<compile_context>
chip_gen: v5e
topology: v5e:2x2
jax: 0.10.0
libtpu: 0.0.40
codegen_flags: <defaults>
</compile_context>

<pallas_src>
import math

import jax
import jax.numpy as jnp
from jax.experimental import pallas as pl
from jax.experimental.pallas import tpu as pltpu


# ---------------------------------------------------------------------------
# S4D SSM kernel (Vandermonde), real arithmetic. Matches S4DKernel.forward:
#   dt = exp(log_dt);  A = -exp(log_A_real) + i*A_imag;  dtA = A * dt
#   C' = C * (exp(dtA) - 1) / A
#   K[h, l] = 2 * Re( sum_n C'[h, n] * exp(dtA[h, n] * l) )
# Parameter-only precompute -> done in the wrapper, not in the Pallas kernel.
# ---------------------------------------------------------------------------
def s4d_ssm_kernel(log_dt, C_re, C_im, log_A_real, A_imag, L):
    dt = jnp.exp(log_dt)[:, None]                       # (H, 1)
    Ar = -jnp.exp(log_A_real)                           # (H, N2)
    Ai = A_imag                                         # (H, N2)
    dtAr, dtAi = Ar * dt, Ai * dt
    mag = jnp.exp(dtAr)
    er = mag * jnp.cos(dtAi) - 1.0                      # Re(exp(dtA) - 1)
    ei = mag * jnp.sin(dtAi)                            # Im(exp(dtA) - 1)
    nr = C_re * er - C_im * ei                          # C * (exp(dtA)-1)
    ni = C_re * ei + C_im * er
    den = Ar * Ar + Ai * Ai
    cpr = (nr * Ar + ni * Ai) / den                     # Re(C')
    cpi = (ni * Ar - nr * Ai) / den                     # Im(C')
    l = jnp.arange(L, dtype=jnp.float32)                # (L,)
    pr = dtAr[:, :, None] * l                           # (H, N2, L)
    ph = dtAi[:, :, None] * l
    K = 2.0 * jnp.sum(
        jnp.exp(pr) * (cpr[:, :, None] * jnp.cos(ph) - cpi[:, :, None] * jnp.sin(ph)),
        axis=1)
    return K                                            # (H, L)


# ---------------------------------------------------------------------------
# Fused Pallas kernel: n_layers x (S4D + residual + LayerNorm) -> decoder.
# One grid step processes a (Bt, L, H) batch block, flattened to (Bt*L, H).
# ---------------------------------------------------------------------------
def _s4_model_kernel(h0_ref, k_ref, dskip_ref, wglu_ref, bglu_ref,
                     gamma_ref, beta_ref, wdec_ref, bdec_ref, out_ref):
    n_layers, L, H = k_ref.shape
    Bt = h0_ref.shape[0]
    M = Bt * L

    # Flatten (Bt, L, H) -> (Bt*L, H): batch rows feed the MXU M dimension.
    h = h0_ref[...].reshape(M, H)

    # Position-in-sequence of every flattened row; hoisted once, reused by all
    # layers/taps (JAX does not CSE broadcast_in_dim, so don't rebuild per tap).
    seqpos = jnp.tile(jax.lax.broadcasted_iota(jnp.int32, (L, H), 0), (Bt, 1))

    for layer in range(n_layers):                       # static unroll (small n_layers)
        u = h                                           # layer input (M, H), f32

        # -- depthwise causal conv: y[b,l,c] = sum_m K[m,c] * u[b,l-m,c], u[<0]=0 --
        # Tap m: roll the flattened slab down by m rows (XLU, in-register) and mask
        # rows with in-sequence position < m (also kills cross-batch wraparound).
        y = u * k_ref[layer, 0:1, :]
        for m in range(1, L):
            shifted = pltpu.roll(u, shift=m, axis=0)
            y = y + jnp.where(seqpos >= m, shifted, 0.0) * k_ref[layer, m:m + 1, :]

        y = y + u * dskip_ref[layer]                    # per-channel D skip
        y = jax.nn.gelu(y)                              # tanh approx (PyTorch: erf, ~1e-3)

        # output_linear: Conv1d(H, 2H, kernel=1) + GLU, bf16 operands on the MXU.
        v = (jnp.dot(y.astype(jnp.bfloat16), wglu_ref[layer],
                     preferred_element_type=jnp.float32)
             + bglu_ref[layer])                         # (M, 2H) f32
        z = v[:, :H] * jax.nn.sigmoid(v[:, H:])

        h = z + u                                       # residual
        # post-norm LayerNorm over d_model (eps = 1e-5), f32
        mean = jnp.mean(h, axis=-1, keepdims=True)
        c = h - mean
        var = jnp.mean(c * c, axis=-1, keepdims=True)
        h = c * jax.lax.rsqrt(var + 1e-5) * gamma_ref[layer] + beta_ref[layer]

    # Decoder, bf16 operands, output padded to a lane-dense 128-wide slab.
    o = (jnp.dot(h.astype(jnp.bfloat16), wdec_ref[...],
                 preferred_element_type=jnp.float32)
         + bdec_ref[...])                               # (M, Dpad)
    out_ref[...] = o.reshape(out_ref.shape)


def _pick_batch_block(B, L, max_rows=512):
    """Largest divisor Bt of B such that M = Bt*L stays modest (VMEM / vreg pressure)
    while keeping >= 2 grid steps when possible (v7x has 2 TensorCores)."""
    best = 1
    for bt in range(1, B + 1):
        if B % bt != 0:
            continue
        if B >= 2 and B // bt < 2:
            continue
        if bt * L > max(max_rows, L):
            continue
        best = bt
    return best


def s4_forward(x, prep, d_output, times=None, batch_block=None):
    """x: (B, L, d_input) float32 -> (B, L, d_output) float32.  `times` unused."""
    del times
    B, L, _ = x.shape
    H = prep["wenc"].shape[1]
    n_layers = prep["k"].shape[0]
    Dpad = prep["wdec"].shape[1]
    assert L % 8 == 0, "time dim must be sublane-aligned for the flattened conv"

    # Encoder hoisted to XLA: contraction depth d_input (e.g. 4) is far too small for
    # an MXU pass and a (L, d_input) tile is lane-sparse; this makes the kernel input
    # lane-dense (B, L, H).
    h0 = (jnp.einsum("bli,ih->blh", x, prep["wenc"],
                     precision=jax.lax.Precision.HIGHEST)
          + prep["benc"]).astype(jnp.float32)

    Bt = batch_block if batch_block is not None else _pick_batch_block(B, L)
    assert B % Bt == 0
    grid = (B // Bt,)

    const2 = lambda shape: pl.BlockSpec(shape, lambda b: (0, 0))
    const3 = lambda shape: pl.BlockSpec(shape, lambda b: (0, 0, 0))

    out = pl.pallas_call(
        _s4_model_kernel,
        out_shape=jax.ShapeDtypeStruct((B, L, Dpad), jnp.float32),
        grid_spec=pltpu.PrefetchScalarGridSpec(
            num_scalar_prefetch=0,
            grid=grid,
            in_specs=[
                pl.BlockSpec((Bt, L, H), lambda b: (b, 0, 0)),         # encoder output
                const3((n_layers, L, H)),                              # SSM kernels K
                const3((n_layers, 1, H)),                              # D skip
                const3((n_layers, H, 2 * H)),                          # GLU weight (bf16)
                const3((n_layers, 1, 2 * H)),                          # GLU bias
                const3((n_layers, 1, H)), const3((n_layers, 1, H)),    # LayerNorm g/b
                const2((H, Dpad)), const2((1, Dpad)),                  # decoder (padded)
            ],
            out_specs=pl.BlockSpec((Bt, L, Dpad), lambda b: (b, 0, 0)),
        ),
        compiler_params=pltpu.CompilerParams(
            dimension_semantics=("parallel",),     # batch blocks are independent
            vmem_limit_bytes=32 * 1024 * 1024,     # explicit; safe on v5e/v6e/v7x
        ),
    )(h0, prep["k"], prep["dskip"], prep["wglu"], prep["bglu"],
      prep["gamma"], prep["beta"], prep["wdec"], prep["bdec"])
    return out[:, :, :d_output]


# ---------------------------------------------------------------------------
# Parameters (PyTorch-style inits) and kernel-ready packing.
# ---------------------------------------------------------------------------
def init_params(key, d_input, d_model, d_output, n_layers, d_state,
                dt_min=0.001, dt_max=0.1):
    H, N2 = d_model, d_state // 2
    keys = iter(jax.random.split(key, 5 * n_layers + 4))
    u = lambda k, shape, s: jax.random.uniform(k, shape, jnp.float32, -s, s)
    params = {
        "wenc": u(next(keys), (d_input, H), 1.0 / math.sqrt(d_input)),
        "benc": u(next(keys), (1, H), 1.0 / math.sqrt(d_input)),
        "wdec": u(next(keys), (H, d_output), 1.0 / math.sqrt(H)),
        "bdec": u(next(keys), (1, d_output), 1.0 / math.sqrt(H)),
        "layers": [],
    }
    for _ in range(n_layers):
        lk = {}
        lk["log_dt"] = (jax.random.uniform(next(keys), (H,), jnp.float32)
                        * (math.log(dt_max) - math.log(dt_min)) + math.log(dt_min))
        C = jax.random.normal(next(keys), (H, N2, 2), jnp.float32) * (2.0 ** -0.5)
        lk["C_re"], lk["C_im"] = C[..., 0], C[..., 1]
        lk["log_A_real"] = jnp.log(0.5 * jnp.ones((H, N2), jnp.float32))
        lk["A_imag"] = math.pi * jnp.broadcast_to(
            jnp.arange(N2, dtype=jnp.float32), (H, N2))
        lk["D"] = jax.random.normal(next(keys), (H,), jnp.float32)
        lk["wglu"] = u(next(keys), (H, 2 * H), 1.0 / math.sqrt(H))
        lk["bglu"] = u(next(keys), (1, 2 * H), 1.0 / math.sqrt(H))
        lk["gamma"] = jnp.ones((1, H), jnp.float32)
        lk["beta"] = jnp.zeros((1, H), jnp.float32)
        params["layers"].append(lk)
    return params


def prepare(params, L):
    """Precompute the S4D kernels, stack per-layer weights (GLU/decoder as bf16),
    pad the decoder output to 128 lanes."""
    H = params["wenc"].shape[1]
    d_output = params["wdec"].shape[1]
    Ks, Ds, Wg, bg, gm, bt = [], [], [], [], [], []
    for lk in params["layers"]:
        K = s4d_ssm_kernel(lk["log_dt"], lk["C_re"], lk["C_im"],
                           lk["log_A_real"], lk["A_imag"], L)        # (H, L)
        Ks.append(K.T)                                               # (L, H), row m = tap m
        Ds.append(lk["D"][None, :])
        Wg.append(lk["wglu"]); bg.append(lk["bglu"])
        gm.append(lk["gamma"]); bt.append(lk["beta"])
    d_pad = max(128, ((d_output + 127) // 128) * 128)
    wdec = jnp.zeros((H, d_pad), jnp.float32).at[:, :d_output].set(params["wdec"])
    bdec = jnp.zeros((1, d_pad), jnp.float32).at[:, :d_output].set(params["bdec"])
    prep = {
        "wenc": params["wenc"], "benc": params["benc"],
        "k": jnp.stack(Ks), "dskip": jnp.stack(Ds),
        "wglu": jnp.stack(Wg).astype(jnp.bfloat16),     # MXU-native operand dtype
        "bglu": jnp.stack(bg),
        "gamma": jnp.stack(gm), "beta": jnp.stack(bt),
        "wdec": wdec.astype(jnp.bfloat16), "bdec": bdec,
    }
    return prep, d_output


# ---------------------------------------------------------------------------
# Pure-JAX reference (mirrors the PyTorch forward, FFT-based conv) for checking.
# ---------------------------------------------------------------------------
def s4_reference(x, params, L):
    hp = jax.lax.Precision.HIGHEST
    h = jnp.einsum("bli,ih->blh", x, params["wenc"], precision=hp) + params["benc"]
    H = h.shape[-1]
    for lk in params["layers"]:
        u = h
        K = s4d_ssm_kernel(lk["log_dt"], lk["C_re"], lk["C_im"],
                           lk["log_A_real"], lk["A_imag"], L)        # (H, L)
        ut = jnp.transpose(u, (0, 2, 1))                             # (B, H, L)
        kf = jnp.fft.rfft(K, n=2 * L)
        uf = jnp.fft.rfft(ut, n=2 * L)
        y = jnp.fft.irfft(uf * kf, n=2 * L)[..., :L]                 # (B, H, L)
        y = jnp.transpose(y, (0, 2, 1))                              # (B, L, H)
        y = y + u * lk["D"][None, None, :]
        y = jax.nn.gelu(y)
        v = jnp.einsum("blh,hc->blc", y, lk["wglu"], precision=hp) + lk["bglu"]
        z = v[..., :H] * jax.nn.sigmoid(v[..., H:])
        h = z + h
        mean = jnp.mean(h, axis=-1, keepdims=True)
        c = h - mean
        var = jnp.mean(c * c, axis=-1, keepdims=True)
        h = c * jax.lax.rsqrt(var + 1e-5) * lk["gamma"] + lk["beta"]
    return jnp.einsum("blh,ho->blo", h, params["wdec"], precision=hp) + params["bdec"]


if __name__ == "__main__":
    # Small shapes consistent with S4Model(d_input, d_output=10, d_model=..., n_layers=4).
    # d_model=128 keeps every tile lane-dense; B=8 lets the wrapper pick Bt=4
    # (M = Bt*L = 64 matmul rows per step) while keeping 2 parallel grid steps.
    B, L = 8, 16
    d_input, d_model, d_state, d_output, n_layers = 4, 128, 64, 10, 4

    key = jax.random.PRNGKey(0)
    kx, kp = jax.random.split(key)
    x = jax.random.normal(kx, (B, L, d_input), jnp.float32)

    params = init_params(kp, d_input, d_model, d_output, n_layers, d_state)
    prep, d_out = prepare(params, L)

    out = s4_forward(x, prep, d_out)
    jax.block_until_ready(out)

    assert out.shape == (B, L, d_output)
    assert out.dtype == jnp.float32

    ref = s4_reference(x, params, L)
    max_err = float(jnp.max(jnp.abs(out - ref)))
    # bf16 MXU operands vs HIGHEST-precision reference => a few e-3 expected.
    assert max_err < 3e-2, f"max abs err {max_err}"

    print("KERNEL_OK")
</pallas_src>

<mosaic_0001>
module attributes {stable_mosaic.version = 11 : i64} {
  func.func @_s4_model_kernel(%arg0: i32, %arg1: memref<4x16x128xf32, #tpu.memory_space<vmem>>, %arg2: memref<4x16x128xf32, #tpu.memory_space<vmem>>, %arg3: memref<4x1x128xf32, #tpu.memory_space<vmem>>, %arg4: memref<4x128x256xbf16, #tpu.memory_space<vmem>>, %arg5: memref<4x1x256xf32, #tpu.memory_space<vmem>>, %arg6: memref<4x1x128xf32, #tpu.memory_space<vmem>>, %arg7: memref<4x1x128xf32, #tpu.memory_space<vmem>>, %arg8: memref<128x128xbf16, #tpu.memory_space<vmem>>, %arg9: memref<1x128xf32, #tpu.memory_space<vmem>>, %arg10: memref<4x16x128xf32, #tpu.memory_space<vmem>>) attributes {dimension_semantics = [#tpu.dimension_semantics<parallel>], iteration_bounds = array<i64: 2>, scalar_prefetch = 0 : i64, scratch_operands = 0 : i64, tpu.core_type = #tpu.core_type<tc>, window_params = [{transform_indices = @transform_0, window_bounds = array<i64: 4, 16, 128>}, {pipeline_mode = #tpu.pipeline_mode<synchronous>, transform_indices = @transform_1, window_bounds = array<i64: 4, 16, 128>}, {pipeline_mode = #tpu.pipeline_mode<synchronous>, transform_indices = @transform_2, window_bounds = array<i64: 4, 1, 128>}, {pipeline_mode = #tpu.pipeline_mode<synchronous>, transform_indices = @transform_3, window_bounds = array<i64: 4, 128, 256>}, {pipeline_mode = #tpu.pipeline_mode<synchronous>, transform_indices = @transform_4, window_bounds = array<i64: 4, 1, 256>}, {pipeline_mode = #tpu.pipeline_mode<synchronous>, transform_indices = @transform_5, window_bounds = array<i64: 4, 1, 128>}, {pipeline_mode = #tpu.pipeline_mode<synchronous>, transform_indices = @transform_6, window_bounds = array<i64: 4, 1, 128>}, {pipeline_mode = #tpu.pipeline_mode<synchronous>, transform_indices = @transform_7, window_bounds = array<i64: 128, 128>}, {pipeline_mode = #tpu.pipeline_mode<synchronous>, transform_indices = @transform_8, window_bounds = array<i64: 1, 128>}, {transform_indices = @transform_9, window_bounds = array<i64: 4, 16, 128>}]} {
    %c0 = arith.constant 0 : index
    %c0_0 = arith.constant 0 : index
    %c0_1 = arith.constant 0 : index
    %0 = vector.load %arg1[%c0, %c0_0, %c0_1] : memref<4x16x128xf32, #tpu.memory_space<vmem>>, vector<4x16x128xf32>
    %1 = vector.shape_cast %0 : vector<4x16x128xf32> to vector<64x128xf32>
    %2 = tpu.iota {dimensions = array<i32: 0>} : vector<16x128xi32>
    %3 = tpu.concatenate %2, %2, %2, %2 in 0 : vector<16x128xi32>, vector<16x128xi32>, vector<16x128xi32>, vector<16x128xi32> -> vector<64x128xi32>
    %c0_2 = arith.constant 0 : index
    %c0_3 = arith.constant 0 : index
    %c0_4 = arith.constant 0 : index
    %4 = vector.load %arg2[%c0_2, %c0_3, %c0_4] : memref<4x16x128xf32, #tpu.memory_space<vmem>>, vector<1x1x128xf32>
    %5 = vector.shape_cast %4 : vector<1x1x128xf32> to vector<1x128xf32>
    %6 = vector.broadcast %5 : vector<1x128xf32> to vector<64x128xf32>
    %7 = arith.mulf %1, %6 : vector<64x128xf32>
    %c1_i32 = arith.constant 1 : i32
    %8 = tpu.dynamic_rotate %1 by %c1_i32 dim 0 : vector<64x128xf32>, i32 -> vector<64x128xf32>
    %c1_i32_5 = arith.constant 1 : i32
    %9 = vector.broadcast %c1_i32_5 : i32 to vector<64x128xi32>
    %10 = arith.cmpi sge, %3, %9 : vector<64x128xi32>
    %cst = arith.constant 0.000000e+00 : f32
    %11 = vector.broadcast %cst : f32 to vector<64x128xf32>
    %12 = arith.select %10, %8, %11 : vector<64x128xi1>, vector<64x128xf32>
    %c0_6 = arith.constant 0 : index
    %c1 = arith.constant 1 : index
    %c0_7 = arith.constant 0 : index
    %13 = vector.load %arg2[%c0_6, %c1, %c0_7] : memref<4x16x128xf32, #tpu.memory_space<vmem>>, vector<1x1x128xf32>
    %14 = vector.shape_cast %13 : vector<1x1x128xf32> to vector<1x128xf32>
    %15 = vector.broadcast %14 : vector<1x128xf32> to vector<64x128xf32>
    %16 = arith.mulf %12, %15 : vector<64x128xf32>
    %17 = arith.addf %7, %16 : vector<64x128xf32>
    %c2_i32 = arith.constant 2 : i32
    %18 = tpu.dynamic_rotate %1 by %c2_i32 dim 0 : vector<64x128xf32>, i32 -> vector<64x128xf32>
    %c2_i32_8 = arith.constant 2 : i32
    %19 = vector.broadcast %c2_i32_8 : i32 to vector<64x128xi32>
    %20 = arith.cmpi sge, %3, %19 : vector<64x128xi32>
    %cst_9 = arith.constant 0.000000e+00 : f32
    %21 = vector.broadcast %cst_9 : f32 to vector<64x128xf32>
    %22 = arith.select %20, %18, %21 : vector<64x128xi1>, vector<64x128xf32>
    %c0_10 = arith.constant 0 : index
    %c2 = arith.constant 2 : index
    %c0_11 = arith.constant 0 : index
    %23 = vector.load %arg2[%c0_10, %c2, %c0_11] : memref<4x16x128xf32, #tpu.memory_space<vmem>>, vector<1x1x128xf32>
    %24 = vector.shape_cast %23 : vector<1x1x128xf32> to vector<1x128xf32>
    %25 = vector.broadcast %24 : vector<1x128xf32> to vector<64x128xf32>
    %26 = arith.mulf %22, %25 : vector<64x128xf32>
    %27 = arith.addf %17, %26 : vector<64x128xf32>
    %c3_i32 = arith.constant 3 : i32
    %28 = tpu.dynamic_rotate %1 by %c3_i32 dim 0 : vector<64x128xf32>, i32 -> vector<64x128xf32>
    %c3_i32_12 = arith.constant 3 : i32
    %29 = vector.broadcast %c3_i32_12 : i32 to vector<64x128xi32>
    %30 = arith.cmpi sge, %3, %29 : vector<64x128xi32>
    %cst_13 = arith.constant 0.000000e+00 : f32
    %31 = vector.broadcast %cst_13 : f32 to vector<64x128xf32>
    %32 = arith.select %30, %28, %31 : vector<64x128xi1>, vector<64x128xf32>
    %c0_14 = arith.constant 0 : index
    %c3 = arith.constant 3 : index
    %c0_15 = arith.constant 0 : index
    %33 = vector.load %arg2[%c0_14, %c3, %c0_15] : memref<4x16x128xf32, #tpu.memory_space<vmem>>, vector<1x1x128xf32>
    %34 = vector.shape_cast %33 : vector<1x1x128xf32> to vector<1x128xf32>
    %35 = vector.broadcast %34 : vector<1x128xf32> to vector<64x128xf32>
    %36 = arith.mulf %32, %35 : vector<64x128xf32>
    %37 = arith.addf %27, %36 : vector<64x128xf32>
    %c4_i32 = arith.constant 4 : i32
    %38 = tpu.dynamic_rotate %1 by %c4_i32 dim 0 : vector<64x128xf32>, i32 -> vector<64x128xf32>
    %c4_i32_16 = arith.constant 4 : i32
    %39 = vector.broadcast %c4_i32_16 : i32 to vector<64x128xi32>
    %40 = arith.cmpi sge, %3, %39 : vector<64x128xi32>
    %cst_17 = arith.constant 0.000000e+00 : f32
    %41 = vector.broadcast %cst_17 : f32 to vector<64x128xf32>
    %42 = arith.select %40, %38, %41 : vector<64x128xi1>, vector<64x128xf32>
    %c0_18 = arith.constant 0 : index
    %c4 = arith.constant 4 : index
    %c0_19 = arith.constant 0 : index
    %43 = vector.load %arg2[%c0_18, %c4, %c0_19] : memref<4x16x128xf32, #tpu.memory_space<vmem>>, vector<1x1x128xf32>
    %44 = vector.shape_cast %43 : vector<1x1x128xf32> to vector<1x128xf32>
    %45 = vector.broadcast %44 : vector<1x128xf32> to vector<64x128xf32>
    %46 = arith.mulf %42, %45 : vector<64x128xf32>
    %47 = arith.addf %37, %46 : vector<64x128xf32>
    %c5_i32 = arith.constant 5 : i32
    %48 = tpu.dynamic_rotate %1 by %c5_i32 dim 0 : vector<64x128xf32>, i32 -> vector<64x128xf32>
    %c5_i32_20 = arith.constant 5 : i32
    %49 = vector.broadcast %c5_i32_20 : i32 to vector<64x128xi32>
    %50 = arith.cmpi sge, %3, %49 : vector<64x128xi32>
    %cst_21 = arith.constant 0.000000e+00 : f32
    %51 = vector.broadcast %cst_21 : f32 to vector<64x128xf32>
    %52 = arith.select %50, %48, %51 : vector<64x128xi1>, vector<64x128xf32>
    %c0_22 = arith.constant 0 : index
    %c5 = arith.constant 5 : index
    %c0_23 = arith.constant 0 : index
    %53 = vector.load %arg2[%c0_22, %c5, %c0_23] : memref<4x16x128xf32, #tpu.memory_space<vmem>>, vector<1x1x128xf32>
    %54 = vector.shape_cast %53 : vector<1x1x128xf32> to vector<1x128xf32>
    %55 = vector.broadcast %54 : vector<1x128xf32> to vector<64x128xf32>
    %56 = arith.mulf %52, %55 : vector<64x128xf32>
    %57 = arith.addf %47, %56 : vector<64x128xf32>
    %c6_i32 = arith.constant 6 : i32
    %58 = tpu.dynamic_rotate %1 by %c6_i32 dim 0 : vector<64x128xf32>, i32 -> vector<64x128xf32>
    %c6_i32_24 = arith.constant 6 : i32
    %59 = vector.broadcast %c6_i32_24 : i32 to vector<64x128xi32>
    %60 = arith.cmpi sge, %3, %59 : vector<64x128xi32>
    %cst_25 = arith.constant 0.000000e+00 : f32
    %61 = vector.broadcast %cst_25 : f32 to vector<64x128xf32>
    %62 = arith.select %60, %58, %61 : vector<64x128xi1>, vector<64x128xf32>
    %c0_26 = arith.constant 0 : index
    %c6 = arith.constant 6 : index
    %c0_27 = arith.constant 0 : index
    %63 = vector.load %arg2[%c0_26, %c6, %c0_27] : memref<4x16x128xf32, #tpu.memory_space<vmem>>, vector<1x1x128xf32>
    %64 = vector.shape_cast %63 : vector<1x1x128xf32> to vector<1x128xf32>
    %65 = vector.broadcast %64 : vector<1x128xf32> to vector<64x128xf32>
    %66 = arith.mulf %62, %65 : vector<64x128xf32>
    %67 = arith.addf %57, %66 : vector<64x128xf32>
    %c7_i32 = arith.constant 7 : i32
    %68 = tpu.dynamic_rotate %1 by %c7_i32 dim 0 : vector<64x128xf32>, i32 -> vector<64x128xf32>
    %c7_i32_28 = arith.constant 7 : i32
    %69 = vector.broadcast %c7_i32_28 : i32 to vector<64x128xi32>
    %70 = arith.cmpi sge, %3, %69 : vector<64x128xi32>
    %cst_29 = arith.constant 0.000000e+00 : f32
    %71 = vector.broadcast %cst_29 : f32 to vector<64x128xf32>
    %72 = arith.select %70, %68, %71 : vector<64x128xi1>, vector<64x128xf32>
    %c0_30 = arith.constant 0 : index
    %c7 = arith.constant 7 : index
    %c0_31 = arith.constant 0 : index
    %73 = vector.load %arg2[%c0_30, %c7, %c0_31] : memref<4x16x128xf32, #tpu.memory_space<vmem>>, vector<1x1x128xf32>
    %74 = vector.shape_cast %73 : vector<1x1x128xf32> to vector<1x128xf32>
    %75 = vector.broadcast %74 : vector<1x128xf32> to vector<64x128xf32>
    %76 = arith.mulf %72, %75 : vector<64x128xf32>
    %77 = arith.addf %67, %76 : vector<64x128xf32>
    %c8_i32 = arith.constant 8 : i32
    %78 = tpu.dynamic_rotate %1 by %c8_i32 dim 0 : vector<64x128xf32>, i32 -> vector<64x128xf32>
    %c8_i32_32 = arith.constant 8 : i32
    %79 = vector.broadcast %c8_i32_32 : i32 to vector<64x128xi32>
    %80 = arith.cmpi sge, %3, %79 : vector<64x128xi32>
    %cst_33 = arith.constant 0.000000e+00 : f32
    %81 = vector.broadcast %cst_33 : f32 to vector<64x128xf32>
    %82 = arith.select %80, %78, %81 : vector<64x128xi1>, vector<64x128xf32>
    %c0_34 = arith.constant 0 : index
    %c8 = arith.constant 8 : index
    %c0_35 = arith.constant 0 : index
    %83 = vector.load %arg2[%c0_34, %c8, %c0_35] : memref<4x16x128xf32, #tpu.memory_space<vmem>>, vector<1x1x128xf32>
    %84 = vector.shape_cast %83 : vector<1x1x128xf32> to vector<1x128xf32>
    %85 = vector.broadcast %84 : vector<1x128xf32> to vector<64x128xf32>
    %86 = arith.mulf %82, %85 : vector<64x128xf32>
    %87 = arith.addf %77, %86 : vector<64x128xf32>
    %c9_i32 = arith.constant 9 : i32
    %88 = tpu.dynamic_rotate %1 by %c9_i32 dim 0 : vector<64x128xf32>, i32 -> vector<64x128xf32>
    %c9_i32_36 = arith.constant 9 : i32
    %89 = vector.broadcast %c9_i32_36 : i32 to vector<64x128xi32>
    %90 = arith.cmpi sge, %3, %89 : vector<64x128xi32>
    %cst_37 = arith.constant 0.000000e+00 : f32
    %91 = vector.broadcast %cst_37 : f32 to vector<64x128xf32>
    %92 = arith.select %90, %88, %91 : vector<64x128xi1>, vector<64x128xf32>
    %c0_38 = arith.constant 0 : index
    %c9 = arith.constant 9 : index
    %c0_39 = arith.constant 0 : index
    %93 = vector.load %arg2[%c0_38, %c9, %c0_39] : memref<4x16x128xf32, #tpu.memory_space<vmem>>, vector<1x1x128xf32>
    %94 = vector.shape_cast %93 : vector<1x1x128xf32> to vector<1x128xf32>
    %95 = vector.broadcast %94 : vector<1x128xf32> to vector<64x128xf32>
    %96 = arith.mulf %92, %95 : vector<64x128xf32>
    %97 = arith.addf %87, %96 : vector<64x128xf32>
    %c10_i32 = arith.constant 10 : i32
    %98 = tpu.dynamic_rotate %1 by %c10_i32 dim 0 : vector<64x128xf32>, i32 -> vector<64x128xf32>
    %c10_i32_40 = arith.constant 10 : i32
    %99 = vector.broadcast %c10_i32_40 : i32 to vector<64x128xi32>
    %100 = arith.cmpi sge, %3, %99 : vector<64x128xi32>
    %cst_41 = arith.constant 0.000000e+00 : f32
    %101 = vector.broadcast %cst_41 : f32 to vector<64x128xf32>
    %102 = arith.select %100, %98, %101 : vector<64x128xi1>, vector<64x128xf32>
    %c0_42 = arith.constant 0 : index
    %c10 = arith.constant 10 : index
    %c0_43 = arith.constant 0 : index
    %103 = vector.load %arg2[%c0_42, %c10, %c0_43] : memref<4x16x128xf32, #tpu.memory_space<vmem>>, vector<1x1x128xf32>
    %104 = vector.shape_cast %103 : vector<1x1x128xf32> to vector<1x128xf32>
    %105 = vector.broadcast %104 : vector<1x128xf32> to vector<64x128xf32>
    %106 = arith.mulf %102, %105 : vector<64x128xf32>
    %107 = arith.addf %97, %106 : vector<64x128xf32>
    %c11_i32 = arith.constant 11 : i32
    %108 = tpu.dynamic_rotate %1 by %c11_i32 dim 0 : vector<64x128xf32>, i32 -> vector<64x128xf32>
    %c11_i32_44 = arith.constant 11 : i32
    %109 = vector.broadcast %c11_i32_44 : i32 to vector<64x128xi32>
    %110 = arith.cmpi sge, %3, %109 : vector<64x128xi32>
    %cst_45 = arith.constant 0.000000e+00 : f32
    %111 = vector.broadcast %cst_45 : f32 to vector<64x128xf32>
    %112 = arith.select %110, %108, %111 : vector<64x128xi1>, vector<64x128xf32>
    %c0_46 = arith.constant 0 : index
    %c11 = arith.constant 11 : index
    %c0_47 = arith.constant 0 : index
    %113 = vector.load %arg2[%c0_46, %c11, %c0_47] : memref<4x16x128xf32, #tpu.memory_space<vmem>>, vector<1x1x128xf32>
    %114 = vector.shape_cast %113 : vector<1x1x128xf32> to vector<1x128xf32>
    %115 = vector.broadcast %114 : vector<1x128xf32> to vector<64x128xf32>
    %116 = arith.mulf %112, %115 : vector<64x128xf32>
    %117 = arith.addf %107, %116 : vector<64x128xf32>
    %c12_i32 = arith.constant 12 : i32
    %118 = tpu.dynamic_rotate %1 by %c12_i32 dim 0 : vector<64x128xf32>, i32 -> vector<64x128xf32>
    %c12_i32_48 = arith.constant 12 : i32
    %119 = vector.broadcast %c12_i32_48 : i32 to vector<64x128xi32>
    %120 = arith.cmpi sge, %3, %119 : vector<64x128xi32>
    %cst_49 = arith.constant 0.000000e+00 : f32
    %121 = vector.broadcast %cst_49 : f32 to vector<64x128xf32>
    %122 = arith.select %120, %118, %121 : vector<64x128xi1>, vector<64x128xf32>
    %c0_50 = arith.constant 0 : index
    %c12 = arith.constant 12 : index
    %c0_51 = arith.constant 0 : index
    %123 = vector.load %arg2[%c0_50, %c12, %c0_51] : memref<4x16x128xf32, #tpu.memory_space<vmem>>, vector<1x1x128xf32>
    %124 = vector.shape_cast %123 : vector<1x1x128xf32> to vector<1x128xf32>
    %125 = vector.broadcast %124 : vector<1x128xf32> to vector<64x128xf32>
    %126 = arith.mulf %122, %125 : vector<64x128xf32>
    %127 = arith.addf %117, %126 : vector<64x128xf32>
    %c13_i32 = arith.constant 13 : i32
    %128 = tpu.dynamic_rotate %1 by %c13_i32 dim 0 : vector<64x128xf32>, i32 -> vector<64x128xf32>
    %c13_i32_52 = arith.constant 13 : i32
    %129 = vector.broadcast %c13_i32_52 : i32 to vector<64x128xi32>
    %130 = arith.cmpi sge, %3, %129 : vector<64x128xi32>
    %cst_53 = arith.constant 0.000000e+00 : f32
    %131 = vector.broadcast %cst_53 : f32 to vector<64x128xf32>
    %132 = arith.select %130, %128, %131 : vector<64x128xi1>, vector<64x128xf32>
    %c0_54 = arith.constant 0 : index
    %c13 = arith.constant 13 : index
    %c0_55 = arith.constant 0 : index
    %133 = vector.load %arg2[%c0_54, %c13, %c0_55] : memref<4x16x128xf32, #tpu.memory_space<vmem>>, vector<1x1x128xf32>
    %134 = vector.shape_cast %133 : vector<1x1x128xf32> to vector<1x128xf32>
    %135 = vector.broadcast %134 : vector<1x128xf32> to vector<64x128xf32>
    %136 = arith.mulf %132, %135 : vector<64x128xf32>
    %137 = arith.addf %127, %136 : vector<64x128xf32>
    %c14_i32 = arith.constant 14 : i32
    %138 = tpu.dynamic_rotate %1 by %c14_i32 dim 0 : vector<64x128xf32>, i32 -> vector<64x128xf32>
    %c14_i32_56 = arith.constant 14 : i32
    %139 = vector.broadcast %c14_i32_56 : i32 to vector<64x128xi32>
    %140 = arith.cmpi sge, %3, %139 : vector<64x128xi32>
    %cst_57 = arith.constant 0.000000e+00 : f32
    %141 = vector.broadcast %cst_57 : f32 to vector<64x128xf32>
    %142 = arith.select %140, %138, %141 : vector<64x128xi1>, vector<64x128xf32>
    %c0_58 = arith.constant 0 : index
    %c14 = arith.constant 14 : index
    %c0_59 = arith.constant 0 : index
    %143 = vector.load %arg2[%c0_58, %c14, %c0_59] : memref<4x16x128xf32, #tpu.memory_space<vmem>>, vector<1x1x128xf32>
    %144 = vector.shape_cast %143 : vector<1x1x128xf32> to vector<1x128xf32>
    %145 = vector.broadcast %144 : vector<1x128xf32> to vector<64x128xf32>
    %146 = arith.mulf %142, %145 : vector<64x128xf32>
    %147 = arith.addf %137, %146 : vector<64x128xf32>
    %c15_i32 = arith.constant 15 : i32
    %148 = tpu.dynamic_rotate %1 by %c15_i32 dim 0 : vector<64x128xf32>, i32 -> vector<64x128xf32>
    %c15_i32_60 = arith.constant 15 : i32
    %149 = vector.broadcast %c15_i32_60 : i32 to vector<64x128xi32>
    %150 = arith.cmpi sge, %3, %149 : vector<64x128xi32>
    %cst_61 = arith.constant 0.000000e+00 : f32
    %151 = vector.broadcast %cst_61 : f32 to vector<64x128xf32>
    %152 = arith.select %150, %148, %151 : vector<64x128xi1>, vector<64x128xf32>
    %c0_62 = arith.constant 0 : index
    %c15 = arith.constant 15 : index
    %c0_63 = arith.constant 0 : index
    %153 = vector.load %arg2[%c0_62, %c15, %c0_63] : memref<4x16x128xf32, #tpu.memory_space<vmem>>, vector<1x1x128xf32>
    %154 = vector.shape_cast %153 : vector<1x1x128xf32> to vector<1x128xf32>
    %155 = vector.broadcast %154 : vector<1x128xf32> to vector<64x128xf32>
    %156 = arith.mulf %152, %155 : vector<64x128xf32>
    %157 = arith.addf %147, %156 : vector<64x128xf32>
    %c0_64 = arith.constant 0 : index
    %c0_65 = arith.constant 0 : index
    %c0_66 = arith.constant 0 : index
    %158 = vector.load %arg3[%c0_64, %c0_65, %c0_66] : memref<4x1x128xf32, #tpu.memory_space<vmem>>, vector<1x1x128xf32>
    %159 = vector.shape_cast %158 : vector<1x1x128xf32> to vector<1x128xf32>
    %160 = vector.broadcast %159 : vector<1x128xf32> to vector<64x128xf32>
    %161 = arith.mulf %1, %160 : vector<64x128xf32>
    %162 = arith.addf %157, %161 : vector<64x128xf32>
    %163 = arith.mulf %162, %162 : vector<64x128xf32>
    %164 = arith.mulf %162, %163 : vector<64x128xf32>
    %cst_67 = arith.constant 4.471500e-02 : f32
    %165 = vector.broadcast %cst_67 : f32 to vector<64x128xf32>
    %166 = arith.mulf %165, %164 : vector<64x128xf32>
    %167 = arith.addf %162, %166 : vector<64x128xf32>
    %cst_68 = arith.constant 0.797884583 : f32
    %168 = vector.broadcast %cst_68 : f32 to vector<64x128xf32>
    %169 = arith.mulf %168, %167 : vector<64x128xf32>
    %170 = math.tanh %169 : vector<64x128xf32>
    %cst_69 = arith.constant 1.000000e+00 : f32
    %171 = vector.broadcast %cst_69 : f32 to vector<64x128xf32>
    %172 = arith.addf %171, %170 : vector<64x128xf32>
    %cst_70 = arith.constant 5.000000e-01 : f32
    %173 = vector.broadcast %cst_70 : f32 to vector<64x128xf32>
    %174 = arith.mulf %173, %172 : vector<64x128xf32>
    %175 = arith.mulf %162, %174 : vector<64x128xf32>
    %176 = arith.truncf %175 : vector<64x128xf32> to vector<64x128xbf16>
    %c0_71 = arith.constant 0 : index
    %c0_72 = arith.constant 0 : index
    %c0_73 = arith.constant 0 : index
    %177 = vector.load %arg4[%c0_71, %c0_72, %c0_73] : memref<4x128x256xbf16, #tpu.memory_space<vmem>>, vector<1x128x256xbf16>
    %178 = vector.shape_cast %177 : vector<1x128x256xbf16> to vector<128x256xbf16>
    %cst_74 = arith.constant dense<0.000000e+00> : vector<64x256xf32>
    %179 = tpu.matmul %176, %178, %cst_74 {dimension_numbers = #tpu.dot_dimension_numbers<[1], [0], [0], [1], [0, 0, 1, 1], [], []>} : vector<64x128xbf16>, vector<128x256xbf16>, vector<64x256xf32> -> vector<64x256xf32>
    %c0_75 = arith.constant 0 : index
    %c0_76 = arith.constant 0 : index
    %c0_77 = arith.constant 0 : index
    %180 = vector.load %arg5[%c0_75, %c0_76, %c0_77] : memref<4x1x256xf32, #tpu.memory_space<vmem>>, vector<1x1x256xf32>
    %181 = vector.shape_cast %180 : vector<1x1x256xf32> to vector<1x256xf32>
    %182 = vector.broadcast %181 : vector<1x256xf32> to vector<64x256xf32>
    %183 = arith.addf %179, %182 : vector<64x256xf32>
    %184 = vector.extract_strided_slice %183 {offsets = [0, 0], sizes = [64, 128], strides = [1, 1]} : vector<64x256xf32> to vector<64x128xf32>
    %185 = vector.extract_strided_slice %183 {offsets = [0, 128], sizes = [64, 128], strides = [1, 1]} : vector<64x256xf32> to vector<64x128xf32>
    %186 = arith.negf %185 : vector<64x128xf32>
    %187 = math.exp %186 : vector<64x128xf32>
    %cst_78 = arith.constant 1.000000e+00 : f32
    %188 = vector.broadcast %cst_78 : f32 to vector<64x128xf32>
    %189 = arith.addf %188, %187 : vector<64x128xf32>
    %190 = arith.divf %188, %189 : vector<64x128xf32>
    %191 = arith.mulf %184, %190 : vector<64x128xf32>
    %192 = arith.addf %191, %1 : vector<64x128xf32>
    %cst_79 = arith.constant dense<0.000000e+00> : vector<64xf32>
    %193 = vector.multi_reduction <add>, %192, %cst_79 [1] : vector<64x128xf32> to vector<64xf32>
    %194 = vector.shape_cast %193 : vector<64xf32> to vector<64x1xf32>
    %cst_80 = arith.constant 1.280000e+02 : f32
    %195 = vector.broadcast %cst_80 : f32 to vector<64x1xf32>
    %196 = arith.divf %194, %195 : vector<64x1xf32>
    %197 = vector.broadcast %196 : vector<64x1xf32> to vector<64x128xf32>
    %198 = arith.subf %192, %197 : vector<64x128xf32>
    %199 = arith.mulf %198, %198 : vector<64x128xf32>
    %cst_81 = arith.constant dense<0.000000e+00> : vector<64xf32>
    %200 = vector.multi_reduction <add>, %199, %cst_81 [1] : vector<64x128xf32> to vector<64xf32>
    %201 = vector.shape_cast %200 : vector<64xf32> to vector<64x1xf32>
    %cst_82 = arith.constant 1.280000e+02 : f32
    %202 = vector.broadcast %cst_82 : f32 to vector<64x1xf32>
    %203 = arith.divf %201, %202 : vector<64x1xf32>
    %cst_83 = arith.constant 9.99999974E-6 : f32
    %204 = vector.broadcast %cst_83 : f32 to vector<64x1xf32>
    %205 = arith.addf %203, %204 : vector<64x1xf32>
    %206 = math.rsqrt %205 : vector<64x1xf32>
    %207 = vector.broadcast %206 : vector<64x1xf32> to vector<64x128xf32>
    %208 = arith.mulf %198, %207 : vector<64x128xf32>
    %c0_84 = arith.constant 0 : index
    %c0_85 = arith.constant 0 : index
    %c0_86 = arith.constant 0 : index
    %209 = vector.load %arg6[%c0_84, %c0_85, %c0_86] : memref<4x1x128xf32, #tpu.memory_space<vmem>>, vector<1x1x128xf32>
    %210 = vector.shape_cast %209 : vector<1x1x128xf32> to vector<1x128xf32>
    %211 = vector.broadcast %210 : vector<1x128xf32> to vector<64x128xf32>
    %212 = arith.mulf %208, %211 : vector<64x128xf32>
    %c0_87 = arith.constant 0 : index
    %c0_88 = arith.constant 0 : index
    %c0_89 = arith.constant 0 : index
    %213 = vector.load %arg7[%c0_87, %c0_88, %c0_89] : memref<4x1x128xf32, #tpu.memory_space<vmem>>, vector<1x1x128xf32>
    %214 = vector.shape_cast %213 : vector<1x1x128xf32> to vector<1x128xf32>
    %215 = vector.broadcast %214 : vector<1x128xf32> to vector<64x128xf32>
    %216 = arith.addf %212, %215 : vector<64x128xf32>
    %c1_90 = arith.constant 1 : index
    %c0_91 = arith.constant 0 : index
    %c0_92 = arith.constant 0 : index
    %217 = vector.load %arg2[%c1_90, %c0_91, %c0_92] : memref<4x16x128xf32, #tpu.memory_space<vmem>>, vector<1x1x128xf32>
    %218 = vector.shape_cast %217 : vector<1x1x128xf32> to vector<1x128xf32>
    %219 = vector.broadcast %218 : vector<1x128xf32> to vector<64x128xf32>
    %220 = arith.mulf %216, %219 : vector<64x128xf32>
    %c1_i32_93 = arith.constant 1 : i32
    %221 = tpu.dynamic_rotate %216 by %c1_i32_93 dim 0 : vector<64x128xf32>, i32 -> vector<64x128xf32>
    %c1_i32_94 = arith.constant 1 : i32
    %222 = vector.broadcast %c1_i32_94 : i32 to vector<64x128xi32>
    %223 = arith.cmpi sge, %3, %222 : vector<64x128xi32>
    %cst_95 = arith.constant 0.000000e+00 : f32
    %224 = vector.broadcast %cst_95 : f32 to vector<64x128xf32>
    %225 = arith.select %223, %221, %224 : vector<64x128xi1>, vector<64x128xf32>
    %c1_96 = arith.constant 1 : index
    %c1_97 = arith.constant 1 : index
    %c0_98 = arith.constant 0 : index
    %226 = vector.load %arg2[%c1_96, %c1_97, %c0_98] : memref<4x16x128xf32, #tpu.memory_space<vmem>>, vector<1x1x128xf32>
    %227 = vector.shape_cast %226 : vector<1x1x128xf32> to vector<1x128xf32>
    %228 = vector.broadcast %227 : vector<1x128xf32> to vector<64x128xf32>
    %229 = arith.mulf %225, %228 : vector<64x128xf32>
    %230 = arith.addf %220, %229 : vector<64x128xf32>
    %c2_i32_99 = arith.constant 2 : i32
    %231 = tpu.dynamic_rotate %216 by %c2_i32_99 dim 0 : vector<64x128xf32>, i32 -> vector<64x128xf32>
    %c2_i32_100 = arith.constant 2 : i32
    %232 = vector.broadcast %c2_i32_100 : i32 to vector<64x128xi32>
    %233 = arith.cmpi sge, %3, %232 : vector<64x128xi32>
    %cst_101 = arith.constant 0.000000e+00 : f32
    %234 = vector.broadcast %cst_101 : f32 to vector<64x128xf32>
    %235 = arith.select %233, %231, %234 : vector<64x128xi1>, vector<64x128xf32>
    %c1_102 = arith.constant 1 : index
    %c2_103 = arith.constant 2 : index
    %c0_104 = arith.constant 0 : index
    %236 = vector.load %arg2[%c1_102, %c2_103, %c0_104] : memref<4x16x128xf32, #tpu.memory_space<vmem>>, vector<1x1x128xf32>
    %237 = vector.shape_cast %236 : vector<1x1x128xf32> to vector<1x128xf32>
    %238 = vector.broadcast %237 : vector<1x128xf32> to vector<64x128xf32>
    %239 = arith.mulf %235, %238 : vector<64x128xf32>
    %240 = arith.addf %230, %239 : vector<64x128xf32>
    %c3_i32_105 = arith.constant 3 : i32
    %241 = tpu.dynamic_rotate %216 by %c3_i32_105 dim 0 : vector<64x128xf32>, i32 -> vector<64x128xf32>
    %c3_i32_106 = arith.constant 3 : i32
    %242 = vector.broadcast %c3_i32_106 : i32 to vector<64x128xi32>
    %243 = arith.cmpi sge, %3, %242 : vector<64x128xi32>
    %cst_107 = arith.constant 0.000000e+00 : f32
    %244 = vector.broadcast %cst_107 : f32 to vector<64x128xf32>
    %245 = arith.select %243, %241, %244 : vector<64x128xi1>, vector<64x128xf32>
    %c1_108 = arith.constant 1 : index
    %c3_109 = arith.constant 3 : index
    %c0_110 = arith.constant 0 : index
    %246 = vector.load %arg2[%c1_108, %c3_109, %c0_110] : memref<4x16x128xf32, #tpu.memory_space<vmem>>, vector<1x1x128xf32>
    %247 = vector.shape_cast %246 : vector<1x1x128xf32> to vector<1x128xf32>
    %248 = vector.broadcast %247 : vector<1x128xf32> to vector<64x128xf32>
    %249 = arith.mulf %245, %248 : vector<64x128xf32>
    %250 = arith.addf %240, %249 : vector<64x128xf32>
    %c4_i32_111 = arith.constant 4 : i32
    %251 = tpu.dynamic_rotate %216 by %c4_i32_111 dim 0 : vector<64x128xf32>, i32 -> vector<64x128xf32>
    %c4_i32_112 = arith.constant 4 : i32
    %252 = vector.broadcast %c4_i32_112 : i32 to vector<64x128xi32>
    %253 = arith.cmpi sge, %3, %252 : vector<64x128xi32>
    %cst_113 = arith.constant 0.000000e+00 : f32
    %254 = vector.broadcast %cst_113 : f32 to vector<64x128xf32>
    %255 = arith.select %253, %251, %254 : vector<64x128xi1>, vector<64x128xf32>
    %c1_114 = arith.constant 1 : index
    %c4_115 = arith.constant 4 : index
    %c0_116 = arith.constant 0 : index
    %256 = vector.load %arg2[%c1_114, %c4_115, %c0_116] : memref<4x16x128xf32, #tpu.memory_space<vmem>>, vector<1x1x128xf32>
    %257 = vector.shape_cast %256 : vector<1x1x128xf32> to vector<1x128xf32>
    %258 = vector.broadcast %257 : vector<1x128xf32> to vector<64x128xf32>
    %259 = arith.mulf %255, %258 : vector<64x128xf32>
    %260 = arith.addf %250, %259 : vector<64x128xf32>
    %c5_i32_117 = arith.constant 5 : i32
    %261 = tpu.dynamic_rotate %216 by %c5_i32_117 dim 0 : vector<64x128xf32>, i32 -> vector<64x128xf32>
    %c5_i32_118 = arith.constant 5 : i32
    %262 = vector.broadcast %c5_i32_118 : i32 to vector<64x128xi32>
    %263 = arith.cmpi sge, %3, %262 : vector<64x128xi32>
    %cst_119 = arith.constant 0.000000e+00 : f32
    %264 = vector.broadcast %cst_119 : f32 to vector<64x128xf32>
    %265 = arith.select %263, %261, %264 : vector<64x128xi1>, vector<64x128xf32>
    %c1_120 = arith.constant 1 : index
    %c5_121 = arith.constant 5 : index
    %c0_122 = arith.constant 0 : index
    %266 = vector.load %arg2[%c1_120, %c5_121, %c0_122] : memref<4x16x128xf32, #tpu.memory_space<vmem>>, vector<1x1x128xf32>
    %267 = vector.shape_cast %266 : vector<1x1x128xf32> to vector<1x128xf32>
    %268 = vector.broadcast %267 : vector<1x128xf32> to vector<64x128xf32>
    %269 = arith.mulf %265, %268 : vector<64x128xf32>
    %270 = arith.addf %260, %269 : vector<64x128xf32>
    %c6_i32_123 = arith.constant 6 : i32
    %271 = tpu.dynamic_rotate %216 by %c6_i32_123 dim 0 : vector<64x128xf32>, i32 -> vector<64x128xf32>
    %c6_i32_124 = arith.constant 6 : i32
    %272 = vector.broadcast %c6_i32_124 : i32 to vector<64x128xi32>
    %273 = arith.cmpi sge, %3, %272 : vector<64x128xi32>
    %cst_125 = arith.constant 0.000000e+00 : f32
    %274 = vector.broadcast %cst_125 : f32 to vector<64x128xf32>
    %275 = arith.select %273, %271, %274 : vector<64x128xi1>, vector<64x128xf32>
    %c1_126 = arith.constant 1 : index
    %c6_127 = arith.constant 6 : index
    %c0_128 = arith.constant 0 : index
    %276 = vector.load %arg2[%c1_126, %c6_127, %c0_128] : memref<4x16x128xf32, #tpu.memory_space<vmem>>, vector<1x1x128xf32>
    %277 = vector.shape_cast %276 : vector<1x1x128xf32> to vector<1x128xf32>
    %278 = vector.broadcast %277 : vector<1x128xf32> to vector<64x128xf32>
    %279 = arith.mulf %275, %278 : vector<64x128xf32>
    %280 = arith.addf %270, %279 : vector<64x128xf32>
    %c7_i32_129 = arith.constant 7 : i32
    %281 = tpu.dynamic_rotate %216 by %c7_i32_129 dim 0 : vector<64x128xf32>, i32 -> vector<64x128xf32>
    %c7_i32_130 = arith.constant 7 : i32
    %282 = vector.broadcast %c7_i32_130 : i32 to vector<64x128xi32>
    %283 = arith.cmpi sge, %3, %282 : vector<64x128xi32>
    %cst_131 = arith.constant 0.000000e+00 : f32
    %284 = vector.broadcast %cst_131 : f32 to vector<64x128xf32>
    %285 = arith.select %283, %281, %284 : vector<64x128xi1>, vector<64x128xf32>
    %c1_132 = arith.constant 1 : index
    %c7_133 = arith.constant 7 : index
    %c0_134 = arith.constant 0 : index
    %286 = vector.load %arg2[%c1_132, %c7_133, %c0_134] : memref<4x16x128xf32, #tpu.memory_space<vmem>>, vector<1x1x128xf32>
    %287 = vector.shape_cast %286 : vector<1x1x128xf32> to vector<1x128xf32>
    %288 = vector.broadcast %287 : vector<1x128xf32> to vector<64x128xf32>
    %289 = arith.mulf %285, %288 : vector<64x128xf32>
    %290 = arith.addf %280, %289 : vector<64x128xf32>
    %c8_i32_135 = arith.constant 8 : i32
    %291 = tpu.dynamic_rotate %216 by %c8_i32_135 dim 0 : vector<64x128xf32>, i32 -> vector<64x128xf32>
    %c8_i32_136 = arith.constant 8 : i32
    %292 = vector.broadcast %c8_i32_136 : i32 to vector<64x128xi32>
    %293 = arith.cmpi sge, %3, %292 : vector<64x128xi32>
    %cst_137 = arith.constant 0.000000e+00 : f32
    %294 = vector.broadcast %cst_137 : f32 to vector<64x128xf32>
    %295 = arith.select %293, %291, %294 : vector<64x128xi1>, vector<64x128xf32>
    %c1_138 = arith.constant 1 : index
    %c8_139 = arith.constant 8 : index
    %c0_140 = arith.constant 0 : index
    %296 = vector.load %arg2[%c1_138, %c8_139, %c0_140] : memref<4x16x128xf32, #tpu.memory_space<vmem>>, vector<1x1x128xf32>
    %297 = vector.shape_cast %296 : vector<1x1x128xf32> to vector<1x128xf32>
    %298 = vector.broadcast %297 : vector<1x128xf32> to vector<64x128xf32>
    %299 = arith.mulf %295, %298 : vector<64x128xf32>
    %300 = arith.addf %290, %299 : vector<64x128xf32>
    %c9_i32_141 = arith.constant 9 : i32
    %301 = tpu.dynamic_rotate %216 by %c9_i32_141 dim 0 : vector<64x128xf32>, i32 -> vector<64x128xf32>
    %c9_i32_142 = arith.constant 9 : i32
    %302 = vector.broadcast %c9_i32_142 : i32 to vector<64x128xi32>
    %303 = arith.cmpi sge, %3, %302 : vector<64x128xi32>
    %cst_143 = arith.constant 0.000000e+00 : f32
    %304 = vector.broadcast %cst_143 : f32 to vector<64x128xf32>
    %305 = arith.select %303, %301, %304 : vector<64x128xi1>, vector<64x128xf32>
    %c1_144 = arith.constant 1 : index
    %c9_145 = arith.constant 9 : index
    %c0_146 = arith.constant 0 : index
    %306 = vector.load %arg2[%c1_144, %c9_145, %c0_146] : memref<4x16x128xf32, #tpu.memory_space<vmem>>, vector<1x1x128xf32>
    %307 = vector.shape_cast %306 : vector<1x1x128xf32> to vector<1x128xf32>
    %308 = vector.broadcast %307 : vector<1x128xf32> to vector<64x128xf32>
    %309 = arith.mulf %305, %308 : vector<64x128xf32>
    %310 = arith.addf %300, %309 : vector<64x128xf32>
    %c10_i32_147 = arith.constant 10 : i32
    %311 = tpu.dynamic_rotate %216 by %c10_i32_147 dim 0 : vector<64x128xf32>, i32 -> vector<64x128xf32>
    %c10_i32_148 = arith.constant 10 : i32
    %312 = vector.broadcast %c10_i32_148 : i32 to vector<64x128xi32>
    %313 = arith.cmpi sge, %3, %312 : vector<64x128xi32>
    %cst_149 = arith.constant 0.000000e+00 : f32
    %314 = vector.broadcast %cst_149 : f32 to vector<64x128xf32>
    %315 = arith.select %313, %311, %314 : vector<64x128xi1>, vector<64x128xf32>
    %c1_150 = arith.constant 1 : index
    %c10_151 = arith.constant 10 : index
    %c0_152 = arith.constant 0 : index
    %316 = vector.load %arg2[%c1_150, %c10_151, %c0_152] : memref<4x16x128xf32, #tpu.memory_space<vmem>>, vector<1x1x128xf32>
    %317 = vector.shape_cast %316 : vector<1x1x128xf32> to vector<1x128xf32>
    %318 = vector.broadcast %317 : vector<1x128xf32> to vector<64x128xf32>
    %319 = arith.mulf %315, %318 : vector<64x128xf32>
    %320 = arith.addf %310, %319 : vector<64x128xf32>
    %c11_i32_153 = arith.constant 11 : i32
    %321 = tpu.dynamic_rotate %216 by %c11_i32_153 dim 0 : vector<64x128xf32>, i32 -> vector<64x128xf32>
    %c11_i32_154 = arith.constant 11 : i32
    %322 = vector.broadcast %c11_i32_154 : i32 to vector<64x128xi32>
    %323 = arith.cmpi sge, %3, %322 : vector<64x128xi32>
    %cst_155 = arith.constant 0.000000e+00 : f32
    %324 = vector.broadcast %cst_155 : f32 to vector<64x128xf32>
    %325 = arith.select %323, %321, %324 : vector<64x128xi1>, vector<64x128xf32>
    %c1_156 = arith.constant 1 : index
    %c11_157 = arith.constant 11 : index
    %c0_158 = arith.constant 0 : index
    %326 = vector.load %arg2[%c1_156, %c11_157, %c0_158] : memref<4x16x128xf32, #tpu.memory_space<vmem>>, vector<1x1x128xf32>
    %327 = vector.shape_cast %326 : vector<1x1x128xf32> to vector<1x128xf32>
    %328 = vector.broadcast %327 : vector<1x128xf32> to vector<64x128xf32>
    %329 = arith.mulf %325, %328 : vector<64x128xf32>
    %330 = arith.addf %320, %329 : vector<64x128xf32>
    %c12_i32_159 = arith.constant 12 : i32
    %331 = tpu.dynamic_rotate %216 by %c12_i32_159 dim 0 : vector<64x128xf32>, i32 -> vector<64x128xf32>
    %c12_i32_160 = arith.constant 12 : i32
    %332 = vector.broadcast %c12_i32_160 : i32 to vector<64x128xi32>
    %333 = arith.cmpi sge, %3, %332 : vector<64x128xi32>
    %cst_161 = arith.constant 0.000000e+00 : f32
    %334 = vector.broadcast %cst_161 : f32 to vector<64x128xf32>
    %335 = arith.select %333, %331, %334 : vector<64x128xi1>, vector<64x128xf32>
    %c1_162 = arith.constant 1 : index
    %c12_163 = arith.constant 12 : index
    %c0_164 = arith.constant 0 : index
    %336 = vector.load %arg2[%c1_162, %c12_163, %c0_164] : memref<4x16x128xf32, #tpu.memory_space<vmem>>, vector<1x1x128xf32>
    %337 = vector.shape_cast %336 : vector<1x1x128xf32> to vector<1x128xf32>
    %338 = vector.broadcast %337 : vector<1x128xf32> to vector<64x128xf32>
    %339 = arith.mulf %335, %338 : vector<64x128xf32>
    %340 = arith.addf %330, %339 : vector<64x128xf32>
    %c13_i32_165 = arith.constant 13 : i32
    %341 = tpu.dynamic_rotate %216 by %c13_i32_165 dim 0 : vector<64x128xf32>, i32 -> vector<64x128xf32>
    %c13_i32_166 = arith.constant 13 : i32
    %342 = vector.broadcast %c13_i32_166 : i32 to vector<64x128xi32>
    %343 = arith.cmpi sge, %3, %342 : vector<64x128xi32>
    %cst_167 = arith.constant 0.000000e+00 : f32
    %344 = vector.broadcast %cst_167 : f32 to vector<64x128xf32>
    %345 = arith.select %343, %341, %344 : vector<64x128xi1>, vector<64x128xf32>
    %c1_168 = arith.constant 1 : index
    %c13_169 = arith.constant 13 : index
    %c0_170 = arith.constant 0 : index
    %346 = vector.load %arg2[%c1_168, %c13_169, %c0_170] : memref<4x16x128xf32, #tpu.memory_space<vmem>>, vector<1x1x128xf32>
    %347 = vector.shape_cast %346 : vector<1x1x128xf32> to vector<1x128xf32>
    %348 = vector.broadcast %347 : vector<1x128xf32> to vector<64x128xf32>
    %349 = arith.mulf %345, %348 : vector<64x128xf32>
    %350 = arith.addf %340, %349 : vector<64x128xf32>
    %c14_i32_171 = arith.constant 14 : i32
    %351 = tpu.dynamic_rotate %216 by %c14_i32_171 dim 0 : vector<64x128xf32>, i32 -> vector<64x128xf32>
    %c14_i32_172 = arith.constant 14 : i32
    %352 = vector.broadcast %c14_i32_172 : i32 to vector<64x128xi32>
    %353 = arith.cmpi sge, %3, %352 : vector<64x128xi32>
    %cst_173 = arith.constant 0.000000e+00 : f32
    %354 = vector.broadcast %cst_173 : f32 to vector<64x128xf32>
    %355 = arith.select %353, %351, %354 : vector<64x128xi1>, vector<64x128xf32>
    %c1_174 = arith.constant 1 : index
    %c14_175 = arith.constant 14 : index
    %c0_176 = arith.constant 0 : index
    %356 = vector.load %arg2[%c1_174, %c14_175, %c0_176] : memref<4x16x128xf32, #tpu.memory_space<vmem>>, vector<1x1x128xf32>
    %357 = vector.shape_cast %356 : vector<1x1x128xf32> to vector<1x128xf32>
    %358 = vector.broadcast %357 : vector<1x128xf32> to vector<64x128xf32>
    %359 = arith.mulf %355, %358 : vector<64x128xf32>
    %360 = arith.addf %350, %359 : vector<64x128xf32>
    %c15_i32_177 = arith.constant 15 : i32
    %361 = tpu.dynamic_rotate %216 by %c15_i32_177 dim 0 : vector<64x128xf32>, i32 -> vector<64x128xf32>
    %c15_i32_178 = arith.constant 15 : i32
    %362 = vector.broadcast %c15_i32_178 : i32 to vector<64x128xi32>
    %363 = arith.cmpi sge, %3, %362 : vector<64x128xi32>
    %cst_179 = arith.constant 0.000000e+00 : f32
    %364 = vector.broadcast %cst_179 : f32 to vector<64x128xf32>
    %365 = arith.select %363, %361, %364 : vector<64x128xi1>, vector<64x128xf32>
    %c1_180 = arith.constant 1 : index
    %c15_181 = arith.constant 15 : index
    %c0_182 = arith.constant 0 : index
    %366 = vector.load %arg2[%c1_180, %c15_181, %c0_182] : memref<4x16x128xf32, #tpu.memory_space<vmem>>, vector<1x1x128xf32>
    %367 = vector.shape_cast %366 : vector<1x1x128xf32> to vector<1x128xf32>
    %368 = vector.broadcast %367 : vector<1x128xf32> to vector<64x128xf32>
    %369 = arith.mulf %365, %368 : vector<64x128xf32>
    %370 = arith.addf %360, %369 : vector<64x128xf32>
    %c1_183 = arith.constant 1 : index
    %c0_184 = arith.constant 0 : index
    %c0_185 = arith.constant 0 : index
    %371 = vector.load %arg3[%c1_183, %c0_184, %c0_185] : memref<4x1x128xf32, #tpu.memory_space<vmem>>, vector<1x1x128xf32>
    %372 = vector.shape_cast %371 : vector<1x1x128xf32> to vector<1x128xf32>
    %373 = vector.broadcast %372 : vector<1x128xf32> to vector<64x128xf32>
    %374 = arith.mulf %216, %373 : vector<64x128xf32>
    %375 = arith.addf %370, %374 : vector<64x128xf32>
    %376 = arith.mulf %375, %375 : vector<64x128xf32>
    %377 = arith.mulf %375, %376 : vector<64x128xf32>
    %cst_186 = arith.constant 4.471500e-02 : f32
    %378 = vector.broadcast %cst_186 : f32 to vector<64x128xf32>
    %379 = arith.mulf %378, %377 : vector<64x128xf32>
    %380 = arith.addf %375, %379 : vector<64x128xf32>
    %cst_187 = arith.constant 0.797884583 : f32
    %381 = vector.broadcast %cst_187 : f32 to vector<64x128xf32>
    %382 = arith.mulf %381, %380 : vector<64x128xf32>
    %383 = math.tanh %382 : vector<64x128xf32>
    %cst_188 = arith.constant 1.000000e+00 : f32
    %384 = vector.broadcast %cst_188 : f32 to vector<64x128xf32>
    %385 = arith.addf %384, %383 : vector<64x128xf32>
    %cst_189 = arith.constant 5.000000e-01 : f32
    %386 = vector.broadcast %cst_189 : f32 to vector<64x128xf32>
    %387 = arith.mulf %386, %385 : vector<64x128xf32>
    %388 = arith.mulf %375, %387 : vector<64x128xf32>
    %389 = arith.truncf %388 : vector<64x128xf32> to vector<64x128xbf16>
    %c1_190 = arith.constant 1 : index
    %c0_191 = arith.constant 0 : index
    %c0_192 = arith.constant 0 : index
    %390 = vector.load %arg4[%c1_190, %c0_191, %c0_192] : memref<4x128x256xbf16, #tpu.memory_space<vmem>>, vector<1x128x256xbf16>
    %391 = vector.shape_cast %390 : vector<1x128x256xbf16> to vector<128x256xbf16>
    %cst_193 = arith.constant dense<0.000000e+00> : vector<64x256xf32>
    %392 = tpu.matmul %389, %391, %cst_193 {dimension_numbers = #tpu.dot_dimension_numbers<[1], [0], [0], [1], [0, 0, 1, 1], [], []>} : vector<64x128xbf16>, vector<128x256xbf16>, vector<64x256xf32> -> vector<64x256xf32>
    %c1_194 = arith.constant 1 : index
    %c0_195 = arith.constant 0 : index
    %c0_196 = arith.constant 0 : index
    %393 = vector.load %arg5[%c1_194, %c0_195, %c0_196] : memref<4x1x256xf32, #tpu.memory_space<vmem>>, vector<1x1x256xf32>
    %394 = vector.shape_cast %393 : vector<1x1x256xf32> to vector<1x256xf32>
    %395 = vector.broadcast %394 : vector<1x256xf32> to vector<64x256xf32>
    %396 = arith.addf %392, %395 : vector<64x256xf32>
    %397 = vector.extract_strided_slice %396 {offsets = [0, 0], sizes = [64, 128], strides = [1, 1]} : vector<64x256xf32> to vector<64x128xf32>
    %398 = vector.extract_strided_slice %396 {offsets = [0, 128], sizes = [64, 128], strides = [1, 1]} : vector<64x256xf32> to vector<64x128xf32>
    %399 = arith.negf %398 : vector<64x128xf32>
    %400 = math.exp %399 : vector<64x128xf32>
    %cst_197 = arith.constant 1.000000e+00 : f32
    %401 = vector.broadcast %cst_197 : f32 to vector<64x128xf32>
    %402 = arith.addf %401, %400 : vector<64x128xf32>
    %403 = arith.divf %401, %402 : vector<64x128xf32>
    %404 = arith.mulf %397, %403 : vector<64x128xf32>
    %405 = arith.addf %404, %216 : vector<64x128xf32>
    %cst_198 = arith.constant dense<0.000000e+00> : vector<64xf32>
    %406 = vector.multi_reduction <add>, %405, %cst_198 [1] : vector<64x128xf32> to vector<64xf32>
    %407 = vector.shape_cast %406 : vector<64xf32> to vector<64x1xf32>
    %cst_199 = arith.constant 1.280000e+02 : f32
    %408 = vector.broadcast %cst_199 : f32 to vector<64x1xf32>
    %409 = arith.divf %407, %408 : vector<64x1xf32>
    %410 = vector.broadcast %409 : vector<64x1xf32> to vector<64x128xf32>
    %411 = arith.subf %405, %410 : vector<64x128xf32>
    %412 = arith.mulf %411, %411 : vector<64x128xf32>
    %cst_200 = arith.constant dense<0.000000e+00> : vector<64xf32>
    %413 = vector.multi_reduction <add>, %412, %cst_200 [1] : vector<64x128xf32> to vector<64xf32>
    %414 = vector.shape_cast %413 : vector<64xf32> to vector<64x1xf32>
    %cst_201 = arith.constant 1.280000e+02 : f32
    %415 = vector.broadcast %cst_201 : f32 to vector<64x1xf32>
    %416 = arith.divf %414, %415 : vector<64x1xf32>
    %cst_202 = arith.constant 9.99999974E-6 : f32
    %417 = vector.broadcast %cst_202 : f32 to vector<64x1xf32>
    %418 = arith.addf %416, %417 : vector<64x1xf32>
    %419 = math.rsqrt %418 : vector<64x1xf32>
    %420 = vector.broadcast %419 : vector<64x1xf32> to vector<64x128xf32>
    %421 = arith.mulf %411, %420 : vector<64x128xf32>
    %c1_203 = arith.constant 1 : index
    %c0_204 = arith.constant 0 : index
    %c0_205 = arith.constant 0 : index
    %422 = vector.load %arg6[%c1_203, %c0_204, %c0_205] : memref<4x1x128xf32, #tpu.memory_space<vmem>>, vector<1x1x128xf32>
    %423 = vector.shape_cast %422 : vector<1x1x128xf32> to vector<1x128xf32>
    %424 = vector.broadcast %423 : vector<1x128xf32> to vector<64x128xf32>
    %425 = arith.mulf %421, %424 : vector<64x128xf32>
    %c1_206 = arith.constant 1 : index
    %c0_207 = arith.constant 0 : index
    %c0_208 = arith.constant 0 : index
    %426 = vector.load %arg7[%c1_206, %c0_207, %c0_208] : memref<4x1x128xf32, #tpu.memory_space<vmem>>, vector<1x1x128xf32>
    %427 = vector.shape_cast %426 : vector<1x1x128xf32> to vector<1x128xf32>
    %428 = vector.broadcast %427 : vector<1x128xf32> to vector<64x128xf32>
    %429 = arith.addf %425, %428 : vector<64x128xf32>
    %c2_209 = arith.constant 2 : index
    %c0_210 = arith.constant 0 : index
    %c0_211 = arith.constant 0 : index
    %430 = vector.load %arg2[%c2_209, %c0_210, %c0_211] : memref<4x16x128xf32, #tpu.memory_space<vmem>>, vector<1x1x128xf32>
    %431 = vector.shape_cast %430 : vector<1x1x128xf32> to vector<1x128xf32>
    %432 = vector.broadcast %431 : vector<1x128xf32> to vector<64x128xf32>
    %433 = arith.mulf %429, %432 : vector<64x128xf32>
    %c1_i32_212 = arith.constant 1 : i32
    %434 = tpu.dynamic_rotate %429 by %c1_i32_212 dim 0 : vector<64x128xf32>, i32 -> vector<64x128xf32>
    %c1_i32_213 = arith.constant 1 : i32
    %435 = vector.broadcast %c1_i32_213 : i32 to vector<64x128xi32>
    %436 = arith.cmpi sge, %3, %435 : vector<64x128xi32>
    %cst_214 = arith.constant 0.000000e+00 : f32
    %437 = vector.broadcast %cst_214 : f32 to vector<64x128xf32>
    %438 = arith.select %436, %434, %437 : vector<64x128xi1>, vector<64x128xf32>
    %c2_215 = arith.constant 2 : index
    %c1_216 = arith.constant 1 : index
    %c0_217 = arith.constant 0 : index
    %439 = vector.load %arg2[%c2_215, %c1_216, %c0_217] : memref<4x16x128xf32, #tpu.memory_space<vmem>>, vector<1x1x128xf32>
    %440 = vector.shape_cast %439 : vector<1x1x128xf32> to vector<1x128xf32>
    %441 = vector.broadcast %440 : vector<1x128xf32> to vector<64x128xf32>
    %442 = arith.mulf %438, %441 : vector<64x128xf32>
    %443 = arith.addf %433, %442 : vector<64x128xf32>
    %c2_i32_218 = arith.constant 2 : i32
    %444 = tpu.dynamic_rotate %429 by %c2_i32_218 dim 0 : vector<64x128xf32>, i32 -> vector<64x128xf32>
    %c2_i32_219 = arith.constant 2 : i32
    %445 = vector.broadcast %c2_i32_219 : i32 to vector<64x128xi32>
    %446 = arith.cmpi sge, %3, %445 : vector<64x128xi32>
    %cst_220 = arith.constant 0.000000e+00 : f32
    %447 = vector.broadcast %cst_220 : f32 to vector<64x128xf32>
    %448 = arith.select %446, %444, %447 : vector<64x128xi1>, vector<64x128xf32>
    %c2_221 = arith.constant 2 : index
    %c2_222 = arith.constant 2 : index
    %c0_223 = arith.constant 0 : index
    %449 = vector.load %arg2[%c2_221, %c2_222, %c0_223] : memref<4x16x128xf32, #tpu.memory_space<vmem>>, vector<1x1x128xf32>
    %450 = vector.shape_cast %449 : vector<1x1x128xf32> to vector<1x128xf32>
    %451 = vector.broadcast %450 : vector<1x128xf32> to vector<64x128xf32>
    %452 = arith.mulf %448, %451 : vector<64x128xf32>
    %453 = arith.addf %443, %452 : vector<64x128xf32>
    %c3_i32_224 = arith.constant 3 : i32
    %454 = tpu.dynamic_rotate %429 by %c3_i32_224 dim 0 : vector<64x128xf32>, i32 -> vector<64x128xf32>
    %c3_i32_225 = arith.constant 3 : i32
    %455 = vector.broadcast %c3_i32_225 : i32 to vector<64x128xi32>
    %456 = arith.cmpi sge, %3, %455 : vector<64x128xi32>
    %cst_226 = arith.constant 0.000000e+00 : f32
    %457 = vector.broadcast %cst_226 : f32 to vector<64x128xf32>
    %458 = arith.select %456, %454, %457 : vector<64x128xi1>, vector<64x128xf32>
    %c2_227 = arith.constant 2 : index
    %c3_228 = arith.constant 3 : index
    %c0_229 = arith.constant 0 : index
    %459 = vector.load %arg2[%c2_227, %c3_228, %c0_229] : memref<4x16x128xf32, #tpu.memory_space<vmem>>, vector<1x1x128xf32>
    %460 = vector.shape_cast %459 : vector<1x1x128xf32> to vector<1x128xf32>
    %461 = vector.broadcast %460 : vector<1x128xf32> to vector<64x128xf32>
    %462 = arith.mulf %458, %461 : vector<64x128xf32>
    %463 = arith.addf %453, %462 : vector<64x128xf32>
    %c4_i32_230 = arith.constant 4 : i32
    %464 = tpu.dynamic_rotate %429 by %c4_i32_230 dim 0 : vector<64x128xf32>, i32 -> vector<64x128xf32>
    %c4_i32_231 = arith.constant 4 : i32
    %465 = vector.broadcast %c4_i32_231 : i32 to vector<64x128xi32>
    %466 = arith.cmpi sge, %3, %465 : vector<64x128xi32>
    %cst_232 = arith.constant 0.000000e+00 : f32
    %467 = vector.broadcast %cst_232 : f32 to vector<64x128xf32>
    %468 = arith.select %466, %464, %467 : vector<64x128xi1>, vector<64x128xf32>
    %c2_233 = arith.constant 2 : index
    %c4_234 = arith.constant 4 : index
    %c0_235 = arith.constant 0 : index
    %469 = vector.load %arg2[%c2_233, %c4_234, %c0_235] : memref<4x16x128xf32, #tpu.memory_space<vmem>>, vector<1x1x128xf32>
    %470 = vector.shape_cast %469 : vector<1x1x128xf32> to vector<1x128xf32>
    %471 = vector.broadcast %470 : vector<1x128xf32> to vector<64x128xf32>
    %472 = arith.mulf %468, %471 : vector<64x128xf32>
    %473 = arith.addf %463, %472 : vector<64x128xf32>
    %c5_i32_236 = arith.constant 5 : i32
    %474 = tpu.dynamic_rotate %429 by %c5_i32_236 dim 0 : vector<64x128xf32>, i32 -> vector<64x128xf32>
    %c5_i32_237 = arith.constant 5 : i32
    %475 = vector.broadcast %c5_i32_237 : i32 to vector<64x128xi32>
    %476 = arith.cmpi sge, %3, %475 : vector<64x128xi32>
    %cst_238 = arith.constant 0.000000e+00 : f32
    %477 = vector.broadcast %cst_238 : f32 to vector<64x128xf32>
    %478 = arith.select %476, %474, %477 : vector<64x128xi1>, vector<64x128xf32>
    %c2_239 = arith.constant 2 : index
    %c5_240 = arith.constant 5 : index
    %c0_241 = arith.constant 0 : index
    %479 = vector.load %arg2[%c2_239, %c5_240, %c0_241] : memref<4x16x128xf32, #tpu.memory_space<vmem>>, vector<1x1x128xf32>
    %480 = vector.shape_cast %479 : vector<1x1x128xf32> to vector<1x128xf32>
    %481 = vector.broadcast %480 : vector<1x128xf32> to vector<64x128xf32>
    %482 = arith.mulf %478, %481 : vector<64x128xf32>
    %483 = arith.addf %473, %482 : vector<64x128xf32>
    %c6_i32_242 = arith.constant 6 : i32
    %484 = tpu.dynamic_rotate %429 by %c6_i32_242 dim 0 : vector<64x128xf32>, i32 -> vector<64x128xf32>
    %c6_i32_243 = arith.constant 6 : i32
    %485 = vector.broadcast %c6_i32_243 : i32 to vector<64x128xi32>
    %486 = arith.cmpi sge, %3, %485 : vector<64x128xi32>
    %cst_244 = arith.constant 0.000000e+00 : f32
    %487 = vector.broadcast %cst_244 : f32 to vector<64x128xf32>
    %488 = arith.select %486, %484, %487 : vector<64x128xi1>, vector<64x128xf32>
    %c2_245 = arith.constant 2 : index
    %c6_246 = arith.constant 6 : index
    %c0_247 = arith.constant 0 : index
    %489 = vector.load %arg2[%c2_245, %c6_246, %c0_247] : memref<4x16x128xf32, #tpu.memory_space<vmem>>, vector<1x1x128xf32>
    %490 = vector.shape_cast %489 : vector<1x1x128xf32> to vector<1x128xf32>
    %491 = vector.broadcast %490 : vector<1x128xf32> to vector<64x128xf32>
    %492 = arith.mulf %488, %491 : vector<64x128xf32>
    %493 = arith.addf %483, %492 : vector<64x128xf32>
    %c7_i32_248 = arith.constant 7 : i32
    %494 = tpu.dynamic_rotate %429 by %c7_i32_248 dim 0 : vector<64x128xf32>, i32 -> vector<64x128xf32>
    %c7_i32_249 = arith.constant 7 : i32
    %495 = vector.broadcast %c7_i32_249 : i32 to vector<64x128xi32>
    %496 = arith.cmpi sge, %3, %495 : vector<64x128xi32>
    %cst_250 = arith.constant 0.000000e+00 : f32
    %497 = vector.broadcast %cst_250 : f32 to vector<64x128xf32>
    %498 = arith.select %496, %494, %497 : vector<64x128xi1>, vector<64x128xf32>
    %c2_251 = arith.constant 2 : index
    %c7_252 = arith.constant 7 : index
    %c0_253 = arith.constant 0 : index
    %499 = vector.load %arg2[%c2_251, %c7_252, %c0_253] : memref<4x16x128xf32, #tpu.memory_space<vmem>>, vector<1x1x128xf32>
    %500 = vector.shape_cast %499 : vector<1x1x128xf32> to vector<1x128xf32>
    %501 = vector.broadcast %500 : vector<1x128xf32> to vector<64x128xf32>
    %502 = arith.mulf %498, %501 : vector<64x128xf32>
    %503 = arith.addf %493, %502 : vector<64x128xf32>
    %c8_i32_254 = arith.constant 8 : i32
    %504 = tpu.dynamic_rotate %429 by %c8_i32_254 dim 0 : vector<64x128xf32>, i32 -> vector<64x128xf32>
    %c8_i32_255 = arith.constant 8 : i32
    %505 = vector.broadcast %c8_i32_255 : i32 to vector<64x128xi32>
    %506 = arith.cmpi sge, %3, %505 : vector<64x128xi32>
    %cst_256 = arith.constant 0.000000e+00 : f32
    %507 = vector.broadcast %cst_256 : f32 to vector<64x128xf32>
    %508 = arith.select %506, %504, %507 : vector<64x128xi1>, vector<64x128xf32>
    %c2_257 = arith.constant 2 : index
    %c8_258 = arith.constant 8 : index
    %c0_259 = arith.constant 0 : index
    %509 = vector.load %arg2[%c2_257, %c8_258, %c0_259] : memref<4x16x128xf32, #tpu.memory_space<vmem>>, vector<1x1x128xf32>
    %510 = vector.shape_cast %509 : vector<1x1x128xf32> to vector<1x128xf32>
    %511 = vector.broadcast %510 : vector<1x128xf32> to vector<64x128xf32>
    %512 = arith.mulf %508, %511 : vector<64x128xf32>
    %513 = arith.addf %503, %512 : vector<64x128xf32>
    %c9_i32_260 = arith.constant 9 : i32
    %514 = tpu.dynamic_rotate %429 by %c9_i32_260 dim 0 : vector<64x128xf32>, i32 -> vector<64x128xf32>
    %c9_i32_261 = arith.constant 9 : i32
    %515 = vector.broadcast %c9_i32_261 : i32 to vector<64x128xi32>
    %516 = arith.cmpi sge, %3, %515 : vector<64x128xi32>
    %cst_262 = arith.constant 0.000000e+00 : f32
    %517 = vector.broadcast %cst_262 : f32 to vector<64x128xf32>
    %518 = arith.select %516, %514, %517 : vector<64x128xi1>, vector<64x128xf32>
    %c2_263 = arith.constant 2 : index
    %c9_264 = arith.constant 9 : index
    %c0_265 = arith.constant 0 : index
    %519 = vector.load %arg2[%c2_263, %c9_264, %c0_265] : memref<4x16x128xf32, #tpu.memory_space<vmem>>, vector<1x1x128xf32>
    %520 = vector.shape_cast %519 : vector<1x1x128xf32> to vector<1x128xf32>
    %521 = vector.broadcast %520 : vector<1x128xf32> to vector<64x128xf32>
    %522 = arith.mulf %518, %521 : vector<64x128xf32>
    %523 = arith.addf %513, %522 : vector<64x128xf32>
    %c10_i32_266 = arith.constant 10 : i32
    %524 = tpu.dynamic_rotate %429 by %c10_i32_266 dim 0 : vector<64x128xf32>, i32 -> vector<64x128xf32>
    %c10_i32_267 = arith.constant 10 : i32
    %525 = vector.broadcast %c10_i32_267 : i32 to vector<64x128xi32>
    %526 = arith.cmpi sge, %3, %525 : vector<64x128xi32>
    %cst_268 = arith.constant 0.000000e+00 : f32
    %527 = vector.broadcast %cst_268 : f32 to vector<64x128xf32>
    %528 = arith.select %526, %524, %527 : vector<64x128xi1>, vector<64x128xf32>
    %c2_269 = arith.constant 2 : index
    %c10_270 = arith.constant 10 : index
    %c0_271 = arith.constant 0 : index
    %529 = vector.load %arg2[%c2_269, %c10_270, %c0_271] : memref<4x16x128xf32, #tpu.memory_space<vmem>>, vector<1x1x128xf32>
    %530 = vector.shape_cast %529 : vector<1x1x128xf32> to vector<1x128xf32>
    %531 = vector.broadcast %530 : vector<1x128xf32> to vector<64x128xf32>
    %532 = arith.mulf %528, %531 : vector<64x128xf32>
    %533 = arith.addf %523, %532 : vector<64x128xf32>
    %c11_i32_272 = arith.constant 11 : i32
    %534 = tpu.dynamic_rotate %429 by %c11_i32_272 dim 0 : vector<64x128xf32>, i32 -> vector<64x128xf32>
    %c11_i32_273 = arith.constant 11 : i32
    %535 = vector.broadcast %c11_i32_273 : i32 to vector<64x128xi32>
    %536 = arith.cmpi sge, %3, %535 : vector<64x128xi32>
    %cst_274 = arith.constant 0.000000e+00 : f32
    %537 = vector.broadcast %cst_274 : f32 to vector<64x128xf32>
    %538 = arith.select %536, %534, %537 : vector<64x128xi1>, vector<64x128xf32>
    %c2_275 = arith.constant 2 : index
    %c11_276 = arith.constant 11 : index
    %c0_277 = arith.constant 0 : index
    %539 = vector.load %arg2[%c2_275, %c11_276, %c0_277] : memref<4x16x128xf32, #tpu.memory_space<vmem>>, vector<1x1x128xf32>
    %540 = vector.shape_cast %539 : vector<1x1x128xf32> to vector<1x128xf32>
    %541 = vector.broadcast %540 : vector<1x128xf32> to vector<64x128xf32>
    %542 = arith.mulf %538, %541 : vector<64x128xf32>
    %543 = arith.addf %533, %542 : vector<64x128xf32>
    %c12_i32_278 = arith.constant 12 : i32
    %544 = tpu.dynamic_rotate %429 by %c12_i32_278 dim 0 : vector<64x128xf32>, i32 -> vector<64x128xf32>
    %c12_i32_279 = arith.constant 12 : i32
    %545 = vector.broadcast %c12_i32_279 : i32 to vector<64x128xi32>
    %546 = arith.cmpi sge, %3, %545 : vector<64x128xi32>
    %cst_280 = arith.constant 0.000000e+00 : f32
    %547 = vector.broadcast %cst_280 : f32 to vector<64x128xf32>
    %548 = arith.select %546, %544, %547 : vector<64x128xi1>, vector<64x128xf32>
    %c2_281 = arith.constant 2 : index
    %c12_282 = arith.constant 12 : index
    %c0_283 = arith.constant 0 : index
    %549 = vector.load %arg2[%c2_281, %c12_282, %c0_283] : memref<4x16x128xf32, #tpu.memory_space<vmem>>, vector<1x1x128xf32>
    %550 = vector.shape_cast %549 : vector<1x1x128xf32> to vector<1x128xf32>
    %551 = vector.broadcast %550 : vector<1x128xf32> to vector<64x128xf32>
    %552 = arith.mulf %548, %551 : vector<64x128xf32>
    %553 = arith.addf %543, %552 : vector<64x128xf32>
    %c13_i32_284 = arith.constant 13 : i32
    %554 = tpu.dynamic_rotate %429 by %c13_i32_284 dim 0 : vector<64x128xf32>, i32 -> vector<64x128xf32>
    %c13_i32_285 = arith.constant 13 : i32
    %555 = vector.broadcast %c13_i32_285 : i32 to vector<64x128xi32>
    %556 = arith.cmpi sge, %3, %555 : vector<64x128xi32>
    %cst_286 = arith.constant 0.000000e+00 : f32
    %557 = vector.broadcast %cst_286 : f32 to vector<64x128xf32>
    %558 = arith.select %556, %554, %557 : vector<64x128xi1>, vector<64x128xf32>
    %c2_287 = arith.constant 2 : index
    %c13_288 = arith.constant 13 : index
    %c0_289 = arith.constant 0 : index
    %559 = vector.load %arg2[%c2_287, %c13_288, %c0_289] : memref<4x16x128xf32, #tpu.memory_space<vmem>>, vector<1x1x128xf32>
    %560 = vector.shape_cast %559 : vector<1x1x128xf32> to vector<1x128xf32>
    %561 = vector.broadcast %560 : vector<1x128xf32> to vector<64x128xf32>
    %562 = arith.mulf %558, %561 : vector<64x128xf32>
    %563 = arith.addf %553, %562 : vector<64x128xf32>
    %c14_i32_290 = arith.constant 14 : i32
    %564 = tpu.dynamic_rotate %429 by %c14_i32_290 dim 0 : vector<64x128xf32>, i32 -> vector<64x128xf32>
    %c14_i32_291 = arith.constant 14 : i32
    %565 = vector.broadcast %c14_i32_291 : i32 to vector<64x128xi32>
    %566 = arith.cmpi sge, %3, %565 : vector<64x128xi32>
    %cst_292 = arith.constant 0.000000e+00 : f32
    %567 = vector.broadcast %cst_292 : f32 to vector<64x128xf32>
    %568 = arith.select %566, %564, %567 : vector<64x128xi1>, vector<64x128xf32>
    %c2_293 = arith.constant 2 : index
    %c14_294 = arith.constant 14 : index
    %c0_295 = arith.constant 0 : index
    %569 = vector.load %arg2[%c2_293, %c14_294, %c0_295] : memref<4x16x128xf32, #tpu.memory_space<vmem>>, vector<1x1x128xf32>
    %570 = vector.shape_cast %569 : vector<1x1x128xf32> to vector<1x128xf32>
    %571 = vector.broadcast %570 : vector<1x128xf32> to vector<64x128xf32>
    %572 = arith.mulf %568, %571 : vector<64x128xf32>
    %573 = arith.addf %563, %572 : vector<64x128xf32>
    %c15_i32_296 = arith.constant 15 : i32
    %574 = tpu.dynamic_rotate %429 by %c15_i32_296 dim 0 : vector<64x128xf32>, i32 -> vector<64x128xf32>
    %c15_i32_297 = arith.constant 15 : i32
    %575 = vector.broadcast %c15_i32_297 : i32 to vector<64x128xi32>
    %576 = arith.cmpi sge, %3, %575 : vector<64x128xi32>
    %cst_298 = arith.constant 0.000000e+00 : f32
    %577 = vector.broadcast %cst_298 : f32 to vector<64x128xf32>
    %578 = arith.select %576, %574, %577 : vector<64x128xi1>, vector<64x128xf32>
    %c2_299 = arith.constant 2 : index
    %c15_300 = arith.constant 15 : index
    %c0_301 = arith.constant 0 : index
    %579 = vector.load %arg2[%c2_299, %c15_300, %c0_301] : memref<4x16x128xf32, #tpu.memory_space<vmem>>, vector<1x1x128xf32>
    %580 = vector.shape_cast %579 : vector<1x1x128xf32> to vector<1x128xf32>
    %581 = vector.broadcast %580 : vector<1x128xf32> to vector<64x128xf32>
    %582 = arith.mulf %578, %581 : vector<64x128xf32>
    %583 = arith.addf %573, %582 : vector<64x128xf32>
    %c2_302 = arith.constant 2 : index
    %c0_303 = arith.constant 0 : index
    %c0_304 = arith.constant 0 : index
    %584 = vector.load %arg3[%c2_302, %c0_303, %c0_304] : memref<4x1x128xf32, #tpu.memory_space<vmem>>, vector<1x1x128xf32>
    %585 = vector.shape_cast %584 : vector<1x1x128xf32> to vector<1x128xf32>
    %586 = vector.broadcast %585 : vector<1x128xf32> to vector<64x128xf32>
    %587 = arith.mulf %429, %586 : vector<64x128xf32>
    %588 = arith.addf %583, %587 : vector<64x128xf32>
    %589 = arith.mulf %588, %588 : vector<64x128xf32>
    %590 = arith.mulf %588, %589 : vector<64x128xf32>
    %cst_305 = arith.constant 4.471500e-02 : f32
    %591 = vector.broadcast %cst_305 : f32 to vector<64x128xf32>
    %592 = arith.mulf %591, %590 : vector<64x128xf32>
    %593 = arith.addf %588, %592 : vector<64x128xf32>
    %cst_306 = arith.constant 0.797884583 : f32
    %594 = vector.broadcast %cst_306 : f32 to vector<64x128xf32>
    %595 = arith.mulf %594, %593 : vector<64x128xf32>
    %596 = math.tanh %595 : vector<64x128xf32>
    %cst_307 = arith.constant 1.000000e+00 : f32
    %597 = vector.broadcast %cst_307 : f32 to vector<64x128xf32>
    %598 = arith.addf %597, %596 : vector<64x128xf32>
    %cst_308 = arith.constant 5.000000e-01 : f32
    %599 = vector.broadcast %cst_308 : f32 to vector<64x128xf32>
    %600 = arith.mulf %599, %598 : vector<64x128xf32>
    %601 = arith.mulf %588, %600 : vector<64x128xf32>
    %602 = arith.truncf %601 : vector<64x128xf32> to vector<64x128xbf16>
    %c2_309 = arith.constant 2 : index
    %c0_310 = arith.constant 0 : index
    %c0_311 = arith.constant 0 : index
    %603 = vector.load %arg4[%c2_309, %c0_310, %c0_311] : memref<4x128x256xbf16, #tpu.memory_space<vmem>>, vector<1x128x256xbf16>
    %604 = vector.shape_cast %603 : vector<1x128x256xbf16> to vector<128x256xbf16>
    %cst_312 = arith.constant dense<0.000000e+00> : vector<64x256xf32>
    %605 = tpu.matmul %602, %604, %cst_312 {dimension_numbers = #tpu.dot_dimension_numbers<[1], [0], [0], [1], [0, 0, 1, 1], [], []>} : vector<64x128xbf16>, vector<128x256xbf16>, vector<64x256xf32> -> vector<64x256xf32>
    %c2_313 = arith.constant 2 : index
    %c0_314 = arith.constant 0 : index
    %c0_315 = arith.constant 0 : index
    %606 = vector.load %arg5[%c2_313, %c0_314, %c0_315] : memref<4x1x256xf32, #tpu.memory_space<vmem>>, vector<1x1x256xf32>
    %607 = vector.shape_cast %606 : vector<1x1x256xf32> to vector<1x256xf32>
    %608 = vector.broadcast %607 : vector<1x256xf32> to vector<64x256xf32>
    %609 = arith.addf %605, %608 : vector<64x256xf32>
    %610 = vector.extract_strided_slice %609 {offsets = [0, 0], sizes = [64, 128], strides = [1, 1]} : vector<64x256xf32> to vector<64x128xf32>
    %611 = vector.extract_strided_slice %609 {offsets = [0, 128], sizes = [64, 128], strides = [1, 1]} : vector<64x256xf32> to vector<64x128xf32>
    %612 = arith.negf %611 : vector<64x128xf32>
    %613 = math.exp %612 : vector<64x128xf32>
    %cst_316 = arith.constant 1.000000e+00 : f32
    %614 = vector.broadcast %cst_316 : f32 to vector<64x128xf32>
    %615 = arith.addf %614, %613 : vector<64x128xf32>
    %616 = arith.divf %614, %615 : vector<64x128xf32>
    %617 = arith.mulf %610, %616 : vector<64x128xf32>
    %618 = arith.addf %617, %429 : vector<64x128xf32>
    %cst_317 = arith.constant dense<0.000000e+00> : vector<64xf32>
    %619 = vector.multi_reduction <add>, %618, %cst_317 [1] : vector<64x128xf32> to vector<64xf32>
    %620 = vector.shape_cast %619 : vector<64xf32> to vector<64x1xf32>
    %cst_318 = arith.constant 1.280000e+02 : f32
    %621 = vector.broadcast %cst_318 : f32 to vector<64x1xf32>
    %622 = arith.divf %620, %621 : vector<64x1xf32>
    %623 = vector.broadcast %622 : vector<64x1xf32> to vector<64x128xf32>
    %624 = arith.subf %618, %623 : vector<64x128xf32>
    %625 = arith.mulf %624, %624 : vector<64x128xf32>
    %cst_319 = arith.constant dense<0.000000e+00> : vector<64xf32>
    %626 = vector.multi_reduction <add>, %625, %cst_319 [1] : vector<64x128xf32> to vector<64xf32>
    %627 = vector.shape_cast %626 : vector<64xf32> to vector<64x1xf32>
    %cst_320 = arith.constant 1.280000e+02 : f32
    %628 = vector.broadcast %cst_320 : f32 to vector<64x1xf32>
    %629 = arith.divf %627, %628 : vector<64x1xf32>
    %cst_321 = arith.constant 9.99999974E-6 : f32
    %630 = vector.broadcast %cst_321 : f32 to vector<64x1xf32>
    %631 = arith.addf %629, %630 : vector<64x1xf32>
    %632 = math.rsqrt %631 : vector<64x1xf32>
    %633 = vector.broadcast %632 : vector<64x1xf32> to vector<64x128xf32>
    %634 = arith.mulf %624, %633 : vector<64x128xf32>
    %c2_322 = arith.constant 2 : index
    %c0_323 = arith.constant 0 : index
    %c0_324 = arith.constant 0 : index
    %635 = vector.load %arg6[%c2_322, %c0_323, %c0_324] : memref<4x1x128xf32, #tpu.memory_space<vmem>>, vector<1x1x128xf32>
    %636 = vector.shape_cast %635 : vector<1x1x128xf32> to vector<1x128xf32>
    %637 = vector.broadcast %636 : vector<1x128xf32> to vector<64x128xf32>
    %638 = arith.mulf %634, %637 : vector<64x128xf32>
    %c2_325 = arith.constant 2 : index
    %c0_326 = arith.constant 0 : index
    %c0_327 = arith.constant 0 : index
    %639 = vector.load %arg7[%c2_325, %c0_326, %c0_327] : memref<4x1x128xf32, #tpu.memory_space<vmem>>, vector<1x1x128xf32>
    %640 = vector.shape_cast %639 : vector<1x1x128xf32> to vector<1x128xf32>
    %641 = vector.broadcast %640 : vector<1x128xf32> to vector<64x128xf32>
    %642 = arith.addf %638, %641 : vector<64x128xf32>
    %c3_328 = arith.constant 3 : index
    %c0_329 = arith.constant 0 : index
    %c0_330 = arith.constant 0 : index
    %643 = vector.load %arg2[%c3_328, %c0_329, %c0_330] : memref<4x16x128xf32, #tpu.memory_space<vmem>>, vector<1x1x128xf32>
    %644 = vector.shape_cast %643 : vector<1x1x128xf32> to vector<1x128xf32>
    %645 = vector.broadcast %644 : vector<1x128xf32> to vector<64x128xf32>
    %646 = arith.mulf %642, %645 : vector<64x128xf32>
    %c1_i32_331 = arith.constant 1 : i32
    %647 = tpu.dynamic_rotate %642 by %c1_i32_331 dim 0 : vector<64x128xf32>, i32 -> vector<64x128xf32>
    %c1_i32_332 = arith.constant 1 : i32
    %648 = vector.broadcast %c1_i32_332 : i32 to vector<64x128xi32>
    %649 = arith.cmpi sge, %3, %648 : vector<64x128xi32>
    %cst_333 = arith.constant 0.000000e+00 : f32
    %650 = vector.broadcast %cst_333 : f32 to vector<64x128xf32>
    %651 = arith.select %649, %647, %650 : vector<64x128xi1>, vector<64x128xf32>
    %c3_334 = arith.constant 3 : index
    %c1_335 = arith.constant 1 : index
    %c0_336 = arith.constant 0 : index
    %652 = vector.load %arg2[%c3_334, %c1_335, %c0_336] : memref<4x16x128xf32, #tpu.memory_space<vmem>>, vector<1x1x128xf32>
    %653 = vector.shape_cast %652 : vector<1x1x128xf32> to vector<1x128xf32>
    %654 = vector.broadcast %653 : vector<1x128xf32> to vector<64x128xf32>
    %655 = arith.mulf %651, %654 : vector<64x128xf32>
    %656 = arith.addf %646, %655 : vector<64x128xf32>
    %c2_i32_337 = arith.constant 2 : i32
    %657 = tpu.dynamic_rotate %642 by %c2_i32_337 dim 0 : vector<64x128xf32>, i32 -> vector<64x128xf32>
    %c2_i32_338 = arith.constant 2 : i32
    %658 = vector.broadcast %c2_i32_338 : i32 to vector<64x128xi32>
    %659 = arith.cmpi sge, %3, %658 : vector<64x128xi32>
    %cst_339 = arith.constant 0.000000e+00 : f32
    %660 = vector.broadcast %cst_339 : f32 to vector<64x128xf32>
    %661 = arith.select %659, %657, %660 : vector<64x128xi1>, vector<64x128xf32>
    %c3_340 = arith.constant 3 : index
    %c2_341 = arith.constant 2 : index
    %c0_342 = arith.constant 0 : index
    %662 = vector.load %arg2[%c3_340, %c2_341, %c0_342] : memref<4x16x128xf32, #tpu.memory_space<vmem>>, vector<1x1x128xf32>
    %663 = vector.shape_cast %662 : vector<1x1x128xf32> to vector<1x128xf32>
    %664 = vector.broadcast %663 : vector<1x128xf32> to vector<64x128xf32>
    %665 = arith.mulf %661, %664 : vector<64x128xf32>
    %666 = arith.addf %656, %665 : vector<64x128xf32>
    %c3_i32_343 = arith.constant 3 : i32
    %667 = tpu.dynamic_rotate %642 by %c3_i32_343 dim 0 : vector<64x128xf32>, i32 -> vector<64x128xf32>
    %c3_i32_344 = arith.constant 3 : i32
    %668 = vector.broadcast %c3_i32_344 : i32 to vector<64x128xi32>
    %669 = arith.cmpi sge, %3, %668 : vector<64x128xi32>
    %cst_345 = arith.constant 0.000000e+00 : f32
    %670 = vector.broadcast %cst_345 : f32 to vector<64x128xf32>
    %671 = arith.select %669, %667, %670 : vector<64x128xi1>, vector<64x128xf32>
    %c3_346 = arith.constant 3 : index
    %c3_347 = arith.constant 3 : index
    %c0_348 = arith.constant 0 : index
    %672 = vector.load %arg2[%c3_346, %c3_347, %c0_348] : memref<4x16x128xf32, #tpu.memory_space<vmem>>, vector<1x1x128xf32>
    %673 = vector.shape_cast %672 : vector<1x1x128xf32> to vector<1x128xf32>
    %674 = vector.broadcast %673 : vector<1x128xf32> to vector<64x128xf32>
    %675 = arith.mulf %671, %674 : vector<64x128xf32>
    %676 = arith.addf %666, %675 : vector<64x128xf32>
    %c4_i32_349 = arith.constant 4 : i32
    %677 = tpu.dynamic_rotate %642 by %c4_i32_349 dim 0 : vector<64x128xf32>, i32 -> vector<64x128xf32>
    %c4_i32_350 = arith.constant 4 : i32
    %678 = vector.broadcast %c4_i32_350 : i32 to vector<64x128xi32>
    %679 = arith.cmpi sge, %3, %678 : vector<64x128xi32>
    %cst_351 = arith.constant 0.000000e+00 : f32
    %680 = vector.broadcast %cst_351 : f32 to vector<64x128xf32>
    %681 = arith.select %679, %677, %680 : vector<64x128xi1>, vector<64x128xf32>
    %c3_352 = arith.constant 3 : index
    %c4_353 = arith.constant 4 : index
    %c0_354 = arith.constant 0 : index
    %682 = vector.load %arg2[%c3_352, %c4_353, %c0_354] : memref<4x16x128xf32, #tpu.memory_space<vmem>>, vector<1x1x128xf32>
    %683 = vector.shape_cast %682 : vector<1x1x128xf32> to vector<1x128xf32>
    %684 = vector.broadcast %683 : vector<1x128xf32> to vector<64x128xf32>
    %685 = arith.mulf %681, %684 : vector<64x128xf32>
    %686 = arith.addf %676, %685 : vector<64x128xf32>
    %c5_i32_355 = arith.constant 5 : i32
    %687 = tpu.dynamic_rotate %642 by %c5_i32_355 dim 0 : vector<64x128xf32>, i32 -> vector<64x128xf32>
    %c5_i32_356 = arith.constant 5 : i32
    %688 = vector.broadcast %c5_i32_356 : i32 to vector<64x128xi32>
    %689 = arith.cmpi sge, %3, %688 : vector<64x128xi32>
    %cst_357 = arith.constant 0.000000e+00 : f32
    %690 = vector.broadcast %cst_357 : f32 to vector<64x128xf32>
    %691 = arith.select %689, %687, %690 : vector<64x128xi1>, vector<64x128xf32>
    %c3_358 = arith.constant 3 : index
    %c5_359 = arith.constant 5 : index
    %c0_360 = arith.constant 0 : index
    %692 = vector.load %arg2[%c3_358, %c5_359, %c0_360] : memref<4x16x128xf32, #tpu.memory_space<vmem>>, vector<1x1x128xf32>
    %693 = vector.shape_cast %692 : vector<1x1x128xf32> to vector<1x128xf32>
    %694 = vector.broadcast %693 : vector<1x128xf32> to vector<64x128xf32>
    %695 = arith.mulf %691, %694 : vector<64x128xf32>
    %696 = arith.addf %686, %695 : vector<64x128xf32>
    %c6_i32_361 = arith.constant 6 : i32
    %697 = tpu.dynamic_rotate %642 by %c6_i32_361 dim 0 : vector<64x128xf32>, i32 -> vector<64x128xf32>
    %c6_i32_362 = arith.constant 6 : i32
    %698 = vector.broadcast %c6_i32_362 : i32 to vector<64x128xi32>
    %699 = arith.cmpi sge, %3, %698 : vector<64x128xi32>
    %cst_363 = arith.constant 0.000000e+00 : f32
    %700 = vector.broadcast %cst_363 : f32 to vector<64x128xf32>
    %701 = arith.select %699, %697, %700 : vector<64x128xi1>, vector<64x128xf32>
    %c3_364 = arith.constant 3 : index
    %c6_365 = arith.constant 6 : index
    %c0_366 = arith.constant 0 : index
    %702 = vector.load %arg2[%c3_364, %c6_365, %c0_366] : memref<4x16x128xf32, #tpu.memory_space<vmem>>, vector<1x1x128xf32>
    %703 = vector.shape_cast %702 : vector<1x1x128xf32> to vector<1x128xf32>
    %704 = vector.broadcast %703 : vector<1x128xf32> to vector<64x128xf32>
    %705 = arith.mulf %701, %704 : vector<64x128xf32>
    %706 = arith.addf %696, %705 : vector<64x128xf32>
    %c7_i32_367 = arith.constant 7 : i32
    %707 = tpu.dynamic_rotate %642 by %c7_i32_367 dim 0 : vector<64x128xf32>, i32 -> vector<64x128xf32>
    %c7_i32_368 = arith.constant 7 : i32
    %708 = vector.broadcast %c7_i32_368 : i32 to vector<64x128xi32>
    %709 = arith.cmpi sge, %3, %708 : vector<64x128xi32>
    %cst_369 = arith.constant 0.000000e+00 : f32
    %710 = vector.broadcast %cst_369 : f32 to vector<64x128xf32>
    %711 = arith.select %709, %707, %710 : vector<64x128xi1>, vector<64x128xf32>
    %c3_370 = arith.constant 3 : index
    %c7_371 = arith.constant 7 : index
    %c0_372 = arith.constant 0 : index
    %712 = vector.load %arg2[%c3_370, %c7_371, %c0_372] : memref<4x16x128xf32, #tpu.memory_space<vmem>>, vector<1x1x128xf32>
    %713 = vector.shape_cast %712 : vector<1x1x128xf32> to vector<1x128xf32>
    %714 = vector.broadcast %713 : vector<1x128xf32> to vector<64x128xf32>
    %715 = arith.mulf %711, %714 : vector<64x128xf32>
    %716 = arith.addf %706, %715 : vector<64x128xf32>
    %c8_i32_373 = arith.constant 8 : i32
    %717 = tpu.dynamic_rotate %642 by %c8_i32_373 dim 0 : vector<64x128xf32>, i32 -> vector<64x128xf32>
    %c8_i32_374 = arith.constant 8 : i32
    %718 = vector.broadcast %c8_i32_374 : i32 to vector<64x128xi32>
    %719 = arith.cmpi sge, %3, %718 : vector<64x128xi32>
    %cst_375 = arith.constant 0.000000e+00 : f32
    %720 = vector.broadcast %cst_375 : f32 to vector<64x128xf32>
    %721 = arith.select %719, %717, %720 : vector<64x128xi1>, vector<64x128xf32>
    %c3_376 = arith.constant 3 : index
    %c8_377 = arith.constant 8 : index
    %c0_378 = arith.constant 0 : index
    %722 = vector.load %arg2[%c3_376, %c8_377, %c0_378] : memref<4x16x128xf32, #tpu.memory_space<vmem>>, vector<1x1x128xf32>
    %723 = vector.shape_cast %722 : vector<1x1x128xf32> to vector<1x128xf32>
    %724 = vector.broadcast %723 : vector<1x128xf32> to vector<64x128xf32>
    %725 = arith.mulf %721, %724 : vector<64x128xf32>
    %726 = arith.addf %716, %725 : vector<64x128xf32>
    %c9_i32_379 = arith.constant 9 : i32
    %727 = tpu.dynamic_rotate %642 by %c9_i32_379 dim 0 : vector<64x128xf32>, i32 -> vector<64x128xf32>
    %c9_i32_380 = arith.constant 9 : i32
    %728 = vector.broadcast %c9_i32_380 : i32 to vector<64x128xi32>
    %729 = arith.cmpi sge, %3, %728 : vector<64x128xi32>
    %cst_381 = arith.constant 0.000000e+00 : f32
    %730 = vector.broadcast %cst_381 : f32 to vector<64x128xf32>
    %731 = arith.select %729, %727, %730 : vector<64x128xi1>, vector<64x128xf32>
    %c3_382 = arith.constant 3 : index
    %c9_383 = arith.constant 9 : index
    %c0_384 = arith.constant 0 : index
    %732 = vector.load %arg2[%c3_382, %c9_383, %c0_384] : memref<4x16x128xf32, #tpu.memory_space<vmem>>, vector<1x1x128xf32>
    %733 = vector.shape_cast %732 : vector<1x1x128xf32> to vector<1x128xf32>
    %734 = vector.broadcast %733 : vector<1x128xf32> to vector<64x128xf32>
    %735 = arith.mulf %731, %734 : vector<64x128xf32>
    %736 = arith.addf %726, %735 : vector<64x128xf32>
    %c10_i32_385 = arith.constant 10 : i32
    %737 = tpu.dynamic_rotate %642 by %c10_i32_385 dim 0 : vector<64x128xf32>, i32 -> vector<64x128xf32>
    %c10_i32_386 = arith.constant 10 : i32
    %738 = vector.broadcast %c10_i32_386 : i32 to vector<64x128xi32>
    %739 = arith.cmpi sge, %3, %738 : vector<64x128xi32>
    %cst_387 = arith.constant 0.000000e+00 : f32
    %740 = vector.broadcast %cst_387 : f32 to vector<64x128xf32>
    %741 = arith.select %739, %737, %740 : vector<64x128xi1>, vector<64x128xf32>
    %c3_388 = arith.constant 3 : index
    %c10_389 = arith.constant 10 : index
    %c0_390 = arith.constant 0 : index
    %742 = vector.load %arg2[%c3_388, %c10_389, %c0_390] : memref<4x16x128xf32, #tpu.memory_space<vmem>>, vector<1x1x128xf32>
    %743 = vector.shape_cast %742 : vector<1x1x128xf32> to vector<1x128xf32>
    %744 = vector.broadcast %743 : vector<1x128xf32> to vector<64x128xf32>
    %745 = arith.mulf %741, %744 : vector<64x128xf32>
    %746 = arith.addf %736, %745 : vector<64x128xf32>
    %c11_i32_391 = arith.constant 11 : i32
    %747 = tpu.dynamic_rotate %642 by %c11_i32_391 dim 0 : vector<64x128xf32>, i32 -> vector<64x128xf32>
    %c11_i32_392 = arith.constant 11 : i32
    %748 = vector.broadcast %c11_i32_392 : i32 to vector<64x128xi32>
    %749 = arith.cmpi sge, %3, %748 : vector<64x128xi32>
    %cst_393 = arith.constant 0.000000e+00 : f32
    %750 = vector.broadcast %cst_393 : f32 to vector<64x128xf32>
    %751 = arith.select %749, %747, %750 : vector<64x128xi1>, vector<64x128xf32>
    %c3_394 = arith.constant 3 : index
    %c11_395 = arith.constant 11 : index
    %c0_396 = arith.constant 0 : index
    %752 = vector.load %arg2[%c3_394, %c11_395, %c0_396] : memref<4x16x128xf32, #tpu.memory_space<vmem>>, vector<1x1x128xf32>
    %753 = vector.shape_cast %752 : vector<1x1x128xf32> to vector<1x128xf32>
    %754 = vector.broadcast %753 : vector<1x128xf32> to vector<64x128xf32>
    %755 = arith.mulf %751, %754 : vector<64x128xf32>
    %756 = arith.addf %746, %755 : vector<64x128xf32>
    %c12_i32_397 = arith.constant 12 : i32
    %757 = tpu.dynamic_rotate %642 by %c12_i32_397 dim 0 : vector<64x128xf32>, i32 -> vector<64x128xf32>
    %c12_i32_398 = arith.constant 12 : i32
    %758 = vector.broadcast %c12_i32_398 : i32 to vector<64x128xi32>
    %759 = arith.cmpi sge, %3, %758 : vector<64x128xi32>
    %cst_399 = arith.constant 0.000000e+00 : f32
    %760 = vector.broadcast %cst_399 : f32 to vector<64x128xf32>
    %761 = arith.select %759, %757, %760 : vector<64x128xi1>, vector<64x128xf32>
    %c3_400 = arith.constant 3 : index
    %c12_401 = arith.constant 12 : index
    %c0_402 = arith.constant 0 : index
    %762 = vector.load %arg2[%c3_400, %c12_401, %c0_402] : memref<4x16x128xf32, #tpu.memory_space<vmem>>, vector<1x1x128xf32>
    %763 = vector.shape_cast %762 : vector<1x1x128xf32> to vector<1x128xf32>
    %764 = vector.broadcast %763 : vector<1x128xf32> to vector<64x128xf32>
    %765 = arith.mulf %761, %764 : vector<64x128xf32>
    %766 = arith.addf %756, %765 : vector<64x128xf32>
    %c13_i32_403 = arith.constant 13 : i32
    %767 = tpu.dynamic_rotate %642 by %c13_i32_403 dim 0 : vector<64x128xf32>, i32 -> vector<64x128xf32>
    %c13_i32_404 = arith.constant 13 : i32
    %768 = vector.broadcast %c13_i32_404 : i32 to vector<64x128xi32>
    %769 = arith.cmpi sge, %3, %768 : vector<64x128xi32>
    %cst_405 = arith.constant 0.000000e+00 : f32
    %770 = vector.broadcast %cst_405 : f32 to vector<64x128xf32>
    %771 = arith.select %769, %767, %770 : vector<64x128xi1>, vector<64x128xf32>
    %c3_406 = arith.constant 3 : index
    %c13_407 = arith.constant 13 : index
    %c0_408 = arith.constant 0 : index
    %772 = vector.load %arg2[%c3_406, %c13_407, %c0_408] : memref<4x16x128xf32, #tpu.memory_space<vmem>>, vector<1x1x128xf32>
    %773 = vector.shape_cast %772 : vector<1x1x128xf32> to vector<1x128xf32>
    %774 = vector.broadcast %773 : vector<1x128xf32> to vector<64x128xf32>
    %775 = arith.mulf %771, %774 : vector<64x128xf32>
    %776 = arith.addf %766, %775 : vector<64x128xf32>
    %c14_i32_409 = arith.constant 14 : i32
    %777 = tpu.dynamic_rotate %642 by %c14_i32_409 dim 0 : vector<64x128xf32>, i32 -> vector<64x128xf32>
    %c14_i32_410 = arith.constant 14 : i32
    %778 = vector.broadcast %c14_i32_410 : i32 to vector<64x128xi32>
    %779 = arith.cmpi sge, %3, %778 : vector<64x128xi32>
    %cst_411 = arith.constant 0.000000e+00 : f32
    %780 = vector.broadcast %cst_411 : f32 to vector<64x128xf32>
    %781 = arith.select %779, %777, %780 : vector<64x128xi1>, vector<64x128xf32>
    %c3_412 = arith.constant 3 : index
    %c14_413 = arith.constant 14 : index
    %c0_414 = arith.constant 0 : index
    %782 = vector.load %arg2[%c3_412, %c14_413, %c0_414] : memref<4x16x128xf32, #tpu.memory_space<vmem>>, vector<1x1x128xf32>
    %783 = vector.shape_cast %782 : vector<1x1x128xf32> to vector<1x128xf32>
    %784 = vector.broadcast %783 : vector<1x128xf32> to vector<64x128xf32>
    %785 = arith.mulf %781, %784 : vector<64x128xf32>
    %786 = arith.addf %776, %785 : vector<64x128xf32>
    %c15_i32_415 = arith.constant 15 : i32
    %787 = tpu.dynamic_rotate %642 by %c15_i32_415 dim 0 : vector<64x128xf32>, i32 -> vector<64x128xf32>
    %c15_i32_416 = arith.constant 15 : i32
    %788 = vector.broadcast %c15_i32_416 : i32 to vector<64x128xi32>
    %789 = arith.cmpi sge, %3, %788 : vector<64x128xi32>
    %cst_417 = arith.constant 0.000000e+00 : f32
    %790 = vector.broadcast %cst_417 : f32 to vector<64x128xf32>
    %791 = arith.select %789, %787, %790 : vector<64x128xi1>, vector<64x128xf32>
    %c3_418 = arith.constant 3 : index
    %c15_419 = arith.constant 15 : index
    %c0_420 = arith.constant 0 : index
    %792 = vector.load %arg2[%c3_418, %c15_419, %c0_420] : memref<4x16x128xf32, #tpu.memory_space<vmem>>, vector<1x1x128xf32>
    %793 = vector.shape_cast %792 : vector<1x1x128xf32> to vector<1x128xf32>
    %794 = vector.broadcast %793 : vector<1x128xf32> to vector<64x128xf32>
    %795 = arith.mulf %791, %794 : vector<64x128xf32>
    %796 = arith.addf %786, %795 : vector<64x128xf32>
    %c3_421 = arith.constant 3 : index
    %c0_422 = arith.constant 0 : index
    %c0_423 = arith.constant 0 : index
    %797 = vector.load %arg3[%c3_421, %c0_422, %c0_423] : memref<4x1x128xf32, #tpu.memory_space<vmem>>, vector<1x1x128xf32>
    %798 = vector.shape_cast %797 : vector<1x1x128xf32> to vector<1x128xf32>
    %799 = vector.broadcast %798 : vector<1x128xf32> to vector<64x128xf32>
    %800 = arith.mulf %642, %799 : vector<64x128xf32>
    %801 = arith.addf %796, %800 : vector<64x128xf32>
    %802 = arith.mulf %801, %801 : vector<64x128xf32>
    %803 = arith.mulf %801, %802 : vector<64x128xf32>
    %cst_424 = arith.constant 4.471500e-02 : f32
    %804 = vector.broadcast %cst_424 : f32 to vector<64x128xf32>
    %805 = arith.mulf %804, %803 : vector<64x128xf32>
    %806 = arith.addf %801, %805 : vector<64x128xf32>
    %cst_425 = arith.constant 0.797884583 : f32
    %807 = vector.broadcast %cst_425 : f32 to vector<64x128xf32>
    %808 = arith.mulf %807, %806 : vector<64x128xf32>
    %809 = math.tanh %808 : vector<64x128xf32>
    %cst_426 = arith.constant 1.000000e+00 : f32
    %810 = vector.broadcast %cst_426 : f32 to vector<64x128xf32>
    %811 = arith.addf %810, %809 : vector<64x128xf32>
    %cst_427 = arith.constant 5.000000e-01 : f32
    %812 = vector.broadcast %cst_427 : f32 to vector<64x128xf32>
    %813 = arith.mulf %812, %811 : vector<64x128xf32>
    %814 = arith.mulf %801, %813 : vector<64x128xf32>
    %815 = arith.truncf %814 : vector<64x128xf32> to vector<64x128xbf16>
    %c3_428 = arith.constant 3 : index
    %c0_429 = arith.constant 0 : index
    %c0_430 = arith.constant 0 : index
    %816 = vector.load %arg4[%c3_428, %c0_429, %c0_430] : memref<4x128x256xbf16, #tpu.memory_space<vmem>>, vector<1x128x256xbf16>
    %817 = vector.shape_cast %816 : vector<1x128x256xbf16> to vector<128x256xbf16>
    %cst_431 = arith.constant dense<0.000000e+00> : vector<64x256xf32>
    %818 = tpu.matmul %815, %817, %cst_431 {dimension_numbers = #tpu.dot_dimension_numbers<[1], [0], [0], [1], [0, 0, 1, 1], [], []>} : vector<64x128xbf16>, vector<128x256xbf16>, vector<64x256xf32> -> vector<64x256xf32>
    %c3_432 = arith.constant 3 : index
    %c0_433 = arith.constant 0 : index
    %c0_434 = arith.constant 0 : index
    %819 = vector.load %arg5[%c3_432, %c0_433, %c0_434] : memref<4x1x256xf32, #tpu.memory_space<vmem>>, vector<1x1x256xf32>
    %820 = vector.shape_cast %819 : vector<1x1x256xf32> to vector<1x256xf32>
    %821 = vector.broadcast %820 : vector<1x256xf32> to vector<64x256xf32>
    %822 = arith.addf %818, %821 : vector<64x256xf32>
    %823 = vector.extract_strided_slice %822 {offsets = [0, 0], sizes = [64, 128], strides = [1, 1]} : vector<64x256xf32> to vector<64x128xf32>
    %824 = vector.extract_strided_slice %822 {offsets = [0, 128], sizes = [64, 128], strides = [1, 1]} : vector<64x256xf32> to vector<64x128xf32>
    %825 = arith.negf %824 : vector<64x128xf32>
    %826 = math.exp %825 : vector<64x128xf32>
    %cst_435 = arith.constant 1.000000e+00 : f32
    %827 = vector.broadcast %cst_435 : f32 to vector<64x128xf32>
    %828 = arith.addf %827, %826 : vector<64x128xf32>
    %829 = arith.divf %827, %828 : vector<64x128xf32>
    %830 = arith.mulf %823, %829 : vector<64x128xf32>
    %831 = arith.addf %830, %642 : vector<64x128xf32>
    %cst_436 = arith.constant dense<0.000000e+00> : vector<64xf32>
    %832 = vector.multi_reduction <add>, %831, %cst_436 [1] : vector<64x128xf32> to vector<64xf32>
    %833 = vector.shape_cast %832 : vector<64xf32> to vector<64x1xf32>
    %cst_437 = arith.constant 1.280000e+02 : f32
    %834 = vector.broadcast %cst_437 : f32 to vector<64x1xf32>
    %835 = arith.divf %833, %834 : vector<64x1xf32>
    %836 = vector.broadcast %835 : vector<64x1xf32> to vector<64x128xf32>
    %837 = arith.subf %831, %836 : vector<64x128xf32>
    %838 = arith.mulf %837, %837 : vector<64x128xf32>
    %cst_438 = arith.constant dense<0.000000e+00> : vector<64xf32>
    %839 = vector.multi_reduction <add>, %838, %cst_438 [1] : vector<64x128xf32> to vector<64xf32>
    %840 = vector.shape_cast %839 : vector<64xf32> to vector<64x1xf32>
    %cst_439 = arith.constant 1.280000e+02 : f32
    %841 = vector.broadcast %cst_439 : f32 to vector<64x1xf32>
    %842 = arith.divf %840, %841 : vector<64x1xf32>
    %cst_440 = arith.constant 9.99999974E-6 : f32
    %843 = vector.broadcast %cst_440 : f32 to vector<64x1xf32>
    %844 = arith.addf %842, %843 : vector<64x1xf32>
    %845 = math.rsqrt %844 : vector<64x1xf32>
    %846 = vector.broadcast %845 : vector<64x1xf32> to vector<64x128xf32>
    %847 = arith.mulf %837, %846 : vector<64x128xf32>
    %c3_441 = arith.constant 3 : index
    %c0_442 = arith.constant 0 : index
    %c0_443 = arith.constant 0 : index
    %848 = vector.load %arg6[%c3_441, %c0_442, %c0_443] : memref<4x1x128xf32, #tpu.memory_space<vmem>>, vector<1x1x128xf32>
    %849 = vector.shape_cast %848 : vector<1x1x128xf32> to vector<1x128xf32>
    %850 = vector.broadcast %849 : vector<1x128xf32> to vector<64x128xf32>
    %851 = arith.mulf %847, %850 : vector<64x128xf32>
    %c3_444 = arith.constant 3 : index
    %c0_445 = arith.constant 0 : index
    %c0_446 = arith.constant 0 : index
    %852 = vector.load %arg7[%c3_444, %c0_445, %c0_446] : memref<4x1x128xf32, #tpu.memory_space<vmem>>, vector<1x1x128xf32>
    %853 = vector.shape_cast %852 : vector<1x1x128xf32> to vector<1x128xf32>
    %854 = vector.broadcast %853 : vector<1x128xf32> to vector<64x128xf32>
    %855 = arith.addf %851, %854 : vector<64x128xf32>
    %856 = arith.truncf %855 : vector<64x128xf32> to vector<64x128xbf16>
    %c0_447 = arith.constant 0 : index
    %c0_448 = arith.constant 0 : index
    %857 = vector.load %arg8[%c0_447, %c0_448] : memref<128x128xbf16, #tpu.memory_space<vmem>>, vector<128x128xbf16>
    %cst_449 = arith.constant dense<0.000000e+00> : vector<64x128xf32>
    %858 = tpu.matmul %856, %857, %cst_449 {dimension_numbers = #tpu.dot_dimension_numbers<[1], [0], [0], [1], [0, 0, 1, 1], [], []>} : vector<64x128xbf16>, vector<128x128xbf16>, vector<64x128xf32> -> vector<64x128xf32>
    %c0_450 = arith.constant 0 : index
    %c0_451 = arith.constant 0 : index
    %859 = vector.load %arg9[%c0_450, %c0_451] : memref<1x128xf32, #tpu.memory_space<vmem>>, vector<1x128xf32>
    %860 = vector.broadcast %859 : vector<1x128xf32> to vector<64x128xf32>
    %861 = arith.addf %858, %860 : vector<64x128xf32>
    %862 = vector.shape_cast %861 : vector<64x128xf32> to vector<4x16x128xf32>
    %c0_452 = arith.constant 0 : index
    %c0_453 = arith.constant 0 : index
    %c0_454 = arith.constant 0 : index
    %863 = vector.load %arg10[%c0_452, %c0_453, %c0_454] : memref<4x16x128xf32, #tpu.memory_space<vmem>>, vector<4x16x128xf32>
    tpu.vector_store %arg10[%c0_452, %c0_453, %c0_454], %862 {strides = array<i32>} : memref<4x16x128xf32, #tpu.memory_space<vmem>>, vector<4x16x128xf32>,
    return
  }
  func.func @transform_0(%arg0: i32) -> (i32, i32, i32) {
    %c0_i32 = arith.constant 0 : i32
    %c0_i32_0 = arith.constant 0 : i32
    %c0_i32_1 = arith.constant 0 : i32
    return %arg0, %c0_i32, %c0_i32_0 : i32, i32, i32
  }
  func.func @transform_1(%arg0: i32) -> (i32, i32, i32) {
    %c0_i32 = arith.constant 0 : i32
    %c0_i32_0 = arith.constant 0 : i32
    %c0_i32_1 = arith.constant 0 : i32
    %c0_i32_2 = arith.constant 0 : i32
    return %c0_i32, %c0_i32_0, %c0_i32_1 : i32, i32, i32
  }
  func.func @transform_2(%arg0: i32) -> (i32, i32, i32) {
    %c0_i32 = arith.constant 0 : i32
    %c0_i32_0 = arith.constant 0 : i32
    %c0_i32_1 = arith.constant 0 : i32
    %c0_i32_2 = arith.constant 0 : i32
    return %c0_i32, %c0_i32_0, %c0_i32_1 : i32, i32, i32
  }
  func.func @transform_3(%arg0: i32) -> (i32, i32, i32) {
    %c0_i32 = arith.constant 0 : i32
    %c0_i32_0 = arith.constant 0 : i32
    %c0_i32_1 = arith.constant 0 : i32
    %c0_i32_2 = arith.constant 0 : i32
    return %c0_i32, %c0_i32_0, %c0_i32_1 : i32, i32, i32
  }
  func.func @transform_4(%arg0: i32) -> (i32, i32, i32) {
    %c0_i32 = arith.constant 0 : i32
    %c0_i32_0 = arith.constant 0 : i32
    %c0_i32_1 = arith.constant 0 : i32
    %c0_i32_2 = arith.constant 0 : i32
    return %c0_i32, %c0_i32_0, %c0_i32_1 : i32, i32, i32
  }
  func.func @transform_5(%arg0: i32) -> (i32, i32, i32) {
    %c0_i32 = arith.constant 0 : i32
    %c0_i32_0 = arith.constant 0 : i32
    %c0_i32_1 = arith.constant 0 : i32
    %c0_i32_2 = arith.constant 0 : i32
    return %c0_i32, %c0_i32_0, %c0_i32_1 : i32, i32, i32
  }
  func.func @transform_6(%arg0: i32) -> (i32, i32, i32) {
    %c0_i32 = arith.constant 0 : i32
    %c0_i32_0 = arith.constant 0 : i32
    %c0_i32_1 = arith.constant 0 : i32
    %c0_i32_2 = arith.constant 0 : i32
    return %c0_i32, %c0_i32_0, %c0_i32_1 : i32, i32, i32
  }
  func.func @transform_7(%arg0: i32) -> (i32, i32) {
    %c0_i32 = arith.constant 0 : i32
    %c0_i32_0 = arith.constant 0 : i32
    %c0_i32_1 = arith.constant 0 : i32
    return %c0_i32, %c0_i32_0 : i32, i32
  }
  func.func @transform_8(%arg0: i32) -> (i32, i32) {
    %c0_i32 = arith.constant 0 : i32
    %c0_i32_0 = arith.constant 0 : i32
    %c0_i32_1 = arith.constant 0 : i32
    return %c0_i32, %c0_i32_0 : i32, i32
  }
  func.func @transform_9(%arg0: i32) -> (i32, i32, i32) {
    %c0_i32 = arith.constant 0 : i32
    %c0_i32_0 = arith.constant 0 : i32
    %c0_i32_1 = arith.constant 0 : i32
    return %arg0, %c0_i32, %c0_i32_0 : i32, i32, i32
  }
}

</mosaic_0001>

<llo_original>
// kernel: tpu_custom_call.1
$region0: #{tpu_custom_call.1}
  #allocation0 [shape = 'u32[]', space=smem, size = 0x4, offset = 0x4, fixed_abs, tag = 'smem constant byte address 0x4 - core index']
  #allocation1 [shape = 'u32[72,128]{1,0:T(1,128)}', space=vmem, size = 0x9000, scoped, tag = 'internal scratch']
  %s0 = inlined_call_operand.hbm [shape: f32[8,16,128], index: 0, kind: input, shape index: {}]
  %s1 = inlined_call_operand.hbm [shape: f32[4,16,128], index: 1, kind: input, shape index: {}]
  %s2 = inlined_call_operand.hbm [shape: f32[4,1,128], index: 2, kind: input, shape index: {}]
  %s3 = inlined_call_operand.hbm [shape: bf16[4,128,256], index: 3, kind: input, shape index: {}]
  %s4 = inlined_call_operand.hbm [shape: f32[4,1,256], index: 4, kind: input, shape index: {}]
  %s5 = inlined_call_operand.vmem [shape: f32[4,1,128], index: 5, kind: input, shape index: {}]
  %s6 = inlined_call_operand.hbm [shape: f32[4,1,128], index: 6, kind: input, shape index: {}]
  %s7 = inlined_call_operand.hbm [shape: bf16[128,128], index: 7, kind: input, shape index: {}]
  %s8 = inlined_call_operand.vmem [shape: f32[1,128], index: 8, kind: input, shape index: {}]
  %s9 = inlined_call_operand.hbm [shape: f32[8,16,128], index: 9, kind: output, shape index: {}]
  %s10 = sld [smem:[#allocation0]]
  $region97: #{tpu_custom_call.1} parent=0
    _
  %s12 = ssub.s32 1, %s10
  %s13 = scalar_select 0, %s12, %s10
  $region1: #{tpu_custom_call.1} parent=0
    #allocation2 [shape = 'u8[65536]{0}', space=vmem, size = 0x10000, scoped, tag = 'input window, operand 0']
    #allocation3 [shape = 's32[2]{0}', space=sflag, size = 0x8, scoped, tag = 'scoped memory for tpu_custom_call.1']
    #allocation4 [shape = 's32[2]{0}', space=sflag, size = 0x8, scoped, tag = 'scoped memory for tpu_custom_call.1']
    #allocation5 [shape = 'u8[32768]{0}', space=vmem, size = 0x8000, scoped, tag = 'input window, operand 1, single buffered']
    #allocation6 [shape = 's32[1]{0}', space=sflag, size = 0x4, scoped, tag = 'scoped memory for tpu_custom_call.1']
    #allocation7 [shape = 'u8[2048]{0}', space=vmem, size = 0x800, scoped, tag = 'input window, operand 2, single buffered']
    #allocation8 [shape = 'u8[262144]{0}', space=vmem, size = 0x40000, scoped, tag = 'input window, operand 3, single buffered']
    #allocation9 [shape = 's32[1]{0}', space=sflag, size = 0x4, scoped, tag = 'scoped memory for tpu_custom_call.1']
    #allocation10 [shape = 'u8[4096]{0}', space=vmem, size = 0x1000, scoped, tag = 'input window, operand 4, single buffered']
    #allocation11 [shape = 'u8[2048]{0}', space=vmem, size = 0x800, scoped, tag = 'input window, operand 6, single buffered']
    #allocation12 [shape = 's32[1]{0}', space=sflag, size = 0x4, scoped, tag = 'scoped memory for tpu_custom_call.1']
    #allocation13 [shape = 'u8[32768]{0}', space=vmem, size = 0x8000, scoped, tag = 'input window, operand 7, single buffered']
    #allocation14 [shape = 'u8[65536]{0}', space=vmem, size = 0x10000, scoped, tag = 'output window, operand 0']
    %14 = vsyncpa [#allocation3], 0
    %s15 = scalar_lea.sflag [#allocation3], 1
    %16 = vsyncpa %s15, 0
    %17 = vsyncpa [#allocation6], 0
    %18 = vsyncpa [#allocation9], 0
    %19 = vsyncpa [#allocation12], 0
    %20 = vsyncpa [#allocation4], 0
    %s21 = scalar_lea.sflag [#allocation4], 1
    %22 = vsyncpa %s21, 0
    loop: start=0, step=1, limit=4
    $region2: #{tpu_custom_call.1} parent=1 // loop_pre_header
      _
    $region3: #{tpu_custom_call.1} parent=1 // loop_header
      %s24 = sphi 0, %s28
      %p25 = scmp.ge.s32.totalorder %s24, 4
      %s34 = sphi 0, %s36
      %s37 = sphi 0, %s34
      %s38 = sphi 0, %s37
      %s54 = sphi 0, %s38
      %s58 = sphi 0, %s58
      %s60 = sphi 0, %s58
      %s61 = sphi 0, %s60
      %s75 = sphi 0, %s61
      %s79 = sphi 0, %s79
      %s81 = sphi 0, %s79
      %s82 = sphi 0, %s81
      %s96 = sphi 0, %s82
      %s100 = sphi 0, %s100
      %s102 = sphi 0, %s100
      %s103 = sphi 0, %s102
      %s117 = sphi 0, %s103
      %s121 = sphi 0, %s121
      %s123 = sphi 0, %s121
      %s124 = sphi 0, %s123
      %s138 = sphi 0, %s124
      %s142 = sphi 0, %s142
      %s144 = sphi 0, %s142
      %s145 = sphi 0, %s144
      %s159 = sphi 0, %s145
      %s163 = sphi 0, %s163
      %s165 = sphi 0, %s163
      %s166 = sphi 0, %s165
      %s180 = sphi 0, %s166
      %s184 = sphi 0, %s184
      %s186 = sphi 0, %s184
      %s187 = sphi 0, %s186
      %s201 = sphi 0, %s187
      %s205 = sphi 0, %s205
      %s207 = sphi 0, %s205
      %s208 = sphi 0, %s207
      %s222 = sphi 0, %s208
      %s228 = sphi 0, %s230
      %s231 = sphi 0, %s228
      %s232 = sphi 0, %s231
      %s248 = sphi 0, %s232
    $region4: #{tpu_custom_call.1} parent=1 // loop_header_branch
      %27 = sbr.rel (%p25) target = $region8
    $region5: #{tpu_custom_call.1} parent=1 // loop_body
      %s29 = ssub.s32 %s24, 1
      %s30 = ssub.s32 %s24, 2
      %s31 = sadd.s32 %s24, 1
      %s32 = ssub.s32 %s24, %s31
      %p33 = scmp.eq.s32.totalorder %s32, 0
      %s35 = sadd.s32 %s34, 1
      %s36 = scalar_select %p33, %s34, %s35
      %p39 = pneg %p33
      %p40 = scmp.eq.s32.totalorder %s24, 1
      %p41 = por %p39, %p40
      %p42 = scmp.ne.s32.totalorder %s34, %s37
      %p43 = scmp.eq.s32.totalorder %s24, 0
      %p44 = por %p42, %p43
      %p45 = scmp.ne.s32.totalorder %s34, %s37
      %p46 = scmp.eq.s32.totalorder %s29, 1
      %p47 = por %p45, %p46
      %p48 = scmp.ne.s32.totalorder %s37, %s38
      %p49 = scmp.eq.s32.totalorder %s29, 0
      %p50 = por %p48, %p49
      %p51 = scmp.ne.s32.totalorder %s37, %s38
      %p52 = scmp.eq.s32.totalorder %s30, 1
      %p53 = por %p51, %p52
      %p55 = scmp.ne.s32.totalorder %s38, %s54
      %p56 = scmp.eq.s32.totalorder %s30, 0
      %p57 = por %p55, %p56
      %s59 = sadd.s32 %s58, 1
      %p62 = scmp.eq.s32.totalorder %s24, 1
      %p63 = scmp.ne.s32.totalorder %s58, %s60
      %p64 = scmp.eq.s32.totalorder %s24, 0
      %p65 = por %p63, %p64
      %p66 = scmp.ne.s32.totalorder %s58, %s60
      %p67 = scmp.eq.s32.totalorder %s29, 1
      %p68 = por %p66, %p67
      %p69 = scmp.ne.s32.totalorder %s60, %s61
      %p70 = scmp.eq.s32.totalorder %s29, 0
      %p71 = por %p69, %p70
      %p72 = scmp.ne.s32.totalorder %s60, %s61
      %p73 = scmp.eq.s32.totalorder %s30, 1
      %p74 = por %p72, %p73
      %p76 = scmp.ne.s32.totalorder %s61, %s75
      %p77 = scmp.eq.s32.totalorder %s30, 0
      %p78 = por %p76, %p77
      %s80 = sadd.s32 %s79, 1
      %p83 = scmp.eq.s32.totalorder %s24, 1
      %p84 = scmp.ne.s32.totalorder %s79, %s81
      %p85 = scmp.eq.s32.totalorder %s24, 0
      %p86 = por %p84, %p85
      %p87 = scmp.ne.s32.totalorder %s79, %s81
      %p88 = scmp.eq.s32.totalorder %s29, 1
      %p89 = por %p87, %p88
      %p90 = scmp.ne.s32.totalorder %s81, %s82
      %p91 = scmp.eq.s32.totalorder %s29, 0
      %p92 = por %p90, %p91
      %p93 = scmp.ne.s32.totalorder %s81, %s82
      %p94 = scmp.eq.s32.totalorder %s30, 1
      %p95 = por %p93, %p94
      %p97 = scmp.ne.s32.totalorder %s82, %s96
      %p98 = scmp.eq.s32.totalorder %s30, 0
      %p99 = por %p97, %p98
      %s101 = sadd.s32 %s100, 1
      %p104 = scmp.eq.s32.totalorder %s24, 1
      %p105 = scmp.ne.s32.totalorder %s100, %s102
      %p106 = scmp.eq.s32.totalorder %s24, 0
      %p107 = por %p105, %p106
      %p108 = scmp.ne.s32.totalorder %s100, %s102
      %p109 = scmp.eq.s32.totalorder %s29, 1
      %p110 = por %p108, %p109
      %p111 = scmp.ne.s32.totalorder %s102, %s103
      %p112 = scmp.eq.s32.totalorder %s29, 0
      %p113 = por %p111, %p112
      %p114 = scmp.ne.s32.totalorder %s102, %s103
      %p115 = scmp.eq.s32.totalorder %s30, 1
      %p116 = por %p114, %p115
      %p118 = scmp.ne.s32.totalorder %s103, %s117
      %p119 = scmp.eq.s32.totalorder %s30, 0
      %p120 = por %p118, %p119
      %s122 = sadd.s32 %s121, 1
      %p125 = scmp.eq.s32.totalorder %s24, 1
      %p126 = scmp.ne.s32.totalorder %s121, %s123
      %p127 = scmp.eq.s32.totalorder %s24, 0
      %p128 = por %p126, %p127
      %p129 = scmp.ne.s32.totalorder %s121, %s123
      %p130 = scmp.eq.s32.totalorder %s29, 1
      %p131 = por %p129, %p130
      %p132 = scmp.ne.s32.totalorder %s123, %s124
      %p133 = scmp.eq.s32.totalorder %s29, 0
      %p134 = por %p132, %p133
      %p135 = scmp.ne.s32.totalorder %s123, %s124
      %p136 = scmp.eq.s32.totalorder %s30, 1
      %p137 = por %p135, %p136
      %p139 = scmp.ne.s32.totalorder %s124, %s138
      %p140 = scmp.eq.s32.totalorder %s30, 0
      %p141 = por %p139, %p140
      %s143 = sadd.s32 %s142, 1
      %p146 = scmp.eq.s32.totalorder %s24, 1
      %p147 = scmp.ne.s32.totalorder %s142, %s144
      %p148 = scmp.eq.s32.totalorder %s24, 0
      %p149 = por %p147, %p148
      %p150 = scmp.ne.s32.totalorder %s142, %s144
      %p151 = scmp.eq.s32.totalorder %s29, 1
      %p152 = por %p150, %p151
      %p153 = scmp.ne.s32.totalorder %s144, %s145
      %p154 = scmp.eq.s32.totalorder %s29, 0
      %p155 = por %p153, %p154
      %p156 = scmp.ne.s32.totalorder %s144, %s145
      %p157 = scmp.eq.s32.totalorder %s30, 1
      %p158 = por %p156, %p157
      %p160 = scmp.ne.s32.totalorder %s145, %s159
      %p161 = scmp.eq.s32.totalorder %s30, 0
      %p162 = por %p160, %p161
      %s164 = sadd.s32 %s163, 1
      %p167 = scmp.eq.s32.totalorder %s24, 1
      %p168 = scmp.ne.s32.totalorder %s163, %s165
      %p169 = scmp.eq.s32.totalorder %s24, 0
      %p170 = por %p168, %p169
      %p171 = scmp.ne.s32.totalorder %s163, %s165
      %p172 = scmp.eq.s32.totalorder %s29, 1
      %p173 = por %p171, %p172
      %p174 = scmp.ne.s32.totalorder %s165, %s166
      %p175 = scmp.eq.s32.totalorder %s29, 0
      %p176 = por %p174, %p175
      %p177 = scmp.ne.s32.totalorder %s165, %s166
      %p178 = scmp.eq.s32.totalorder %s30, 1
      %p179 = por %p177, %p178
      %p181 = scmp.ne.s32.totalorder %s166, %s180
      %p182 = scmp.eq.s32.totalorder %s30, 0
      %p183 = por %p181, %p182
      %s185 = sadd.s32 %s184, 1
      %p188 = scmp.eq.s32.totalorder %s24, 1
      %p189 = scmp.ne.s32.totalorder %s184, %s186
      %p190 = scmp.eq.s32.totalorder %s24, 0
      %p191 = por %p189, %p190
      %p192 = scmp.ne.s32.totalorder %s184, %s186
      %p193 = scmp.eq.s32.totalorder %s29, 1
      %p194 = por %p192, %p193
      %p195 = scmp.ne.s32.totalorder %s186, %s187
      %p196 = scmp.eq.s32.totalorder %s29, 0
      %p197 = por %p195, %p196
      %p198 = scmp.ne.s32.totalorder %s186, %s187
      %p199 = scmp.eq.s32.totalorder %s30, 1
      %p200 = por %p198, %p199
      %p202 = scmp.ne.s32.totalorder %s187, %s201
      %p203 = scmp.eq.s32.totalorder %s30, 0
      %p204 = por %p202, %p203
      %s206 = sadd.s32 %s205, 1
      %p209 = scmp.eq.s32.totalorder %s24, 1
      %p210 = scmp.ne.s32.totalorder %s205, %s207
      %p211 = scmp.eq.s32.totalorder %s24, 0
      %p212 = por %p210, %p211
      %p213 = scmp.ne.s32.totalorder %s205, %s207
      %p214 = scmp.eq.s32.totalorder %s29, 1
      %p215 = por %p213, %p214
      %p216 = scmp.ne.s32.totalorder %s207, %s208
      %p217 = scmp.eq.s32.totalorder %s29, 0
      %p218 = por %p216, %p217
      %p219 = scmp.ne.s32.totalorder %s207, %s208
      %p220 = scmp.eq.s32.totalorder %s30, 1
      %p221 = por %p219, %p220
      %p223 = scmp.ne.s32.totalorder %s208, %s222
      %p224 = scmp.eq.s32.totalorder %s30, 0
      %p225 = por %p223, %p224
      %s226 = ssub.s32 %s24, %s31
      %p227 = scmp.eq.s32.totalorder %s226, 0
      %s229 = sadd.s32 %s228, 1
      %s230 = scalar_select %p227, %s228, %s229
      %p233 = pneg %p227
      %p234 = scmp.eq.s32.totalorder %s24, 1
      %p235 = por %p233, %p234
      %p236 = scmp.ne.s32.totalorder %s228, %s231
      %p237 = scmp.eq.s32.totalorder %s24, 0
      %p238 = por %p236, %p237
      %p239 = scmp.ne.s32.totalorder %s228, %s231
      %p240 = scmp.eq.s32.totalorder %s29, 1
      %p241 = por %p239, %p240
      %p242 = scmp.ne.s32.totalorder %s231, %s232
      %p243 = scmp.eq.s32.totalorder %s29, 0
      %p244 = por %p242, %p243
      %p245 = scmp.ne.s32.totalorder %s231, %s232
      %p246 = scmp.eq.s32.totalorder %s30, 1
      %p247 = por %p245, %p246
      %p249 = scmp.ne.s32.totalorder %s232, %s248
      %p250 = scmp.eq.s32.totalorder %s30, 0
      %p251 = por %p249, %p250
      %p252 = scmp.le.s32.totalorder 1, %s24
      %p253 = scmp.lt.s32.totalorder %s24, 3
      %p254 = pnand %p252, %p253
      %p255 = pneg %p254
      // Predicated region
      $region9: #{tpu_custom_call.1} parent=5 // pred_check
        _
      $region10: #{tpu_custom_call.1} parent=5 // pred_check_branch
        %257 = sbr.rel (%p254) target = $region12
      $region11: #{tpu_custom_call.1} parent=5 // pred_region
        %s258 = ssub.s32 %s24, 1
        // Predicated region
        $region13: #{tpu_custom_call.1} parent=11 // pred_check
          %p259 = pneg %p71
        $region14: #{tpu_custom_call.1} parent=11 // pred_check_branch
          %261 = sbr.rel (%p259) target = $region16
        $region15: #{tpu_custom_call.1} parent=11 // pred_region
          %263 = vsyncadd [#allocation6], 0
          %s264 = sshll.u32 %s1, 4
          %s265 = int_to_ptr.hbm [resolvable:$true] %s264
          %s266 = sshll.u32 [#allocation5], 4
          %s267 = int_to_ptr.vmem [resolvable:$true] %s266
          %272 = dma.hbm_to_vmem [thread:$0]  %s265, 1024, %s267, [#allocation6], 128, 128, 8
        $region16: #{tpu_custom_call.1} parent=11 // pred_fallthru
          _
        // Predicated region
        $region17: #{tpu_custom_call.1} parent=11 // pred_check
          %p273 = pneg %p92
        $region18: #{tpu_custom_call.1} parent=11 // pred_check_branch
          %275 = sbr.rel (%p273) target = $region20
        $region19: #{tpu_custom_call.1} parent=11 // pred_region
          %277 = vsyncadd [#allocation6], 0
          %s278 = sshll.u32 %s2, 4
          %s279 = int_to_ptr.hbm [resolvable:$true] %s278
          %s280 = sshll.u32 [#allocation7], 4
          %s281 = int_to_ptr.vmem [resolvable:$true] %s280
          %286 = dma.hbm_to_vmem [thread:$0]  %s279, 64, %s281, [#allocation6], 16, 16, 1
        $region20: #{tpu_custom_call.1} parent=11 // pred_fallthru
          _
        // Predicated region
        $region21: #{tpu_custom_call.1} parent=11 // pred_check
          %p287 = pneg %p113
        $region22: #{tpu_custom_call.1} parent=11 // pred_check_branch
          %289 = sbr.rel (%p287) target = $region24
        $region23: #{tpu_custom_call.1} parent=11 // pred_region
          %291 = vsyncadd [#allocation9], 0
          %s292 = sshll.u32 %s3, 4
          %s293 = int_to_ptr.hbm [resolvable:$true] %s292
          %s294 = sshll.u32 [#allocation8], 4
          %s295 = int_to_ptr.vmem [resolvable:$true] %s294
          %300 = dma.hbm_to_vmem [thread:$0]  %s293, 8192, %s295, [#allocation9], 128, 128, 8
        $region24: #{tpu_custom_call.1} parent=11 // pred_fallthru
          _
        // Predicated region
        $region25: #{tpu_custom_call.1} parent=11 // pred_check
          %p301 = pneg %p134
        $region26: #{tpu_custom_call.1} parent=11 // pred_check_branch
          %303 = sbr.rel (%p301) target = $region28
        $region27: #{tpu_custom_call.1} parent=11 // pred_region
          %305 = vsyncadd [#allocation9], 0
          %s306 = sshll.u32 %s4, 4
          %s307 = int_to_ptr.hbm [resolvable:$true] %s306
          %s308 = sshll.u32 [#allocation10], 4
          %s309 = int_to_ptr.vmem [resolvable:$true] %s308
          %314 = dma.hbm_to_vmem [thread:$0]  %s307, 128, %s309, [#allocation9], 32, 32, 2
        $region28: #{tpu_custom_call.1} parent=11 // pred_fallthru
          _
        // Predicated region
        $region29: #{tpu_custom_call.1} parent=11 // pred_check
          %p315 = pneg %p155
        $region30: #{tpu_custom_call.1} parent=11 // pred_check_branch
          %317 = sbr.rel (%p315) target = $region32
        $region31: #{tpu_custom_call.1} parent=11 // pred_region
          _
        $region32: #{tpu_custom_call.1} parent=11 // pred_fallthru
          _
        // Predicated region
        $region33: #{tpu_custom_call.1} parent=11 // pred_check
          %p318 = pneg %p176
        $region34: #{tpu_custom_call.1} parent=11 // pred_check_branch
          %320 = sbr.rel (%p318) target = $region36
        $region35: #{tpu_custom_call.1} parent=11 // pred_region
          %322 = vsyncadd [#allocation12], 0
          %s323 = sshll.u32 %s6, 4
          %s324 = int_to_ptr.hbm [resolvable:$true] %s323
          %s325 = sshll.u32 [#allocation11], 4
          %s326 = int_to_ptr.vmem [resolvable:$true] %s325
          %331 = dma.hbm_to_vmem [thread:$0]  %s324, 64, %s326, [#allocation12], 16, 16, 1
        $region36: #{tpu_custom_call.1} parent=11 // pred_fallthru
          _
        // Predicated region
        $region37: #{tpu_custom_call.1} parent=11 // pred_check
          %p332 = pneg %p197
        $region38: #{tpu_custom_call.1} parent=11 // pred_check_branch
          %334 = sbr.rel (%p332) target = $region40
        $region39: #{tpu_custom_call.1} parent=11 // pred_region
          %336 = vsyncadd [#allocation12], 0
          %s337 = sshll.u32 %s7, 4
          %s338 = int_to_ptr.hbm [resolvable:$true] %s337
          %s339 = sshll.u32 [#allocation13], 4
          %s340 = int_to_ptr.vmem [resolvable:$true] %s339
          %345 = dma.hbm_to_vmem [thread:$0]  %s338, 1024, %s340, [#allocation12], 64, 64, 4
        $region40: #{tpu_custom_call.1} parent=11 // pred_fallthru
          _
        // Predicated region
        $region41: #{tpu_custom_call.1} parent=11 // pred_check
          %p346 = pneg %p218
        $region42: #{tpu_custom_call.1} parent=11 // pred_check_branch
          %348 = sbr.rel (%p346) target = $region44
        $region43: #{tpu_custom_call.1} parent=11 // pred_region
          _
        $region44: #{tpu_custom_call.1} parent=11 // pred_fallthru
          _
      $region12: #{tpu_custom_call.1} parent=5 // pred_fallthru
        _
      %p349 = scmp.lt.s32.totalorder %s24, 2
      // Predicated region
      $region45: #{tpu_custom_call.1} parent=5 // pred_check
        %p350 = pneg %p349
      $region46: #{tpu_custom_call.1} parent=5 // pred_check_branch
        %352 = sbr.rel (%p350) target = $region48
      $region47: #{tpu_custom_call.1} parent=5 // pred_region
        // Predicated region
        $region49: #{tpu_custom_call.1} parent=47 // pred_check
          %p353 = pneg %p44
        $region50: #{tpu_custom_call.1} parent=47 // pred_check_branch
          %355 = sbr.rel (%p353) target = $region52
        $region51: #{tpu_custom_call.1} parent=47 // pred_region
          %s356 = sand.u32 %s34, 1
          %s357 = scalar_lea.sflag [#allocation3], %s356
          %s358 = sand.u32 %s34, 1
          %s359 = smul.addr %s358, 64
          %s360 = scalar_lea.vmem [#allocation2], %s359
          %s361 = smul.u32 4, %s24
          %363 = vsyncadd %s357, 0
          %s364 = smul.addr %s361, 2
          %s365 = smul.addr %s364, 8
          %s366 = scalar_lea.hbm %s0, %s365
          %s367 = sshll.u32 %s366, 4
          %s368 = int_to_ptr.hbm [resolvable:$true] %s367
          %s369 = sshll.u32 %s360, 4
          %s370 = int_to_ptr.vmem [resolvable:$true] %s369
          %375 = dma.hbm_to_vmem [thread:$0]  %s368, 1024, %s370, %s357, 128, 128, 8
        $region52: #{tpu_custom_call.1} parent=47 // pred_fallthru
          _
      $region48: #{tpu_custom_call.1} parent=5 // pred_fallthru
        _
      %p376 = scmp.le.s32.totalorder 1, %s24
      %p377 = scmp.lt.s32.totalorder %s24, 3
      %p378 = pnand %p376, %p377
      %p379 = pneg %p378
      // Predicated region
      $region53: #{tpu_custom_call.1} parent=5 // pred_check
        _
      $region54: #{tpu_custom_call.1} parent=5 // pred_check_branch
        %381 = sbr.rel (%p378) target = $region56
      $region55: #{tpu_custom_call.1} parent=5 // pred_region
        %s382 = ssub.s32 %s24, 1
        %s383 = sand.u32 %s37, 1
        %s384 = scalar_lea.sflag [#allocation3], %s383
        %s385 = sand.u32 %s37, 1
        %s386 = smul.addr %s385, 64
        %s387 = scalar_lea.vmem [#allocation2], %s386
        // Predicated region
        $region57: #{tpu_custom_call.1} parent=55 // pred_check
          %p388 = pneg %p50
        $region58: #{tpu_custom_call.1} parent=55 // pred_check_branch
          %390 = sbr.rel (%p388) target = $region60
        $region59: #{tpu_custom_call.1} parent=55 // pred_region
          %392 = dma.done %s384, 1024
        $region60: #{tpu_custom_call.1} parent=55 // pred_fallthru
          _
        // Predicated region
        $region61: #{tpu_custom_call.1} parent=55 // pred_check
          %p393 = pneg %p71
        $region62: #{tpu_custom_call.1} parent=55 // pred_check_branch
          %395 = sbr.rel (%p393) target = $region64
        $region63: #{tpu_custom_call.1} parent=55 // pred_region
          %397 = dma.done [#allocation6], 1024
        $region64: #{tpu_custom_call.1} parent=55 // pred_fallthru
          _
        // Predicated region
        $region65: #{tpu_custom_call.1} parent=55 // pred_check
          %p398 = pneg %p92
        $region66: #{tpu_custom_call.1} parent=55 // pred_check_branch
          %400 = sbr.rel (%p398) target = $region68
        $region67: #{tpu_custom_call.1} parent=55 // pred_region
          %402 = dma.done [#allocation6], 64
        $region68: #{tpu_custom_call.1} parent=55 // pred_fallthru
          _
        // Predicated region
        $region69: #{tpu_custom_call.1} parent=55 // pred_check
          %p403 = pneg %p113
        $region70: #{tpu_custom_call.1} parent=55 // pred_check_branch
          %405 = sbr.rel (%p403) target = $region72
        $region71: #{tpu_custom_call.1} parent=55 // pred_region
          %407 = dma.done [#allocation9], 8192
        $region72: #{tpu_custom_call.1} parent=55 // pred_fallthru
          _
        // Predicated region
        $region73: #{tpu_custom_call.1} parent=55 // pred_check
          %p408 = pneg %p134
        $region74: #{tpu_custom_call.1} parent=55 // pred_check_branch
          %410 = sbr.rel (%p408) target = $region76
        $region75: #{tpu_custom_call.1} parent=55 // pred_region
          %412 = dma.done [#allocation9], 128
        $region76: #{tpu_custom_call.1} parent=55 // pred_fallthru
          _
        // Predicated region
        $region77: #{tpu_custom_call.1} parent=55 // pred_check
          %p413 = pneg %p176
        $region78: #{tpu_custom_call.1} parent=55 // pred_check_branch
          %415 = sbr.rel (%p413) target = $region80
        $region79: #{tpu_custom_call.1} parent=55 // pred_region
          %417 = dma.done [#allocation12], 64
        $region80: #{tpu_custom_call.1} parent=55 // pred_fallthru
          _
        // Predicated region
        $region81: #{tpu_custom_call.1} parent=55 // pred_check
          %p418 = pneg %p197
        $region82: #{tpu_custom_call.1} parent=55 // pred_check_branch
          %420 = sbr.rel (%p418) target = $region84
        $region83: #{tpu_custom_call.1} parent=55 // pred_region
          %422 = dma.done [#allocation12], 1024
        $region84: #{tpu_custom_call.1} parent=55 // pred_fallthru
          _
        %s423 = sand.u32 %s37, 1
        %s424 = scalar_lea.sflag [#allocation3], %s423
        %s425 = sand.u32 %s37, 1
        %s426 = smul.addr %s425, 64
        %s427 = scalar_lea.vmem [#allocation2], %s426
        %p428 = pneg %p50
        %p429 = pneg %p47
        %p430 = pneg %p71
        %p431 = pneg %p68
        %p432 = pneg %p92
        %p433 = pneg %p89
        %p434 = pneg %p113
        %p435 = pneg %p110
        %p436 = pneg %p134
        %p437 = pneg %p131
        %p438 = pneg %p155
        %p439 = pneg %p152
        %p440 = pneg %p176
        %p441 = pneg %p173
        %p442 = pneg %p197
        %p443 = pneg %p194
        %p444 = pneg %p218
        %p445 = pneg %p215
        %p446 = pneg %p244
        %p447 = pneg %p241
        %s448 = sand.u32 %s231, 1
        %s449 = scalar_lea.sflag [#allocation4], %s448
        %s450 = sand.u32 %s231, 1
        %s451 = smul.addr %s450, 64
        %s452 = scalar_lea.vmem [#allocation14], %s451
        %s453 = smul.u32 4, %s29
        %s454 = smul.u32 4, %s29
        %v455 = vld [vmem:[%s387] sm:$0xff]
        %v456 = vld [vmem:[%s387 + $0x8] sm:$0xff]
        %v457 = vld [vmem:[%s387 + $0x10] sm:$0xff]
        %v458 = vld [vmem:[%s387 + $0x18] sm:$0xff]
        %v459 = vld [vmem:[%s387 + $0x20] sm:$0xff]
        %v460 = vld [vmem:[%s387 + $0x28] sm:$0xff]
        %v461 = vld [vmem:[%s387 + $0x30] sm:$0xff]
        %v462 = vld [vmem:[%s387 + $0x38] sm:$0xff]
        %v463 = vlaneseq
        %v464 = vshrl.u32 %v463, 7
        %v465 = vadd.s32 %v464, 8
        %v466 = vld [vmem:[#allocation5] sm:$0x1]
        %v467 = vperm.slane %v466, 0
        %v468 = vmul.f32 %v455, %v467
        %v469 = vmul.f32 %v456, %v467
        %v470 = vmul.f32 %v457, %v467
        %v471 = vmul.f32 %v458, %v467
        %v472 = vmul.f32 %v459, %v467
        %v473 = vmul.f32 %v460, %v467
        %v474 = vmul.f32 %v461, %v467
        %v475 = vmul.f32 %v462, %v467
        %v476 = vrot.slane %v455, 7
        %v477 = vrot.slane %v456, 7
        %v478 = vrot.slane %v457, 7
        %v479 = vrot.slane %v458, 7
        %v480 = vrot.slane %v459, 7
        %v481 = vrot.slane %v460, 7
        %v482 = vrot.slane %v461, 7
        %v483 = vrot.slane %v462, 7
        %vm484 = vcmp.lt.s32.totalorder %v464, 1
        %v485 = vsel %vm484, %v482, %v483
        %v486 = vsel %vm484, %v481, %v482
        %v487 = vsel %vm484, %v480, %v481
        %v488 = vsel %vm484, %v479, %v480
        %v489 = vsel %vm484, %v478, %v479
        %v490 = vsel %vm484, %v477, %v478
        %v491 = vsel %vm484, %v476, %v477
        %v492 = vsel %vm484, %v483, %v476
        %vm493 = vcmp.ge.s32.totalorder %v464, 1
        %vm494 = vcmp.ge.s32.totalorder %v465, 1
        %v495 = vsel %vm493, %v492, 0.0
        %v496 = vsel %vm494, %v491, 0.0
        %v497 = vsel %vm493, %v490, 0.0
        %v498 = vsel %vm494, %v489, 0.0
        %v499 = vsel %vm493, %v488, 0.0
        %v500 = vsel %vm494, %v487, 0.0
        %v501 = vsel %vm493, %v486, 0.0
        %v502 = vsel %vm494, %v485, 0.0
        %v503 = vld [vmem:[#allocation5 + $0x1] sm:$0x1]
        %v504 = vperm.slane %v503, 0
        %v505 = vmul.f32 %v495, %v504
        %v506 = vmul.f32 %v496, %v504
        %v507 = vmul.f32 %v497, %v504
        %v508 = vmul.f32 %v498, %v504
        %v509 = vmul.f32 %v499, %v504
        %v510 = vmul.f32 %v500, %v504
        %v511 = vmul.f32 %v501, %v504
        %v512 = vmul.f32 %v502, %v504
        %v513 = vadd.f32 %v468, %v505
        %v514 = vadd.f32 %v469, %v506
        %v515 = vadd.f32 %v470, %v507
        %v516 = vadd.f32 %v471, %v508
        %v517 = vadd.f32 %v472, %v509
        %v518 = vadd.f32 %v473, %v510
        %v519 = vadd.f32 %v474, %v511
        %v520 = vadd.f32 %v475, %v512
        %v521 = vrot.slane %v455, 6
        %v522 = vrot.slane %v456, 6
        %v523 = vrot.slane %v457, 6
        %v524 = vrot.slane %v458, 6
        %v525 = vrot.slane %v459, 6
        %v526 = vrot.slane %v460, 6
        %v527 = vrot.slane %v461, 6
        %v528 = vrot.slane %v462, 6
        %vm529 = vcmp.lt.s32.totalorder %v464, 2
        %v530 = vsel %vm529, %v527, %v528
        %v531 = vsel %vm529, %v526, %v527
        %v532 = vsel %vm529, %v525, %v526
        %v533 = vsel %vm529, %v524, %v525
        %v534 = vsel %vm529, %v523, %v524
        %v535 = vsel %vm529, %v522, %v523
        %v536 = vsel %vm529, %v521, %v522
        %v537 = vsel %vm529, %v528, %v521
        %vm538 = vcmp.ge.s32.totalorder %v464, 2
        %vm539 = vcmp.ge.s32.totalorder %v465, 2
        %v540 = vsel %vm538, %v537, 0.0
        %v541 = vsel %vm539, %v536, 0.0
        %v542 = vsel %vm538, %v535, 0.0
        %v543 = vsel %vm539, %v534, 0.0
        %v544 = vsel %vm538, %v533, 0.0
        %v545 = vsel %vm539, %v532, 0.0
        %v546 = vsel %vm538, %v531, 0.0
        %v547 = vsel %vm539, %v530, 0.0
        %v548 = vld [vmem:[#allocation5 + $0x2] sm:$0x1]
        %v549 = vperm.slane %v548, 0
        %v550 = vmul.f32 %v540, %v549
        %v551 = vmul.f32 %v541, %v549
        %v552 = vmul.f32 %v542, %v549
        %v553 = vmul.f32 %v543, %v549
        %v554 = vmul.f32 %v544, %v549
        %v555 = vmul.f32 %v545, %v549
        %v556 = vmul.f32 %v546, %v549
        %v557 = vmul.f32 %v547, %v549
        %v558 = vadd.f32 %v513, %v550
        %v559 = vadd.f32 %v514, %v551
        %v560 = vadd.f32 %v515, %v552
        %v561 = vadd.f32 %v516, %v553
        %v562 = vadd.f32 %v517, %v554
        %v563 = vadd.f32 %v518, %v555
        %v564 = vadd.f32 %v519, %v556
        %v565 = vadd.f32 %v520, %v557
        %v566 = vrot.slane %v455, 5
        %v567 = vrot.slane %v456, 5
        %v568 = vrot.slane %v457, 5
        %v569 = vrot.slane %v458, 5
        %v570 = vrot.slane %v459, 5
        %v571 = vrot.slane %v460, 5
        %v572 = vrot.slane %v461, 5
        %v573 = vrot.slane %v462, 5
        %vm574 = vcmp.lt.s32.totalorder %v464, 3
        %v575 = vsel %vm574, %v572, %v573
        %v576 = vsel %vm574, %v571, %v572
        %v577 = vsel %vm574, %v570, %v571
        %v578 = vsel %vm574, %v569, %v570
        %v579 = vsel %vm574, %v568, %v569
        %v580 = vsel %vm574, %v567, %v568
        %v581 = vsel %vm574, %v566, %v567
        %v582 = vsel %vm574, %v573, %v566
        %vm583 = vcmp.ge.s32.totalorder %v464, 3
        %vm584 = vcmp.ge.s32.totalorder %v465, 3
        %v585 = vsel %vm583, %v582, 0.0
        %v586 = vsel %vm584, %v581, 0.0
        %v587 = vsel %vm583, %v580, 0.0
        %v588 = vsel %vm584, %v579, 0.0
        %v589 = vsel %vm583, %v578, 0.0
        %v590 = vsel %vm584, %v577, 0.0
        %v591 = vsel %vm583, %v576, 0.0
        %v592 = vsel %vm584, %v575, 0.0
        %v593 = vld [vmem:[#allocation5 + $0x3] sm:$0x1]
        %v594 = vperm.slane %v593, 0
        %v595 = vmul.f32 %v585, %v594
        %v596 = vmul.f32 %v586, %v594
        %v597 = vmul.f32 %v587, %v594
        %v598 = vmul.f32 %v588, %v594
        %v599 = vmul.f32 %v589, %v594
        %v600 = vmul.f32 %v590, %v594
        %v601 = vmul.f32 %v591, %v594
        %v602 = vmul.f32 %v592, %v594
        %v603 = vadd.f32 %v558, %v595
        %v604 = vadd.f32 %v559, %v596
        %v605 = vadd.f32 %v560, %v597
        %v606 = vadd.f32 %v561, %v598
        %v607 = vadd.f32 %v562, %v599
        %v608 = vadd.f32 %v563, %v600
        %v609 = vadd.f32 %v564, %v601
        %v610 = vadd.f32 %v565, %v602
        %v611 = vrot.slane %v455, 4
        %v612 = vrot.slane %v456, 4
        %v613 = vrot.slane %v457, 4
        %v614 = vrot.slane %v458, 4
        %v615 = vrot.slane %v459, 4
        %v616 = vrot.slane %v460, 4
        %v617 = vrot.slane %v461, 4
        %v618 = vrot.slane %v462, 4
        %vm619 = vcmp.lt.s32.totalorder %v464, 4
        %v620 = vsel %vm619, %v617, %v618
        %v621 = vsel %vm619, %v616, %v617
        %v622 = vsel %vm619, %v615, %v616
        %v623 = vsel %vm619, %v614, %v615
        %v624 = vsel %vm619, %v613, %v614
        %v625 = vsel %vm619, %v612, %v613
        %v626 = vsel %vm619, %v611, %v612
        %v627 = vsel %vm619, %v618, %v611
        %vm628 = vcmp.ge.s32.totalorder %v464, 4
        %vm629 = vcmp.ge.s32.totalorder %v465, 4
        %v630 = vsel %vm628, %v627, 0.0
        %v631 = vsel %vm629, %v626, 0.0
        %v632 = vsel %vm628, %v625, 0.0
        %v633 = vsel %vm629, %v624, 0.0
        %v634 = vsel %vm628, %v623, 0.0
        %v635 = vsel %vm629, %v622, 0.0
        %v636 = vsel %vm628, %v621, 0.0
        %v637 = vsel %vm629, %v620, 0.0
        %v638 = vld [vmem:[#allocation5 + $0x4] sm:$0x1]
        %v639 = vperm.slane %v638, 0
        %v640 = vmul.f32 %v630, %v639
        %v641 = vmul.f32 %v631, %v639
        %v642 = vmul.f32 %v632, %v639
        %v643 = vmul.f32 %v633, %v639
        %v644 = vmul.f32 %v634, %v639
        %v645 = vmul.f32 %v635, %v639
        %v646 = vmul.f32 %v636, %v639
        %v647 = vmul.f32 %v637, %v639
        %v648 = vadd.f32 %v603, %v640
        %v649 = vadd.f32 %v604, %v641
        %v650 = vadd.f32 %v605, %v642
        %v651 = vadd.f32 %v606, %v643
        %v652 = vadd.f32 %v607, %v644
        %v653 = vadd.f32 %v608, %v645
        %v654 = vadd.f32 %v609, %v646
        %v655 = vadd.f32 %v610, %v647
        %v656 = vrot.slane %v455, 3
        %v657 = vrot.slane %v456, 3
        %v658 = vrot.slane %v457, 3
        %v659 = vrot.slane %v458, 3
        %v660 = vrot.slane %v459, 3
        %v661 = vrot.slane %v460, 3
        %v662 = vrot.slane %v461, 3
        %v663 = vrot.slane %v462, 3
        %vm664 = vcmp.lt.s32.totalorder %v464, 5
        %v665 = vsel %vm664, %v662, %v663
        %v666 = vsel %vm664, %v661, %v662
        %v667 = vsel %vm664, %v660, %v661
        %v668 = vsel %vm664, %v659, %v660
        %v669 = vsel %vm664, %v658, %v659
        %v670 = vsel %vm664, %v657, %v658
        %v671 = vsel %vm664, %v656, %v657
        %v672 = vsel %vm664, %v663, %v656
        %vm673 = vcmp.ge.s32.totalorder %v464, 5
        %vm674 = vcmp.ge.s32.totalorder %v465, 5
        %v675 = vsel %vm673, %v672, 0.0
        %v676 = vsel %vm674, %v671, 0.0
        %v677 = vsel %vm673, %v670, 0.0
        %v678 = vsel %vm674, %v669, 0.0
        %v679 = vsel %vm673, %v668, 0.0
        %v680 = vsel %vm674, %v667, 0.0
        %v681 = vsel %vm673, %v666, 0.0
        %v682 = vsel %vm674, %v665, 0.0
        %v683 = vld [vmem:[#allocation5 + $0x5] sm:$0x1]
        %v684 = vperm.slane %v683, 0
        %v685 = vmul.f32 %v675, %v684
        %v686 = vmul.f32 %v676, %v684
        %v687 = vmul.f32 %v677, %v684
        %v688 = vmul.f32 %v678, %v684
        %v689 = vmul.f32 %v679, %v684
        %v690 = vmul.f32 %v680, %v684
        %v691 = vmul.f32 %v681, %v684
        %v692 = vmul.f32 %v682, %v684
        %v693 = vadd.f32 %v648, %v685
        %v694 = vadd.f32 %v649, %v686
        %v695 = vadd.f32 %v650, %v687
        %v696 = vadd.f32 %v651, %v688
        %v697 = vadd.f32 %v652, %v689
        %v698 = vadd.f32 %v653, %v690
        %v699 = vadd.f32 %v654, %v691
        %v700 = vadd.f32 %v655, %v692
        %v701 = vrot.slane %v455, 2
        %v702 = vrot.slane %v456, 2
        %v703 = vrot.slane %v457, 2
        %v704 = vrot.slane %v458, 2
        %v705 = vrot.slane %v459, 2
        %v706 = vrot.slane %v460, 2
        %v707 = vrot.slane %v461, 2
        %v708 = vrot.slane %v462, 2
        %vm709 = vcmp.lt.s32.totalorder %v464, 6
        %v710 = vsel %vm709, %v707, %v708
        %v711 = vsel %vm709, %v706, %v707
        %v712 = vsel %vm709, %v705, %v706
        %v713 = vsel %vm709, %v704, %v705
        %v714 = vsel %vm709, %v703, %v704
        %v715 = vsel %vm709, %v702, %v703
        %v716 = vsel %vm709, %v701, %v702
        %v717 = vsel %vm709, %v708, %v701
        %vm718 = vcmp.ge.s32.totalorder %v464, 6
        %vm719 = vcmp.ge.s32.totalorder %v465, 6
        %v720 = vsel %vm718, %v717, 0.0
        %v721 = vsel %vm719, %v716, 0.0
        %v722 = vsel %vm718, %v715, 0.0
        %v723 = vsel %vm719, %v714, 0.0
        %v724 = vsel %vm718, %v713, 0.0
        %v725 = vsel %vm719, %v712, 0.0
        %v726 = vsel %vm718, %v711, 0.0
        %v727 = vsel %vm719, %v710, 0.0
        %v728 = vld [vmem:[#allocation5 + $0x6] sm:$0x1]
        %v729 = vperm.slane %v728, 0
        %v730 = vmul.f32 %v720, %v729
        %v731 = vmul.f32 %v721, %v729
        %v732 = vmul.f32 %v722, %v729
        %v733 = vmul.f32 %v723, %v729
        %v734 = vmul.f32 %v724, %v729
        %v735 = vmul.f32 %v725, %v729
        %v736 = vmul.f32 %v726, %v729
        %v737 = vmul.f32 %v727, %v729
        %v738 = vadd.f32 %v693, %v730
        %v739 = vadd.f32 %v694, %v731
        %v740 = vadd.f32 %v695, %v732
        %v741 = vadd.f32 %v696, %v733
        %v742 = vadd.f32 %v697, %v734
        %v743 = vadd.f32 %v698, %v735
        %v744 = vadd.f32 %v699, %v736
        %v745 = vadd.f32 %v700, %v737
        %v746 = vrot.slane %v455, 1
        %v747 = vrot.slane %v456, 1
        %v748 = vrot.slane %v457, 1
        %v749 = vrot.slane %v458, 1
        %v750 = vrot.slane %v459, 1
        %v751 = vrot.slane %v460, 1
        %v752 = vrot.slane %v461, 1
        %v753 = vrot.slane %v462, 1
        %vm754 = vcmp.lt.s32.totalorder %v464, 7
        %v755 = vsel %vm754, %v752, %v753
        %v756 = vsel %vm754, %v751, %v752
        %v757 = vsel %vm754, %v750, %v751
        %v758 = vsel %vm754, %v749, %v750
        %v759 = vsel %vm754, %v748, %v749
        %v760 = vsel %vm754, %v747, %v748
        %v761 = vsel %vm754, %v746, %v747
        %v762 = vsel %vm754, %v753, %v746
        %vm763 = vcmp.ge.s32.totalorder %v464, 7
        %vm764 = vcmp.ge.s32.totalorder %v465, 7
        %v765 = vsel %vm763, %v762, 0.0
        %v766 = vsel %vm764, %v761, 0.0
        %v767 = vsel %vm763, %v760, 0.0
        %v768 = vsel %vm764, %v759, 0.0
        %v769 = vsel %vm763, %v758, 0.0
        %v770 = vsel %vm764, %v757, 0.0
        %v771 = vsel %vm763, %v756, 0.0
        %v772 = vsel %vm764, %v755, 0.0
        %v773 = vld [vmem:[#allocation5 + $0x7] sm:$0x1]
        %v774 = vperm.slane %v773, 0
        %v775 = vmul.f32 %v765, %v774
        %v776 = vmul.f32 %v766, %v774
        %v777 = vmul.f32 %v767, %v774
        %v778 = vmul.f32 %v768, %v774
        %v779 = vmul.f32 %v769, %v774
        %v780 = vmul.f32 %v770, %v774
        %v781 = vmul.f32 %v771, %v774
        %v782 = vmul.f32 %v772, %v774
        %v783 = vadd.f32 %v738, %v775
        %v784 = vadd.f32 %v739, %v776
        %v785 = vadd.f32 %v740, %v777
        %v786 = vadd.f32 %v741, %v778
        %v787 = vadd.f32 %v742, %v779
        %v788 = vadd.f32 %v743, %v780
        %v789 = vadd.f32 %v744, %v781
        %v790 = vadd.f32 %v745, %v782
        %vm791 = vcmp.ge.s32.totalorder %v464, 8
        %vm792 = vcmp.ge.s32.totalorder %v465, 8
        %v793 = vsel %vm791, %v462, 0.0
        %v794 = vsel %vm792, %v455, 0.0
        %v795 = vsel %vm791, %v456, 0.0
        %v796 = vsel %vm792, %v457, 0.0
        %v797 = vsel %vm791, %v458, 0.0
        %v798 = vsel %vm792, %v459, 0.0
        %v799 = vsel %vm791, %v460, 0.0
        %v800 = vsel %vm792, %v461, 0.0
        %v801 = vld [vmem:[#allocation5 + $0x8] sm:$0x1]
        %v802 = vperm.slane %v801, 0
        %v803 = vmul.f32 %v793, %v802
        %v804 = vmul.f32 %v794, %v802
        %v805 = vmul.f32 %v795, %v802
        %v806 = vmul.f32 %v796, %v802
        %v807 = vmul.f32 %v797, %v802
        %v808 = vmul.f32 %v798, %v802
        %v809 = vmul.f32 %v799, %v802
        %v810 = vmul.f32 %v800, %v802
        %v811 = vadd.f32 %v783, %v803
        %v812 = vadd.f32 %v784, %v804
        %v813 = vadd.f32 %v785, %v805
        %v814 = vadd.f32 %v786, %v806
        %v815 = vadd.f32 %v787, %v807
        %v816 = vadd.f32 %v788, %v808
        %v817 = vadd.f32 %v789, %v809
        %v818 = vadd.f32 %v790, %v810
        %vm819 = vcmp.ge.s32.totalorder %v464, 9
        %vm820 = vcmp.ge.s32.totalorder %v465, 9
        %v821 = vsel %vm819, %v485, 0.0
        %v822 = vsel %vm820, %v492, 0.0
        %v823 = vsel %vm819, %v491, 0.0
        %v824 = vsel %vm820, %v490, 0.0
        %v825 = vsel %vm819, %v489, 0.0
        %v826 = vsel %vm820, %v488, 0.0
        %v827 = vsel %vm819, %v487, 0.0
        %v828 = vsel %vm820, %v486, 0.0
        %v829 = vld [vmem:[#allocation5 + $0x9] sm:$0x1]
        %v830 = vperm.slane %v829, 0
        %v831 = vmul.f32 %v821, %v830
        %v832 = vmul.f32 %v822, %v830
        %v833 = vmul.f32 %v823, %v830
        %v834 = vmul.f32 %v824, %v830
        %v835 = vmul.f32 %v825, %v830
        %v836 = vmul.f32 %v826, %v830
        %v837 = vmul.f32 %v827, %v830
        %v838 = vmul.f32 %v828, %v830
        %v839 = vadd.f32 %v811, %v831
        %v840 = vadd.f32 %v812, %v832
        %v841 = vadd.f32 %v813, %v833
        %v842 = vadd.f32 %v814, %v834
        %v843 = vadd.f32 %v815, %v835
        %v844 = vadd.f32 %v816, %v836
        %v845 = vadd.f32 %v817, %v837
        %v846 = vadd.f32 %v818, %v838
        %vm847 = vcmp.ge.s32.totalorder %v464, 10
        %vm848 = vcmp.ge.s32.totalorder %v465, 10
        %v849 = vsel %vm847, %v530, 0.0
        %v850 = vsel %vm848, %v537, 0.0
        %v851 = vsel %vm847, %v536, 0.0
        %v852 = vsel %vm848, %v535, 0.0
        %v853 = vsel %vm847, %v534, 0.0
        %v854 = vsel %vm848, %v533, 0.0
        %v855 = vsel %vm847, %v532, 0.0
        %v856 = vsel %vm848, %v531, 0.0
        %v857 = vld [vmem:[#allocation5 + $0xa] sm:$0x1]
        %v858 = vperm.slane %v857, 0
        %v859 = vmul.f32 %v849, %v858
        %v860 = vmul.f32 %v850, %v858
        %v861 = vmul.f32 %v851, %v858
        %v862 = vmul.f32 %v852, %v858
        %v863 = vmul.f32 %v853, %v858
        %v864 = vmul.f32 %v854, %v858
        %v865 = vmul.f32 %v855, %v858
        %v866 = vmul.f32 %v856, %v858
        %v867 = vadd.f32 %v839, %v859
        %v868 = vadd.f32 %v840, %v860
        %v869 = vadd.f32 %v841, %v861
        %v870 = vadd.f32 %v842, %v862
        %v871 = vadd.f32 %v843, %v863
        %v872 = vadd.f32 %v844, %v864
        %v873 = vadd.f32 %v845, %v865
        %v874 = vadd.f32 %v846, %v866
        %vm875 = vcmp.ge.s32.totalorder %v464, 11
        %vm876 = vcmp.ge.s32.totalorder %v465, 11
        %v877 = vsel %vm875, %v575, 0.0
        %v878 = vsel %vm876, %v582, 0.0
        %v879 = vsel %vm875, %v581, 0.0
        %v880 = vsel %vm876, %v580, 0.0
        %v881 = vsel %vm875, %v579, 0.0
        %v882 = vsel %vm876, %v578, 0.0
        %v883 = vsel %vm875, %v577, 0.0
        %v884 = vsel %vm876, %v576, 0.0
        %v885 = vld [vmem:[#allocation5 + $0xb] sm:$0x1]
        %v886 = vperm.slane %v885, 0
        %v887 = vmul.f32 %v877, %v886
        %v888 = vmul.f32 %v878, %v886
        %v889 = vmul.f32 %v879, %v886
        %v890 = vmul.f32 %v880, %v886
        %v891 = vmul.f32 %v881, %v886
        %v892 = vmul.f32 %v882, %v886
        %v893 = vmul.f32 %v883, %v886
        %v894 = vmul.f32 %v884, %v886
        %v895 = vadd.f32 %v867, %v887
        %v896 = vadd.f32 %v868, %v888
        %v897 = vadd.f32 %v869, %v889
        %v898 = vadd.f32 %v870, %v890
        %v899 = vadd.f32 %v871, %v891
        %v900 = vadd.f32 %v872, %v892
        %v901 = vadd.f32 %v873, %v893
        %v902 = vadd.f32 %v874, %v894
        %vm903 = vcmp.ge.s32.totalorder %v464, 12
        %vm904 = vcmp.ge.s32.totalorder %v465, 12
        %v905 = vsel %vm903, %v620, 0.0
        %v906 = vsel %vm904, %v627, 0.0
        %v907 = vsel %vm903, %v626, 0.0
        %v908 = vsel %vm904, %v625, 0.0
        %v909 = vsel %vm903, %v624, 0.0
        %v910 = vsel %vm904, %v623, 0.0
        %v911 = vsel %vm903, %v622, 0.0
        %v912 = vsel %vm904, %v621, 0.0
        %v913 = vld [vmem:[#allocation5 + $0xc] sm:$0x1]
        %v914 = vperm.slane %v913, 0
        %v915 = vmul.f32 %v905, %v914
        %v916 = vmul.f32 %v906, %v914
        %v917 = vmul.f32 %v907, %v914
        %v918 = vmul.f32 %v908, %v914
        %v919 = vmul.f32 %v909, %v914
        %v920 = vmul.f32 %v910, %v914
        %v921 = vmul.f32 %v911, %v914
        %v922 = vmul.f32 %v912, %v914
        %v923 = vadd.f32 %v895, %v915
        %v924 = vadd.f32 %v896, %v916
        %v925 = vadd.f32 %v897, %v917
        %v926 = vadd.f32 %v898, %v918
        %v927 = vadd.f32 %v899, %v919
        %v928 = vadd.f32 %v900, %v920
        %v929 = vadd.f32 %v901, %v921
        %v930 = vadd.f32 %v902, %v922
        %vm931 = vcmp.ge.s32.totalorder %v464, 13
        %vm932 = vcmp.ge.s32.totalorder %v465, 13
        %v933 = vsel %vm931, %v665, 0.0
        %v934 = vsel %vm932, %v672, 0.0
        %v935 = vsel %vm931, %v671, 0.0
        %v936 = vsel %vm932, %v670, 0.0
        %v937 = vsel %vm931, %v669, 0.0
        %v938 = vsel %vm932, %v668, 0.0
        %v939 = vsel %vm931, %v667, 0.0
        %v940 = vsel %vm932, %v666, 0.0
        %v941 = vld [vmem:[#allocation5 + $0xd] sm:$0x1]
        %v942 = vperm.slane %v941, 0
        %v943 = vmul.f32 %v933, %v942
        %v944 = vmul.f32 %v934, %v942
        %v945 = vmul.f32 %v935, %v942
        %v946 = vmul.f32 %v936, %v942
        %v947 = vmul.f32 %v937, %v942
        %v948 = vmul.f32 %v938, %v942
        %v949 = vmul.f32 %v939, %v942
        %v950 = vmul.f32 %v940, %v942
        %v951 = vadd.f32 %v923, %v943
        %v952 = vadd.f32 %v924, %v944
        %v953 = vadd.f32 %v925, %v945
        %v954 = vadd.f32 %v926, %v946
        %v955 = vadd.f32 %v927, %v947
        %v956 = vadd.f32 %v928, %v948
        %v957 = vadd.f32 %v929, %v949
        %v958 = vadd.f32 %v930, %v950
        %vm959 = vcmp.ge.s32.totalorder %v464, 14
        %vm960 = vcmp.ge.s32.totalorder %v465, 14
        %v961 = vsel %vm959, %v710, 0.0
        %v962 = vsel %vm960, %v717, 0.0
        %v963 = vsel %vm959, %v716, 0.0
        %v964 = vsel %vm960, %v715, 0.0
        %v965 = vsel %vm959, %v714, 0.0
        %v966 = vsel %vm960, %v713, 0.0
        %v967 = vsel %vm959, %v712, 0.0
        %v968 = vsel %vm960, %v711, 0.0
        %v969 = vld [vmem:[#allocation5 + $0xe] sm:$0x1]
        %v970 = vperm.slane %v969, 0
        %v971 = vmul.f32 %v961, %v970
        %v972 = vmul.f32 %v962, %v970
        %v973 = vmul.f32 %v963, %v970
        %v974 = vmul.f32 %v964, %v970
        %v975 = vmul.f32 %v965, %v970
        %v976 = vmul.f32 %v966, %v970
        %v977 = vmul.f32 %v967, %v970
        %v978 = vmul.f32 %v968, %v970
        %v979 = vadd.f32 %v951, %v971
        %v980 = vadd.f32 %v952, %v972
        %v981 = vadd.f32 %v953, %v973
        %v982 = vadd.f32 %v954, %v974
        %v983 = vadd.f32 %v955, %v975
        %v984 = vadd.f32 %v956, %v976
        %v985 = vadd.f32 %v957, %v977
        %v986 = vadd.f32 %v958, %v978
        %vm987 = vcmp.ge.s32.totalorder %v464, 15
        %vm988 = vcmp.ge.s32.totalorder %v465, 15
        %v989 = vsel %vm987, %v755, 0.0
        %v990 = vsel %vm988, %v762, 0.0
        %v991 = vsel %vm987, %v761, 0.0
        %v992 = vsel %vm988, %v760, 0.0
        %v993 = vsel %vm987, %v759, 0.0
        %v994 = vsel %vm988, %v758, 0.0
        %v995 = vsel %vm987, %v757, 0.0
        %v996 = vsel %vm988, %v756, 0.0
        %v997 = vld [vmem:[#allocation5 + $0xf] sm:$0x1]
        %v998 = vperm.slane %v997, 0
        %v999 = vmul.f32 %v989, %v998
        %v1000 = vmul.f32 %v990, %v998
        %v1001 = vmul.f32 %v991, %v998
        %v1002 = vmul.f32 %v992, %v998
        %v1003 = vmul.f32 %v993, %v998
        %v1004 = vmul.f32 %v994, %v998
        %v1005 = vmul.f32 %v995, %v998
        %v1006 = vmul.f32 %v996, %v998
        %v1007 = vadd.f32 %v979, %v999
        %v1008 = vadd.f32 %v980, %v1000
        %v1009 = vadd.f32 %v981, %v1001
        %v1010 = vadd.f32 %v982, %v1002
        %v1011 = vadd.f32 %v983, %v1003
        %v1012 = vadd.f32 %v984, %v1004
        %v1013 = vadd.f32 %v985, %v1005
        %v1014 = vadd.f32 %v986, %v1006
        %v1015 = vld [vmem:[#allocation7] sm:$0x1]
        %v1017 = vperm.slane %v1015, 0
        %v1019 = vmul.f32 %v455, %v1017
        %v1020 = vmul.f32 %v456, %v1017
        %v1021 = vmul.f32 %v457, %v1017
        %v1022 = vmul.f32 %v458, %v1017
        %v1023 = vmul.f32 %v459, %v1017
        %v1024 = vmul.f32 %v460, %v1017
        %v1025 = vmul.f32 %v461, %v1017
        %v1026 = vmul.f32 %v462, %v1017
        %v1027 = vadd.f32 %v1007, %v1019
        %v1028 = vadd.f32 %v1008, %v1020
        %v1029 = vadd.f32 %v1009, %v1021
        %v1030 = vadd.f32 %v1010, %v1022
        %v1031 = vadd.f32 %v1011, %v1023
        %v1032 = vadd.f32 %v1012, %v1024
        %v1033 = vadd.f32 %v1013, %v1025
        %v1034 = vadd.f32 %v1014, %v1026
        %v1035 = vmul.f32 %v1027, %v1027
        %v1036 = vmul.f32 %v1028, %v1028
        %v1037 = vmul.f32 %v1029, %v1029
        %v1038 = vmul.f32 %v1030, %v1030
        %v1039 = vmul.f32 %v1031, %v1031
        %v1040 = vmul.f32 %v1032, %v1032
        %v1041 = vmul.f32 %v1033, %v1033
        %v1042 = vmul.f32 %v1034, %v1034
        %v1043 = vmul.f32 %v1027, %v1035
        %v1044 = vmul.f32 %v1028, %v1036
        %v1045 = vmul.f32 %v1029, %v1037
        %v1046 = vmul.f32 %v1030, %v1038
        %v1047 = vmul.f32 %v1031, %v1039
        %v1048 = vmul.f32 %v1032, %v1040
        %v1049 = vmul.f32 %v1033, %v1041
        %v1050 = vmul.f32 %v1034, %v1042
        %v1051 = vmul.f32 %v1043, 0.044715
        %v1052 = vmul.f32 %v1044, 0.044715
        %v1053 = vmul.f32 %v1045, 0.044715
        %v1054 = vmul.f32 %v1046, 0.044715
        %v1055 = vmul.f32 %v1047, 0.044715
        %v1056 = vmul.f32 %v1048, 0.044715
        %v1057 = vmul.f32 %v1049, 0.044715
        %v1058 = vmul.f32 %v1050, 0.044715
        %v1059 = vadd.f32 %v1027, %v1051
        %v1060 = vadd.f32 %v1028, %v1052
        %v1061 = vadd.f32 %v1029, %v1053
        %v1062 = vadd.f32 %v1030, %v1054
        %v1063 = vadd.f32 %v1031, %v1055
        %v1064 = vadd.f32 %v1032, %v1056
        %v1065 = vadd.f32 %v1033, %v1057
        %v1066 = vadd.f32 %v1034, %v1058
        %v1067 = vmul.f32 %v1059, 0.7978846
        %v1068 = vmul.f32 %v1060, 0.7978846
        %v1069 = vmul.f32 %v1061, 0.7978846
        %v1070 = vmul.f32 %v1062, 0.7978846
        %v1071 = vmul.f32 %v1063, 0.7978846
        %v1072 = vmul.f32 %v1064, 0.7978846
        %v1073 = vmul.f32 %v1065, 0.7978846
        %v1074 = vmul.f32 %v1066, 0.7978846
        %v1075 = vtanh.pop %v1067
        %v1076 = vtanh.pop %v1068
        %v1077 = vtanh.pop %v1069
        %v1078 = vtanh.pop %v1070
        %v1079 = vtanh.pop %v1071
        %v1080 = vtanh.pop %v1072
        %v1081 = vtanh.pop %v1073
        %v1082 = vtanh.pop %v1074
        %v1083 = vadd.f32 %v1075, 1.0
        %v1084 = vadd.f32 %v1076, 1.0
        %v1085 = vadd.f32 %v1077, 1.0
        %v1086 = vadd.f32 %v1078, 1.0
        %v1087 = vadd.f32 %v1079, 1.0
        %v1088 = vadd.f32 %v1080, 1.0
        %v1089 = vadd.f32 %v1081, 1.0
        %v1090 = vadd.f32 %v1082, 1.0
        %v1091 = vmul.f32 %v1083, 0.5
        %v1092 = vmul.f32 %v1084, 0.5
        %v1093 = vmul.f32 %v1085, 0.5
        %v1094 = vmul.f32 %v1086, 0.5
        %v1095 = vmul.f32 %v1087, 0.5
        %v1096 = vmul.f32 %v1088, 0.5
        %v1097 = vmul.f32 %v1089, 0.5
        %v1098 = vmul.f32 %v1090, 0.5
        %v1099 = vmul.f32 %v1027, %v1091
        %v1100 = vmul.f32 %v1028, %v1092
        %v1101 = vmul.f32 %v1029, %v1093
        %v1102 = vmul.f32 %v1030, %v1094
        %v1103 = vmul.f32 %v1031, %v1095
        %v1104 = vmul.f32 %v1032, %v1096
        %v1105 = vmul.f32 %v1033, %v1097
        %v1106 = vmul.f32 %v1034, %v1098
        %v1107 = vpack.c.bf16 %v1100, %v1099
        %v1108 = vpack.c.bf16 %v1102, %v1101
        %v1109 = vpack.c.bf16 %v1104, %v1103
        %v1110 = vpack.c.bf16 %v1106, %v1105
        %v1111 = vld [vmem:[#allocation8] sm:$0xff]
        %v1112 = vld [vmem:[#allocation8 + $0x8] sm:$0xff]
        %v1113 = vld [vmem:[#allocation8 + $0x10] sm:$0xff]
        %v1114 = vld [vmem:[#allocation8 + $0x18] sm:$0xff]
        %v1115 = vld [vmem:[#allocation8 + $0x20] sm:$0xff]
        %v1116 = vld [vmem:[#allocation8 + $0x28] sm:$0xff]
        %v1117 = vld [vmem:[#allocation8 + $0x30] sm:$0xff]
        %v1118 = vld [vmem:[#allocation8 + $0x38] sm:$0xff]
        %v1119 = vld [vmem:[#allocation8 + $0x40] sm:$0xff]
        %v1120 = vld [vmem:[#allocation8 + $0x48] sm:$0xff]
        %v1121 = vld [vmem:[#allocation8 + $0x50] sm:$0xff]
        %v1122 = vld [vmem:[#allocation8 + $0x58] sm:$0xff]
        %v1123 = vld [vmem:[#allocation8 + $0x60] sm:$0xff]
        %v1124 = vld [vmem:[#allocation8 + $0x68] sm:$0xff]
        %v1125 = vld [vmem:[#allocation8 + $0x70] sm:$0xff]
        %v1126 = vld [vmem:[#allocation8 + $0x78] sm:$0xff]
        %v1127 = vld [vmem:[#allocation10] sm:$0x3]
        %v1129 = vperm.slane %v1127, 0
        %v1130 = vperm.slane %v1127, 1
        %v1149 = vunpack.c.l.b16 %v1111
        %v1150 = vunpack.c.h.b16 %v1111
        %v1151 = vunpack.c.l.b16 %v1112
        %v1152 = vunpack.c.h.b16 %v1112
        %v1153 = vunpack.c.l.b16 %v1113
        %v1154 = vunpack.c.h.b16 %v1113
        %v1155 = vunpack.c.l.b16 %v1114
        %v1156 = vunpack.c.h.b16 %v1114
        %v1157 = vunpack.c.l.b16 %v1115
        %v1158 = vunpack.c.h.b16 %v1115
        %v1159 = vunpack.c.l.b16 %v1116
        %v1160 = vunpack.c.h.b16 %v1116
        %v1161 = vunpack.c.l.b16 %v1117
        %v1162 = vunpack.c.h.b16 %v1117
        %v1163 = vunpack.c.l.b16 %v1118
        %v1164 = vunpack.c.h.b16 %v1118
        %v1165 = vunpack.c.l.b16 %v1119
        %v1166 = vunpack.c.h.b16 %v1119
        %v1167 = vunpack.c.l.b16 %v1120
        %v1168 = vunpack.c.h.b16 %v1120
        %v1169 = vunpack.c.l.b16 %v1121
        %v1170 = vunpack.c.h.b16 %v1121
        %v1171 = vunpack.c.l.b16 %v1122
        %v1172 = vunpack.c.h.b16 %v1122
        %v1173 = vunpack.c.l.b16 %v1123
        %v1174 = vunpack.c.h.b16 %v1123
        %v1175 = vunpack.c.l.b16 %v1124
        %v1176 = vunpack.c.h.b16 %v1124
        %v1177 = vunpack.c.l.b16 %v1125
        %v1178 = vunpack.c.h.b16 %v1125
        %v1179 = vunpack.c.l.b16 %v1126
        %v1180 = vunpack.c.h.b16 %v1126
        %v1181 = vpack.c.b16 %v1151, %v1149
        %v1182 = vpack.c.b16 %v1152, %v1150
        %v1183 = vpack.c.b16 %v1155, %v1153
        %v1184 = vpack.c.b16 %v1156, %v1154
        %v1185 = vpack.c.b16 %v1159, %v1157
        %v1186 = vpack.c.b16 %v1160, %v1158
        %v1187 = vpack.c.b16 %v1163, %v1161
        %v1188 = vpack.c.b16 %v1164, %v1162
        %v1189 = vpack.c.b16 %v1167, %v1165
        %v1190 = vpack.c.b16 %v1168, %v1166
        %v1191 = vpack.c.b16 %v1171, %v1169
        %v1192 = vpack.c.b16 %v1172, %v1170
        %v1193 = vpack.c.b16 %v1175, %v1173
        %v1194 = vpack.c.b16 %v1176, %v1174
        %v1195 = vpack.c.b16 %v1179, %v1177
        %v1196 = vpack.c.b16 %v1180, %v1178
        %1213 = vmatpush.bf16.msra.mxu0 %v1195
        %1214 = vmatpush.bf16.msra.mxu0 %v1193
        %1215 = vmatpush.bf16.msra.mxu0 %v1191
        %1216 = vmatpush.bf16.msra.mxu0 %v1189
        %1217 = vmatpush.bf16.msra.mxu0 %v1187
        %1218 = vmatpush.bf16.msra.mxu0 %v1185
        %1219 = vmatpush.bf16.msra.mxu0 %v1183
        %1220 = vmatpush.bf16.msra.mxu0 %v1181
        %1221 = vmatmul.bf16.gmra.mxu0 %v1107
        %v1222 = vpop.f32.mrf.mxu0
        %v1223 = vadd.f32 %v1129, %v1222
        %v1224 = vpop.f32.mrf.mxu0
        %v1225 = vadd.f32 %v1129, %v1224
        %1226 = vmatmul.bf16.gmra.mxu0 %v1108
        %v1227 = vpop.f32.mrf.mxu0
        %v1228 = vadd.f32 %v1129, %v1227
        %v1229 = vpop.f32.mrf.mxu0
        %v1230 = vadd.f32 %v1129, %v1229
        %1231 = vmatmul.bf16.gmra.mxu0 %v1109
        %v1232 = vpop.f32.mrf.mxu0
        %v1233 = vadd.f32 %v1129, %v1232
        %v1234 = vpop.f32.mrf.mxu0
        %v1235 = vadd.f32 %v1129, %v1234
        %1236 = vmatmul.bf16.gmra.mxu0 %v1110
        %v1237 = vpop.f32.mrf.mxu0
        %v1238 = vadd.f32 %v1129, %v1237
        %v1239 = vpop.f32.mrf.mxu0
        %v1240 = vadd.f32 %v1129, %v1239
        %1241 = vdwg.mxu0
        %1242 = vmatpush.bf16.msra.mxu0 %v1196
        %1243 = vmatpush.bf16.msra.mxu0 %v1194
        %1244 = vmatpush.bf16.msra.mxu0 %v1192
        %1245 = vmatpush.bf16.msra.mxu0 %v1190
        %1246 = vmatpush.bf16.msra.mxu0 %v1188
        %1247 = vmatpush.bf16.msra.mxu0 %v1186
        %1248 = vmatpush.bf16.msra.mxu0 %v1184
        %1249 = vmatpush.bf16.msra.mxu0 %v1182
        %1250 = vmatmul.bf16.gmra.mxu0 %v1107
        %v1251 = vpop.f32.mrf.mxu0
        %v1252 = vadd.f32 %v1130, %v1251
        %v1253 = vpop.f32.mrf.mxu0
        %v1254 = vadd.f32 %v1130, %v1253
        %1255 = vmatmul.bf16.gmra.mxu0 %v1108
        %v1256 = vpop.f32.mrf.mxu0
        %v1257 = vadd.f32 %v1130, %v1256
        %v1258 = vpop.f32.mrf.mxu0
        %v1259 = vadd.f32 %v1130, %v1258
        %1260 = vmatmul.bf16.gmra.mxu0 %v1109
        %v1261 = vpop.f32.mrf.mxu0
        %v1262 = vadd.f32 %v1130, %v1261
        %v1263 = vpop.f32.mrf.mxu0
        %v1264 = vadd.f32 %v1130, %v1263
        %1265 = vmatmul.bf16.gmra.mxu0 %v1110
        %v1266 = vpop.f32.mrf.mxu0
        %v1267 = vadd.f32 %v1130, %v1266
        %v1268 = vpop.f32.mrf.mxu0
        %v1269 = vadd.f32 %v1130, %v1268
        %1270 = vdwg.mxu0
        %v1271 = vxor.u32 %v1252, 2147483648
        %v1272 = vxor.u32 %v1254, 2147483648
        %v1273 = vxor.u32 %v1257, 2147483648
        %v1274 = vxor.u32 %v1259, 2147483648
        %v1275 = vxor.u32 %v1262, 2147483648
        %v1276 = vxor.u32 %v1264, 2147483648
        %v1277 = vxor.u32 %v1267, 2147483648
        %v1278 = vxor.u32 %v1269, 2147483648
        %v1279 = vmul.f32 %v1271, 1.442695
        %v1280 = vpow.pop %v1279
        %v1281 = vmul.f32 %v1272, 1.442695
        %v1282 = vpow.pop %v1281
        %v1283 = vmul.f32 %v1273, 1.442695
        %v1284 = vpow.pop %v1283
        %v1285 = vmul.f32 %v1274, 1.442695
        %v1286 = vpow.pop %v1285
        %v1287 = vmul.f32 %v1275, 1.442695
        %v1288 = vpow.pop %v1287
        %v1289 = vmul.f32 %v1276, 1.442695
        %v1290 = vpow.pop %v1289
        %v1291 = vmul.f32 %v1277, 1.442695
        %v1292 = vpow.pop %v1291
        %v1293 = vmul.f32 %v1278, 1.442695
        %v1294 = vpow.pop %v1293
        %v1295 = vadd.f32 %v1280, 1.0
        %v1296 = vadd.f32 %v1282, 1.0
        %v1297 = vadd.f32 %v1284, 1.0
        %v1298 = vadd.f32 %v1286, 1.0
        %v1299 = vadd.f32 %v1288, 1.0
        %v1300 = vadd.f32 %v1290, 1.0
        %v1301 = vadd.f32 %v1292, 1.0
        %v1302 = vadd.f32 %v1294, 1.0
        %v1303 = vrcp.pop %v1295
        %v1304 = vmul.f32 %v1295, %v1303
        %v1305 = vsub.f32 1.0, %v1304
        %v1306 = vmul.f32 %v1303, %v1305
        %v1307 = vadd.f32 %v1303, %v1306
        %vm1308 = vweird.f32 %v1295
        %vm1309 = vweird.f32 %v1303
        %vm1310 = vmor %vm1308, %vm1309
        %v1311 = vsel %vm1310, %v1303, %v1307
        %v1312 = vand.u32 2147483647, %v1295
        %vm1313 = vcmp.eq.f32.partialorder %v1312, 8.507059e+37
        %v1314 = vand.u32 %v1295, 2147483648
        %v1315 = vor.u32 1.1754944e-38, %v1314
        %v1316 = vsel %vm1313, %v1315, %v1311
        %v1317 = vmul.f32 1.0, %v1316
        %v1318 = vrcp.pop %v1296
        %v1319 = vmul.f32 %v1296, %v1318
        %v1320 = vsub.f32 1.0, %v1319
        %v1321 = vmul.f32 %v1318, %v1320
        %v1322 = vadd.f32 %v1318, %v1321
        %vm1323 = vweird.f32 %v1296
        %vm1324 = vweird.f32 %v1318
        %vm1325 = vmor %vm1323, %vm1324
        %v1326 = vsel %vm1325, %v1318, %v1322
        %v1327 = vand.u32 2147483647, %v1296
        %vm1328 = vcmp.eq.f32.partialorder %v1327, 8.507059e+37
        %v1329 = vand.u32 %v1296, 2147483648
        %v1330 = vor.u32 1.1754944e-38, %v1329
        %v1331 = vsel %vm1328, %v1330, %v1326
        %v1332 = vmul.f32 1.0, %v1331
        %v1333 = vrcp.pop %v1297
        %v1334 = vmul.f32 %v1297, %v1333
        %v1335 = vsub.f32 1.0, %v1334
        %v1336 = vmul.f32 %v1333, %v1335
        %v1337 = vadd.f32 %v1333, %v1336
        %vm1338 = vweird.f32 %v1297
        %vm1339 = vweird.f32 %v1333
        %vm1340 = vmor %vm1338, %vm1339
        %v1341 = vsel %vm1340, %v1333, %v1337
        %v1342 = vand.u32 2147483647, %v1297
        %vm1343 = vcmp.eq.f32.partialorder %v1342, 8.507059e+37
        %v1344 = vand.u32 %v1297, 2147483648
        %v1345 = vor.u32 1.1754944e-38, %v1344
        %v1346 = vsel %vm1343, %v1345, %v1341
        %v1347 = vmul.f32 1.0, %v1346
        %v1348 = vrcp.pop %v1298
        %v1349 = vmul.f32 %v1298, %v1348
        %v1350 = vsub.f32 1.0, %v1349
        %v1351 = vmul.f32 %v1348, %v1350
        %v1352 = vadd.f32 %v1348, %v1351
        %vm1353 = vweird.f32 %v1298
        %vm1354 = vweird.f32 %v1348
        %vm1355 = vmor %vm1353, %vm1354
        %v1356 = vsel %vm1355, %v1348, %v1352
        %v1357 = vand.u32 2147483647, %v1298
        %vm1358 = vcmp.eq.f32.partialorder %v1357, 8.507059e+37
        %v1359 = vand.u32 %v1298, 2147483648
        %v1360 = vor.u32 1.1754944e-38, %v1359
        %v1361 = vsel %vm1358, %v1360, %v1356
        %v1362 = vmul.f32 1.0, %v1361
        %v1363 = vrcp.pop %v1299
        %v1364 = vmul.f32 %v1299, %v1363
        %v1365 = vsub.f32 1.0, %v1364
        %v1366 = vmul.f32 %v1363, %v1365
        %v1367 = vadd.f32 %v1363, %v1366
        %vm1368 = vweird.f32 %v1299
        %vm1369 = vweird.f32 %v1363
        %vm1370 = vmor %vm1368, %vm1369
        %v1371 = vsel %vm1370, %v1363, %v1367
        %v1372 = vand.u32 2147483647, %v1299
        %vm1373 = vcmp.eq.f32.partialorder %v1372, 8.507059e+37
        %v1374 = vand.u32 %v1299, 2147483648
        %v1375 = vor.u32 1.1754944e-38, %v1374
        %v1376 = vsel %vm1373, %v1375, %v1371
        %v1377 = vmul.f32 1.0, %v1376
        %v1378 = vrcp.pop %v1300
        %v1379 = vmul.f32 %v1300, %v1378
        %v1380 = vsub.f32 1.0, %v1379
        %v1381 = vmul.f32 %v1378, %v1380
        %v1382 = vadd.f32 %v1378, %v1381
        %vm1383 = vweird.f32 %v1300
        %vm1384 = vweird.f32 %v1378
        %vm1385 = vmor %vm1383, %vm1384
        %v1386 = vsel %vm1385, %v1378, %v1382
        %v1387 = vand.u32 2147483647, %v1300
        %vm1388 = vcmp.eq.f32.partialorder %v1387, 8.507059e+37
        %v1389 = vand.u32 %v1300, 2147483648
        %v1390 = vor.u32 1.1754944e-38, %v1389
        %v1391 = vsel %vm1388, %v1390, %v1386
        %v1392 = vmul.f32 1.0, %v1391
        %v1393 = vrcp.pop %v1301
        %v1394 = vmul.f32 %v1301, %v1393
        %v1395 = vsub.f32 1.0, %v1394
        %v1396 = vmul.f32 %v1393, %v1395
        %v1397 = vadd.f32 %v1393, %v1396
        %vm1398 = vweird.f32 %v1301
        %vm1399 = vweird.f32 %v1393
        %vm1400 = vmor %vm1398, %vm1399
        %v1401 = vsel %vm1400, %v1393, %v1397
        %v1402 = vand.u32 2147483647, %v1301
        %vm1403 = vcmp.eq.f32.partialorder %v1402, 8.507059e+37
        %v1404 = vand.u32 %v1301, 2147483648
        %v1405 = vor.u32 1.1754944e-38, %v1404
        %v1406 = vsel %vm1403, %v1405, %v1401
        %v1407 = vmul.f32 1.0, %v1406
        %v1408 = vrcp.pop %v1302
        %v1409 = vmul.f32 %v1302, %v1408
        %v1410 = vsub.f32 1.0, %v1409
        %v1411 = vmul.f32 %v1408, %v1410
        %v1412 = vadd.f32 %v1408, %v1411
        %vm1413 = vweird.f32 %v1302
        %vm1414 = vweird.f32 %v1408
        %vm1415 = vmor %vm1413, %vm1414
        %v1416 = vsel %vm1415, %v1408, %v1412
        %v1417 = vand.u32 2147483647, %v1302
        %vm1418 = vcmp.eq.f32.partialorder %v1417, 8.507059e+37
        %v1419 = vand.u32 %v1302, 2147483648
        %v1420 = vor.u32 1.1754944e-38, %v1419
        %v1421 = vsel %vm1418, %v1420, %v1416
        %v1422 = vmul.f32 1.0, %v1421
        %v1423 = vmul.f32 %v1223, %v1317
        %v1424 = vmul.f32 %v1225, %v1332
        %v1425 = vmul.f32 %v1228, %v1347
        %v1426 = vmul.f32 %v1230, %v1362
        %v1427 = vmul.f32 %v1233, %v1377
        %v1428 = vmul.f32 %v1235, %v1392
        %v1429 = vmul.f32 %v1238, %v1407
        %v1430 = vmul.f32 %v1240, %v1422
        %v1431 = vadd.f32 %v1423, %v455
        %v1432 = vadd.f32 %v1424, %v456
        %v1433 = vadd.f32 %v1425, %v457
        %v1434 = vadd.f32 %v1426, %v458
        %v1435 = vadd.f32 %v1427, %v459
        %v1436 = vadd.f32 %v1428, %v460
        %v1437 = vadd.f32 %v1429, %v461
        %v1438 = vadd.f32 %v1430, %v462
        %1439 = vadd.xlane.f32.xlu0 %v1431
        %v1440 = vpop.xlane.xlu0 %1439
        %1441 = vadd.xlane.f32.xlu0 %v1432
        %v1442 = vpop.xlane.xlu0 %1441
        %1443 = vadd.xlane.f32.xlu0 %v1433
        %v1444 = vpop.xlane.xlu0 %1443
        %1445 = vadd.xlane.f32.xlu0 %v1434
        %v1446 = vpop.xlane.xlu0 %1445
        %1447 = vadd.xlane.f32.xlu0 %v1435
        %v1448 = vpop.xlane.xlu0 %1447
        %1449 = vadd.xlane.f32.xlu0 %v1436
        %v1450 = vpop.xlane.xlu0 %1449
        %1451 = vadd.xlane.f32.xlu0 %v1437
        %v1452 = vpop.xlane.xlu0 %1451
        %1453 = vadd.xlane.f32.xlu0 %v1438
        %v1454 = vpop.xlane.xlu0 %1453
        %v1455 = vrcp.pop 128.0
        %v1456 = vmul.f32 128.0, %v1455
        %v1457 = vsub.f32 1.0, %v1456
        %v1458 = vmul.f32 %v1455, %v1457
        %v1459 = vadd.f32 %v1455, %v1458
        %vm1460 = vweird.f32 %v1455
        %v1461 = vsel %vm1460, %v1455, %v1459
        %v1462 = vmul.f32 %v1440, %v1461
        %v1463 = vmul.f32 %v1442, %v1461
        %v1464 = vmul.f32 %v1444, %v1461
        %v1465 = vmul.f32 %v1446, %v1461
        %v1466 = vmul.f32 %v1448, %v1461
        %v1467 = vmul.f32 %v1450, %v1461
        %v1468 = vmul.f32 %v1452, %v1461
        %v1469 = vmul.f32 %v1454, %v1461
        %v1470 = vsub.f32 %v1431, %v1462
        %v1471 = vsub.f32 %v1432, %v1463
        %v1472 = vsub.f32 %v1433, %v1464
        %v1473 = vsub.f32 %v1434, %v1465
        %v1474 = vsub.f32 %v1435, %v1466
        %v1475 = vsub.f32 %v1436, %v1467
        %v1476 = vsub.f32 %v1437, %v1468
        %v1477 = vsub.f32 %v1438, %v1469
        %v1478 = vmul.f32 %v1470, %v1470
        %v1479 = vmul.f32 %v1471, %v1471
        %v1480 = vmul.f32 %v1472, %v1472
        %v1481 = vmul.f32 %v1473, %v1473
        %v1482 = vmul.f32 %v1474, %v1474
        %v1483 = vmul.f32 %v1475, %v1475
        %v1484 = vmul.f32 %v1476, %v1476
        %v1485 = vmul.f32 %v1477, %v1477
        %1486 = vadd.xlane.f32.xlu0 %v1478
        %v1487 = vpop.xlane.xlu0 %1486
        %1488 = vadd.xlane.f32.xlu0 %v1479
        %v1489 = vpop.xlane.xlu0 %1488
        %1490 = vadd.xlane.f32.xlu0 %v1480
        %v1491 = vpop.xlane.xlu0 %1490
        %1492 = vadd.xlane.f32.xlu0 %v1481
        %v1493 = vpop.xlane.xlu0 %1492
        %1494 = vadd.xlane.f32.xlu0 %v1482
        %v1495 = vpop.xlane.xlu0 %1494
        %1496 = vadd.xlane.f32.xlu0 %v1483
        %v1497 = vpop.xlane.xlu0 %1496
        %1498 = vadd.xlane.f32.xlu0 %v1484
        %v1499 = vpop.xlane.xlu0 %1498
        %1500 = vadd.xlane.f32.xlu0 %v1485
        %v1501 = vpop.xlane.xlu0 %1500
        %v1502 = vmul.f32 %v1487, %v1461
        %v1503 = vmul.f32 %v1489, %v1461
        %v1504 = vmul.f32 %v1491, %v1461
        %v1505 = vmul.f32 %v1493, %v1461
        %v1506 = vmul.f32 %v1495, %v1461
        %v1507 = vmul.f32 %v1497, %v1461
        %v1508 = vmul.f32 %v1499, %v1461
        %v1509 = vmul.f32 %v1501, %v1461
        %v1510 = vadd.f32 %v1502, 1e-05
        %v1511 = vadd.f32 %v1503, 1e-05
        %v1512 = vadd.f32 %v1504, 1e-05
        %v1513 = vadd.f32 %v1505, 1e-05
        %v1514 = vadd.f32 %v1506, 1e-05
        %v1515 = vadd.f32 %v1507, 1e-05
        %v1516 = vadd.f32 %v1508, 1e-05
        %v1517 = vadd.f32 %v1509, 1e-05
        %v1518 = vrsqrt.pop %v1510
        %v1519 = vmul.f32 %v1518, %v1510
        %v1520 = vmul.f32 %v1519, %v1518
        %v1521 = vmul.f32 0.5, %v1520
        %v1522 = vsub.f32 1.5, %v1521
        %v1523 = vmul.f32 %v1518, %v1522
        %vm1524 = vweird.f32 %v1510
        %vm1525 = vweird.f32 %v1518
        %vm1526 = vmor %vm1524, %vm1525
        %v1527 = vsel %vm1526, %v1518, %v1523
        %v1528 = vrsqrt.pop %v1511
        %v1529 = vmul.f32 %v1528, %v1511
        %v1530 = vmul.f32 %v1529, %v1528
        %v1531 = vmul.f32 0.5, %v1530
        %v1532 = vsub.f32 1.5, %v1531
        %v1533 = vmul.f32 %v1528, %v1532
        %vm1534 = vweird.f32 %v1511
        %vm1535 = vweird.f32 %v1528
        %vm1536 = vmor %vm1534, %vm1535
        %v1537 = vsel %vm1536, %v1528, %v1533
        %v1538 = vrsqrt.pop %v1512
        %v1539 = vmul.f32 %v1538, %v1512
        %v1540 = vmul.f32 %v1539, %v1538
        %v1541 = vmul.f32 0.5, %v1540
        %v1542 = vsub.f32 1.5, %v1541
        %v1543 = vmul.f32 %v1538, %v1542
        %vm1544 = vweird.f32 %v1512
        %vm1545 = vweird.f32 %v1538
        %vm1546 = vmor %vm1544, %vm1545
        %v1547 = vsel %vm1546, %v1538, %v1543
        %v1548 = vrsqrt.pop %v1513
        %v1549 = vmul.f32 %v1548, %v1513
        %v1550 = vmul.f32 %v1549, %v1548
        %v1551 = vmul.f32 0.5, %v1550
        %v1552 = vsub.f32 1.5, %v1551
        %v1553 = vmul.f32 %v1548, %v1552
        %vm1554 = vweird.f32 %v1513
        %vm1555 = vweird.f32 %v1548
        %vm1556 = vmor %vm1554, %vm1555
        %v1557 = vsel %vm1556, %v1548, %v1553
        %v1558 = vrsqrt.pop %v1514
        %v1559 = vmul.f32 %v1558, %v1514
        %v1560 = vmul.f32 %v1559, %v1558
        %v1561 = vmul.f32 0.5, %v1560
        %v1562 = vsub.f32 1.5, %v1561
        %v1563 = vmul.f32 %v1558, %v1562
        %vm1564 = vweird.f32 %v1514
        %vm1565 = vweird.f32 %v1558
        %vm1566 = vmor %vm1564, %vm1565
        %v1567 = vsel %vm1566, %v1558, %v1563
        %v1568 = vrsqrt.pop %v1515
        %v1569 = vmul.f32 %v1568, %v1515
        %v1570 = vmul.f32 %v1569, %v1568
        %v1571 = vmul.f32 0.5, %v1570
        %v1572 = vsub.f32 1.5, %v1571
        %v1573 = vmul.f32 %v1568, %v1572
        %vm1574 = vweird.f32 %v1515
        %vm1575 = vweird.f32 %v1568
        %vm1576 = vmor %vm1574, %vm1575
        %v1577 = vsel %vm1576, %v1568, %v1573
        %v1578 = vrsqrt.pop %v1516
        %v1579 = vmul.f32 %v1578, %v1516
        %v1580 = vmul.f32 %v1579, %v1578
        %v1581 = vmul.f32 0.5, %v1580
        %v1582 = vsub.f32 1.5, %v1581
        %v1583 = vmul.f32 %v1578, %v1582
        %vm1584 = vweird.f32 %v1516
        %vm1585 = vweird.f32 %v1578
        %vm1586 = vmor %vm1584, %vm1585
        %v1587 = vsel %vm1586, %v1578, %v1583
        %v1588 = vrsqrt.pop %v1517
        %v1589 = vmul.f32 %v1588, %v1517
        %v1590 = vmul.f32 %v1589, %v1588
        %v1591 = vmul.f32 0.5, %v1590
        %v1592 = vsub.f32 1.5, %v1591
        %v1593 = vmul.f32 %v1588, %v1592
        %vm1594 = vweird.f32 %v1517
        %vm1595 = vweird.f32 %v1588
        %vm1596 = vmor %vm1594, %vm1595
        %v1597 = vsel %vm1596, %v1588, %v1593
        %v1598 = vmul.f32 %v1470, %v1527
        %v1599 = vmul.f32 %v1471, %v1537
        %v1600 = vmul.f32 %v1472, %v1547
        %v1601 = vmul.f32 %v1473, %v1557
        %v1602 = vmul.f32 %v1474, %v1567
        %v1603 = vmul.f32 %v1475, %v1577
        %v1604 = vmul.f32 %v1476, %v1587
        %v1605 = vmul.f32 %v1477, %v1597
        %v1606 = vld [vmem:[%s5] sm:$0x1]
        %v1608 = vperm.slane %v1606, 0
        %v1610 = vmul.f32 %v1598, %v1608
        %v1611 = vmul.f32 %v1599, %v1608
        %v1612 = vmul.f32 %v1600, %v1608
        %v1613 = vmul.f32 %v1601, %v1608
        %v1614 = vmul.f32 %v1602, %v1608
        %v1615 = vmul.f32 %v1603, %v1608
        %v1616 = vmul.f32 %v1604, %v1608
        %v1617 = vmul.f32 %v1605, %v1608
        %v1618 = vld [vmem:[#allocation11] sm:$0x1]
        %v1620 = vperm.slane %v1618, 0
        %v1622 = vadd.f32 %v1610, %v1620
        %v1623 = vadd.f32 %v1611, %v1620
        %v1624 = vadd.f32 %v1612, %v1620
        %v1625 = vadd.f32 %v1613, %v1620
        %v1626 = vadd.f32 %v1614, %v1620
        %v1627 = vadd.f32 %v1615, %v1620
        %v1628 = vadd.f32 %v1616, %v1620
        %v1629 = vadd.f32 %v1617, %v1620
        %s1630 = scalar_lea.vmem [#allocation5], 16
        %v1631 = vld [vmem:[%s1630] sm:$0x1]
        %v1632 = vperm.slane %v1631, 0
        %v1633 = vmul.f32 %v1622, %v1632
        %v1634 = vmul.f32 %v1623, %v1632
        %v1635 = vmul.f32 %v1624, %v1632
        %v1636 = vmul.f32 %v1625, %v1632
        %v1637 = vmul.f32 %v1626, %v1632
        %v1638 = vmul.f32 %v1627, %v1632
        %v1639 = vmul.f32 %v1628, %v1632
        %v1640 = vmul.f32 %v1629, %v1632
        %v1641 = vrot.slane %v1622, 7
        %v1642 = vrot.slane %v1623, 7
        %v1643 = vrot.slane %v1624, 7
        %v1644 = vrot.slane %v1625, 7
        %v1645 = vrot.slane %v1626, 7
        %v1646 = vrot.slane %v1627, 7
        %v1647 = vrot.slane %v1628, 7
        %v1648 = vrot.slane %v1629, 7
        %v1649 = vsel %vm484, %v1647, %v1648
        %v1650 = vsel %vm484, %v1646, %v1647
        %v1651 = vsel %vm484, %v1645, %v1646
        %v1652 = vsel %vm484, %v1644, %v1645
        %v1653 = vsel %vm484, %v1643, %v1644
        %v1654 = vsel %vm484, %v1642, %v1643
        %v1655 = vsel %vm484, %v1641, %v1642
        %v1656 = vsel %vm484, %v1648, %v1641
        %v1657 = vsel %vm493, %v1656, 0.0
        %v1658 = vsel %vm494, %v1655, 0.0
        %v1659 = vsel %vm493, %v1654, 0.0
        %v1660 = vsel %vm494, %v1653, 0.0
        %v1661 = vsel %vm493, %v1652, 0.0
        %v1662 = vsel %vm494, %v1651, 0.0
        %v1663 = vsel %vm493, %v1650, 0.0
        %v1664 = vsel %vm494, %v1649, 0.0
        %v1665 = vld [vmem:[%s1630 + $0x1] sm:$0x1]
        %v1666 = vperm.slane %v1665, 0
        %v1667 = vmul.f32 %v1657, %v1666
        %v1668 = vmul.f32 %v1658, %v1666
        %v1669 = vmul.f32 %v1659, %v1666
        %v1670 = vmul.f32 %v1660, %v1666
        %v1671 = vmul.f32 %v1661, %v1666
        %v1672 = vmul.f32 %v1662, %v1666
        %v1673 = vmul.f32 %v1663, %v1666
        %v1674 = vmul.f32 %v1664, %v1666
        %v1675 = vadd.f32 %v1633, %v1667
        %v1676 = vadd.f32 %v1634, %v1668
        %v1677 = vadd.f32 %v1635, %v1669
        %v1678 = vadd.f32 %v1636, %v1670
        %v1679 = vadd.f32 %v1637, %v1671
        %v1680 = vadd.f32 %v1638, %v1672
        %v1681 = vadd.f32 %v1639, %v1673
        %v1682 = vadd.f32 %v1640, %v1674
        %v1683 = vrot.slane %v1622, 6
        %v1684 = vrot.slane %v1623, 6
        %v1685 = vrot.slane %v1624, 6
        %v1686 = vrot.slane %v1625, 6
        %v1687 = vrot.slane %v1626, 6
        %v1688 = vrot.slane %v1627, 6
        %v1689 = vrot.slane %v1628, 6
        %v1690 = vrot.slane %v1629, 6
        %v1691 = vsel %vm529, %v1689, %v1690
        %v1692 = vsel %vm529, %v1688, %v1689
        %v1693 = vsel %vm529, %v1687, %v1688
        %v1694 = vsel %vm529, %v1686, %v1687
        %v1695 = vsel %vm529, %v1685, %v1686
        %v1696 = vsel %vm529, %v1684, %v1685
        %v1697 = vsel %vm529, %v1683, %v1684
        %v1698 = vsel %vm529, %v1690, %v1683
        %v1699 = vsel %vm538, %v1698, 0.0
        %v1700 = vsel %vm539, %v1697, 0.0
        %v1701 = vsel %vm538, %v1696, 0.0
        %v1702 = vsel %vm539, %v1695, 0.0
        %v1703 = vsel %vm538, %v1694, 0.0
        %v1704 = vsel %vm539, %v1693, 0.0
        %v1705 = vsel %vm538, %v1692, 0.0
        %v1706 = vsel %vm539, %v1691, 0.0
        %v1707 = vld [vmem:[%s1630 + $0x2] sm:$0x1]
        %v1708 = vperm.slane %v1707, 0
        %v1709 = vmul.f32 %v1699, %v1708
        %v1710 = vmul.f32 %v1700, %v1708
        %v1711 = vmul.f32 %v1701, %v1708
        %v1712 = vmul.f32 %v1702, %v1708
        %v1713 = vmul.f32 %v1703, %v1708
        %v1714 = vmul.f32 %v1704, %v1708
        %v1715 = vmul.f32 %v1705, %v1708
        %v1716 = vmul.f32 %v1706, %v1708
        %v1717 = vadd.f32 %v1675, %v1709
        %v1718 = vadd.f32 %v1676, %v1710
        %v1719 = vadd.f32 %v1677, %v1711
        %v1720 = vadd.f32 %v1678, %v1712
        %v1721 = vadd.f32 %v1679, %v1713
        %v1722 = vadd.f32 %v1680, %v1714
        %v1723 = vadd.f32 %v1681, %v1715
        %v1724 = vadd.f32 %v1682, %v1716
        %v1725 = vrot.slane %v1622, 5
        %v1726 = vrot.slane %v1623, 5
        %v1727 = vrot.slane %v1624, 5
        %v1728 = vrot.slane %v1625, 5
        %v1729 = vrot.slane %v1626, 5
        %v1730 = vrot.slane %v1627, 5
        %v1731 = vrot.slane %v1628, 5
        %v1732 = vrot.slane %v1629, 5
        %v1733 = vsel %vm574, %v1731, %v1732
        %v1734 = vsel %vm574, %v1730, %v1731
        %v1735 = vsel %vm574, %v1729, %v1730
        %v1736 = vsel %vm574, %v1728, %v1729
        %v1737 = vsel %vm574, %v1727, %v1728
        %v1738 = vsel %vm574, %v1726, %v1727
        %v1739 = vsel %vm574, %v1725, %v1726
        %v1740 = vsel %vm574, %v1732, %v1725
        %v1741 = vsel %vm583, %v1740, 0.0
        %v1742 = vsel %vm584, %v1739, 0.0
        %v1743 = vsel %vm583, %v1738, 0.0
        %v1744 = vsel %vm584, %v1737, 0.0
        %v1745 = vsel %vm583, %v1736, 0.0
        %v1746 = vsel %vm584, %v1735, 0.0
        %v1747 = vsel %vm583, %v1734, 0.0
        %v1748 = vsel %vm584, %v1733, 0.0
        %v1749 = vld [vmem:[%s1630 + $0x3] sm:$0x1]
        %v1750 = vperm.slane %v1749, 0
        %v1751 = vmul.f32 %v1741, %v1750
        %v1752 = vmul.f32 %v1742, %v1750
        %v1753 = vmul.f32 %v1743, %v1750
        %v1754 = vmul.f32 %v1744, %v1750
        %v1755 = vmul.f32 %v1745, %v1750
        %v1756 = vmul.f32 %v1746, %v1750
        %v1757 = vmul.f32 %v1747, %v1750
        %v1758 = vmul.f32 %v1748, %v1750
        %v1759 = vadd.f32 %v1717, %v1751
        %v1760 = vadd.f32 %v1718, %v1752
        %v1761 = vadd.f32 %v1719, %v1753
        %v1762 = vadd.f32 %v1720, %v1754
        %v1763 = vadd.f32 %v1721, %v1755
        %v1764 = vadd.f32 %v1722, %v1756
        %v1765 = vadd.f32 %v1723, %v1757
        %v1766 = vadd.f32 %v1724, %v1758
        %v1767 = vrot.slane %v1622, 4
        %v1768 = vrot.slane %v1623, 4
        %v1769 = vrot.slane %v1624, 4
        %v1770 = vrot.slane %v1625, 4
        %v1771 = vrot.slane %v1626, 4
        %v1772 = vrot.slane %v1627, 4
        %v1773 = vrot.slane %v1628, 4
        %v1774 = vrot.slane %v1629, 4
        %v1775 = vsel %vm619, %v1773, %v1774
        %v1776 = vsel %vm619, %v1772, %v1773
        %v1777 = vsel %vm619, %v1771, %v1772
        %v1778 = vsel %vm619, %v1770, %v1771
        %v1779 = vsel %vm619, %v1769, %v1770
        %v1780 = vsel %vm619, %v1768, %v1769
        %v1781 = vsel %vm619, %v1767, %v1768
        %v1782 = vsel %vm619, %v1774, %v1767
        %v1783 = vsel %vm628, %v1782, 0.0
        %v1784 = vsel %vm629, %v1781, 0.0
        %v1785 = vsel %vm628, %v1780, 0.0
        %v1786 = vsel %vm629, %v1779, 0.0
        %v1787 = vsel %vm628, %v1778, 0.0
        %v1788 = vsel %vm629, %v1777, 0.0
        %v1789 = vsel %vm628, %v1776, 0.0
        %v1790 = vsel %vm629, %v1775, 0.0
        %v1791 = vld [vmem:[%s1630 + $0x4] sm:$0x1]
        %v1792 = vperm.slane %v1791, 0
        %v1793 = vmul.f32 %v1783, %v1792
        %v1794 = vmul.f32 %v1784, %v1792
        %v1795 = vmul.f32 %v1785, %v1792
        %v1796 = vmul.f32 %v1786, %v1792
        %v1797 = vmul.f32 %v1787, %v1792
        %v1798 = vmul.f32 %v1788, %v1792
        %v1799 = vmul.f32 %v1789, %v1792
        %v1800 = vmul.f32 %v1790, %v1792
        %v1801 = vadd.f32 %v1759, %v1793
        %v1802 = vadd.f32 %v1760, %v1794
        %v1803 = vadd.f32 %v1761, %v1795
        %v1804 = vadd.f32 %v1762, %v1796
        %v1805 = vadd.f32 %v1763, %v1797
        %v1806 = vadd.f32 %v1764, %v1798
        %v1807 = vadd.f32 %v1765, %v1799
        %v1808 = vadd.f32 %v1766, %v1800
        %v1809 = vrot.slane %v1622, 3
        %v1810 = vrot.slane %v1623, 3
        %v1811 = vrot.slane %v1624, 3
        %v1812 = vrot.slane %v1625, 3
        %v1813 = vrot.slane %v1626, 3
        %v1814 = vrot.slane %v1627, 3
        %v1815 = vrot.slane %v1628, 3
        %v1816 = vrot.slane %v1629, 3
        %v1817 = vsel %vm664, %v1815, %v1816
        %v1818 = vsel %vm664, %v1814, %v1815
        %v1819 = vsel %vm664, %v1813, %v1814
        %v1820 = vsel %vm664, %v1812, %v1813
        %v1821 = vsel %vm664, %v1811, %v1812
        %v1822 = vsel %vm664, %v1810, %v1811
        %v1823 = vsel %vm664, %v1809, %v1810
        %v1824 = vsel %vm664, %v1816, %v1809
        %v1825 = vsel %vm673, %v1824, 0.0
        %v1826 = vsel %vm674, %v1823, 0.0
        %v1827 = vsel %vm673, %v1822, 0.0
        %v1828 = vsel %vm674, %v1821, 0.0
        %v1829 = vsel %vm673, %v1820, 0.0
        %v1830 = vsel %vm674, %v1819, 0.0
        %v1831 = vsel %vm673, %v1818, 0.0
        %v1832 = vsel %vm674, %v1817, 0.0
        %v1833 = vld [vmem:[%s1630 + $0x5] sm:$0x1]
        %v1834 = vperm.slane %v1833, 0
        %v1835 = vmul.f32 %v1825, %v1834
        %v1836 = vmul.f32 %v1826, %v1834
        %v1837 = vmul.f32 %v1827, %v1834
        %v1838 = vmul.f32 %v1828, %v1834
        %v1839 = vmul.f32 %v1829, %v1834
        %v1840 = vmul.f32 %v1830, %v1834
        %v1841 = vmul.f32 %v1831, %v1834
        %v1842 = vmul.f32 %v1832, %v1834
        %v1843 = vadd.f32 %v1801, %v1835
        %v1844 = vadd.f32 %v1802, %v1836
        %v1845 = vadd.f32 %v1803, %v1837
        %v1846 = vadd.f32 %v1804, %v1838
        %v1847 = vadd.f32 %v1805, %v1839
        %v1848 = vadd.f32 %v1806, %v1840
        %v1849 = vadd.f32 %v1807, %v1841
        %v1850 = vadd.f32 %v1808, %v1842
        %v1851 = vrot.slane %v1622, 2
        %v1852 = vrot.slane %v1623, 2
        %v1853 = vrot.slane %v1624, 2
        %v1854 = vrot.slane %v1625, 2
        %v1855 = vrot.slane %v1626, 2
        %v1856 = vrot.slane %v1627, 2
        %v1857 = vrot.slane %v1628, 2
        %v1858 = vrot.slane %v1629, 2
        %v1859 = vsel %vm709, %v1857, %v1858
        %v1860 = vsel %vm709, %v1856, %v1857
        %v1861 = vsel %vm709, %v1855, %v1856
        %v1862 = vsel %vm709, %v1854, %v1855
        %v1863 = vsel %vm709, %v1853, %v1854
        %v1864 = vsel %vm709, %v1852, %v1853
        %v1865 = vsel %vm709, %v1851, %v1852
        %v1866 = vsel %vm709, %v1858, %v1851
        %v1867 = vsel %vm718, %v1866, 0.0
        %v1868 = vsel %vm719, %v1865, 0.0
        %v1869 = vsel %vm718, %v1864, 0.0
        %v1870 = vsel %vm719, %v1863, 0.0
        %v1871 = vsel %vm718, %v1862, 0.0
        %v1872 = vsel %vm719, %v1861, 0.0
        %v1873 = vsel %vm718, %v1860, 0.0
        %v1874 = vsel %vm719, %v1859, 0.0
        %v1875 = vld [vmem:[%s1630 + $0x6] sm:$0x1]
        %v1876 = vperm.slane %v1875, 0
        %v1877 = vmul.f32 %v1867, %v1876
        %v1878 = vmul.f32 %v1868, %v1876
        %v1879 = vmul.f32 %v1869, %v1876
        %v1880 = vmul.f32 %v1870, %v1876
        %v1881 = vmul.f32 %v1871, %v1876
        %v1882 = vmul.f32 %v1872, %v1876
        %v1883 = vmul.f32 %v1873, %v1876
        %v1884 = vmul.f32 %v1874, %v1876
        %v1885 = vadd.f32 %v1843, %v1877
        %v1886 = vadd.f32 %v1844, %v1878
        %v1887 = vadd.f32 %v1845, %v1879
        %v1888 = vadd.f32 %v1846, %v1880
        %v1889 = vadd.f32 %v1847, %v1881
        %v1890 = vadd.f32 %v1848, %v1882
        %v1891 = vadd.f32 %v1849, %v1883
        %v1892 = vadd.f32 %v1850, %v1884
        %v1893 = vrot.slane %v1622, 1
        %v1894 = vrot.slane %v1623, 1
        %v1895 = vrot.slane %v1624, 1
        %v1896 = vrot.slane %v1625, 1
        %v1897 = vrot.slane %v1626, 1
        %v1898 = vrot.slane %v1627, 1
        %v1899 = vrot.slane %v1628, 1
        %v1900 = vrot.slane %v1629, 1
        %v1901 = vsel %vm754, %v1899, %v1900
        %v1902 = vsel %vm754, %v1898, %v1899
        %v1903 = vsel %vm754, %v1897, %v1898
        %v1904 = vsel %vm754, %v1896, %v1897
        %v1905 = vsel %vm754, %v1895, %v1896
        %v1906 = vsel %vm754, %v1894, %v1895
        %v1907 = vsel %vm754, %v1893, %v1894
        %v1908 = vsel %vm754, %v1900, %v1893
        %v1909 = vsel %vm763, %v1908, 0.0
        %v1910 = vsel %vm764, %v1907, 0.0
        %v1911 = vsel %vm763, %v1906, 0.0
        %v1912 = vsel %vm764, %v1905, 0.0
        %v1913 = vsel %vm763, %v1904, 0.0
        %v1914 = vsel %vm764, %v1903, 0.0
        %v1915 = vsel %vm763, %v1902, 0.0
        %v1916 = vsel %vm764, %v1901, 0.0
        %v1917 = vld [vmem:[%s1630 + $0x7] sm:$0x1]
        %v1918 = vperm.slane %v1917, 0
        %v1919 = vmul.f32 %v1909, %v1918
        %v1920 = vmul.f32 %v1910, %v1918
        %v1921 = vmul.f32 %v1911, %v1918
        %v1922 = vmul.f32 %v1912, %v1918
        %v1923 = vmul.f32 %v1913, %v1918
        %v1924 = vmul.f32 %v1914, %v1918
        %v1925 = vmul.f32 %v1915, %v1918
        %v1926 = vmul.f32 %v1916, %v1918
        %v1927 = vadd.f32 %v1885, %v1919
        %v1928 = vadd.f32 %v1886, %v1920
        %v1929 = vadd.f32 %v1887, %v1921
        %v1930 = vadd.f32 %v1888, %v1922
        %v1931 = vadd.f32 %v1889, %v1923
        %v1932 = vadd.f32 %v1890, %v1924
        %v1933 = vadd.f32 %v1891, %v1925
        %v1934 = vadd.f32 %v1892, %v1926
        %v1935 = vsel %vm791, %v1629, 0.0
        %v1936 = vsel %vm792, %v1622, 0.0
        %v1937 = vsel %vm791, %v1623, 0.0
        %v1938 = vsel %vm792, %v1624, 0.0
        %v1939 = vsel %vm791, %v1625, 0.0
        %v1940 = vsel %vm792, %v1626, 0.0
        %v1941 = vsel %vm791, %v1627, 0.0
        %v1942 = vsel %vm792, %v1628, 0.0
        %v1943 = vld [vmem:[%s1630 + $0x8] sm:$0x1]
        %v1944 = vperm.slane %v1943, 0
        %v1945 = vmul.f32 %v1935, %v1944
        %v1946 = vmul.f32 %v1936, %v1944
        %v1947 = vmul.f32 %v1937, %v1944
        %v1948 = vmul.f32 %v1938, %v1944
        %v1949 = vmul.f32 %v1939, %v1944
        %v1950 = vmul.f32 %v1940, %v1944
        %v1951 = vmul.f32 %v1941, %v1944
        %v1952 = vmul.f32 %v1942, %v1944
        %v1953 = vadd.f32 %v1927, %v1945
        %v1954 = vadd.f32 %v1928, %v1946
        %v1955 = vadd.f32 %v1929, %v1947
        %v1956 = vadd.f32 %v1930, %v1948
        %v1957 = vadd.f32 %v1931, %v1949
        %v1958 = vadd.f32 %v1932, %v1950
        %v1959 = vadd.f32 %v1933, %v1951
        %v1960 = vadd.f32 %v1934, %v1952
        %v1961 = vsel %vm819, %v1649, 0.0
        %v1962 = vsel %vm820, %v1656, 0.0
        %v1963 = vsel %vm819, %v1655, 0.0
        %v1964 = vsel %vm820, %v1654, 0.0
        %v1965 = vsel %vm819, %v1653, 0.0
        %v1966 = vsel %vm820, %v1652, 0.0
        %v1967 = vsel %vm819, %v1651, 0.0
        %v1968 = vsel %vm820, %v1650, 0.0
        %v1969 = vld [vmem:[%s1630 + $0x9] sm:$0x1]
        %v1970 = vperm.slane %v1969, 0
        %v1971 = vmul.f32 %v1961, %v1970
        %v1972 = vmul.f32 %v1962, %v1970
        %v1973 = vmul.f32 %v1963, %v1970
        %v1974 = vmul.f32 %v1964, %v1970
        %v1975 = vmul.f32 %v1965, %v1970
        %v1976 = vmul.f32 %v1966, %v1970
        %v1977 = vmul.f32 %v1967, %v1970
        %v1978 = vmul.f32 %v1968, %v1970
        %v1979 = vadd.f32 %v1953, %v1971
        %v1980 = vadd.f32 %v1954, %v1972
        %v1981 = vadd.f32 %v1955, %v1973
        %v1982 = vadd.f32 %v1956, %v1974
        %v1983 = vadd.f32 %v1957, %v1975
        %v1984 = vadd.f32 %v1958, %v1976
        %v1985 = vadd.f32 %v1959, %v1977
        %v1986 = vadd.f32 %v1960, %v1978
        %v1987 = vsel %vm847, %v1691, 0.0
        %v1988 = vsel %vm848, %v1698, 0.0
        %v1989 = vsel %vm847, %v1697, 0.0
        %v1990 = vsel %vm848, %v1696, 0.0
        %v1991 = vsel %vm847, %v1695, 0.0
        %v1992 = vsel %vm848, %v1694, 0.0
        %v1993 = vsel %vm847, %v1693, 0.0
        %v1994 = vsel %vm848, %v1692, 0.0
        %v1995 = vld [vmem:[%s1630 + $0xa] sm:$0x1]
        %v1996 = vperm.slane %v1995, 0
        %v1997 = vmul.f32 %v1987, %v1996
        %v1998 = vmul.f32 %v1988, %v1996
        %v1999 = vmul.f32 %v1989, %v1996
        %v2000 = vmul.f32 %v1990, %v1996
        %v2001 = vmul.f32 %v1991, %v1996
        %v2002 = vmul.f32 %v1992, %v1996
        %v2003 = vmul.f32 %v1993, %v1996
        %v2004 = vmul.f32 %v1994, %v1996
        %v2005 = vadd.f32 %v1979, %v1997
        %v2006 = vadd.f32 %v1980, %v1998
        %v2007 = vadd.f32 %v1981, %v1999
        %v2008 = vadd.f32 %v1982, %v2000
        %v2009 = vadd.f32 %v1983, %v2001
        %v2010 = vadd.f32 %v1984, %v2002
        %v2011 = vadd.f32 %v1985, %v2003
        %v2012 = vadd.f32 %v1986, %v2004
        %v2013 = vsel %vm875, %v1733, 0.0
        %v2014 = vsel %vm876, %v1740, 0.0
        %v2015 = vsel %vm875, %v1739, 0.0
        %v2016 = vsel %vm876, %v1738, 0.0
        %v2017 = vsel %vm875, %v1737, 0.0
        %v2018 = vsel %vm876, %v1736, 0.0
        %v2019 = vsel %vm875, %v1735, 0.0
        %v2020 = vsel %vm876, %v1734, 0.0
        %v2021 = vld [vmem:[%s1630 + $0xb] sm:$0x1]
        %v2022 = vperm.slane %v2021, 0
        %v2023 = vmul.f32 %v2013, %v2022
        %v2024 = vmul.f32 %v2014, %v2022
        %v2025 = vmul.f32 %v2015, %v2022
        %v2026 = vmul.f32 %v2016, %v2022
        %v2027 = vmul.f32 %v2017, %v2022
        %v2028 = vmul.f32 %v2018, %v2022
        %v2029 = vmul.f32 %v2019, %v2022
        %v2030 = vmul.f32 %v2020, %v2022
        %v2031 = vadd.f32 %v2005, %v2023
        %v2032 = vadd.f32 %v2006, %v2024
        %v2033 = vadd.f32 %v2007, %v2025
        %v2034 = vadd.f32 %v2008, %v2026
        %v2035 = vadd.f32 %v2009, %v2027
        %v2036 = vadd.f32 %v2010, %v2028
        %v2037 = vadd.f32 %v2011, %v2029
        %v2038 = vadd.f32 %v2012, %v2030
        %v2039 = vsel %vm903, %v1775, 0.0
        %v2040 = vsel %vm904, %v1782, 0.0
        %v2041 = vsel %vm903, %v1781, 0.0
        %v2042 = vsel %vm904, %v1780, 0.0
        %v2043 = vsel %vm903, %v1779, 0.0
        %v2044 = vsel %vm904, %v1778, 0.0
        %v2045 = vsel %vm903, %v1777, 0.0
        %v2046 = vsel %vm904, %v1776, 0.0
        %v2047 = vld [vmem:[%s1630 + $0xc] sm:$0x1]
        %v2048 = vperm.slane %v2047, 0
        %v2049 = vmul.f32 %v2039, %v2048
        %v2050 = vmul.f32 %v2040, %v2048
        %v2051 = vmul.f32 %v2041, %v2048
        %v2052 = vmul.f32 %v2042, %v2048
        %v2053 = vmul.f32 %v2043, %v2048
        %v2054 = vmul.f32 %v2044, %v2048
        %v2055 = vmul.f32 %v2045, %v2048
        %v2056 = vmul.f32 %v2046, %v2048
        %v2057 = vadd.f32 %v2031, %v2049
        %v2058 = vadd.f32 %v2032, %v2050
        %v2059 = vadd.f32 %v2033, %v2051
        %v2060 = vadd.f32 %v2034, %v2052
        %v2061 = vadd.f32 %v2035, %v2053
        %v2062 = vadd.f32 %v2036, %v2054
        %v2063 = vadd.f32 %v2037, %v2055
        %v2064 = vadd.f32 %v2038, %v2056
        %v2065 = vsel %vm931, %v1817, 0.0
        %v2066 = vsel %vm932, %v1824, 0.0
        %v2067 = vsel %vm931, %v1823, 0.0
        %v2068 = vsel %vm932, %v1822, 0.0
        %v2069 = vsel %vm931, %v1821, 0.0
        %v2070 = vsel %vm932, %v1820, 0.0
        %v2071 = vsel %vm931, %v1819, 0.0
        %v2072 = vsel %vm932, %v1818, 0.0
        %v2073 = vld [vmem:[%s1630 + $0xd] sm:$0x1]
        %v2074 = vperm.slane %v2073, 0
        %v2075 = vmul.f32 %v2065, %v2074
        %v2076 = vmul.f32 %v2066, %v2074
        %v2077 = vmul.f32 %v2067, %v2074
        %v2078 = vmul.f32 %v2068, %v2074
        %v2079 = vmul.f32 %v2069, %v2074
        %v2080 = vmul.f32 %v2070, %v2074
        %v2081 = vmul.f32 %v2071, %v2074
        %v2082 = vmul.f32 %v2072, %v2074
        %v2083 = vadd.f32 %v2057, %v2075
        %v2084 = vadd.f32 %v2058, %v2076
        %v2085 = vadd.f32 %v2059, %v2077
        %v2086 = vadd.f32 %v2060, %v2078
        %v2087 = vadd.f32 %v2061, %v2079
        %v2088 = vadd.f32 %v2062, %v2080
        %v2089 = vadd.f32 %v2063, %v2081
        %v2090 = vadd.f32 %v2064, %v2082
        %v2091 = vsel %vm959, %v1859, 0.0
        %v2092 = vsel %vm960, %v1866, 0.0
        %v2093 = vsel %vm959, %v1865, 0.0
        %v2094 = vsel %vm960, %v1864, 0.0
        %v2095 = vsel %vm959, %v1863, 0.0
        %v2096 = vsel %vm960, %v1862, 0.0
        %v2097 = vsel %vm959, %v1861, 0.0
        %v2098 = vsel %vm960, %v1860, 0.0
        %v2099 = vld [vmem:[%s1630 + $0xe] sm:$0x1]
        %v2100 = vperm.slane %v2099, 0
        %v2101 = vmul.f32 %v2091, %v2100
        %v2102 = vmul.f32 %v2092, %v2100
        %v2103 = vmul.f32 %v2093, %v2100
        %v2104 = vmul.f32 %v2094, %v2100
        %v2105 = vmul.f32 %v2095, %v2100
        %v2106 = vmul.f32 %v2096, %v2100
        %v2107 = vmul.f32 %v2097, %v2100
        %v2108 = vmul.f32 %v2098, %v2100
        %v2109 = vadd.f32 %v2083, %v2101
        %v2110 = vadd.f32 %v2084, %v2102
        %v2111 = vadd.f32 %v2085, %v2103
        %v2112 = vadd.f32 %v2086, %v2104
        %v2113 = vadd.f32 %v2087, %v2105
        %v2114 = vadd.f32 %v2088, %v2106
        %v2115 = vadd.f32 %v2089, %v2107
        %v2116 = vadd.f32 %v2090, %v2108
        %v2117 = vsel %vm987, %v1901, 0.0
        %v2118 = vsel %vm988, %v1908, 0.0
        %v2119 = vsel %vm987, %v1907, 0.0
        %v2120 = vsel %vm988, %v1906, 0.0
        %v2121 = vsel %vm987, %v1905, 0.0
        %v2122 = vsel %vm988, %v1904, 0.0
        %v2123 = vsel %vm987, %v1903, 0.0
        %v2124 = vsel %vm988, %v1902, 0.0
        %v2125 = vld [vmem:[%s1630 + $0xf] sm:$0x1]
        %v2126 = vperm.slane %v2125, 0
        %v2127 = vmul.f32 %v2117, %v2126
        %v2128 = vmul.f32 %v2118, %v2126
        %v2129 = vmul.f32 %v2119, %v2126
        %v2130 = vmul.f32 %v2120, %v2126
        %v2131 = vmul.f32 %v2121, %v2126
        %v2132 = vmul.f32 %v2122, %v2126
        %v2133 = vmul.f32 %v2123, %v2126
        %v2134 = vmul.f32 %v2124, %v2126
        %v2135 = vadd.f32 %v2109, %v2127
        %v2136 = vadd.f32 %v2110, %v2128
        %v2137 = vadd.f32 %v2111, %v2129
        %v2138 = vadd.f32 %v2112, %v2130
        %v2139 = vadd.f32 %v2113, %v2131
        %v2140 = vadd.f32 %v2114, %v2132
        %v2141 = vadd.f32 %v2115, %v2133
        %v2142 = vadd.f32 %v2116, %v2134
        %s2143 = scalar_lea.vmem [#allocation7], 1
        %v2144 = vld [vmem:[%s2143] sm:$0x1]
        %v2146 = vperm.slane %v2144, 0
        %v2148 = vmul.f32 %v1622, %v2146
        %v2149 = vmul.f32 %v1623, %v2146
        %v2150 = vmul.f32 %v1624, %v2146
        %v2151 = vmul.f32 %v1625, %v2146
        %v2152 = vmul.f32 %v1626, %v2146
        %v2153 = vmul.f32 %v1627, %v2146
        %v2154 = vmul.f32 %v1628, %v2146
        %v2155 = vmul.f32 %v1629, %v2146
        %v2156 = vadd.f32 %v2135, %v2148
        %v2157 = vadd.f32 %v2136, %v2149
        %v2158 = vadd.f32 %v2137, %v2150
        %v2159 = vadd.f32 %v2138, %v2151
        %v2160 = vadd.f32 %v2139, %v2152
        %v2161 = vadd.f32 %v2140, %v2153
        %v2162 = vadd.f32 %v2141, %v2154
        %v2163 = vadd.f32 %v2142, %v2155
        %v2164 = vmul.f32 %v2156, %v2156
        %v2165 = vmul.f32 %v2157, %v2157
        %v2166 = vmul.f32 %v2158, %v2158
        %v2167 = vmul.f32 %v2159, %v2159
        %v2168 = vmul.f32 %v2160, %v2160
        %v2169 = vmul.f32 %v2161, %v2161
        %v2170 = vmul.f32 %v2162, %v2162
        %v2171 = vmul.f32 %v2163, %v2163
        %v2172 = vmul.f32 %v2156, %v2164
        %v2173 = vmul.f32 %v2157, %v2165
        %v2174 = vmul.f32 %v2158, %v2166
        %v2175 = vmul.f32 %v2159, %v2167
        %v2176 = vmul.f32 %v2160, %v2168
        %v2177 = vmul.f32 %v2161, %v2169
        %v2178 = vmul.f32 %v2162, %v2170
        %v2179 = vmul.f32 %v2163, %v2171
        %v2180 = vmul.f32 %v2172, 0.044715
        %v2181 = vmul.f32 %v2173, 0.044715
        %v2182 = vmul.f32 %v2174, 0.044715
        %v2183 = vmul.f32 %v2175, 0.044715
        %v2184 = vmul.f32 %v2176, 0.044715
        %v2185 = vmul.f32 %v2177, 0.044715
        %v2186 = vmul.f32 %v2178, 0.044715
        %v2187 = vmul.f32 %v2179, 0.044715
        %v2188 = vadd.f32 %v2156, %v2180
        %v2189 = vadd.f32 %v2157, %v2181
        %v2190 = vadd.f32 %v2158, %v2182
        %v2191 = vadd.f32 %v2159, %v2183
        %v2192 = vadd.f32 %v2160, %v2184
        %v2193 = vadd.f32 %v2161, %v2185
        %v2194 = vadd.f32 %v2162, %v2186
        %v2195 = vadd.f32 %v2163, %v2187
        %v2196 = vmul.f32 %v2188, 0.7978846
        %v2197 = vmul.f32 %v2189, 0.7978846
        %v2198 = vmul.f32 %v2190, 0.7978846
        %v2199 = vmul.f32 %v2191, 0.7978846
        %v2200 = vmul.f32 %v2192, 0.7978846
        %v2201 = vmul.f32 %v2193, 0.7978846
        %v2202 = vmul.f32 %v2194, 0.7978846
        %v2203 = vmul.f32 %v2195, 0.7978846
        %v2204 = vtanh.pop %v2196
        %v2205 = vtanh.pop %v2197
        %v2206 = vtanh.pop %v2198
        %v2207 = vtanh.pop %v2199
        %v2208 = vtanh.pop %v2200
        %v2209 = vtanh.pop %v2201
        %v2210 = vtanh.pop %v2202
        %v2211 = vtanh.pop %v2203
        %v2212 = vadd.f32 %v2204, 1.0
        %v2213 = vadd.f32 %v2205, 1.0
        %v2214 = vadd.f32 %v2206, 1.0
        %v2215 = vadd.f32 %v2207, 1.0
        %v2216 = vadd.f32 %v2208, 1.0
        %v2217 = vadd.f32 %v2209, 1.0
        %v2218 = vadd.f32 %v2210, 1.0
        %v2219 = vadd.f32 %v2211, 1.0
        %v2220 = vmul.f32 %v2212, 0.5
        %v2221 = vmul.f32 %v2213, 0.5
        %v2222 = vmul.f32 %v2214, 0.5
        %v2223 = vmul.f32 %v2215, 0.5
        %v2224 = vmul.f32 %v2216, 0.5
        %v2225 = vmul.f32 %v2217, 0.5
        %v2226 = vmul.f32 %v2218, 0.5
        %v2227 = vmul.f32 %v2219, 0.5
        %v2228 = vmul.f32 %v2156, %v2220
        %v2229 = vmul.f32 %v2157, %v2221
        %v2230 = vmul.f32 %v2158, %v2222
        %v2231 = vmul.f32 %v2159, %v2223
        %v2232 = vmul.f32 %v2160, %v2224
        %v2233 = vmul.f32 %v2161, %v2225
        %v2234 = vmul.f32 %v2162, %v2226
        %v2235 = vmul.f32 %v2163, %v2227
        %v2236 = vpack.c.bf16 %v2229, %v2228
        %v2237 = vpack.c.bf16 %v2231, %v2230
        %v2238 = vpack.c.bf16 %v2233, %v2232
        %v2239 = vpack.c.bf16 %v2235, %v2234
        %s2240 = scalar_lea.vmem [#allocation8], 128
        %v2241 = vld [vmem:[%s2240] sm:$0xff]
        %v2242 = vld [vmem:[%s2240 + $0x8] sm:$0xff]
        %v2243 = vld [vmem:[%s2240 + $0x10] sm:$0xff]
        %v2244 = vld [vmem:[%s2240 + $0x18] sm:$0xff]
        %v2245 = vld [vmem:[%s2240 + $0x20] sm:$0xff]
        %v2246 = vld [vmem:[%s2240 + $0x28] sm:$0xff]
        %v2247 = vld [vmem:[%s2240 + $0x30] sm:$0xff]
        %v2248 = vld [vmem:[%s2240 + $0x38] sm:$0xff]
        %v2249 = vld [vmem:[%s2240 + $0x40] sm:$0xff]
        %v2250 = vld [vmem:[%s2240 + $0x48] sm:$0xff]
        %v2251 = vld [vmem:[%s2240 + $0x50] sm:$0xff]
        %v2252 = vld [vmem:[%s2240 + $0x58] sm:$0xff]
        %v2253 = vld [vmem:[%s2240 + $0x60] sm:$0xff]
        %v2254 = vld [vmem:[%s2240 + $0x68] sm:$0xff]
        %v2255 = vld [vmem:[%s2240 + $0x70] sm:$0xff]
        %v2256 = vld [vmem:[%s2240 + $0x78] sm:$0xff]
        %s2257 = scalar_lea.vmem [#allocation10], 2
        %v2258 = vld [vmem:[%s2257] sm:$0x3]
        %v2260 = vperm.slane %v2258, 0
        %v2261 = vperm.slane %v2258, 1
        %v2280 = vunpack.c.l.b16 %v2241
        %v2281 = vunpack.c.h.b16 %v2241
        %v2282 = vunpack.c.l.b16 %v2242
        %v2283 = vunpack.c.h.b16 %v2242
        %v2284 = vunpack.c.l.b16 %v2243
        %v2285 = vunpack.c.h.b16 %v2243
        %v2286 = vunpack.c.l.b16 %v2244
        %v2287 = vunpack.c.h.b16 %v2244
        %v2288 = vunpack.c.l.b16 %v2245
        %v2289 = vunpack.c.h.b16 %v2245
        %v2290 = vunpack.c.l.b16 %v2246
        %v2291 = vunpack.c.h.b16 %v2246
        %v2292 = vunpack.c.l.b16 %v2247
        %v2293 = vunpack.c.h.b16 %v2247
        %v2294 = vunpack.c.l.b16 %v2248
        %v2295 = vunpack.c.h.b16 %v2248
        %v2296 = vunpack.c.l.b16 %v2249
        %v2297 = vunpack.c.h.b16 %v2249
        %v2298 = vunpack.c.l.b16 %v2250
        %v2299 = vunpack.c.h.b16 %v2250
        %v2300 = vunpack.c.l.b16 %v2251
        %v2301 = vunpack.c.h.b16 %v2251
        %v2302 = vunpack.c.l.b16 %v2252
        %v2303 = vunpack.c.h.b16 %v2252
        %v2304 = vunpack.c.l.b16 %v2253
        %v2305 = vunpack.c.h.b16 %v2253
        %v2306 = vunpack.c.l.b16 %v2254
        %v2307 = vunpack.c.h.b16 %v2254
        %v2308 = vunpack.c.l.b16 %v2255
        %v2309 = vunpack.c.h.b16 %v2255
        %v2310 = vunpack.c.l.b16 %v2256
        %v2311 = vunpack.c.h.b16 %v2256
        %v2312 = vpack.c.b16 %v2282, %v2280
        %v2313 = vpack.c.b16 %v2283, %v2281
        %v2314 = vpack.c.b16 %v2286, %v2284
        %v2315 = vpack.c.b16 %v2287, %v2285
        %v2316 = vpack.c.b16 %v2290, %v2288
        %v2317 = vpack.c.b16 %v2291, %v2289
        %v2318 = vpack.c.b16 %v2294, %v2292
        %v2319 = vpack.c.b16 %v2295, %v2293
        %v2320 = vpack.c.b16 %v2298, %v2296
        %v2321 = vpack.c.b16 %v2299, %v2297
        %v2322 = vpack.c.b16 %v2302, %v2300
        %v2323 = vpack.c.b16 %v2303, %v2301
        %v2324 = vpack.c.b16 %v2306, %v2304
        %v2325 = vpack.c.b16 %v2307, %v2305
        %v2326 = vpack.c.b16 %v2310, %v2308
        %v2327 = vpack.c.b16 %v2311, %v2309
        %2344 = vmatpush.bf16.msra.mxu0 %v2326
        %2345 = vmatpush.bf16.msra.mxu0 %v2324
        %2346 = vmatpush.bf16.msra.mxu0 %v2322
        %2347 = vmatpush.bf16.msra.mxu0 %v2320
        %2348 = vmatpush.bf16.msra.mxu0 %v2318
        %2349 = vmatpush.bf16.msra.mxu0 %v2316
        %2350 = vmatpush.bf16.msra.mxu0 %v2314
        %2351 = vmatpush.bf16.msra.mxu0 %v2312
        %2352 = vmatmul.bf16.gmra.mxu0 %v2236
        %v2353 = vpop.f32.mrf.mxu0
        %v2354 = vadd.f32 %v2260, %v2353
        %v2355 = vpop.f32.mrf.mxu0
        %v2356 = vadd.f32 %v2260, %v2355
        %2357 = vmatmul.bf16.gmra.mxu0 %v2237
        %v2358 = vpop.f32.mrf.mxu0
        %v2359 = vadd.f32 %v2260, %v2358
        %v2360 = vpop.f32.mrf.mxu0
        %v2361 = vadd.f32 %v2260, %v2360
        %2362 = vmatmul.bf16.gmra.mxu0 %v2238
        %v2363 = vpop.f32.mrf.mxu0
        %v2364 = vadd.f32 %v2260, %v2363
        %v2365 = vpop.f32.mrf.mxu0
        %v2366 = vadd.f32 %v2260, %v2365
        %2367 = vmatmul.bf16.gmra.mxu0 %v2239
        %v2368 = vpop.f32.mrf.mxu0
        %v2369 = vadd.f32 %v2260, %v2368
        %v2370 = vpop.f32.mrf.mxu0
        %v2371 = vadd.f32 %v2260, %v2370
        %2372 = vdwg.mxu0
        %2373 = vmatpush.bf16.msra.mxu0 %v2327
        %2374 = vmatpush.bf16.msra.mxu0 %v2325
        %2375 = vmatpush.bf16.msra.mxu0 %v2323
        %2376 = vmatpush.bf16.msra.mxu0 %v2321
        %2377 = vmatpush.bf16.msra.mxu0 %v2319
        %2378 = vmatpush.bf16.msra.mxu0 %v2317
        %2379 = vmatpush.bf16.msra.mxu0 %v2315
        %2380 = vmatpush.bf16.msra.mxu0 %v2313
        %2381 = vmatmul.bf16.gmra.mxu0 %v2236
        %v2382 = vpop.f32.mrf.mxu0
        %v2383 = vadd.f32 %v2261, %v2382
        %v2384 = vpop.f32.mrf.mxu0
        %v2385 = vadd.f32 %v2261, %v2384
        %2386 = vmatmul.bf16.gmra.mxu0 %v2237
        %v2387 = vpop.f32.mrf.mxu0
        %v2388 = vadd.f32 %v2261, %v2387
        %v2389 = vpop.f32.mrf.mxu0
        %v2390 = vadd.f32 %v2261, %v2389
        %2391 = vmatmul.bf16.gmra.mxu0 %v2238
        %v2392 = vpop.f32.mrf.mxu0
        %v2393 = vadd.f32 %v2261, %v2392
        %v2394 = vpop.f32.mrf.mxu0
        %v2395 = vadd.f32 %v2261, %v2394
        %2396 = vmatmul.bf16.gmra.mxu0 %v2239
        %v2397 = vpop.f32.mrf.mxu0
        %v2398 = vadd.f32 %v2261, %v2397
        %v2399 = vpop.f32.mrf.mxu0
        %v2400 = vadd.f32 %v2261, %v2399
        %2401 = vdwg.mxu0
        %v2402 = vxor.u32 %v2383, 2147483648
        %v2403 = vxor.u32 %v2385, 2147483648
        %v2404 = vxor.u32 %v2388, 2147483648
        %v2405 = vxor.u32 %v2390, 2147483648
        %v2406 = vxor.u32 %v2393, 2147483648
        %v2407 = vxor.u32 %v2395, 2147483648
        %v2408 = vxor.u32 %v2398, 2147483648
        %v2409 = vxor.u32 %v2400, 2147483648
        %v2410 = vmul.f32 %v2402, 1.442695
        %v2411 = vpow.pop %v2410
        %v2412 = vmul.f32 %v2403, 1.442695
        %v2413 = vpow.pop %v2412
        %v2414 = vmul.f32 %v2404, 1.442695
        %v2415 = vpow.pop %v2414
        %v2416 = vmul.f32 %v2405, 1.442695
        %v2417 = vpow.pop %v2416
        %v2418 = vmul.f32 %v2406, 1.442695
        %v2419 = vpow.pop %v2418
        %v2420 = vmul.f32 %v2407, 1.442695
        %v2421 = vpow.pop %v2420
        %v2422 = vmul.f32 %v2408, 1.442695
        %v2423 = vpow.pop %v2422
        %v2424 = vmul.f32 %v2409, 1.442695
        %v2425 = vpow.pop %v2424
        %v2426 = vadd.f32 %v2411, 1.0
        %v2427 = vadd.f32 %v2413, 1.0
        %v2428 = vadd.f32 %v2415, 1.0
        %v2429 = vadd.f32 %v2417, 1.0
        %v2430 = vadd.f32 %v2419, 1.0
        %v2431 = vadd.f32 %v2421, 1.0
        %v2432 = vadd.f32 %v2423, 1.0
        %v2433 = vadd.f32 %v2425, 1.0
        %v2434 = vrcp.pop %v2426
        %v2435 = vmul.f32 %v2426, %v2434
        %v2436 = vsub.f32 1.0, %v2435
        %v2437 = vmul.f32 %v2434, %v2436
        %v2438 = vadd.f32 %v2434, %v2437
        %vm2439 = vweird.f32 %v2426
        %vm2440 = vweird.f32 %v2434
        %vm2441 = vmor %vm2439, %vm2440
        %v2442 = vsel %vm2441, %v2434, %v2438
        %v2443 = vand.u32 2147483647, %v2426
        %vm2444 = vcmp.eq.f32.partialorder %v2443, 8.507059e+37
        %v2445 = vand.u32 %v2426, 2147483648
        %v2446 = vor.u32 1.1754944e-38, %v2445
        %v2447 = vsel %vm2444, %v2446, %v2442
        %v2448 = vmul.f32 1.0, %v2447
        %v2449 = vrcp.pop %v2427
        %v2450 = vmul.f32 %v2427, %v2449
        %v2451 = vsub.f32 1.0, %v2450
        %v2452 = vmul.f32 %v2449, %v2451
        %v2453 = vadd.f32 %v2449, %v2452
        %vm2454 = vweird.f32 %v2427
        %vm2455 = vweird.f32 %v2449
        %vm2456 = vmor %vm2454, %vm2455
        %v2457 = vsel %vm2456, %v2449, %v2453
        %v2458 = vand.u32 2147483647, %v2427
        %vm2459 = vcmp.eq.f32.partialorder %v2458, 8.507059e+37
        %v2460 = vand.u32 %v2427, 2147483648
        %v2461 = vor.u32 1.1754944e-38, %v2460
        %v2462 = vsel %vm2459, %v2461, %v2457
        %v2463 = vmul.f32 1.0, %v2462
        %v2464 = vrcp.pop %v2428
        %v2465 = vmul.f32 %v2428, %v2464
        %v2466 = vsub.f32 1.0, %v2465
        %v2467 = vmul.f32 %v2464, %v2466
        %v2468 = vadd.f32 %v2464, %v2467
        %vm2469 = vweird.f32 %v2428
        %vm2470 = vweird.f32 %v2464
        %vm2471 = vmor %vm2469, %vm2470
        %v2472 = vsel %vm2471, %v2464, %v2468
        %v2473 = vand.u32 2147483647, %v2428
        %vm2474 = vcmp.eq.f32.partialorder %v2473, 8.507059e+37
        %v2475 = vand.u32 %v2428, 2147483648
        %v2476 = vor.u32 1.1754944e-38, %v2475
        %v2477 = vsel %vm2474, %v2476, %v2472
        %v2478 = vmul.f32 1.0, %v2477
        %v2479 = vrcp.pop %v2429
        %v2480 = vmul.f32 %v2429, %v2479
        %v2481 = vsub.f32 1.0, %v2480
        %v2482 = vmul.f32 %v2479, %v2481
        %v2483 = vadd.f32 %v2479, %v2482
        %vm2484 = vweird.f32 %v2429
        %vm2485 = vweird.f32 %v2479
        %vm2486 = vmor %vm2484, %vm2485
        %v2487 = vsel %vm2486, %v2479, %v2483
        %v2488 = vand.u32 2147483647, %v2429
        %vm2489 = vcmp.eq.f32.partialorder %v2488, 8.507059e+37
        %v2490 = vand.u32 %v2429, 2147483648
        %v2491 = vor.u32 1.1754944e-38, %v2490
        %v2492 = vsel %vm2489, %v2491, %v2487
        %v2493 = vmul.f32 1.0, %v2492
        %v2494 = vrcp.pop %v2430
        %v2495 = vmul.f32 %v2430, %v2494
        %v2496 = vsub.f32 1.0, %v2495
        %v2497 = vmul.f32 %v2494, %v2496
        %v2498 = vadd.f32 %v2494, %v2497
        %vm2499 = vweird.f32 %v2430
        %vm2500 = vweird.f32 %v2494
        %vm2501 = vmor %vm2499, %vm2500
        %v2502 = vsel %vm2501, %v2494, %v2498
        %v2503 = vand.u32 2147483647, %v2430
        %vm2504 = vcmp.eq.f32.partialorder %v2503, 8.507059e+37
        %v2505 = vand.u32 %v2430, 2147483648
        %v2506 = vor.u32 1.1754944e-38, %v2505
        %v2507 = vsel %vm2504, %v2506, %v2502
        %v2508 = vmul.f32 1.0, %v2507
        %v2509 = vrcp.pop %v2431
        %v2510 = vmul.f32 %v2431, %v2509
        %v2511 = vsub.f32 1.0, %v2510
        %v2512 = vmul.f32 %v2509, %v2511
        %v2513 = vadd.f32 %v2509, %v2512
        %vm2514 = vweird.f32 %v2431
        %vm2515 = vweird.f32 %v2509
        %vm2516 = vmor %vm2514, %vm2515
        %v2517 = vsel %vm2516, %v2509, %v2513
        %v2518 = vand.u32 2147483647, %v2431
        %vm2519 = vcmp.eq.f32.partialorder %v2518, 8.507059e+37
        %v2520 = vand.u32 %v2431, 2147483648
        %v2521 = vor.u32 1.1754944e-38, %v2520
        %v2522 = vsel %vm2519, %v2521, %v2517
        %v2523 = vmul.f32 1.0, %v2522
        %v2524 = vrcp.pop %v2432
        %v2525 = vmul.f32 %v2432, %v2524
        %v2526 = vsub.f32 1.0, %v2525
        %v2527 = vmul.f32 %v2524, %v2526
        %v2528 = vadd.f32 %v2524, %v2527
        %vm2529 = vweird.f32 %v2432
        %vm2530 = vweird.f32 %v2524
        %vm2531 = vmor %vm2529, %vm2530
        %v2532 = vsel %vm2531, %v2524, %v2528
        %v2533 = vand.u32 2147483647, %v2432
        %vm2534 = vcmp.eq.f32.partialorder %v2533, 8.507059e+37
        %v2535 = vand.u32 %v2432, 2147483648
        %v2536 = vor.u32 1.1754944e-38, %v2535
        %v2537 = vsel %vm2534, %v2536, %v2532
        %v2538 = vmul.f32 1.0, %v2537
        %v2539 = vrcp.pop %v2433
        %v2540 = vmul.f32 %v2433, %v2539
        %v2541 = vsub.f32 1.0, %v2540
        %v2542 = vmul.f32 %v2539, %v2541
        %v2543 = vadd.f32 %v2539, %v2542
        %vm2544 = vweird.f32 %v2433
        %vm2545 = vweird.f32 %v2539
        %vm2546 = vmor %vm2544, %vm2545
        %v2547 = vsel %vm2546, %v2539, %v2543
        %v2548 = vand.u32 2147483647, %v2433
        %vm2549 = vcmp.eq.f32.partialorder %v2548, 8.507059e+37
        %v2550 = vand.u32 %v2433, 2147483648
        %v2551 = vor.u32 1.1754944e-38, %v2550
        %v2552 = vsel %vm2549, %v2551, %v2547
        %v2553 = vmul.f32 1.0, %v2552
        %v2554 = vmul.f32 %v2354, %v2448
        %v2555 = vmul.f32 %v2356, %v2463
        %v2556 = vmul.f32 %v2359, %v2478
        %v2557 = vmul.f32 %v2361, %v2493
        %v2558 = vmul.f32 %v2364, %v2508
        %v2559 = vmul.f32 %v2366, %v2523
        %v2560 = vmul.f32 %v2369, %v2538
        %v2561 = vmul.f32 %v2371, %v2553
        %v2562 = vadd.f32 %v2554, %v1622
        %v2563 = vadd.f32 %v2555, %v1623
        %v2564 = vadd.f32 %v2556, %v1624
        %v2565 = vadd.f32 %v2557, %v1625
        %v2566 = vadd.f32 %v2558, %v1626
        %v2567 = vadd.f32 %v2559, %v1627
        %v2568 = vadd.f32 %v2560, %v1628
        %v2569 = vadd.f32 %v2561, %v1629
        %2570 = vadd.xlane.f32.xlu0 %v2562
        %v2571 = vpop.xlane.xlu0 %2570
        %2572 = vadd.xlane.f32.xlu0 %v2563
        %v2573 = vpop.xlane.xlu0 %2572
        %2574 = vadd.xlane.f32.xlu0 %v2564
        %v2575 = vpop.xlane.xlu0 %2574
        %2576 = vadd.xlane.f32.xlu0 %v2565
        %v2577 = vpop.xlane.xlu0 %2576
        %2578 = vadd.xlane.f32.xlu0 %v2566
        %v2579 = vpop.xlane.xlu0 %2578
        %2580 = vadd.xlane.f32.xlu0 %v2567
        %v2581 = vpop.xlane.xlu0 %2580
        %2582 = vadd.xlane.f32.xlu0 %v2568
        %v2583 = vpop.xlane.xlu0 %2582
        %2584 = vadd.xlane.f32.xlu0 %v2569
        %v2585 = vpop.xlane.xlu0 %2584
        %v2586 = vmul.f32 %v2571, %v1461
        %v2587 = vmul.f32 %v2573, %v1461
        %v2588 = vmul.f32 %v2575, %v1461
        %v2589 = vmul.f32 %v2577, %v1461
        %v2590 = vmul.f32 %v2579, %v1461
        %v2591 = vmul.f32 %v2581, %v1461
        %v2592 = vmul.f32 %v2583, %v1461
        %v2593 = vmul.f32 %v2585, %v1461
        %v2594 = vsub.f32 %v2562, %v2586
        %v2595 = vsub.f32 %v2563, %v2587
        %v2596 = vsub.f32 %v2564, %v2588
        %v2597 = vsub.f32 %v2565, %v2589
        %v2598 = vsub.f32 %v2566, %v2590
        %v2599 = vsub.f32 %v2567, %v2591
        %v2600 = vsub.f32 %v2568, %v2592
        %v2601 = vsub.f32 %v2569, %v2593
        %v2602 = vmul.f32 %v2594, %v2594
        %v2603 = vmul.f32 %v2595, %v2595
        %v2604 = vmul.f32 %v2596, %v2596
        %v2605 = vmul.f32 %v2597, %v2597
        %v2606 = vmul.f32 %v2598, %v2598
        %v2607 = vmul.f32 %v2599, %v2599
        %v2608 = vmul.f32 %v2600, %v2600
        %v2609 = vmul.f32 %v2601, %v2601
        %2610 = vadd.xlane.f32.xlu0 %v2602
        %v2611 = vpop.xlane.xlu0 %2610
        %2612 = vadd.xlane.f32.xlu0 %v2603
        %v2613 = vpop.xlane.xlu0 %2612
        %2614 = vadd.xlane.f32.xlu0 %v2604
        %v2615 = vpop.xlane.xlu0 %2614
        %2616 = vadd.xlane.f32.xlu0 %v2605
        %v2617 = vpop.xlane.xlu0 %2616
        %2618 = vadd.xlane.f32.xlu0 %v2606
        %v2619 = vpop.xlane.xlu0 %2618
        %2620 = vadd.xlane.f32.xlu0 %v2607
        %v2621 = vpop.xlane.xlu0 %2620
        %2622 = vadd.xlane.f32.xlu0 %v2608
        %v2623 = vpop.xlane.xlu0 %2622
        %2624 = vadd.xlane.f32.xlu0 %v2609
        %v2625 = vpop.xlane.xlu0 %2624
        %v2626 = vmul.f32 %v2611, %v1461
        %v2627 = vmul.f32 %v2613, %v1461
        %v2628 = vmul.f32 %v2615, %v1461
        %v2629 = vmul.f32 %v2617, %v1461
        %v2630 = vmul.f32 %v2619, %v1461
        %v2631 = vmul.f32 %v2621, %v1461
        %v2632 = vmul.f32 %v2623, %v1461
        %v2633 = vmul.f32 %v2625, %v1461
        %v2634 = vadd.f32 %v2626, 1e-05
        %v2635 = vadd.f32 %v2627, 1e-05
        %v2636 = vadd.f32 %v2628, 1e-05
        %v2637 = vadd.f32 %v2629, 1e-05
        %v2638 = vadd.f32 %v2630, 1e-05
        %v2639 = vadd.f32 %v2631, 1e-05
        %v2640 = vadd.f32 %v2632, 1e-05
        %v2641 = vadd.f32 %v2633, 1e-05
        %v2642 = vrsqrt.pop %v2634
        %v2643 = vmul.f32 %v2642, %v2634
        %v2644 = vmul.f32 %v2643, %v2642
        %v2645 = vmul.f32 0.5, %v2644
        %v2646 = vsub.f32 1.5, %v2645
        %v2647 = vmul.f32 %v2642, %v2646
        %vm2648 = vweird.f32 %v2634
        %vm2649 = vweird.f32 %v2642
        %vm2650 = vmor %vm2648, %vm2649
        %v2651 = vsel %vm2650, %v2642, %v2647
        %v2652 = vrsqrt.pop %v2635
        %v2653 = vmul.f32 %v2652, %v2635
        %v2654 = vmul.f32 %v2653, %v2652
        %v2655 = vmul.f32 0.5, %v2654
        %v2656 = vsub.f32 1.5, %v2655
        %v2657 = vmul.f32 %v2652, %v2656
        %vm2658 = vweird.f32 %v2635
        %vm2659 = vweird.f32 %v2652
        %vm2660 = vmor %vm2658, %vm2659
        %v2661 = vsel %vm2660, %v2652, %v2657
        %v2662 = vrsqrt.pop %v2636
        %v2663 = vmul.f32 %v2662, %v2636
        %v2664 = vmul.f32 %v2663, %v2662
        %v2665 = vmul.f32 0.5, %v2664
        %v2666 = vsub.f32 1.5, %v2665
        %v2667 = vmul.f32 %v2662, %v2666
        %vm2668 = vweird.f32 %v2636
        %vm2669 = vweird.f32 %v2662
        %vm2670 = vmor %vm2668, %vm2669
        %v2671 = vsel %vm2670, %v2662, %v2667
        %v2672 = vrsqrt.pop %v2637
        %v2673 = vmul.f32 %v2672, %v2637
        %v2674 = vmul.f32 %v2673, %v2672
        %v2675 = vmul.f32 0.5, %v2674
        %v2676 = vsub.f32 1.5, %v2675
        %v2677 = vmul.f32 %v2672, %v2676
        %vm2678 = vweird.f32 %v2637
        %vm2679 = vweird.f32 %v2672
        %vm2680 = vmor %vm2678, %vm2679
        %v2681 = vsel %vm2680, %v2672, %v2677
        %v2682 = vrsqrt.pop %v2638
        %v2683 = vmul.f32 %v2682, %v2638
        %v2684 = vmul.f32 %v2683, %v2682
        %v2685 = vmul.f32 0.5, %v2684
        %v2686 = vsub.f32 1.5, %v2685
        %v2687 = vmul.f32 %v2682, %v2686
        %vm2688 = vweird.f32 %v2638
        %vm2689 = vweird.f32 %v2682
        %vm2690 = vmor %vm2688, %vm2689
        %v2691 = vsel %vm2690, %v2682, %v2687
        %v2692 = vrsqrt.pop %v2639
        %v2693 = vmul.f32 %v2692, %v2639
        %v2694 = vmul.f32 %v2693, %v2692
        %v2695 = vmul.f32 0.5, %v2694
        %v2696 = vsub.f32 1.5, %v2695
        %v2697 = vmul.f32 %v2692, %v2696
        %vm2698 = vweird.f32 %v2639
        %vm2699 = vweird.f32 %v2692
        %vm2700 = vmor %vm2698, %vm2699
        %v2701 = vsel %vm2700, %v2692, %v2697
        %v2702 = vrsqrt.pop %v2640
        %v2703 = vmul.f32 %v2702, %v2640
        %v2704 = vmul.f32 %v2703, %v2702
        %v2705 = vmul.f32 0.5, %v2704
        %v2706 = vsub.f32 1.5, %v2705
        %v2707 = vmul.f32 %v2702, %v2706
        %vm2708 = vweird.f32 %v2640
        %vm2709 = vweird.f32 %v2702
        %vm2710 = vmor %vm2708, %vm2709
        %v2711 = vsel %vm2710, %v2702, %v2707
        %v2712 = vrsqrt.pop %v2641
        %v2713 = vmul.f32 %v2712, %v2641
        %v2714 = vmul.f32 %v2713, %v2712
        %v2715 = vmul.f32 0.5, %v2714
        %v2716 = vsub.f32 1.5, %v2715
        %v2717 = vmul.f32 %v2712, %v2716
        %vm2718 = vweird.f32 %v2641
        %vm2719 = vweird.f32 %v2712
        %vm2720 = vmor %vm2718, %vm2719
        %v2721 = vsel %vm2720, %v2712, %v2717
        %v2722 = vmul.f32 %v2594, %v2651
        %v2723 = vmul.f32 %v2595, %v2661
        %v2724 = vmul.f32 %v2596, %v2671
        %v2725 = vmul.f32 %v2597, %v2681
        %v2726 = vmul.f32 %v2598, %v2691
        %v2727 = vmul.f32 %v2599, %v2701
        %v2728 = vmul.f32 %v2600, %v2711
        %v2729 = vmul.f32 %v2601, %v2721
        %s2730 = scalar_lea.vmem %s5, 1
        %v2731 = vld [vmem:[%s2730] sm:$0x1]
        %v2733 = vperm.slane %v2731, 0
        %v2735 = vmul.f32 %v2722, %v2733
        %v2736 = vmul.f32 %v2723, %v2733
        %v2737 = vmul.f32 %v2724, %v2733
        %v2738 = vmul.f32 %v2725, %v2733
        %v2739 = vmul.f32 %v2726, %v2733
        %v2740 = vmul.f32 %v2727, %v2733
        %v2741 = vmul.f32 %v2728, %v2733
        %v2742 = vmul.f32 %v2729, %v2733
        %s2743 = scalar_lea.vmem [#allocation11], 1
        %v2744 = vld [vmem:[%s2743] sm:$0x1]
        %v2746 = vperm.slane %v2744, 0
        %v2748 = vadd.f32 %v2735, %v2746
        %v2749 = vadd.f32 %v2736, %v2746
        %v2750 = vadd.f32 %v2737, %v2746
        %v2751 = vadd.f32 %v2738, %v2746
        %v2752 = vadd.f32 %v2739, %v2746
        %v2753 = vadd.f32 %v2740, %v2746
        %v2754 = vadd.f32 %v2741, %v2746
        %v2755 = vadd.f32 %v2742, %v2746
        %s2756 = scalar_lea.vmem [#allocation5], 32
        %v2757 = vld [vmem:[%s2756] sm:$0x1]
        %v2758 = vperm.slane %v2757, 0
        %v2759 = vmul.f32 %v2748, %v2758
        %v2760 = vmul.f32 %v2749, %v2758
        %v2761 = vmul.f32 %v2750, %v2758
        %v2762 = vmul.f32 %v2751, %v2758
        %v2763 = vmul.f32 %v2752, %v2758
        %v2764 = vmul.f32 %v2753, %v2758
        %v2765 = vmul.f32 %v2754, %v2758
        %v2766 = vmul.f32 %v2755, %v2758
        %v2767 = vrot.slane %v2748, 7
        %v2768 = vrot.slane %v2749, 7
        %v2769 = vrot.slane %v2750, 7
        %v2770 = vrot.slane %v2751, 7
        %v2771 = vrot.slane %v2752, 7
        %v2772 = vrot.slane %v2753, 7
        %v2773 = vrot.slane %v2754, 7
        %v2774 = vrot.slane %v2755, 7
        %v2775 = vsel %vm484, %v2773, %v2774
        %v2776 = vsel %vm484, %v2772, %v2773
        %v2777 = vsel %vm484, %v2771, %v2772
        %v2778 = vsel %vm484, %v2770, %v2771
        %v2779 = vsel %vm484, %v2769, %v2770
        %v2780 = vsel %vm484, %v2768, %v2769
        %v2781 = vsel %vm484, %v2767, %v2768
        %v2782 = vsel %vm484, %v2774, %v2767
        %v2783 = vsel %vm493, %v2782, 0.0
        %v2784 = vsel %vm494, %v2781, 0.0
        %v2785 = vsel %vm493, %v2780, 0.0
        %v2786 = vsel %vm494, %v2779, 0.0
        %v2787 = vsel %vm493, %v2778, 0.0
        %v2788 = vsel %vm494, %v2777, 0.0
        %v2789 = vsel %vm493, %v2776, 0.0
        %v2790 = vsel %vm494, %v2775, 0.0
        %v2791 = vld [vmem:[%s2756 + $0x1] sm:$0x1]
        %v2792 = vperm.slane %v2791, 0
        %v2793 = vmul.f32 %v2783, %v2792
        %v2794 = vmul.f32 %v2784, %v2792
        %v2795 = vmul.f32 %v2785, %v2792
        %v2796 = vmul.f32 %v2786, %v2792
        %v2797 = vmul.f32 %v2787, %v2792
        %v2798 = vmul.f32 %v2788, %v2792
        %v2799 = vmul.f32 %v2789, %v2792
        %v2800 = vmul.f32 %v2790, %v2792
        %v2801 = vadd.f32 %v2759, %v2793
        %v2802 = vadd.f32 %v2760, %v2794
        %v2803 = vadd.f32 %v2761, %v2795
        %v2804 = vadd.f32 %v2762, %v2796
        %v2805 = vadd.f32 %v2763, %v2797
        %v2806 = vadd.f32 %v2764, %v2798
        %v2807 = vadd.f32 %v2765, %v2799
        %v2808 = vadd.f32 %v2766, %v2800
        %v2809 = vrot.slane %v2748, 6
        %v2810 = vrot.slane %v2749, 6
        %v2811 = vrot.slane %v2750, 6
        %v2812 = vrot.slane %v2751, 6
        %v2813 = vrot.slane %v2752, 6
        %v2814 = vrot.slane %v2753, 6
        %v2815 = vrot.slane %v2754, 6
        %v2816 = vrot.slane %v2755, 6
        %v2817 = vsel %vm529, %v2815, %v2816
        %v2818 = vsel %vm529, %v2814, %v2815
        %v2819 = vsel %vm529, %v2813, %v2814
        %v2820 = vsel %vm529, %v2812, %v2813
        %v2821 = vsel %vm529, %v2811, %v2812
        %v2822 = vsel %vm529, %v2810, %v2811
        %v2823 = vsel %vm529, %v2809, %v2810
        %v2824 = vsel %vm529, %v2816, %v2809
        %v2825 = vsel %vm538, %v2824, 0.0
        %v2826 = vsel %vm539, %v2823, 0.0
        %v2827 = vsel %vm538, %v2822, 0.0
        %v2828 = vsel %vm539, %v2821, 0.0
        %v2829 = vsel %vm538, %v2820, 0.0
        %v2830 = vsel %vm539, %v2819, 0.0
        %v2831 = vsel %vm538, %v2818, 0.0
        %v2832 = vsel %vm539, %v2817, 0.0
        %v2833 = vld [vmem:[%s2756 + $0x2] sm:$0x1]
        %v2834 = vperm.slane %v2833, 0
        %v2835 = vmul.f32 %v2825, %v2834
        %v2836 = vmul.f32 %v2826, %v2834
        %v2837 = vmul.f32 %v2827, %v2834
        %v2838 = vmul.f32 %v2828, %v2834
        %v2839 = vmul.f32 %v2829, %v2834
        %v2840 = vmul.f32 %v2830, %v2834
        %v2841 = vmul.f32 %v2831, %v2834
        %v2842 = vmul.f32 %v2832, %v2834
        %v2843 = vadd.f32 %v2801, %v2835
        %v2844 = vadd.f32 %v2802, %v2836
        %v2845 = vadd.f32 %v2803, %v2837
        %v2846 = vadd.f32 %v2804, %v2838
        %v2847 = vadd.f32 %v2805, %v2839
        %v2848 = vadd.f32 %v2806, %v2840
        %v2849 = vadd.f32 %v2807, %v2841
        %v2850 = vadd.f32 %v2808, %v2842
        %v2851 = vrot.slane %v2748, 5
        %v2852 = vrot.slane %v2749, 5
        %v2853 = vrot.slane %v2750, 5
        %v2854 = vrot.slane %v2751, 5
        %v2855 = vrot.slane %v2752, 5
        %v2856 = vrot.slane %v2753, 5
        %v2857 = vrot.slane %v2754, 5
        %v2858 = vrot.slane %v2755, 5
        %v2859 = vsel %vm574, %v2857, %v2858
        %v2860 = vsel %vm574, %v2856, %v2857
        %v2861 = vsel %vm574, %v2855, %v2856
        %v2862 = vsel %vm574, %v2854, %v2855
        %v2863 = vsel %vm574, %v2853, %v2854
        %v2864 = vsel %vm574, %v2852, %v2853
        %v2865 = vsel %vm574, %v2851, %v2852
        %v2866 = vsel %vm574, %v2858, %v2851
        %v2867 = vsel %vm583, %v2866, 0.0
        %v2868 = vsel %vm584, %v2865, 0.0
        %v2869 = vsel %vm583, %v2864, 0.0
        %v2870 = vsel %vm584, %v2863, 0.0
        %v2871 = vsel %vm583, %v2862, 0.0
        %v2872 = vsel %vm584, %v2861, 0.0
        %v2873 = vsel %vm583, %v2860, 0.0
        %v2874 = vsel %vm584, %v2859, 0.0
        %v2875 = vld [vmem:[%s2756 + $0x3] sm:$0x1]
        %v2876 = vperm.slane %v2875, 0
        %v2877 = vmul.f32 %v2867, %v2876
        %v2878 = vmul.f32 %v2868, %v2876
        %v2879 = vmul.f32 %v2869, %v2876
        %v2880 = vmul.f32 %v2870, %v2876
        %v2881 = vmul.f32 %v2871, %v2876
        %v2882 = vmul.f32 %v2872, %v2876
        %v2883 = vmul.f32 %v2873, %v2876
        %v2884 = vmul.f32 %v2874, %v2876
        %v2885 = vadd.f32 %v2843, %v2877
        %v2886 = vadd.f32 %v2844, %v2878
        %v2887 = vadd.f32 %v2845, %v2879
        %v2888 = vadd.f32 %v2846, %v2880
        %v2889 = vadd.f32 %v2847, %v2881
        %v2890 = vadd.f32 %v2848, %v2882
        %v2891 = vadd.f32 %v2849, %v2883
        %v2892 = vadd.f32 %v2850, %v2884
        %v2893 = vrot.slane %v2748, 4
        %v2894 = vrot.slane %v2749, 4
        %v2895 = vrot.slane %v2750, 4
        %v2896 = vrot.slane %v2751, 4
        %v2897 = vrot.slane %v2752, 4
        %v2898 = vrot.slane %v2753, 4
        %v2899 = vrot.slane %v2754, 4
        %v2900 = vrot.slane %v2755, 4
        %v2901 = vsel %vm619, %v2899, %v2900
        %v2902 = vsel %vm619, %v2898, %v2899
        %v2903 = vsel %vm619, %v2897, %v2898
        %v2904 = vsel %vm619, %v2896, %v2897
        %v2905 = vsel %vm619, %v2895, %v2896
        %v2906 = vsel %vm619, %v2894, %v2895
        %v2907 = vsel %vm619, %v2893, %v2894
        %v2908 = vsel %vm619, %v2900, %v2893
        %v2909 = vsel %vm628, %v2908, 0.0
        %v2910 = vsel %vm629, %v2907, 0.0
        %v2911 = vsel %vm628, %v2906, 0.0
        %v2912 = vsel %vm629, %v2905, 0.0
        %v2913 = vsel %vm628, %v2904, 0.0
        %v2914 = vsel %vm629, %v2903, 0.0
        %v2915 = vsel %vm628, %v2902, 0.0
        %v2916 = vsel %vm629, %v2901, 0.0
        %v2917 = vld [vmem:[%s2756 + $0x4] sm:$0x1]
        %v2918 = vperm.slane %v2917, 0
        %v2919 = vmul.f32 %v2909, %v2918
        %v2920 = vmul.f32 %v2910, %v2918
        %v2921 = vmul.f32 %v2911, %v2918
        %v2922 = vmul.f32 %v2912, %v2918
        %v2923 = vmul.f32 %v2913, %v2918
        %v2924 = vmul.f32 %v2914, %v2918
        %v2925 = vmul.f32 %v2915, %v2918
        %v2926 = vmul.f32 %v2916, %v2918
        %v2927 = vadd.f32 %v2885, %v2919
        %v2928 = vadd.f32 %v2886, %v2920
        %v2929 = vadd.f32 %v2887, %v2921
        %v2930 = vadd.f32 %v2888, %v2922
        %v2931 = vadd.f32 %v2889, %v2923
        %v2932 = vadd.f32 %v2890, %v2924
        %v2933 = vadd.f32 %v2891, %v2925
        %v2934 = vadd.f32 %v2892, %v2926
        %v2935 = vrot.slane %v2748, 3
        %v2936 = vrot.slane %v2749, 3
        %v2937 = vrot.slane %v2750, 3
        %v2938 = vrot.slane %v2751, 3
        %v2939 = vrot.slane %v2752, 3
        %v2940 = vrot.slane %v2753, 3
        %v2941 = vrot.slane %v2754, 3
        %v2942 = vrot.slane %v2755, 3
        %v2943 = vsel %vm664, %v2941, %v2942
        %v2944 = vsel %vm664, %v2940, %v2941
        %v2945 = vsel %vm664, %v2939, %v2940
        %v2946 = vsel %vm664, %v2938, %v2939
        %v2947 = vsel %vm664, %v2937, %v2938
        %v2948 = vsel %vm664, %v2936, %v2937
        %v2949 = vsel %vm664, %v2935, %v2936
        %v2950 = vsel %vm664, %v2942, %v2935
        %v2951 = vsel %vm673, %v2950, 0.0
        %v2952 = vsel %vm674, %v2949, 0.0
        %v2953 = vsel %vm673, %v2948, 0.0
        %v2954 = vsel %vm674, %v2947, 0.0
        %v2955 = vsel %vm673, %v2946, 0.0
        %v2956 = vsel %vm674, %v2945, 0.0
        %v2957 = vsel %vm673, %v2944, 0.0
        %v2958 = vsel %vm674, %v2943, 0.0
        %v2959 = vld [vmem:[%s2756 + $0x5] sm:$0x1]
        %v2960 = vperm.slane %v2959, 0
        %v2961 = vmul.f32 %v2951, %v2960
        %v2962 = vmul.f32 %v2952, %v2960
        %v2963 = vmul.f32 %v2953, %v2960
        %v2964 = vmul.f32 %v2954, %v2960
        %v2965 = vmul.f32 %v2955, %v2960
        %v2966 = vmul.f32 %v2956, %v2960
        %v2967 = vmul.f32 %v2957, %v2960
        %v2968 = vmul.f32 %v2958, %v2960
        %v2969 = vadd.f32 %v2927, %v2961
        %v2970 = vadd.f32 %v2928, %v2962
        %v2971 = vadd.f32 %v2929, %v2963
        %v2972 = vadd.f32 %v2930, %v2964
        %v2973 = vadd.f32 %v2931, %v2965
        %v2974 = vadd.f32 %v2932, %v2966
        %v2975 = vadd.f32 %v2933, %v2967
        %v2976 = vadd.f32 %v2934, %v2968
        %v2977 = vrot.slane %v2748, 2
        %v2978 = vrot.slane %v2749, 2
        %v2979 = vrot.slane %v2750, 2
        %v2980 = vrot.slane %v2751, 2
        %v2981 = vrot.slane %v2752, 2
        %v2982 = vrot.slane %v2753, 2
        %v2983 = vrot.slane %v2754, 2
        %v2984 = vrot.slane %v2755, 2
        %v2985 = vsel %vm709, %v2983, %v2984
        %v2986 = vsel %vm709, %v2982, %v2983
        %v2987 = vsel %vm709, %v2981, %v2982
        %v2988 = vsel %vm709, %v2980, %v2981
        %v2989 = vsel %vm709, %v2979, %v2980
        %v2990 = vsel %vm709, %v2978, %v2979
        %v2991 = vsel %vm709, %v2977, %v2978
        %v2992 = vsel %vm709, %v2984, %v2977
        %v2993 = vsel %vm718, %v2992, 0.0
        %v2994 = vsel %vm719, %v2991, 0.0
        %v2995 = vsel %vm718, %v2990, 0.0
        %v2996 = vsel %vm719, %v2989, 0.0
        %v2997 = vsel %vm718, %v2988, 0.0
        %v2998 = vsel %vm719, %v2987, 0.0
        %v2999 = vsel %vm718, %v2986, 0.0
        %v3000 = vsel %vm719, %v2985, 0.0
        %v3001 = vld [vmem:[%s2756 + $0x6] sm:$0x1]
        %v3002 = vperm.slane %v3001, 0
        %v3003 = vmul.f32 %v2993, %v3002
        %v3004 = vmul.f32 %v2994, %v3002
        %v3005 = vmul.f32 %v2995, %v3002
        %v3006 = vmul.f32 %v2996, %v3002
        %v3007 = vmul.f32 %v2997, %v3002
        %v3008 = vmul.f32 %v2998, %v3002
        %v3009 = vmul.f32 %v2999, %v3002
        %v3010 = vmul.f32 %v3000, %v3002
        %v3011 = vadd.f32 %v2969, %v3003
        %v3012 = vadd.f32 %v2970, %v3004
        %v3013 = vadd.f32 %v2971, %v3005
        %v3014 = vadd.f32 %v2972, %v3006
        %v3015 = vadd.f32 %v2973, %v3007
        %v3016 = vadd.f32 %v2974, %v3008
        %v3017 = vadd.f32 %v2975, %v3009
        %v3018 = vadd.f32 %v2976, %v3010
        %v3019 = vrot.slane %v2748, 1
        %v3020 = vrot.slane %v2749, 1
        %v3021 = vrot.slane %v2750, 1
        %v3022 = vrot.slane %v2751, 1
        %v3023 = vrot.slane %v2752, 1
        %v3024 = vrot.slane %v2753, 1
        %v3025 = vrot.slane %v2754, 1
        %v3026 = vrot.slane %v2755, 1
        %v3027 = vsel %vm754, %v3025, %v3026
        %v3028 = vsel %vm754, %v3024, %v3025
        %v3029 = vsel %vm754, %v3023, %v3024
        %v3030 = vsel %vm754, %v3022, %v3023
        %v3031 = vsel %vm754, %v3021, %v3022
        %v3032 = vsel %vm754, %v3020, %v3021
        %v3033 = vsel %vm754, %v3019, %v3020
        %v3034 = vsel %vm754, %v3026, %v3019
        %v3035 = vsel %vm763, %v3034, 0.0
        %v3036 = vsel %vm764, %v3033, 0.0
        %v3037 = vsel %vm763, %v3032, 0.0
        %v3038 = vsel %vm764, %v3031, 0.0
        %v3039 = vsel %vm763, %v3030, 0.0
        %v3040 = vsel %vm764, %v3029, 0.0
        %v3041 = vsel %vm763, %v3028, 0.0
        %v3042 = vsel %vm764, %v3027, 0.0
        %v3043 = vld [vmem:[%s2756 + $0x7] sm:$0x1]
        %v3044 = vperm.slane %v3043, 0
        %v3045 = vmul.f32 %v3035, %v3044
        %v3046 = vmul.f32 %v3036, %v3044
        %v3047 = vmul.f32 %v3037, %v3044
        %v3048 = vmul.f32 %v3038, %v3044
        %v3049 = vmul.f32 %v3039, %v3044
        %v3050 = vmul.f32 %v3040, %v3044
        %v3051 = vmul.f32 %v3041, %v3044
        %v3052 = vmul.f32 %v3042, %v3044
        %v3053 = vadd.f32 %v3011, %v3045
        %v3054 = vadd.f32 %v3012, %v3046
        %v3055 = vadd.f32 %v3013, %v3047
        %v3056 = vadd.f32 %v3014, %v3048
        %v3057 = vadd.f32 %v3015, %v3049
        %v3058 = vadd.f32 %v3016, %v3050
        %v3059 = vadd.f32 %v3017, %v3051
        %v3060 = vadd.f32 %v3018, %v3052
        %v3061 = vsel %vm791, %v2755, 0.0
        %v3062 = vsel %vm792, %v2748, 0.0
        %v3063 = vsel %vm791, %v2749, 0.0
        %v3064 = vsel %vm792, %v2750, 0.0
        %v3065 = vsel %vm791, %v2751, 0.0
        %v3066 = vsel %vm792, %v2752, 0.0
        %v3067 = vsel %vm791, %v2753, 0.0
        %v3068 = vsel %vm792, %v2754, 0.0
        %v3069 = vld [vmem:[%s2756 + $0x8] sm:$0x1]
        %v3070 = vperm.slane %v3069, 0
        %v3071 = vmul.f32 %v3061, %v3070
        %v3072 = vmul.f32 %v3062, %v3070
        %v3073 = vmul.f32 %v3063, %v3070
        %v3074 = vmul.f32 %v3064, %v3070
        %v3075 = vmul.f32 %v3065, %v3070
        %v3076 = vmul.f32 %v3066, %v3070
        %v3077 = vmul.f32 %v3067, %v3070
        %v3078 = vmul.f32 %v3068, %v3070
        %v3079 = vadd.f32 %v3053, %v3071
        %v3080 = vadd.f32 %v3054, %v3072
        %v3081 = vadd.f32 %v3055, %v3073
        %v3082 = vadd.f32 %v3056, %v3074
        %v3083 = vadd.f32 %v3057, %v3075
        %v3084 = vadd.f32 %v3058, %v3076
        %v3085 = vadd.f32 %v3059, %v3077
        %v3086 = vadd.f32 %v3060, %v3078
        %v3087 = vsel %vm819, %v2775, 0.0
        %v3088 = vsel %vm820, %v2782, 0.0
        %v3089 = vsel %vm819, %v2781, 0.0
        %v3090 = vsel %vm820, %v2780, 0.0
        %v3091 = vsel %vm819, %v2779, 0.0
        %v3092 = vsel %vm820, %v2778, 0.0
        %v3093 = vsel %vm819, %v2777, 0.0
        %v3094 = vsel %vm820, %v2776, 0.0
        %v3095 = vld [vmem:[%s2756 + $0x9] sm:$0x1]
        %v3096 = vperm.slane %v3095, 0
        %v3097 = vmul.f32 %v3087, %v3096
        %v3098 = vmul.f32 %v3088, %v3096
        %v3099 = vmul.f32 %v3089, %v3096
        %v3100 = vmul.f32 %v3090, %v3096
        %v3101 = vmul.f32 %v3091, %v3096
        %v3102 = vmul.f32 %v3092, %v3096
        %v3103 = vmul.f32 %v3093, %v3096
        %v3104 = vmul.f32 %v3094, %v3096
        %v3105 = vadd.f32 %v3079, %v3097
        %v3106 = vadd.f32 %v3080, %v3098
        %v3107 = vadd.f32 %v3081, %v3099
        %v3108 = vadd.f32 %v3082, %v3100
        %v3109 = vadd.f32 %v3083, %v3101
        %v3110 = vadd.f32 %v3084, %v3102
        %v3111 = vadd.f32 %v3085, %v3103
        %v3112 = vadd.f32 %v3086, %v3104
        %v3113 = vsel %vm847, %v2817, 0.0
        %v3114 = vsel %vm848, %v2824, 0.0
        %v3115 = vsel %vm847, %v2823, 0.0
        %v3116 = vsel %vm848, %v2822, 0.0
        %v3117 = vsel %vm847, %v2821, 0.0
        %v3118 = vsel %vm848, %v2820, 0.0
        %v3119 = vsel %vm847, %v2819, 0.0
        %v3120 = vsel %vm848, %v2818, 0.0
        %v3121 = vld [vmem:[%s2756 + $0xa] sm:$0x1]
        %v3122 = vperm.slane %v3121, 0
        %v3123 = vmul.f32 %v3113, %v3122
        %v3124 = vmul.f32 %v3114, %v3122
        %v3125 = vmul.f32 %v3115, %v3122
        %v3126 = vmul.f32 %v3116, %v3122
        %v3127 = vmul.f32 %v3117, %v3122
        %v3128 = vmul.f32 %v3118, %v3122
        %v3129 = vmul.f32 %v3119, %v3122
        %v3130 = vmul.f32 %v3120, %v3122
        %v3131 = vadd.f32 %v3105, %v3123
        %v3132 = vadd.f32 %v3106, %v3124
        %v3133 = vadd.f32 %v3107, %v3125
        %v3134 = vadd.f32 %v3108, %v3126
        %v3135 = vadd.f32 %v3109, %v3127
        %v3136 = vadd.f32 %v3110, %v3128
        %v3137 = vadd.f32 %v3111, %v3129
        %v3138 = vadd.f32 %v3112, %v3130
        %v3139 = vsel %vm875, %v2859, 0.0
        %v3140 = vsel %vm876, %v2866, 0.0
        %v3141 = vsel %vm875, %v2865, 0.0
        %v3142 = vsel %vm876, %v2864, 0.0
        %v3143 = vsel %vm875, %v2863, 0.0
        %v3144 = vsel %vm876, %v2862, 0.0
        %v3145 = vsel %vm875, %v2861, 0.0
        %v3146 = vsel %vm876, %v2860, 0.0
        %v3147 = vld [vmem:[%s2756 + $0xb] sm:$0x1]
        %v3148 = vperm.slane %v3147, 0
        %v3149 = vmul.f32 %v3139, %v3148
        %v3150 = vmul.f32 %v3140, %v3148
        %v3151 = vmul.f32 %v3141, %v3148
        %v3152 = vmul.f32 %v3142, %v3148
        %v3153 = vmul.f32 %v3143, %v3148
        %v3154 = vmul.f32 %v3144, %v3148
        %v3155 = vmul.f32 %v3145, %v3148
        %v3156 = vmul.f32 %v3146, %v3148
        %v3157 = vadd.f32 %v3131, %v3149
        %v3158 = vadd.f32 %v3132, %v3150
        %v3159 = vadd.f32 %v3133, %v3151
        %v3160 = vadd.f32 %v3134, %v3152
        %v3161 = vadd.f32 %v3135, %v3153
        %v3162 = vadd.f32 %v3136, %v3154
        %v3163 = vadd.f32 %v3137, %v3155
        %v3164 = vadd.f32 %v3138, %v3156
        %v3165 = vsel %vm903, %v2901, 0.0
        %v3166 = vsel %vm904, %v2908, 0.0
        %v3167 = vsel %vm903, %v2907, 0.0
        %v3168 = vsel %vm904, %v2906, 0.0
        %v3169 = vsel %vm903, %v2905, 0.0
        %v3170 = vsel %vm904, %v2904, 0.0
        %v3171 = vsel %vm903, %v2903, 0.0
        %v3172 = vsel %vm904, %v2902, 0.0
        %v3173 = vld [vmem:[%s2756 + $0xc] sm:$0x1]
        %v3174 = vperm.slane %v3173, 0
        %v3175 = vmul.f32 %v3165, %v3174
        %v3176 = vmul.f32 %v3166, %v3174
        %v3177 = vmul.f32 %v3167, %v3174
        %v3178 = vmul.f32 %v3168, %v3174
        %v3179 = vmul.f32 %v3169, %v3174
        %v3180 = vmul.f32 %v3170, %v3174
        %v3181 = vmul.f32 %v3171, %v3174
        %v3182 = vmul.f32 %v3172, %v3174
        %v3183 = vadd.f32 %v3157, %v3175
        %v3184 = vadd.f32 %v3158, %v3176
        %v3185 = vadd.f32 %v3159, %v3177
        %v3186 = vadd.f32 %v3160, %v3178
        %v3187 = vadd.f32 %v3161, %v3179
        %v3188 = vadd.f32 %v3162, %v3180
        %v3189 = vadd.f32 %v3163, %v3181
        %v3190 = vadd.f32 %v3164, %v3182
        %v3191 = vsel %vm931, %v2943, 0.0
        %v3192 = vsel %vm932, %v2950, 0.0
        %v3193 = vsel %vm931, %v2949, 0.0
        %v3194 = vsel %vm932, %v2948, 0.0
        %v3195 = vsel %vm931, %v2947, 0.0
        %v3196 = vsel %vm932, %v2946, 0.0
        %v3197 = vsel %vm931, %v2945, 0.0
        %v3198 = vsel %vm932, %v2944, 0.0
        %v3199 = vld [vmem:[%s2756 + $0xd] sm:$0x1]
        %v3200 = vperm.slane %v3199, 0
        %v3201 = vmul.f32 %v3191, %v3200
        %v3202 = vmul.f32 %v3192, %v3200
        %v3203 = vmul.f32 %v3193, %v3200
        %v3204 = vmul.f32 %v3194, %v3200
        %v3205 = vmul.f32 %v3195, %v3200
        %v3206 = vmul.f32 %v3196, %v3200
        %v3207 = vmul.f32 %v3197, %v3200
        %v3208 = vmul.f32 %v3198, %v3200
        %v3209 = vadd.f32 %v3183, %v3201
        %v3210 = vadd.f32 %v3184, %v3202
        %v3211 = vadd.f32 %v3185, %v3203
        %v3212 = vadd.f32 %v3186, %v3204
        %v3213 = vadd.f32 %v3187, %v3205
        %v3214 = vadd.f32 %v3188, %v3206
        %v3215 = vadd.f32 %v3189, %v3207
        %v3216 = vadd.f32 %v3190, %v3208
        %v3217 = vsel %vm959, %v2985, 0.0
        %v3218 = vsel %vm960, %v2992, 0.0
        %v3219 = vsel %vm959, %v2991, 0.0
        %v3220 = vsel %vm960, %v2990, 0.0
        %v3221 = vsel %vm959, %v2989, 0.0
        %v3222 = vsel %vm960, %v2988, 0.0
        %v3223 = vsel %vm959, %v2987, 0.0
        %v3224 = vsel %vm960, %v2986, 0.0
        %v3225 = vld [vmem:[%s2756 + $0xe] sm:$0x1]
        %v3226 = vperm.slane %v3225, 0
        %v3227 = vmul.f32 %v3217, %v3226
        %v3228 = vmul.f32 %v3218, %v3226
        %v3229 = vmul.f32 %v3219, %v3226
        %v3230 = vmul.f32 %v3220, %v3226
        %v3231 = vmul.f32 %v3221, %v3226
        %v3232 = vmul.f32 %v3222, %v3226
        %v3233 = vmul.f32 %v3223, %v3226
        %v3234 = vmul.f32 %v3224, %v3226
        %v3235 = vadd.f32 %v3209, %v3227
        %v3236 = vadd.f32 %v3210, %v3228
        %v3237 = vadd.f32 %v3211, %v3229
        %v3238 = vadd.f32 %v3212, %v3230
        %v3239 = vadd.f32 %v3213, %v3231
        %v3240 = vadd.f32 %v3214, %v3232
        %v3241 = vadd.f32 %v3215, %v3233
        %v3242 = vadd.f32 %v3216, %v3234
        %v3243 = vsel %vm987, %v3027, 0.0
        %v3244 = vsel %vm988, %v3034, 0.0
        %v3245 = vsel %vm987, %v3033, 0.0
        %v3246 = vsel %vm988, %v3032, 0.0
        %v3247 = vsel %vm987, %v3031, 0.0
        %v3248 = vsel %vm988, %v3030, 0.0
        %v3249 = vsel %vm987, %v3029, 0.0
        %v3250 = vsel %vm988, %v3028, 0.0
        %v3251 = vld [vmem:[%s2756 + $0xf] sm:$0x1]
        %v3252 = vperm.slane %v3251, 0
        %v3253 = vmul.f32 %v3243, %v3252
        %v3254 = vmul.f32 %v3244, %v3252
        %v3255 = vmul.f32 %v3245, %v3252
        %v3256 = vmul.f32 %v3246, %v3252
        %v3257 = vmul.f32 %v3247, %v3252
        %v3258 = vmul.f32 %v3248, %v3252
        %v3259 = vmul.f32 %v3249, %v3252
        %v3260 = vmul.f32 %v3250, %v3252
        %v3261 = vadd.f32 %v3235, %v3253
        %v3262 = vadd.f32 %v3236, %v3254
        %v3263 = vadd.f32 %v3237, %v3255
        %v3264 = vadd.f32 %v3238, %v3256
        %v3265 = vadd.f32 %v3239, %v3257
        %v3266 = vadd.f32 %v3240, %v3258
        %v3267 = vadd.f32 %v3241, %v3259
        %v3268 = vadd.f32 %v3242, %v3260
        %s3269 = scalar_lea.vmem [#allocation7], 2
        %v3270 = vld [vmem:[%s3269] sm:$0x1]
        %v3272 = vperm.slane %v3270, 0
        %v3274 = vmul.f32 %v2748, %v3272
        %v3275 = vmul.f32 %v2749, %v3272
        %v3276 = vmul.f32 %v2750, %v3272
        %v3277 = vmul.f32 %v2751, %v3272
        %v3278 = vmul.f32 %v2752, %v3272
        %v3279 = vmul.f32 %v2753, %v3272
        %v3280 = vmul.f32 %v2754, %v3272
        %v3281 = vmul.f32 %v2755, %v3272
        %v3282 = vadd.f32 %v3261, %v3274
        %v3283 = vadd.f32 %v3262, %v3275
        %v3284 = vadd.f32 %v3263, %v3276
        %v3285 = vadd.f32 %v3264, %v3277
        %v3286 = vadd.f32 %v3265, %v3278
        %v3287 = vadd.f32 %v3266, %v3279
        %v3288 = vadd.f32 %v3267, %v3280
        %v3289 = vadd.f32 %v3268, %v3281
        %v3290 = vmul.f32 %v3282, %v3282
        %v3291 = vmul.f32 %v3283, %v3283
        %v3292 = vmul.f32 %v3284, %v3284
        %v3293 = vmul.f32 %v3285, %v3285
        %v3294 = vmul.f32 %v3286, %v3286
        %v3295 = vmul.f32 %v3287, %v3287
        %v3296 = vmul.f32 %v3288, %v3288
        %v3297 = vmul.f32 %v3289, %v3289
        %v3298 = vmul.f32 %v3282, %v3290
        %v3299 = vmul.f32 %v3283, %v3291
        %v3300 = vmul.f32 %v3284, %v3292
        %v3301 = vmul.f32 %v3285, %v3293
        %v3302 = vmul.f32 %v3286, %v3294
        %v3303 = vmul.f32 %v3287, %v3295
        %v3304 = vmul.f32 %v3288, %v3296
        %v3305 = vmul.f32 %v3289, %v3297
        %v3306 = vmul.f32 %v3298, 0.044715
        %v3307 = vmul.f32 %v3299, 0.044715
        %v3308 = vmul.f32 %v3300, 0.044715
        %v3309 = vmul.f32 %v3301, 0.044715
        %v3310 = vmul.f32 %v3302, 0.044715
        %v3311 = vmul.f32 %v3303, 0.044715
        %v3312 = vmul.f32 %v3304, 0.044715
        %v3313 = vmul.f32 %v3305, 0.044715
        %v3314 = vadd.f32 %v3282, %v3306
        %v3315 = vadd.f32 %v3283, %v3307
        %v3316 = vadd.f32 %v3284, %v3308
        %v3317 = vadd.f32 %v3285, %v3309
        %v3318 = vadd.f32 %v3286, %v3310
        %v3319 = vadd.f32 %v3287, %v3311
        %v3320 = vadd.f32 %v3288, %v3312
        %v3321 = vadd.f32 %v3289, %v3313
        %v3322 = vmul.f32 %v3314, 0.7978846
        %v3323 = vmul.f32 %v3315, 0.7978846
        %v3324 = vmul.f32 %v3316, 0.7978846
        %v3325 = vmul.f32 %v3317, 0.7978846
        %v3326 = vmul.f32 %v3318, 0.7978846
        %v3327 = vmul.f32 %v3319, 0.7978846
        %v3328 = vmul.f32 %v3320, 0.7978846
        %v3329 = vmul.f32 %v3321, 0.7978846
        %v3330 = vtanh.pop %v3322
        %v3331 = vtanh.pop %v3323
        %v3332 = vtanh.pop %v3324
        %v3333 = vtanh.pop %v3325
        %v3334 = vtanh.pop %v3326
        %v3335 = vtanh.pop %v3327
        %v3336 = vtanh.pop %v3328
        %v3337 = vtanh.pop %v3329
        %v3338 = vadd.f32 %v3330, 1.0
        %v3339 = vadd.f32 %v3331, 1.0
        %v3340 = vadd.f32 %v3332, 1.0
        %v3341 = vadd.f32 %v3333, 1.0
        %v3342 = vadd.f32 %v3334, 1.0
        %v3343 = vadd.f32 %v3335, 1.0
        %v3344 = vadd.f32 %v3336, 1.0
        %v3345 = vadd.f32 %v3337, 1.0
        %v3346 = vmul.f32 %v3338, 0.5
        %v3347 = vmul.f32 %v3339, 0.5
        %v3348 = vmul.f32 %v3340, 0.5
        %v3349 = vmul.f32 %v3341, 0.5
        %v3350 = vmul.f32 %v3342, 0.5
        %v3351 = vmul.f32 %v3343, 0.5
        %v3352 = vmul.f32 %v3344, 0.5
        %v3353 = vmul.f32 %v3345, 0.5
        %v3354 = vmul.f32 %v3282, %v3346
        %v3355 = vmul.f32 %v3283, %v3347
        %v3356 = vmul.f32 %v3284, %v3348
        %v3357 = vmul.f32 %v3285, %v3349
        %v3358 = vmul.f32 %v3286, %v3350
        %v3359 = vmul.f32 %v3287, %v3351
        %v3360 = vmul.f32 %v3288, %v3352
        %v3361 = vmul.f32 %v3289, %v3353
        %v3362 = vpack.c.bf16 %v3355, %v3354
        %v3363 = vpack.c.bf16 %v3357, %v3356
        %v3364 = vpack.c.bf16 %v3359, %v3358
        %v3365 = vpack.c.bf16 %v3361, %v3360
        %s3366 = scalar_lea.vmem [#allocation8], 256
        %v3367 = vld [vmem:[%s3366] sm:$0xff]
        %v3368 = vld [vmem:[%s3366 + $0x8] sm:$0xff]
        %v3369 = vld [vmem:[%s3366 + $0x10] sm:$0xff]
        %v3370 = vld [vmem:[%s3366 + $0x18] sm:$0xff]
        %v3371 = vld [vmem:[%s3366 + $0x20] sm:$0xff]
        %v3372 = vld [vmem:[%s3366 + $0x28] sm:$0xff]
        %v3373 = vld [vmem:[%s3366 + $0x30] sm:$0xff]
        %v3374 = vld [vmem:[%s3366 + $0x38] sm:$0xff]
        %v3375 = vld [vmem:[%s3366 + $0x40] sm:$0xff]
        %v3376 = vld [vmem:[%s3366 + $0x48] sm:$0xff]
        %v3377 = vld [vmem:[%s3366 + $0x50] sm:$0xff]
        %v3378 = vld [vmem:[%s3366 + $0x58] sm:$0xff]
        %v3379 = vld [vmem:[%s3366 + $0x60] sm:$0xff]
        %v3380 = vld [vmem:[%s3366 + $0x68] sm:$0xff]
        %v3381 = vld [vmem:[%s3366 + $0x70] sm:$0xff]
        %v3382 = vld [vmem:[%s3366 + $0x78] sm:$0xff]
        %s3383 = scalar_lea.vmem [#allocation10], 4
        %v3384 = vld [vmem:[%s3383] sm:$0x3]
        %v3386 = vperm.slane %v3384, 0
        %v3387 = vperm.slane %v3384, 1
        %v3406 = vunpack.c.l.b16 %v3367
        %v3407 = vunpack.c.h.b16 %v3367
        %v3408 = vunpack.c.l.b16 %v3368
        %v3409 = vunpack.c.h.b16 %v3368
        %v3410 = vunpack.c.l.b16 %v3369
        %v3411 = vunpack.c.h.b16 %v3369
        %v3412 = vunpack.c.l.b16 %v3370
        %v3413 = vunpack.c.h.b16 %v3370
        %v3414 = vunpack.c.l.b16 %v3371
        %v3415 = vunpack.c.h.b16 %v3371
        %v3416 = vunpack.c.l.b16 %v3372
        %v3417 = vunpack.c.h.b16 %v3372
        %v3418 = vunpack.c.l.b16 %v3373
        %v3419 = vunpack.c.h.b16 %v3373
        %v3420 = vunpack.c.l.b16 %v3374
        %v3421 = vunpack.c.h.b16 %v3374
        %v3422 = vunpack.c.l.b16 %v3375
        %v3423 = vunpack.c.h.b16 %v3375
        %v3424 = vunpack.c.l.b16 %v3376
        %v3425 = vunpack.c.h.b16 %v3376
        %v3426 = vunpack.c.l.b16 %v3377
        %v3427 = vunpack.c.h.b16 %v3377
        %v3428 = vunpack.c.l.b16 %v3378
        %v3429 = vunpack.c.h.b16 %v3378
        %v3430 = vunpack.c.l.b16 %v3379
        %v3431 = vunpack.c.h.b16 %v3379
        %v3432 = vunpack.c.l.b16 %v3380
        %v3433 = vunpack.c.h.b16 %v3380
        %v3434 = vunpack.c.l.b16 %v3381
        %v3435 = vunpack.c.h.b16 %v3381
        %v3436 = vunpack.c.l.b16 %v3382
        %v3437 = vunpack.c.h.b16 %v3382
        %v3438 = vpack.c.b16 %v3408, %v3406
        %v3439 = vpack.c.b16 %v3409, %v3407
        %v3440 = vpack.c.b16 %v3412, %v3410
        %v3441 = vpack.c.b16 %v3413, %v3411
        %v3442 = vpack.c.b16 %v3416, %v3414
        %v3443 = vpack.c.b16 %v3417, %v3415
        %v3444 = vpack.c.b16 %v3420, %v3418
        %v3445 = vpack.c.b16 %v3421, %v3419
        %v3446 = vpack.c.b16 %v3424, %v3422
        %v3447 = vpack.c.b16 %v3425, %v3423
        %v3448 = vpack.c.b16 %v3428, %v3426
        %v3449 = vpack.c.b16 %v3429, %v3427
        %v3450 = vpack.c.b16 %v3432, %v3430
        %v3451 = vpack.c.b16 %v3433, %v3431
        %v3452 = vpack.c.b16 %v3436, %v3434
        %v3453 = vpack.c.b16 %v3437, %v3435
        %3470 = vmatpush.bf16.msra.mxu0 %v3452
        %3471 = vmatpush.bf16.msra.mxu0 %v3450
        %3472 = vmatpush.bf16.msra.mxu0 %v3448
        %3473 = vmatpush.bf16.msra.mxu0 %v3446
        %3474 = vmatpush.bf16.msra.mxu0 %v3444
        %3475 = vmatpush.bf16.msra.mxu0 %v3442
        %3476 = vmatpush.bf16.msra.mxu0 %v3440
        %3477 = vmatpush.bf16.msra.mxu0 %v3438
        %3478 = vmatmul.bf16.gmra.mxu0 %v3362
        %v3479 = vpop.f32.mrf.mxu0
        %v3480 = vadd.f32 %v3386, %v3479
        %v3481 = vpop.f32.mrf.mxu0
        %v3482 = vadd.f32 %v3386, %v3481
        %3483 = vmatmul.bf16.gmra.mxu0 %v3363
        %v3484 = vpop.f32.mrf.mxu0
        %v3485 = vadd.f32 %v3386, %v3484
        %v3486 = vpop.f32.mrf.mxu0
        %v3487 = vadd.f32 %v3386, %v3486
        %3488 = vmatmul.bf16.gmra.mxu0 %v3364
        %v3489 = vpop.f32.mrf.mxu0
        %v3490 = vadd.f32 %v3386, %v3489
        %v3491 = vpop.f32.mrf.mxu0
        %v3492 = vadd.f32 %v3386, %v3491
        %3493 = vmatmul.bf16.gmra.mxu0 %v3365
        %v3494 = vpop.f32.mrf.mxu0
        %v3495 = vadd.f32 %v3386, %v3494
        %v3496 = vpop.f32.mrf.mxu0
        %v3497 = vadd.f32 %v3386, %v3496
        %3498 = vdwg.mxu0
        %3499 = vmatpush.bf16.msra.mxu0 %v3453
        %3500 = vmatpush.bf16.msra.mxu0 %v3451
        %3501 = vmatpush.bf16.msra.mxu0 %v3449
        %3502 = vmatpush.bf16.msra.mxu0 %v3447
        %3503 = vmatpush.bf16.msra.mxu0 %v3445
        %3504 = vmatpush.bf16.msra.mxu0 %v3443
        %3505 = vmatpush.bf16.msra.mxu0 %v3441
        %3506 = vmatpush.bf16.msra.mxu0 %v3439
        %3507 = vmatmul.bf16.gmra.mxu0 %v3362
        %v3508 = vpop.f32.mrf.mxu0
        %v3509 = vadd.f32 %v3387, %v3508
        %v3510 = vpop.f32.mrf.mxu0
        %v3511 = vadd.f32 %v3387, %v3510
        %3512 = vmatmul.bf16.gmra.mxu0 %v3363
        %v3513 = vpop.f32.mrf.mxu0
        %v3514 = vadd.f32 %v3387, %v3513
        %v3515 = vpop.f32.mrf.mxu0
        %v3516 = vadd.f32 %v3387, %v3515
        %3517 = vmatmul.bf16.gmra.mxu0 %v3364
        %v3518 = vpop.f32.mrf.mxu0
        %v3519 = vadd.f32 %v3387, %v3518
        %v3520 = vpop.f32.mrf.mxu0
        %v3521 = vadd.f32 %v3387, %v3520
        %3522 = vmatmul.bf16.gmra.mxu0 %v3365
        %v3523 = vpop.f32.mrf.mxu0
        %v3524 = vadd.f32 %v3387, %v3523
        %v3525 = vpop.f32.mrf.mxu0
        %v3526 = vadd.f32 %v3387, %v3525
        %3527 = vdwg.mxu0
        %v3528 = vxor.u32 %v3509, 2147483648
        %v3529 = vxor.u32 %v3511, 2147483648
        %v3530 = vxor.u32 %v3514, 2147483648
        %v3531 = vxor.u32 %v3516, 2147483648
        %v3532 = vxor.u32 %v3519, 2147483648
        %v3533 = vxor.u32 %v3521, 2147483648
        %v3534 = vxor.u32 %v3524, 2147483648
        %v3535 = vxor.u32 %v3526, 2147483648
        %v3536 = vmul.f32 %v3528, 1.442695
        %v3537 = vpow.pop %v3536
        %v3538 = vmul.f32 %v3529, 1.442695
        %v3539 = vpow.pop %v3538
        %v3540 = vmul.f32 %v3530, 1.442695
        %v3541 = vpow.pop %v3540
        %v3542 = vmul.f32 %v3531, 1.442695
        %v3543 = vpow.pop %v3542
        %v3544 = vmul.f32 %v3532, 1.442695
        %v3545 = vpow.pop %v3544
        %v3546 = vmul.f32 %v3533, 1.442695
        %v3547 = vpow.pop %v3546
        %v3548 = vmul.f32 %v3534, 1.442695
        %v3549 = vpow.pop %v3548
        %v3550 = vmul.f32 %v3535, 1.442695
        %v3551 = vpow.pop %v3550
        %v3552 = vadd.f32 %v3537, 1.0
        %v3553 = vadd.f32 %v3539, 1.0
        %v3554 = vadd.f32 %v3541, 1.0
        %v3555 = vadd.f32 %v3543, 1.0
        %v3556 = vadd.f32 %v3545, 1.0
        %v3557 = vadd.f32 %v3547, 1.0
        %v3558 = vadd.f32 %v3549, 1.0
        %v3559 = vadd.f32 %v3551, 1.0
        %v3560 = vrcp.pop %v3552
        %v3561 = vmul.f32 %v3552, %v3560
        %v3562 = vsub.f32 1.0, %v3561
        %v3563 = vmul.f32 %v3560, %v3562
        %v3564 = vadd.f32 %v3560, %v3563
        %vm3565 = vweird.f32 %v3552
        %vm3566 = vweird.f32 %v3560
        %vm3567 = vmor %vm3565, %vm3566
        %v3568 = vsel %vm3567, %v3560, %v3564
        %v3569 = vand.u32 2147483647, %v3552
        %vm3570 = vcmp.eq.f32.partialorder %v3569, 8.507059e+37
        %v3571 = vand.u32 %v3552, 2147483648
        %v3572 = vor.u32 1.1754944e-38, %v3571
        %v3573 = vsel %vm3570, %v3572, %v3568
        %v3574 = vmul.f32 1.0, %v3573
        %v3575 = vrcp.pop %v3553
        %v3576 = vmul.f32 %v3553, %v3575
        %v3577 = vsub.f32 1.0, %v3576
        %v3578 = vmul.f32 %v3575, %v3577
        %v3579 = vadd.f32 %v3575, %v3578
        %vm3580 = vweird.f32 %v3553
        %vm3581 = vweird.f32 %v3575
        %vm3582 = vmor %vm3580, %vm3581
        %v3583 = vsel %vm3582, %v3575, %v3579
        %v3584 = vand.u32 2147483647, %v3553
        %vm3585 = vcmp.eq.f32.partialorder %v3584, 8.507059e+37
        %v3586 = vand.u32 %v3553, 2147483648
        %v3587 = vor.u32 1.1754944e-38, %v3586
        %v3588 = vsel %vm3585, %v3587, %v3583
        %v3589 = vmul.f32 1.0, %v3588
        %v3590 = vrcp.pop %v3554
        %v3591 = vmul.f32 %v3554, %v3590
        %v3592 = vsub.f32 1.0, %v3591
        %v3593 = vmul.f32 %v3590, %v3592
        %v3594 = vadd.f32 %v3590, %v3593
        %vm3595 = vweird.f32 %v3554
        %vm3596 = vweird.f32 %v3590
        %vm3597 = vmor %vm3595, %vm3596
        %v3598 = vsel %vm3597, %v3590, %v3594
        %v3599 = vand.u32 2147483647, %v3554
        %vm3600 = vcmp.eq.f32.partialorder %v3599, 8.507059e+37
        %v3601 = vand.u32 %v3554, 2147483648
        %v3602 = vor.u32 1.1754944e-38, %v3601
        %v3603 = vsel %vm3600, %v3602, %v3598
        %v3604 = vmul.f32 1.0, %v3603
        %v3605 = vrcp.pop %v3555
        %v3606 = vmul.f32 %v3555, %v3605
        %v3607 = vsub.f32 1.0, %v3606
        %v3608 = vmul.f32 %v3605, %v3607
        %v3609 = vadd.f32 %v3605, %v3608
        %vm3610 = vweird.f32 %v3555
        %vm3611 = vweird.f32 %v3605
        %vm3612 = vmor %vm3610, %vm3611
        %v3613 = vsel %vm3612, %v3605, %v3609
        %v3614 = vand.u32 2147483647, %v3555
        %vm3615 = vcmp.eq.f32.partialorder %v3614, 8.507059e+37
        %v3616 = vand.u32 %v3555, 2147483648
        %v3617 = vor.u32 1.1754944e-38, %v3616
        %v3618 = vsel %vm3615, %v3617, %v3613
        %v3619 = vmul.f32 1.0, %v3618
        %v3620 = vrcp.pop %v3556
        %v3621 = vmul.f32 %v3556, %v3620
        %v3622 = vsub.f32 1.0, %v3621
        %v3623 = vmul.f32 %v3620, %v3622
        %v3624 = vadd.f32 %v3620, %v3623
        %vm3625 = vweird.f32 %v3556
        %vm3626 = vweird.f32 %v3620
        %vm3627 = vmor %vm3625, %vm3626
        %v3628 = vsel %vm3627, %v3620, %v3624
        %v3629 = vand.u32 2147483647, %v3556
        %vm3630 = vcmp.eq.f32.partialorder %v3629, 8.507059e+37
        %v3631 = vand.u32 %v3556, 2147483648
        %v3632 = vor.u32 1.1754944e-38, %v3631
        %v3633 = vsel %vm3630, %v3632, %v3628
        %v3634 = vmul.f32 1.0, %v3633
        %v3635 = vrcp.pop %v3557
        %v3636 = vmul.f32 %v3557, %v3635
        %v3637 = vsub.f32 1.0, %v3636
        %v3638 = vmul.f32 %v3635, %v3637
        %v3639 = vadd.f32 %v3635, %v3638
        %vm3640 = vweird.f32 %v3557
        %vm3641 = vweird.f32 %v3635
        %vm3642 = vmor %vm3640, %vm3641
        %v3643 = vsel %vm3642, %v3635, %v3639
        %v3644 = vand.u32 2147483647, %v3557
        %vm3645 = vcmp.eq.f32.partialorder %v3644, 8.507059e+37
        %v3646 = vand.u32 %v3557, 2147483648
        %v3647 = vor.u32 1.1754944e-38, %v3646
        %v3648 = vsel %vm3645, %v3647, %v3643
        %v3649 = vmul.f32 1.0, %v3648
        %v3650 = vrcp.pop %v3558
        %v3651 = vmul.f32 %v3558, %v3650
        %v3652 = vsub.f32 1.0, %v3651
        %v3653 = vmul.f32 %v3650, %v3652
        %v3654 = vadd.f32 %v3650, %v3653
        %vm3655 = vweird.f32 %v3558
        %vm3656 = vweird.f32 %v3650
        %vm3657 = vmor %vm3655, %vm3656
        %v3658 = vsel %vm3657, %v3650, %v3654
        %v3659 = vand.u32 2147483647, %v3558
        %vm3660 = vcmp.eq.f32.partialorder %v3659, 8.507059e+37
        %v3661 = vand.u32 %v3558, 2147483648
        %v3662 = vor.u32 1.1754944e-38, %v3661
        %v3663 = vsel %vm3660, %v3662, %v3658
        %v3664 = vmul.f32 1.0, %v3663
        %v3665 = vrcp.pop %v3559
        %v3666 = vmul.f32 %v3559, %v3665
        %v3667 = vsub.f32 1.0, %v3666
        %v3668 = vmul.f32 %v3665, %v3667
        %v3669 = vadd.f32 %v3665, %v3668
        %vm3670 = vweird.f32 %v3559
        %vm3671 = vweird.f32 %v3665
        %vm3672 = vmor %vm3670, %vm3671
        %v3673 = vsel %vm3672, %v3665, %v3669
        %v3674 = vand.u32 2147483647, %v3559
        %vm3675 = vcmp.eq.f32.partialorder %v3674, 8.507059e+37
        %v3676 = vand.u32 %v3559, 2147483648
        %v3677 = vor.u32 1.1754944e-38, %v3676
        %v3678 = vsel %vm3675, %v3677, %v3673
        %v3679 = vmul.f32 1.0, %v3678
        %v3680 = vmul.f32 %v3480, %v3574
        %v3681 = vmul.f32 %v3482, %v3589
        %v3682 = vmul.f32 %v3485, %v3604
        %v3683 = vmul.f32 %v3487, %v3619
        %v3684 = vmul.f32 %v3490, %v3634
        %v3685 = vmul.f32 %v3492, %v3649
        %v3686 = vmul.f32 %v3495, %v3664
        %v3687 = vmul.f32 %v3497, %v3679
        %v3688 = vadd.f32 %v3680, %v2748
        %v3689 = vadd.f32 %v3681, %v2749
        %v3690 = vadd.f32 %v3682, %v2750
        %v3691 = vadd.f32 %v3683, %v2751
        %v3692 = vadd.f32 %v3684, %v2752
        %v3693 = vadd.f32 %v3685, %v2753
        %v3694 = vadd.f32 %v3686, %v2754
        %v3695 = vadd.f32 %v3687, %v2755
        %3696 = vadd.xlane.f32.xlu0 %v3688
        %v3697 = vpop.xlane.xlu0 %3696
        %3698 = vadd.xlane.f32.xlu0 %v3689
        %v3699 = vpop.xlane.xlu0 %3698
        %3700 = vadd.xlane.f32.xlu0 %v3690
        %v3701 = vpop.xlane.xlu0 %3700
        %3702 = vadd.xlane.f32.xlu0 %v3691
        %v3703 = vpop.xlane.xlu0 %3702
        %3704 = vadd.xlane.f32.xlu0 %v3692
        %v3705 = vpop.xlane.xlu0 %3704
        %3706 = vadd.xlane.f32.xlu0 %v3693
        %v3707 = vpop.xlane.xlu0 %3706
        %3708 = vadd.xlane.f32.xlu0 %v3694
        %v3709 = vpop.xlane.xlu0 %3708
        %3710 = vadd.xlane.f32.xlu0 %v3695
        %v3711 = vpop.xlane.xlu0 %3710
        %v3712 = vmul.f32 %v3697, %v1461
        %v3713 = vmul.f32 %v3699, %v1461
        %v3714 = vmul.f32 %v3701, %v1461
        %v3715 = vmul.f32 %v3703, %v1461
        %v3716 = vmul.f32 %v3705, %v1461
        %v3717 = vmul.f32 %v3707, %v1461
        %v3718 = vmul.f32 %v3709, %v1461
        %v3719 = vmul.f32 %v3711, %v1461
        %v3720 = vsub.f32 %v3688, %v3712
        %v3721 = vsub.f32 %v3689, %v3713
        %v3722 = vsub.f32 %v3690, %v3714
        %v3723 = vsub.f32 %v3691, %v3715
        %v3724 = vsub.f32 %v3692, %v3716
        %v3725 = vsub.f32 %v3693, %v3717
        %v3726 = vsub.f32 %v3694, %v3718
        %v3727 = vsub.f32 %v3695, %v3719
        %v3728 = vmul.f32 %v3720, %v3720
        %v3729 = vmul.f32 %v3721, %v3721
        %v3730 = vmul.f32 %v3722, %v3722
        %v3731 = vmul.f32 %v3723, %v3723
        %v3732 = vmul.f32 %v3724, %v3724
        %v3733 = vmul.f32 %v3725, %v3725
        %v3734 = vmul.f32 %v3726, %v3726
        %v3735 = vmul.f32 %v3727, %v3727
        %3736 = vadd.xlane.f32.xlu0 %v3728
        %v3737 = vpop.xlane.xlu0 %3736
        %3738 = vadd.xlane.f32.xlu0 %v3729
        %v3739 = vpop.xlane.xlu0 %3738
        %3740 = vadd.xlane.f32.xlu0 %v3730
        %v3741 = vpop.xlane.xlu0 %3740
        %3742 = vadd.xlane.f32.xlu0 %v3731
        %v3743 = vpop.xlane.xlu0 %3742
        %3744 = vadd.xlane.f32.xlu0 %v3732
        %v3745 = vpop.xlane.xlu0 %3744
        %3746 = vadd.xlane.f32.xlu0 %v3733
        %v3747 = vpop.xlane.xlu0 %3746
        %3748 = vadd.xlane.f32.xlu0 %v3734
        %v3749 = vpop.xlane.xlu0 %3748
        %3750 = vadd.xlane.f32.xlu0 %v3735
        %v3751 = vpop.xlane.xlu0 %3750
        %v3752 = vmul.f32 %v3737, %v1461
        %v3753 = vmul.f32 %v3739, %v1461
        %v3754 = vmul.f32 %v3741, %v1461
        %v3755 = vmul.f32 %v3743, %v1461
        %v3756 = vmul.f32 %v3745, %v1461
        %v3757 = vmul.f32 %v3747, %v1461
        %v3758 = vmul.f32 %v3749, %v1461
        %v3759 = vmul.f32 %v3751, %v1461
        %v3760 = vadd.f32 %v3752, 1e-05
        %v3761 = vadd.f32 %v3753, 1e-05
        %v3762 = vadd.f32 %v3754, 1e-05
        %v3763 = vadd.f32 %v3755, 1e-05
        %v3764 = vadd.f32 %v3756, 1e-05
        %v3765 = vadd.f32 %v3757, 1e-05
        %v3766 = vadd.f32 %v3758, 1e-05
        %v3767 = vadd.f32 %v3759, 1e-05
        %v3768 = vrsqrt.pop %v3760
        %v3769 = vmul.f32 %v3768, %v3760
        %v3770 = vmul.f32 %v3769, %v3768
        %v3771 = vmul.f32 0.5, %v3770
        %v3772 = vsub.f32 1.5, %v3771
        %v3773 = vmul.f32 %v3768, %v3772
        %vm3774 = vweird.f32 %v3760
        %vm3775 = vweird.f32 %v3768
        %vm3776 = vmor %vm3774, %vm3775
        %v3777 = vsel %vm3776, %v3768, %v3773
        %v3778 = vrsqrt.pop %v3761
        %v3779 = vmul.f32 %v3778, %v3761
        %v3780 = vmul.f32 %v3779, %v3778
        %v3781 = vmul.f32 0.5, %v3780
        %v3782 = vsub.f32 1.5, %v3781
        %v3783 = vmul.f32 %v3778, %v3782
        %vm3784 = vweird.f32 %v3761
        %vm3785 = vweird.f32 %v3778
        %vm3786 = vmor %vm3784, %vm3785
        %v3787 = vsel %vm3786, %v3778, %v3783
        %v3788 = vrsqrt.pop %v3762
        %v3789 = vmul.f32 %v3788, %v3762
        %v3790 = vmul.f32 %v3789, %v3788
        %v3791 = vmul.f32 0.5, %v3790
        %v3792 = vsub.f32 1.5, %v3791
        %v3793 = vmul.f32 %v3788, %v3792
        %vm3794 = vweird.f32 %v3762
        %vm3795 = vweird.f32 %v3788
        %vm3796 = vmor %vm3794, %vm3795
        %v3797 = vsel %vm3796, %v3788, %v3793
        %v3798 = vrsqrt.pop %v3763
        %v3799 = vmul.f32 %v3798, %v3763
        %v3800 = vmul.f32 %v3799, %v3798
        %v3801 = vmul.f32 0.5, %v3800
        %v3802 = vsub.f32 1.5, %v3801
        %v3803 = vmul.f32 %v3798, %v3802
        %vm3804 = vweird.f32 %v3763
        %vm3805 = vweird.f32 %v3798
        %vm3806 = vmor %vm3804, %vm3805
        %v3807 = vsel %vm3806, %v3798, %v3803
        %v3808 = vrsqrt.pop %v3764
        %v3809 = vmul.f32 %v3808, %v3764
        %v3810 = vmul.f32 %v3809, %v3808
        %v3811 = vmul.f32 0.5, %v3810
        %v3812 = vsub.f32 1.5, %v3811
        %v3813 = vmul.f32 %v3808, %v3812
        %vm3814 = vweird.f32 %v3764
        %vm3815 = vweird.f32 %v3808
        %vm3816 = vmor %vm3814, %vm3815
        %v3817 = vsel %vm3816, %v3808, %v3813
        %v3818 = vrsqrt.pop %v3765
        %v3819 = vmul.f32 %v3818, %v3765
        %v3820 = vmul.f32 %v3819, %v3818
        %v3821 = vmul.f32 0.5, %v3820
        %v3822 = vsub.f32 1.5, %v3821
        %v3823 = vmul.f32 %v3818, %v3822
        %vm3824 = vweird.f32 %v3765
        %vm3825 = vweird.f32 %v3818
        %vm3826 = vmor %vm3824, %vm3825
        %v3827 = vsel %vm3826, %v3818, %v3823
        %v3828 = vrsqrt.pop %v3766
        %v3829 = vmul.f32 %v3828, %v3766
        %v3830 = vmul.f32 %v3829, %v3828
        %v3831 = vmul.f32 0.5, %v3830
        %v3832 = vsub.f32 1.5, %v3831
        %v3833 = vmul.f32 %v3828, %v3832
        %vm3834 = vweird.f32 %v3766
        %vm3835 = vweird.f32 %v3828
        %vm3836 = vmor %vm3834, %vm3835
        %v3837 = vsel %vm3836, %v3828, %v3833
        %v3838 = vrsqrt.pop %v3767
        %v3839 = vmul.f32 %v3838, %v3767
        %v3840 = vmul.f32 %v3839, %v3838
        %v3841 = vmul.f32 0.5, %v3840
        %v3842 = vsub.f32 1.5, %v3841
        %v3843 = vmul.f32 %v3838, %v3842
        %vm3844 = vweird.f32 %v3767
        %vm3845 = vweird.f32 %v3838
        %vm3846 = vmor %vm3844, %vm3845
        %v3847 = vsel %vm3846, %v3838, %v3843
        %v3848 = vmul.f32 %v3720, %v3777
        %v3849 = vmul.f32 %v3721, %v3787
        %v3850 = vmul.f32 %v3722, %v3797
        %v3851 = vmul.f32 %v3723, %v3807
        %v3852 = vmul.f32 %v3724, %v3817
        %v3853 = vmul.f32 %v3725, %v3827
        %v3854 = vmul.f32 %v3726, %v3837
        %v3855 = vmul.f32 %v3727, %v3847
        %s3856 = scalar_lea.vmem %s5, 2
        %v3857 = vld [vmem:[%s3856] sm:$0x1]
        %v3859 = vperm.slane %v3857, 0
        %v3861 = vmul.f32 %v3848, %v3859
        %v3862 = vmul.f32 %v3849, %v3859
        %v3863 = vmul.f32 %v3850, %v3859
        %v3864 = vmul.f32 %v3851, %v3859
        %v3865 = vmul.f32 %v3852, %v3859
        %v3866 = vmul.f32 %v3853, %v3859
        %v3867 = vmul.f32 %v3854, %v3859
        %v3868 = vmul.f32 %v3855, %v3859
        %s3869 = scalar_lea.vmem [#allocation11], 2
        %v3870 = vld [vmem:[%s3869] sm:$0x1]
        %v3872 = vperm.slane %v3870, 0
        %v3874 = vadd.f32 %v3861, %v3872
        %v3875 = vadd.f32 %v3862, %v3872
        %v3876 = vadd.f32 %v3863, %v3872
        %v3877 = vadd.f32 %v3864, %v3872
        %v3878 = vadd.f32 %v3865, %v3872
        %v3879 = vadd.f32 %v3866, %v3872
        %v3880 = vadd.f32 %v3867, %v3872
        %v3881 = vadd.f32 %v3868, %v3872
        %s3882 = scalar_lea.vmem [#allocation5], 48
        %v3883 = vld [vmem:[%s3882] sm:$0x1]
        %v3884 = vperm.slane %v3883, 0
        %v3885 = vmul.f32 %v3874, %v3884
        %v3886 = vmul.f32 %v3875, %v3884
        %v3887 = vmul.f32 %v3876, %v3884
        %v3888 = vmul.f32 %v3877, %v3884
        %v3889 = vmul.f32 %v3878, %v3884
        %v3890 = vmul.f32 %v3879, %v3884
        %v3891 = vmul.f32 %v3880, %v3884
        %v3892 = vmul.f32 %v3881, %v3884
        %v3893 = vrot.slane %v3874, 7
        %v3894 = vrot.slane %v3875, 7
        %v3895 = vrot.slane %v3876, 7
        %v3896 = vrot.slane %v3877, 7
        %v3897 = vrot.slane %v3878, 7
        %v3898 = vrot.slane %v3879, 7
        %v3899 = vrot.slane %v3880, 7
        %v3900 = vrot.slane %v3881, 7
        %v3901 = vsel %vm484, %v3899, %v3900
        %v3902 = vsel %vm484, %v3898, %v3899
        %v3903 = vsel %vm484, %v3897, %v3898
        %v3904 = vsel %vm484, %v3896, %v3897
        %v3905 = vsel %vm484, %v3895, %v3896
        %v3906 = vsel %vm484, %v3894, %v3895
        %v3907 = vsel %vm484, %v3893, %v3894
        %v3908 = vsel %vm484, %v3900, %v3893
        %v3909 = vsel %vm493, %v3908, 0.0
        %v3910 = vsel %vm494, %v3907, 0.0
        %v3911 = vsel %vm493, %v3906, 0.0
        %v3912 = vsel %vm494, %v3905, 0.0
        %v3913 = vsel %vm493, %v3904, 0.0
        %v3914 = vsel %vm494, %v3903, 0.0
        %v3915 = vsel %vm493, %v3902, 0.0
        %v3916 = vsel %vm494, %v3901, 0.0
        %v3917 = vld [vmem:[%s3882 + $0x1] sm:$0x1]
        %v3918 = vperm.slane %v3917, 0
        %v3919 = vmul.f32 %v3909, %v3918
        %v3920 = vmul.f32 %v3910, %v3918
        %v3921 = vmul.f32 %v3911, %v3918
        %v3922 = vmul.f32 %v3912, %v3918
        %v3923 = vmul.f32 %v3913, %v3918
        %v3924 = vmul.f32 %v3914, %v3918
        %v3925 = vmul.f32 %v3915, %v3918
        %v3926 = vmul.f32 %v3916, %v3918
        %v3927 = vadd.f32 %v3885, %v3919
        %v3928 = vadd.f32 %v3886, %v3920
        %v3929 = vadd.f32 %v3887, %v3921
        %v3930 = vadd.f32 %v3888, %v3922
        %v3931 = vadd.f32 %v3889, %v3923
        %v3932 = vadd.f32 %v3890, %v3924
        %v3933 = vadd.f32 %v3891, %v3925
        %v3934 = vadd.f32 %v3892, %v3926
        %v3935 = vrot.slane %v3874, 6
        %v3936 = vrot.slane %v3875, 6
        %v3937 = vrot.slane %v3876, 6
        %v3938 = vrot.slane %v3877, 6
        %v3939 = vrot.slane %v3878, 6
        %v3940 = vrot.slane %v3879, 6
        %v3941 = vrot.slane %v3880, 6
        %v3942 = vrot.slane %v3881, 6
        %v3943 = vsel %vm529, %v3941, %v3942
        %v3944 = vsel %vm529, %v3940, %v3941
        %v3945 = vsel %vm529, %v3939, %v3940
        %v3946 = vsel %vm529, %v3938, %v3939
        %v3947 = vsel %vm529, %v3937, %v3938
        %v3948 = vsel %vm529, %v3936, %v3937
        %v3949 = vsel %vm529, %v3935, %v3936
        %v3950 = vsel %vm529, %v3942, %v3935
        %v3951 = vsel %vm538, %v3950, 0.0
        %v3952 = vsel %vm539, %v3949, 0.0
        %v3953 = vsel %vm538, %v3948, 0.0
        %v3954 = vsel %vm539, %v3947, 0.0
        %v3955 = vsel %vm538, %v3946, 0.0
        %v3956 = vsel %vm539, %v3945, 0.0
        %v3957 = vsel %vm538, %v3944, 0.0
        %v3958 = vsel %vm539, %v3943, 0.0
        %v3959 = vld [vmem:[%s3882 + $0x2] sm:$0x1]
        %v3960 = vperm.slane %v3959, 0
        %v3961 = vmul.f32 %v3951, %v3960
        %v3962 = vmul.f32 %v3952, %v3960
        %v3963 = vmul.f32 %v3953, %v3960
        %v3964 = vmul.f32 %v3954, %v3960
        %v3965 = vmul.f32 %v3955, %v3960
        %v3966 = vmul.f32 %v3956, %v3960
        %v3967 = vmul.f32 %v3957, %v3960
        %v3968 = vmul.f32 %v3958, %v3960
        %v3969 = vadd.f32 %v3927, %v3961
        %v3970 = vadd.f32 %v3928, %v3962
        %v3971 = vadd.f32 %v3929, %v3963
        %v3972 = vadd.f32 %v3930, %v3964
        %v3973 = vadd.f32 %v3931, %v3965
        %v3974 = vadd.f32 %v3932, %v3966
        %v3975 = vadd.f32 %v3933, %v3967
        %v3976 = vadd.f32 %v3934, %v3968
        %v3977 = vrot.slane %v3874, 5
        %v3978 = vrot.slane %v3875, 5
        %v3979 = vrot.slane %v3876, 5
        %v3980 = vrot.slane %v3877, 5
        %v3981 = vrot.slane %v3878, 5
        %v3982 = vrot.slane %v3879, 5
        %v3983 = vrot.slane %v3880, 5
        %v3984 = vrot.slane %v3881, 5
        %v3985 = vsel %vm574, %v3983, %v3984
        %v3986 = vsel %vm574, %v3982, %v3983
        %v3987 = vsel %vm574, %v3981, %v3982
        %v3988 = vsel %vm574, %v3980, %v3981
        %v3989 = vsel %vm574, %v3979, %v3980
        %v3990 = vsel %vm574, %v3978, %v3979
        %v3991 = vsel %vm574, %v3977, %v3978
        %v3992 = vsel %vm574, %v3984, %v3977
        %v3993 = vsel %vm583, %v3992, 0.0
        %v3994 = vsel %vm584, %v3991, 0.0
        %v3995 = vsel %vm583, %v3990, 0.0
        %v3996 = vsel %vm584, %v3989, 0.0
        %v3997 = vsel %vm583, %v3988, 0.0
        %v3998 = vsel %vm584, %v3987, 0.0
        %v3999 = vsel %vm583, %v3986, 0.0
        %v4000 = vsel %vm584, %v3985, 0.0
        %v4001 = vld [vmem:[%s3882 + $0x3] sm:$0x1]
        %v4002 = vperm.slane %v4001, 0
        %v4003 = vmul.f32 %v3993, %v4002
        %v4004 = vmul.f32 %v3994, %v4002
        %v4005 = vmul.f32 %v3995, %v4002
        %v4006 = vmul.f32 %v3996, %v4002
        %v4007 = vmul.f32 %v3997, %v4002
        %v4008 = vmul.f32 %v3998, %v4002
        %v4009 = vmul.f32 %v3999, %v4002
        %v4010 = vmul.f32 %v4000, %v4002
        %v4011 = vadd.f32 %v3969, %v4003
        %v4012 = vadd.f32 %v3970, %v4004
        %v4013 = vadd.f32 %v3971, %v4005
        %v4014 = vadd.f32 %v3972, %v4006
        %v4015 = vadd.f32 %v3973, %v4007
        %v4016 = vadd.f32 %v3974, %v4008
        %v4017 = vadd.f32 %v3975, %v4009
        %v4018 = vadd.f32 %v3976, %v4010
        %v4019 = vrot.slane %v3874, 4
        %v4020 = vrot.slane %v3875, 4
        %v4021 = vrot.slane %v3876, 4
        %v4022 = vrot.slane %v3877, 4
        %v4023 = vrot.slane %v3878, 4
        %v4024 = vrot.slane %v3879, 4
        %v4025 = vrot.slane %v3880, 4
        %v4026 = vrot.slane %v3881, 4
        %v4027 = vsel %vm619, %v4025, %v4026
        %v4028 = vsel %vm619, %v4024, %v4025
        %v4029 = vsel %vm619, %v4023, %v4024
        %v4030 = vsel %vm619, %v4022, %v4023
        %v4031 = vsel %vm619, %v4021, %v4022
        %v4032 = vsel %vm619, %v4020, %v4021
        %v4033 = vsel %vm619, %v4019, %v4020
        %v4034 = vsel %vm619, %v4026, %v4019
        %v4035 = vsel %vm628, %v4034, 0.0
        %v4036 = vsel %vm629, %v4033, 0.0
        %v4037 = vsel %vm628, %v4032, 0.0
        %v4038 = vsel %vm629, %v4031, 0.0
        %v4039 = vsel %vm628, %v4030, 0.0
        %v4040 = vsel %vm629, %v4029, 0.0
        %v4041 = vsel %vm628, %v4028, 0.0
        %v4042 = vsel %vm629, %v4027, 0.0
        %v4043 = vld [vmem:[%s3882 + $0x4] sm:$0x1]
        %v4044 = vperm.slane %v4043, 0
        %v4045 = vmul.f32 %v4035, %v4044
        %v4046 = vmul.f32 %v4036, %v4044
        %v4047 = vmul.f32 %v4037, %v4044
        %v4048 = vmul.f32 %v4038, %v4044
        %v4049 = vmul.f32 %v4039, %v4044
        %v4050 = vmul.f32 %v4040, %v4044
        %v4051 = vmul.f32 %v4041, %v4044
        %v4052 = vmul.f32 %v4042, %v4044
        %v4053 = vadd.f32 %v4011, %v4045
        %v4054 = vadd.f32 %v4012, %v4046
        %v4055 = vadd.f32 %v4013, %v4047
        %v4056 = vadd.f32 %v4014, %v4048
        %v4057 = vadd.f32 %v4015, %v4049
        %v4058 = vadd.f32 %v4016, %v4050
        %v4059 = vadd.f32 %v4017, %v4051
        %v4060 = vadd.f32 %v4018, %v4052
        %v4061 = vrot.slane %v3874, 3
        %v4062 = vrot.slane %v3875, 3
        %v4063 = vrot.slane %v3876, 3
        %v4064 = vrot.slane %v3877, 3
        %v4065 = vrot.slane %v3878, 3
        %v4066 = vrot.slane %v3879, 3
        %v4067 = vrot.slane %v3880, 3
        %v4068 = vrot.slane %v3881, 3
        %v4069 = vsel %vm664, %v4067, %v4068
        %v4070 = vsel %vm664, %v4066, %v4067
        %v4071 = vsel %vm664, %v4065, %v4066
        %v4072 = vsel %vm664, %v4064, %v4065
        %v4073 = vsel %vm664, %v4063, %v4064
        %v4074 = vsel %vm664, %v4062, %v4063
        %v4075 = vsel %vm664, %v4061, %v4062
        %v4076 = vsel %vm664, %v4068, %v4061
        %v4077 = vsel %vm673, %v4076, 0.0
        %v4078 = vsel %vm674, %v4075, 0.0
        %v4079 = vsel %vm673, %v4074, 0.0
        %v4080 = vsel %vm674, %v4073, 0.0
        %v4081 = vsel %vm673, %v4072, 0.0
        %v4082 = vsel %vm674, %v4071, 0.0
        %v4083 = vsel %vm673, %v4070, 0.0
        %v4084 = vsel %vm674, %v4069, 0.0
        %v4085 = vld [vmem:[%s3882 + $0x5] sm:$0x1]
        %v4086 = vperm.slane %v4085, 0
        %v4087 = vmul.f32 %v4077, %v4086
        %v4088 = vmul.f32 %v4078, %v4086
        %v4089 = vmul.f32 %v4079, %v4086
        %v4090 = vmul.f32 %v4080, %v4086
        %v4091 = vmul.f32 %v4081, %v4086
        %v4092 = vmul.f32 %v4082, %v4086
        %v4093 = vmul.f32 %v4083, %v4086
        %v4094 = vmul.f32 %v4084, %v4086
        %v4095 = vadd.f32 %v4053, %v4087
        %v4096 = vadd.f32 %v4054, %v4088
        %v4097 = vadd.f32 %v4055, %v4089
        %v4098 = vadd.f32 %v4056, %v4090
        %v4099 = vadd.f32 %v4057, %v4091
        %v4100 = vadd.f32 %v4058, %v4092
        %v4101 = vadd.f32 %v4059, %v4093
        %v4102 = vadd.f32 %v4060, %v4094
        %v4103 = vrot.slane %v3874, 2
        %v4104 = vrot.slane %v3875, 2
        %v4105 = vrot.slane %v3876, 2
        %v4106 = vrot.slane %v3877, 2
        %v4107 = vrot.slane %v3878, 2
        %v4108 = vrot.slane %v3879, 2
        %v4109 = vrot.slane %v3880, 2
        %v4110 = vrot.slane %v3881, 2
        %v4111 = vsel %vm709, %v4109, %v4110
        %v4112 = vsel %vm709, %v4108, %v4109
        %v4113 = vsel %vm709, %v4107, %v4108
        %v4114 = vsel %vm709, %v4106, %v4107
        %v4115 = vsel %vm709, %v4105, %v4106
        %v4116 = vsel %vm709, %v4104, %v4105
        %v4117 = vsel %vm709, %v4103, %v4104
        %v4118 = vsel %vm709, %v4110, %v4103
        %v4119 = vsel %vm718, %v4118, 0.0
        %v4120 = vsel %vm719, %v4117, 0.0
        %v4121 = vsel %vm718, %v4116, 0.0
        %v4122 = vsel %vm719, %v4115, 0.0
        %v4123 = vsel %vm718, %v4114, 0.0
        %v4124 = vsel %vm719, %v4113, 0.0
        %v4125 = vsel %vm718, %v4112, 0.0
        %v4126 = vsel %vm719, %v4111, 0.0
        %v4127 = vld [vmem:[%s3882 + $0x6] sm:$0x1]
        %v4128 = vperm.slane %v4127, 0
        %v4129 = vmul.f32 %v4119, %v4128
        %v4130 = vmul.f32 %v4120, %v4128
        %v4131 = vmul.f32 %v4121, %v4128
        %v4132 = vmul.f32 %v4122, %v4128
        %v4133 = vmul.f32 %v4123, %v4128
        %v4134 = vmul.f32 %v4124, %v4128
        %v4135 = vmul.f32 %v4125, %v4128
        %v4136 = vmul.f32 %v4126, %v4128
        %v4137 = vadd.f32 %v4095, %v4129
        %v4138 = vadd.f32 %v4096, %v4130
        %v4139 = vadd.f32 %v4097, %v4131
        %v4140 = vadd.f32 %v4098, %v4132
        %v4141 = vadd.f32 %v4099, %v4133
        %v4142 = vadd.f32 %v4100, %v4134
        %v4143 = vadd.f32 %v4101, %v4135
        %v4144 = vadd.f32 %v4102, %v4136
        %v4145 = vrot.slane %v3874, 1
        %v4146 = vrot.slane %v3875, 1
        %v4147 = vrot.slane %v3876, 1
        %v4148 = vrot.slane %v3877, 1
        %v4149 = vrot.slane %v3878, 1
        %v4150 = vrot.slane %v3879, 1
        %v4151 = vrot.slane %v3880, 1
        %v4152 = vrot.slane %v3881, 1
        %v4153 = vsel %vm754, %v4151, %v4152
        %v4154 = vsel %vm754, %v4150, %v4151
        %v4155 = vsel %vm754, %v4149, %v4150
        %v4156 = vsel %vm754, %v4148, %v4149
        %v4157 = vsel %vm754, %v4147, %v4148
        %v4158 = vsel %vm754, %v4146, %v4147
        %v4159 = vsel %vm754, %v4145, %v4146
        %v4160 = vsel %vm754, %v4152, %v4145
        %v4161 = vsel %vm763, %v4160, 0.0
        %v4162 = vsel %vm764, %v4159, 0.0
        %v4163 = vsel %vm763, %v4158, 0.0
        %v4164 = vsel %vm764, %v4157, 0.0
        %v4165 = vsel %vm763, %v4156, 0.0
        %v4166 = vsel %vm764, %v4155, 0.0
        %v4167 = vsel %vm763, %v4154, 0.0
        %v4168 = vsel %vm764, %v4153, 0.0
        %v4169 = vld [vmem:[%s3882 + $0x7] sm:$0x1]
        %v4170 = vperm.slane %v4169, 0
        %v4171 = vmul.f32 %v4161, %v4170
        %v4172 = vmul.f32 %v4162, %v4170
        %v4173 = vmul.f32 %v4163, %v4170
        %v4174 = vmul.f32 %v4164, %v4170
        %v4175 = vmul.f32 %v4165, %v4170
        %v4176 = vmul.f32 %v4166, %v4170
        %v4177 = vmul.f32 %v4167, %v4170
        %v4178 = vmul.f32 %v4168, %v4170
        %v4179 = vadd.f32 %v4137, %v4171
        %v4180 = vadd.f32 %v4138, %v4172
        %v4181 = vadd.f32 %v4139, %v4173
        %v4182 = vadd.f32 %v4140, %v4174
        %v4183 = vadd.f32 %v4141, %v4175
        %v4184 = vadd.f32 %v4142, %v4176
        %v4185 = vadd.f32 %v4143, %v4177
        %v4186 = vadd.f32 %v4144, %v4178
        %v4187 = vsel %vm791, %v3881, 0.0
        %v4188 = vsel %vm792, %v3874, 0.0
        %v4189 = vsel %vm791, %v3875, 0.0
        %v4190 = vsel %vm792, %v3876, 0.0
        %v4191 = vsel %vm791, %v3877, 0.0
        %v4192 = vsel %vm792, %v3878, 0.0
        %v4193 = vsel %vm791, %v3879, 0.0
        %v4194 = vsel %vm792, %v3880, 0.0
        %v4195 = vld [vmem:[%s3882 + $0x8] sm:$0x1]
        %v4196 = vperm.slane %v4195, 0
        %v4197 = vmul.f32 %v4187, %v4196
        %v4198 = vmul.f32 %v4188, %v4196
        %v4199 = vmul.f32 %v4189, %v4196
        %v4200 = vmul.f32 %v4190, %v4196
        %v4201 = vmul.f32 %v4191, %v4196
        %v4202 = vmul.f32 %v4192, %v4196
        %v4203 = vmul.f32 %v4193, %v4196
        %v4204 = vmul.f32 %v4194, %v4196
        %v4205 = vadd.f32 %v4179, %v4197
        %v4206 = vadd.f32 %v4180, %v4198
        %v4207 = vadd.f32 %v4181, %v4199
        %v4208 = vadd.f32 %v4182, %v4200
        %v4209 = vadd.f32 %v4183, %v4201
        %v4210 = vadd.f32 %v4184, %v4202
        %v4211 = vadd.f32 %v4185, %v4203
        %v4212 = vadd.f32 %v4186, %v4204
        %v4213 = vsel %vm819, %v3901, 0.0
        %v4214 = vsel %vm820, %v3908, 0.0
        %v4215 = vsel %vm819, %v3907, 0.0
        %v4216 = vsel %vm820, %v3906, 0.0
        %v4217 = vsel %vm819, %v3905, 0.0
        %v4218 = vsel %vm820, %v3904, 0.0
        %v4219 = vsel %vm819, %v3903, 0.0
        %v4220 = vsel %vm820, %v3902, 0.0
        %v4221 = vld [vmem:[%s3882 + $0x9] sm:$0x1]
        %v4222 = vperm.slane %v4221, 0
        %v4223 = vmul.f32 %v4213, %v4222
        %v4224 = vmul.f32 %v4214, %v4222
        %v4225 = vmul.f32 %v4215, %v4222
        %v4226 = vmul.f32 %v4216, %v4222
        %v4227 = vmul.f32 %v4217, %v4222
        %v4228 = vmul.f32 %v4218, %v4222
        %v4229 = vmul.f32 %v4219, %v4222
        %v4230 = vmul.f32 %v4220, %v4222
        %v4231 = vadd.f32 %v4205, %v4223
        %v4232 = vadd.f32 %v4206, %v4224
        %v4233 = vadd.f32 %v4207, %v4225
        %v4234 = vadd.f32 %v4208, %v4226
        %v4235 = vadd.f32 %v4209, %v4227
        %v4236 = vadd.f32 %v4210, %v4228
        %v4237 = vadd.f32 %v4211, %v4229
        %v4238 = vadd.f32 %v4212, %v4230
        %v4239 = vsel %vm847, %v3943, 0.0
        %v4240 = vsel %vm848, %v3950, 0.0
        %v4241 = vsel %vm847, %v3949, 0.0
        %v4242 = vsel %vm848, %v3948, 0.0
        %v4243 = vsel %vm847, %v3947, 0.0
        %v4244 = vsel %vm848, %v3946, 0.0
        %v4245 = vsel %vm847, %v3945, 0.0
        %v4246 = vsel %vm848, %v3944, 0.0
        %v4247 = vld [vmem:[%s3882 + $0xa] sm:$0x1]
        %v4248 = vperm.slane %v4247, 0
        %v4249 = vmul.f32 %v4239, %v4248
        %v4250 = vmul.f32 %v4240, %v4248
        %v4251 = vmul.f32 %v4241, %v4248
        %v4252 = vmul.f32 %v4242, %v4248
        %v4253 = vmul.f32 %v4243, %v4248
        %v4254 = vmul.f32 %v4244, %v4248
        %v4255 = vmul.f32 %v4245, %v4248
        %v4256 = vmul.f32 %v4246, %v4248
        %v4257 = vadd.f32 %v4231, %v4249
        %v4258 = vadd.f32 %v4232, %v4250
        %v4259 = vadd.f32 %v4233, %v4251
        %v4260 = vadd.f32 %v4234, %v4252
        %v4261 = vadd.f32 %v4235, %v4253
        %v4262 = vadd.f32 %v4236, %v4254
        %v4263 = vadd.f32 %v4237, %v4255
        %v4264 = vadd.f32 %v4238, %v4256
        %v4265 = vsel %vm875, %v3985, 0.0
        %v4266 = vsel %vm876, %v3992, 0.0
        %v4267 = vsel %vm875, %v3991, 0.0
        %v4268 = vsel %vm876, %v3990, 0.0
        %v4269 = vsel %vm875, %v3989, 0.0
        %v4270 = vsel %vm876, %v3988, 0.0
        %v4271 = vsel %vm875, %v3987, 0.0
        %v4272 = vsel %vm876, %v3986, 0.0
        %v4273 = vld [vmem:[%s3882 + $0xb] sm:$0x1]
        %v4274 = vperm.slane %v4273, 0
        %v4275 = vmul.f32 %v4265, %v4274
        %v4276 = vmul.f32 %v4266, %v4274
        %v4277 = vmul.f32 %v4267, %v4274
        %v4278 = vmul.f32 %v4268, %v4274
        %v4279 = vmul.f32 %v4269, %v4274
        %v4280 = vmul.f32 %v4270, %v4274
        %v4281 = vmul.f32 %v4271, %v4274
        %v4282 = vmul.f32 %v4272, %v4274
        %v4283 = vadd.f32 %v4257, %v4275
        %v4284 = vadd.f32 %v4258, %v4276
        %v4285 = vadd.f32 %v4259, %v4277
        %v4286 = vadd.f32 %v4260, %v4278
        %v4287 = vadd.f32 %v4261, %v4279
        %v4288 = vadd.f32 %v4262, %v4280
        %v4289 = vadd.f32 %v4263, %v4281
        %v4290 = vadd.f32 %v4264, %v4282
        %v4291 = vsel %vm903, %v4027, 0.0
        %v4292 = vsel %vm904, %v4034, 0.0
        %v4293 = vsel %vm903, %v4033, 0.0
        %v4294 = vsel %vm904, %v4032, 0.0
        %v4295 = vsel %vm903, %v4031, 0.0
        %v4296 = vsel %vm904, %v4030, 0.0
        %v4297 = vsel %vm903, %v4029, 0.0
        %v4298 = vsel %vm904, %v4028, 0.0
        %v4299 = vld [vmem:[%s3882 + $0xc] sm:$0x1]
        %v4300 = vperm.slane %v4299, 0
        %v4301 = vmul.f32 %v4291, %v4300
        %v4302 = vmul.f32 %v4292, %v4300
        %v4303 = vmul.f32 %v4293, %v4300
        %v4304 = vmul.f32 %v4294, %v4300
        %v4305 = vmul.f32 %v4295, %v4300
        %v4306 = vmul.f32 %v4296, %v4300
        %v4307 = vmul.f32 %v4297, %v4300
        %v4308 = vmul.f32 %v4298, %v4300
        %v4309 = vadd.f32 %v4283, %v4301
        %v4310 = vadd.f32 %v4284, %v4302
        %v4311 = vadd.f32 %v4285, %v4303
        %v4312 = vadd.f32 %v4286, %v4304
        %v4313 = vadd.f32 %v4287, %v4305
        %v4314 = vadd.f32 %v4288, %v4306
        %v4315 = vadd.f32 %v4289, %v4307
        %v4316 = vadd.f32 %v4290, %v4308
        %v4317 = vsel %vm931, %v4069, 0.0
        %v4318 = vsel %vm932, %v4076, 0.0
        %v4319 = vsel %vm931, %v4075, 0.0
        %v4320 = vsel %vm932, %v4074, 0.0
        %v4321 = vsel %vm931, %v4073, 0.0
        %v4322 = vsel %vm932, %v4072, 0.0
        %v4323 = vsel %vm931, %v4071, 0.0
        %v4324 = vsel %vm932, %v4070, 0.0
        %v4325 = vld [vmem:[%s3882 + $0xd] sm:$0x1]
        %v4326 = vperm.slane %v4325, 0
        %v4327 = vmul.f32 %v4317, %v4326
        %v4328 = vmul.f32 %v4318, %v4326
        %v4329 = vmul.f32 %v4319, %v4326
        %v4330 = vmul.f32 %v4320, %v4326
        %v4331 = vmul.f32 %v4321, %v4326
        %v4332 = vmul.f32 %v4322, %v4326
        %v4333 = vmul.f32 %v4323, %v4326
        %v4334 = vmul.f32 %v4324, %v4326
        %v4335 = vadd.f32 %v4309, %v4327
        %v4336 = vadd.f32 %v4310, %v4328
        %v4337 = vadd.f32 %v4311, %v4329
        %v4338 = vadd.f32 %v4312, %v4330
        %v4339 = vadd.f32 %v4313, %v4331
        %v4340 = vadd.f32 %v4314, %v4332
        %v4341 = vadd.f32 %v4315, %v4333
        %v4342 = vadd.f32 %v4316, %v4334
        %v4343 = vsel %vm959, %v4111, 0.0
        %v4344 = vsel %vm960, %v4118, 0.0
        %v4345 = vsel %vm959, %v4117, 0.0
        %v4346 = vsel %vm960, %v4116, 0.0
        %v4347 = vsel %vm959, %v4115, 0.0
        %v4348 = vsel %vm960, %v4114, 0.0
        %v4349 = vsel %vm959, %v4113, 0.0
        %v4350 = vsel %vm960, %v4112, 0.0
        %v4351 = vld [vmem:[%s3882 + $0xe] sm:$0x1]
        %v4352 = vperm.slane %v4351, 0
        %v4353 = vmul.f32 %v4343, %v4352
        %v4354 = vmul.f32 %v4344, %v4352
        %v4355 = vmul.f32 %v4345, %v4352
        %v4356 = vmul.f32 %v4346, %v4352
        %v4357 = vmul.f32 %v4347, %v4352
        %v4358 = vmul.f32 %v4348, %v4352
        %v4359 = vmul.f32 %v4349, %v4352
        %v4360 = vmul.f32 %v4350, %v4352
        %v4361 = vadd.f32 %v4335, %v4353
        %v4362 = vadd.f32 %v4336, %v4354
        %v4363 = vadd.f32 %v4337, %v4355
        %v4364 = vadd.f32 %v4338, %v4356
        %v4365 = vadd.f32 %v4339, %v4357
        %v4366 = vadd.f32 %v4340, %v4358
        %v4367 = vadd.f32 %v4341, %v4359
        %v4368 = vadd.f32 %v4342, %v4360
        %v4369 = vsel %vm987, %v4153, 0.0
        %v4370 = vsel %vm988, %v4160, 0.0
        %v4371 = vsel %vm987, %v4159, 0.0
        %v4372 = vsel %vm988, %v4158, 0.0
        %v4373 = vsel %vm987, %v4157, 0.0
        %v4374 = vsel %vm988, %v4156, 0.0
        %v4375 = vsel %vm987, %v4155, 0.0
        %v4376 = vsel %vm988, %v4154, 0.0
        %v4377 = vld [vmem:[%s3882 + $0xf] sm:$0x1]
        %v4378 = vperm.slane %v4377, 0
        %v4379 = vmul.f32 %v4369, %v4378
        %v4380 = vmul.f32 %v4370, %v4378
        %v4381 = vmul.f32 %v4371, %v4378
        %v4382 = vmul.f32 %v4372, %v4378
        %v4383 = vmul.f32 %v4373, %v4378
        %v4384 = vmul.f32 %v4374, %v4378
        %v4385 = vmul.f32 %v4375, %v4378
        %v4386 = vmul.f32 %v4376, %v4378
        %v4387 = vadd.f32 %v4361, %v4379
        %v4388 = vadd.f32 %v4362, %v4380
        %v4389 = vadd.f32 %v4363, %v4381
        %v4390 = vadd.f32 %v4364, %v4382
        %v4391 = vadd.f32 %v4365, %v4383
        %v4392 = vadd.f32 %v4366, %v4384
        %v4393 = vadd.f32 %v4367, %v4385
        %v4394 = vadd.f32 %v4368, %v4386
        %s4395 = scalar_lea.vmem [#allocation7], 3
        %v4396 = vld [vmem:[%s4395] sm:$0x1]
        %v4398 = vperm.slane %v4396, 0
        %v4400 = vmul.f32 %v3874, %v4398
        %v4401 = vmul.f32 %v3875, %v4398
        %v4402 = vmul.f32 %v3876, %v4398
        %v4403 = vmul.f32 %v3877, %v4398
        %v4404 = vmul.f32 %v3878, %v4398
        %v4405 = vmul.f32 %v3879, %v4398
        %v4406 = vmul.f32 %v3880, %v4398
        %v4407 = vmul.f32 %v3881, %v4398
        %v4408 = vadd.f32 %v4387, %v4400
        %v4409 = vadd.f32 %v4388, %v4401
        %v4410 = vadd.f32 %v4389, %v4402
        %v4411 = vadd.f32 %v4390, %v4403
        %v4412 = vadd.f32 %v4391, %v4404
        %v4413 = vadd.f32 %v4392, %v4405
        %v4414 = vadd.f32 %v4393, %v4406
        %v4415 = vadd.f32 %v4394, %v4407
        %v4416 = vmul.f32 %v4408, %v4408
        %v4417 = vmul.f32 %v4409, %v4409
        %v4418 = vmul.f32 %v4410, %v4410
        %v4419 = vmul.f32 %v4411, %v4411
        %v4420 = vmul.f32 %v4412, %v4412
        %v4421 = vmul.f32 %v4413, %v4413
        %v4422 = vmul.f32 %v4414, %v4414
        %v4423 = vmul.f32 %v4415, %v4415
        %v4424 = vmul.f32 %v4408, %v4416
        %v4425 = vmul.f32 %v4409, %v4417
        %v4426 = vmul.f32 %v4410, %v4418
        %v4427 = vmul.f32 %v4411, %v4419
        %v4428 = vmul.f32 %v4412, %v4420
        %v4429 = vmul.f32 %v4413, %v4421
        %v4430 = vmul.f32 %v4414, %v4422
        %v4431 = vmul.f32 %v4415, %v4423
        %v4432 = vmul.f32 %v4424, 0.044715
        %v4433 = vmul.f32 %v4425, 0.044715
        %v4434 = vmul.f32 %v4426, 0.044715
        %v4435 = vmul.f32 %v4427, 0.044715
        %v4436 = vmul.f32 %v4428, 0.044715
        %v4437 = vmul.f32 %v4429, 0.044715
        %v4438 = vmul.f32 %v4430, 0.044715
        %v4439 = vmul.f32 %v4431, 0.044715
        %v4440 = vadd.f32 %v4408, %v4432
        %v4441 = vadd.f32 %v4409, %v4433
        %v4442 = vadd.f32 %v4410, %v4434
        %v4443 = vadd.f32 %v4411, %v4435
        %v4444 = vadd.f32 %v4412, %v4436
        %v4445 = vadd.f32 %v4413, %v4437
        %v4446 = vadd.f32 %v4414, %v4438
        %v4447 = vadd.f32 %v4415, %v4439
        %v4448 = vmul.f32 %v4440, 0.7978846
        %v4449 = vmul.f32 %v4441, 0.7978846
        %v4450 = vmul.f32 %v4442, 0.7978846
        %v4451 = vmul.f32 %v4443, 0.7978846
        %v4452 = vmul.f32 %v4444, 0.7978846
        %v4453 = vmul.f32 %v4445, 0.7978846
        %v4454 = vmul.f32 %v4446, 0.7978846
        %v4455 = vmul.f32 %v4447, 0.7978846
        %v4456 = vtanh.pop %v4448
        %v4457 = vtanh.pop %v4449
        %v4458 = vtanh.pop %v4450
        %v4459 = vtanh.pop %v4451
        %v4460 = vtanh.pop %v4452
        %v4461 = vtanh.pop %v4453
        %v4462 = vtanh.pop %v4454
        %v4463 = vtanh.pop %v4455
        %v4464 = vadd.f32 %v4456, 1.0
        %v4465 = vadd.f32 %v4457, 1.0
        %v4466 = vadd.f32 %v4458, 1.0
        %v4467 = vadd.f32 %v4459, 1.0
        %v4468 = vadd.f32 %v4460, 1.0
        %v4469 = vadd.f32 %v4461, 1.0
        %v4470 = vadd.f32 %v4462, 1.0
        %v4471 = vadd.f32 %v4463, 1.0
        %v4472 = vmul.f32 %v4464, 0.5
        %v4473 = vmul.f32 %v4465, 0.5
        %v4474 = vmul.f32 %v4466, 0.5
        %v4475 = vmul.f32 %v4467, 0.5
        %v4476 = vmul.f32 %v4468, 0.5
        %v4477 = vmul.f32 %v4469, 0.5
        %v4478 = vmul.f32 %v4470, 0.5
        %v4479 = vmul.f32 %v4471, 0.5
        %v4480 = vmul.f32 %v4408, %v4472
        %v4481 = vmul.f32 %v4409, %v4473
        %v4482 = vmul.f32 %v4410, %v4474
        %v4483 = vmul.f32 %v4411, %v4475
        %v4484 = vmul.f32 %v4412, %v4476
        %v4485 = vmul.f32 %v4413, %v4477
        %v4486 = vmul.f32 %v4414, %v4478
        %v4487 = vmul.f32 %v4415, %v4479
        %v4488 = vpack.c.bf16 %v4481, %v4480
        %v4489 = vpack.c.bf16 %v4483, %v4482
        %v4490 = vpack.c.bf16 %v4485, %v4484
        %v4491 = vpack.c.bf16 %v4487, %v4486
        %s4492 = scalar_lea.vmem [#allocation8], 384
        %v4493 = vld [vmem:[%s4492] sm:$0xff]
        %v4494 = vld [vmem:[%s4492 + $0x8] sm:$0xff]
        %v4495 = vld [vmem:[%s4492 + $0x10] sm:$0xff]
        %v4496 = vld [vmem:[%s4492 + $0x18] sm:$0xff]
        %v4497 = vld [vmem:[%s4492 + $0x20] sm:$0xff]
        %v4498 = vld [vmem:[%s4492 + $0x28] sm:$0xff]
        %v4499 = vld [vmem:[%s4492 + $0x30] sm:$0xff]
        %v4500 = vld [vmem:[%s4492 + $0x38] sm:$0xff]
        %v4501 = vld [vmem:[%s4492 + $0x40] sm:$0xff]
        %v4502 = vld [vmem:[%s4492 + $0x48] sm:$0xff]
        %v4503 = vld [vmem:[%s4492 + $0x50] sm:$0xff]
        %v4504 = vld [vmem:[%s4492 + $0x58] sm:$0xff]
        %v4505 = vld [vmem:[%s4492 + $0x60] sm:$0xff]
        %v4506 = vld [vmem:[%s4492 + $0x68] sm:$0xff]
        %v4507 = vld [vmem:[%s4492 + $0x70] sm:$0xff]
        %v4508 = vld [vmem:[%s4492 + $0x78] sm:$0xff]
        %s4509 = scalar_lea.vmem [#allocation10], 6
        %v4510 = vld [vmem:[%s4509] sm:$0x3]
        %v4512 = vperm.slane %v4510, 0
        %v4513 = vperm.slane %v4510, 1
        %v4532 = vunpack.c.l.b16 %v4493
        %v4533 = vunpack.c.h.b16 %v4493
        %v4534 = vunpack.c.l.b16 %v4494
        %v4535 = vunpack.c.h.b16 %v4494
        %v4536 = vunpack.c.l.b16 %v4495
        %v4537 = vunpack.c.h.b16 %v4495
        %v4538 = vunpack.c.l.b16 %v4496
        %v4539 = vunpack.c.h.b16 %v4496
        %v4540 = vunpack.c.l.b16 %v4497
        %v4541 = vunpack.c.h.b16 %v4497
        %v4542 = vunpack.c.l.b16 %v4498
        %v4543 = vunpack.c.h.b16 %v4498
        %v4544 = vunpack.c.l.b16 %v4499
        %v4545 = vunpack.c.h.b16 %v4499
        %v4546 = vunpack.c.l.b16 %v4500
        %v4547 = vunpack.c.h.b16 %v4500
        %v4548 = vunpack.c.l.b16 %v4501
        %v4549 = vunpack.c.h.b16 %v4501
        %v4550 = vunpack.c.l.b16 %v4502
        %v4551 = vunpack.c.h.b16 %v4502
        %v4552 = vunpack.c.l.b16 %v4503
        %v4553 = vunpack.c.h.b16 %v4503
        %v4554 = vunpack.c.l.b16 %v4504
        %v4555 = vunpack.c.h.b16 %v4504
        %v4556 = vunpack.c.l.b16 %v4505
        %v4557 = vunpack.c.h.b16 %v4505
        %v4558 = vunpack.c.l.b16 %v4506
        %v4559 = vunpack.c.h.b16 %v4506
        %v4560 = vunpack.c.l.b16 %v4507
        %v4561 = vunpack.c.h.b16 %v4507
        %v4562 = vunpack.c.l.b16 %v4508
        %v4563 = vunpack.c.h.b16 %v4508
        %v4564 = vpack.c.b16 %v4534, %v4532
        %v4565 = vpack.c.b16 %v4535, %v4533
        %v4566 = vpack.c.b16 %v4538, %v4536
        %v4567 = vpack.c.b16 %v4539, %v4537
        %v4568 = vpack.c.b16 %v4542, %v4540
        %v4569 = vpack.c.b16 %v4543, %v4541
        %v4570 = vpack.c.b16 %v4546, %v4544
        %v4571 = vpack.c.b16 %v4547, %v4545
        %v4572 = vpack.c.b16 %v4550, %v4548
        %v4573 = vpack.c.b16 %v4551, %v4549
        %v4574 = vpack.c.b16 %v4554, %v4552
        %v4575 = vpack.c.b16 %v4555, %v4553
        %v4576 = vpack.c.b16 %v4558, %v4556
        %v4577 = vpack.c.b16 %v4559, %v4557
        %v4578 = vpack.c.b16 %v4562, %v4560
        %v4579 = vpack.c.b16 %v4563, %v4561
        %4596 = vmatpush.bf16.msra.mxu0 %v4578
        %4597 = vmatpush.bf16.msra.mxu0 %v4576
        %4598 = vmatpush.bf16.msra.mxu0 %v4574
        %4599 = vmatpush.bf16.msra.mxu0 %v4572
        %4600 = vmatpush.bf16.msra.mxu0 %v4570
        %4601 = vmatpush.bf16.msra.mxu0 %v4568
        %4602 = vmatpush.bf16.msra.mxu0 %v4566
        %4603 = vmatpush.bf16.msra.mxu0 %v4564
        %4604 = vmatmul.bf16.gmra.mxu0 %v4488
        %v4605 = vpop.f32.mrf.mxu0
        %v4606 = vadd.f32 %v4512, %v4605
        %v4607 = vpop.f32.mrf.mxu0
        %v4608 = vadd.f32 %v4512, %v4607
        %4609 = vmatmul.bf16.gmra.mxu0 %v4489
        %v4610 = vpop.f32.mrf.mxu0
        %v4611 = vadd.f32 %v4512, %v4610
        %v4612 = vpop.f32.mrf.mxu0
        %v4613 = vadd.f32 %v4512, %v4612
        %4614 = vmatmul.bf16.gmra.mxu0 %v4490
        %v4615 = vpop.f32.mrf.mxu0
        %v4616 = vadd.f32 %v4512, %v4615
        %v4617 = vpop.f32.mrf.mxu0
        %v4618 = vadd.f32 %v4512, %v4617
        %4619 = vmatmul.bf16.gmra.mxu0 %v4491
        %v4620 = vpop.f32.mrf.mxu0
        %v4621 = vadd.f32 %v4512, %v4620
        %v4622 = vpop.f32.mrf.mxu0
        %v4623 = vadd.f32 %v4512, %v4622
        %4624 = vdwg.mxu0
        %4625 = vmatpush.bf16.msra.mxu0 %v4579
        %4626 = vmatpush.bf16.msra.mxu0 %v4577
        %4627 = vmatpush.bf16.msra.mxu0 %v4575
        %4628 = vmatpush.bf16.msra.mxu0 %v4573
        %4629 = vmatpush.bf16.msra.mxu0 %v4571
        %4630 = vmatpush.bf16.msra.mxu0 %v4569
        %4631 = vmatpush.bf16.msra.mxu0 %v4567
        %4632 = vmatpush.bf16.msra.mxu0 %v4565
        %4633 = vmatmul.bf16.gmra.mxu0 %v4488
        %v4634 = vpop.f32.mrf.mxu0
        %v4635 = vadd.f32 %v4513, %v4634
        %v4636 = vpop.f32.mrf.mxu0
        %v4637 = vadd.f32 %v4513, %v4636
        %4638 = vmatmul.bf16.gmra.mxu0 %v4489
        %v4639 = vpop.f32.mrf.mxu0
        %v4640 = vadd.f32 %v4513, %v4639
        %v4641 = vpop.f32.mrf.mxu0
        %v4642 = vadd.f32 %v4513, %v4641
        %4643 = vmatmul.bf16.gmra.mxu0 %v4490
        %v4644 = vpop.f32.mrf.mxu0
        %v4645 = vadd.f32 %v4513, %v4644
        %v4646 = vpop.f32.mrf.mxu0
        %v4647 = vadd.f32 %v4513, %v4646
        %4648 = vmatmul.bf16.gmra.mxu0 %v4491
        %v4649 = vpop.f32.mrf.mxu0
        %v4650 = vadd.f32 %v4513, %v4649
        %v4651 = vpop.f32.mrf.mxu0
        %v4652 = vadd.f32 %v4513, %v4651
        %4653 = vdwg.mxu0
        %v4654 = vxor.u32 %v4635, 2147483648
        %v4655 = vxor.u32 %v4637, 2147483648
        %v4656 = vxor.u32 %v4640, 2147483648
        %v4657 = vxor.u32 %v4642, 2147483648
        %v4658 = vxor.u32 %v4645, 2147483648
        %v4659 = vxor.u32 %v4647, 2147483648
        %v4660 = vxor.u32 %v4650, 2147483648
        %v4661 = vxor.u32 %v4652, 2147483648
        %v4662 = vmul.f32 %v4654, 1.442695
        %v4663 = vpow.pop %v4662
        %v4664 = vmul.f32 %v4655, 1.442695
        %v4665 = vpow.pop %v4664
        %v4666 = vmul.f32 %v4656, 1.442695
        %v4667 = vpow.pop %v4666
        %v4668 = vmul.f32 %v4657, 1.442695
        %v4669 = vpow.pop %v4668
        %v4670 = vmul.f32 %v4658, 1.442695
        %v4671 = vpow.pop %v4670
        %v4672 = vmul.f32 %v4659, 1.442695
        %v4673 = vpow.pop %v4672
        %v4674 = vmul.f32 %v4660, 1.442695
        %v4675 = vpow.pop %v4674
        %v4676 = vmul.f32 %v4661, 1.442695
        %v4677 = vpow.pop %v4676
        %v4678 = vadd.f32 %v4663, 1.0
        %v4679 = vadd.f32 %v4665, 1.0
        %v4680 = vadd.f32 %v4667, 1.0
        %v4681 = vadd.f32 %v4669, 1.0
        %v4682 = vadd.f32 %v4671, 1.0
        %v4683 = vadd.f32 %v4673, 1.0
        %v4684 = vadd.f32 %v4675, 1.0
        %v4685 = vadd.f32 %v4677, 1.0
        %v4686 = vrcp.pop %v4678
        %v4687 = vmul.f32 %v4678, %v4686
        %v4688 = vsub.f32 1.0, %v4687
        %v4689 = vmul.f32 %v4686, %v4688
        %v4690 = vadd.f32 %v4686, %v4689
        %vm4691 = vweird.f32 %v4678
        %vm4692 = vweird.f32 %v4686
        %vm4693 = vmor %vm4691, %vm4692
        %v4694 = vsel %vm4693, %v4686, %v4690
        %v4695 = vand.u32 2147483647, %v4678
        %vm4696 = vcmp.eq.f32.partialorder %v4695, 8.507059e+37
        %v4697 = vand.u32 %v4678, 2147483648
        %v4698 = vor.u32 1.1754944e-38, %v4697
        %v4699 = vsel %vm4696, %v4698, %v4694
        %v4700 = vmul.f32 1.0, %v4699
        %v4701 = vrcp.pop %v4679
        %v4702 = vmul.f32 %v4679, %v4701
        %v4703 = vsub.f32 1.0, %v4702
        %v4704 = vmul.f32 %v4701, %v4703
        %v4705 = vadd.f32 %v4701, %v4704
        %vm4706 = vweird.f32 %v4679
        %vm4707 = vweird.f32 %v4701
        %vm4708 = vmor %vm4706, %vm4707
        %v4709 = vsel %vm4708, %v4701, %v4705
        %v4710 = vand.u32 2147483647, %v4679
        %vm4711 = vcmp.eq.f32.partialorder %v4710, 8.507059e+37
        %v4712 = vand.u32 %v4679, 2147483648
        %v4713 = vor.u32 1.1754944e-38, %v4712
        %v4714 = vsel %vm4711, %v4713, %v4709
        %v4715 = vmul.f32 1.0, %v4714
        %v4716 = vrcp.pop %v4680
        %v4717 = vmul.f32 %v4680, %v4716
        %v4718 = vsub.f32 1.0, %v4717
        %v4719 = vmul.f32 %v4716, %v4718
        %v4720 = vadd.f32 %v4716, %v4719
        %vm4721 = vweird.f32 %v4680
        %vm4722 = vweird.f32 %v4716
        %vm4723 = vmor %vm4721, %vm4722
        %v4724 = vsel %vm4723, %v4716, %v4720
        %v4725 = vand.u32 2147483647, %v4680
        %vm4726 = vcmp.eq.f32.partialorder %v4725, 8.507059e+37
        %v4727 = vand.u32 %v4680, 2147483648
        %v4728 = vor.u32 1.1754944e-38, %v4727
        %v4729 = vsel %vm4726, %v4728, %v4724
        %v4730 = vmul.f32 1.0, %v4729
        %v4731 = vrcp.pop %v4681
        %v4732 = vmul.f32 %v4681, %v4731
        %v4733 = vsub.f32 1.0, %v4732
        %v4734 = vmul.f32 %v4731, %v4733
        %v4735 = vadd.f32 %v4731, %v4734
        %vm4736 = vweird.f32 %v4681
        %vm4737 = vweird.f32 %v4731
        %vm4738 = vmor %vm4736, %vm4737
        %v4739 = vsel %vm4738, %v4731, %v4735
        %v4740 = vand.u32 2147483647, %v4681
        %vm4741 = vcmp.eq.f32.partialorder %v4740, 8.507059e+37
        %v4742 = vand.u32 %v4681, 2147483648
        %v4743 = vor.u32 1.1754944e-38, %v4742
        %v4744 = vsel %vm4741, %v4743, %v4739
        %v4745 = vmul.f32 1.0, %v4744
        %v4746 = vrcp.pop %v4682
        %v4747 = vmul.f32 %v4682, %v4746
        %v4748 = vsub.f32 1.0, %v4747
        %v4749 = vmul.f32 %v4746, %v4748
        %v4750 = vadd.f32 %v4746, %v4749
        %vm4751 = vweird.f32 %v4682
        %vm4752 = vweird.f32 %v4746
        %vm4753 = vmor %vm4751, %vm4752
        %v4754 = vsel %vm4753, %v4746, %v4750
        %v4755 = vand.u32 2147483647, %v4682
        %vm4756 = vcmp.eq.f32.partialorder %v4755, 8.507059e+37
        %v4757 = vand.u32 %v4682, 2147483648
        %v4758 = vor.u32 1.1754944e-38, %v4757
        %v4759 = vsel %vm4756, %v4758, %v4754
        %v4760 = vmul.f32 1.0, %v4759
        %v4761 = vrcp.pop %v4683
        %v4762 = vmul.f32 %v4683, %v4761
        %v4763 = vsub.f32 1.0, %v4762
        %v4764 = vmul.f32 %v4761, %v4763
        %v4765 = vadd.f32 %v4761, %v4764
        %vm4766 = vweird.f32 %v4683
        %vm4767 = vweird.f32 %v4761
        %vm4768 = vmor %vm4766, %vm4767
        %v4769 = vsel %vm4768, %v4761, %v4765
        %v4770 = vand.u32 2147483647, %v4683
        %vm4771 = vcmp.eq.f32.partialorder %v4770, 8.507059e+37
        %v4772 = vand.u32 %v4683, 2147483648
        %v4773 = vor.u32 1.1754944e-38, %v4772
        %v4774 = vsel %vm4771, %v4773, %v4769
        %v4775 = vmul.f32 1.0, %v4774
        %v4776 = vrcp.pop %v4684
        %v4777 = vmul.f32 %v4684, %v4776
        %v4778 = vsub.f32 1.0, %v4777
        %v4779 = vmul.f32 %v4776, %v4778
        %v4780 = vadd.f32 %v4776, %v4779
        %vm4781 = vweird.f32 %v4684
        %vm4782 = vweird.f32 %v4776
        %vm4783 = vmor %vm4781, %vm4782
        %v4784 = vsel %vm4783, %v4776, %v4780
        %v4785 = vand.u32 2147483647, %v4684
        %vm4786 = vcmp.eq.f32.partialorder %v4785, 8.507059e+37
        %v4787 = vand.u32 %v4684, 2147483648
        %v4788 = vor.u32 1.1754944e-38, %v4787
        %v4789 = vsel %vm4786, %v4788, %v4784
        %v4790 = vmul.f32 1.0, %v4789
        %v4791 = vrcp.pop %v4685
        %v4792 = vmul.f32 %v4685, %v4791
        %v4793 = vsub.f32 1.0, %v4792
        %v4794 = vmul.f32 %v4791, %v4793
        %v4795 = vadd.f32 %v4791, %v4794
        %vm4796 = vweird.f32 %v4685
        %vm4797 = vweird.f32 %v4791
        %vm4798 = vmor %vm4796, %vm4797
        %v4799 = vsel %vm4798, %v4791, %v4795
        %v4800 = vand.u32 2147483647, %v4685
        %vm4801 = vcmp.eq.f32.partialorder %v4800, 8.507059e+37
        %v4802 = vand.u32 %v4685, 2147483648
        %v4803 = vor.u32 1.1754944e-38, %v4802
        %v4804 = vsel %vm4801, %v4803, %v4799
        %v4805 = vmul.f32 1.0, %v4804
        %v4806 = vmul.f32 %v4606, %v4700
        %v4807 = vmul.f32 %v4608, %v4715
        %v4808 = vmul.f32 %v4611, %v4730
        %v4809 = vmul.f32 %v4613, %v4745
        %v4810 = vmul.f32 %v4616, %v4760
        %v4811 = vmul.f32 %v4618, %v4775
        %v4812 = vmul.f32 %v4621, %v4790
        %v4813 = vmul.f32 %v4623, %v4805
        %v4814 = vadd.f32 %v4806, %v3874
        %v4815 = vadd.f32 %v4807, %v3875
        %v4816 = vadd.f32 %v4808, %v3876
        %v4817 = vadd.f32 %v4809, %v3877
        %v4818 = vadd.f32 %v4810, %v3878
        %v4819 = vadd.f32 %v4811, %v3879
        %v4820 = vadd.f32 %v4812, %v3880
        %v4821 = vadd.f32 %v4813, %v3881
        %4822 = vadd.xlane.f32.xlu0 %v4814
        %v4823 = vpop.xlane.xlu0 %4822
        %4824 = vadd.xlane.f32.xlu0 %v4815
        %v4825 = vpop.xlane.xlu0 %4824
        %4826 = vadd.xlane.f32.xlu0 %v4816
        %v4827 = vpop.xlane.xlu0 %4826
        %4828 = vadd.xlane.f32.xlu0 %v4817
        %v4829 = vpop.xlane.xlu0 %4828
        %4830 = vadd.xlane.f32.xlu0 %v4818
        %v4831 = vpop.xlane.xlu0 %4830
        %4832 = vadd.xlane.f32.xlu0 %v4819
        %v4833 = vpop.xlane.xlu0 %4832
        %4834 = vadd.xlane.f32.xlu0 %v4820
        %v4835 = vpop.xlane.xlu0 %4834
        %4836 = vadd.xlane.f32.xlu0 %v4821
        %v4837 = vpop.xlane.xlu0 %4836
        %v4838 = vmul.f32 %v4823, %v1461
        %v4839 = vmul.f32 %v4825, %v1461
        %v4840 = vmul.f32 %v4827, %v1461
        %v4841 = vmul.f32 %v4829, %v1461
        %v4842 = vmul.f32 %v4831, %v1461
        %v4843 = vmul.f32 %v4833, %v1461
        %v4844 = vmul.f32 %v4835, %v1461
        %v4845 = vmul.f32 %v4837, %v1461
        %v4846 = vsub.f32 %v4814, %v4838
        %v4847 = vsub.f32 %v4815, %v4839
        %v4848 = vsub.f32 %v4816, %v4840
        %v4849 = vsub.f32 %v4817, %v4841
        %v4850 = vsub.f32 %v4818, %v4842
        %v4851 = vsub.f32 %v4819, %v4843
        %v4852 = vsub.f32 %v4820, %v4844
        %v4853 = vsub.f32 %v4821, %v4845
        %v4854 = vmul.f32 %v4846, %v4846
        %v4855 = vmul.f32 %v4847, %v4847
        %v4856 = vmul.f32 %v4848, %v4848
        %v4857 = vmul.f32 %v4849, %v4849
        %v4858 = vmul.f32 %v4850, %v4850
        %v4859 = vmul.f32 %v4851, %v4851
        %v4860 = vmul.f32 %v4852, %v4852
        %v4861 = vmul.f32 %v4853, %v4853
        %4862 = vadd.xlane.f32.xlu0 %v4854
        %v4863 = vpop.xlane.xlu0 %4862
        %4864 = vadd.xlane.f32.xlu0 %v4855
        %v4865 = vpop.xlane.xlu0 %4864
        %4866 = vadd.xlane.f32.xlu0 %v4856
        %v4867 = vpop.xlane.xlu0 %4866
        %4868 = vadd.xlane.f32.xlu0 %v4857
        %v4869 = vpop.xlane.xlu0 %4868
        %4870 = vadd.xlane.f32.xlu0 %v4858
        %v4871 = vpop.xlane.xlu0 %4870
        %4872 = vadd.xlane.f32.xlu0 %v4859
        %v4873 = vpop.xlane.xlu0 %4872
        %4874 = vadd.xlane.f32.xlu0 %v4860
        %v4875 = vpop.xlane.xlu0 %4874
        %4876 = vadd.xlane.f32.xlu0 %v4861
        %v4877 = vpop.xlane.xlu0 %4876
        %v4878 = vmul.f32 %v4863, %v1461
        %v4879 = vmul.f32 %v4865, %v1461
        %v4880 = vmul.f32 %v4867, %v1461
        %v4881 = vmul.f32 %v4869, %v1461
        %v4882 = vmul.f32 %v4871, %v1461
        %v4883 = vmul.f32 %v4873, %v1461
        %v4884 = vmul.f32 %v4875, %v1461
        %v4885 = vmul.f32 %v4877, %v1461
        %v4886 = vadd.f32 %v4878, 1e-05
        %v4887 = vadd.f32 %v4879, 1e-05
        %v4888 = vadd.f32 %v4880, 1e-05
        %v4889 = vadd.f32 %v4881, 1e-05
        %v4890 = vadd.f32 %v4882, 1e-05
        %v4891 = vadd.f32 %v4883, 1e-05
        %v4892 = vadd.f32 %v4884, 1e-05
        %v4893 = vadd.f32 %v4885, 1e-05
        %v4894 = vrsqrt.pop %v4886
        %v4895 = vmul.f32 %v4894, %v4886
        %v4896 = vmul.f32 %v4895, %v4894
        %v4897 = vmul.f32 0.5, %v4896
        %v4898 = vsub.f32 1.5, %v4897
        %v4899 = vmul.f32 %v4894, %v4898
        %vm4900 = vweird.f32 %v4886
        %vm4901 = vweird.f32 %v4894
        %vm4902 = vmor %vm4900, %vm4901
        %v4903 = vsel %vm4902, %v4894, %v4899
        %v4904 = vrsqrt.pop %v4887
        %v4905 = vmul.f32 %v4904, %v4887
        %v4906 = vmul.f32 %v4905, %v4904
        %v4907 = vmul.f32 0.5, %v4906
        %v4908 = vsub.f32 1.5, %v4907
        %v4909 = vmul.f32 %v4904, %v4908
        %vm4910 = vweird.f32 %v4887
        %vm4911 = vweird.f32 %v4904
        %vm4912 = vmor %vm4910, %vm4911
        %v4913 = vsel %vm4912, %v4904, %v4909
        %v4914 = vrsqrt.pop %v4888
        %v4915 = vmul.f32 %v4914, %v4888
        %v4916 = vmul.f32 %v4915, %v4914
        %v4917 = vmul.f32 0.5, %v4916
        %v4918 = vsub.f32 1.5, %v4917
        %v4919 = vmul.f32 %v4914, %v4918
        %vm4920 = vweird.f32 %v4888
        %vm4921 = vweird.f32 %v4914
        %vm4922 = vmor %vm4920, %vm4921
        %v4923 = vsel %vm4922, %v4914, %v4919
        %v4924 = vrsqrt.pop %v4889
        %v4925 = vmul.f32 %v4924, %v4889
        %v4926 = vmul.f32 %v4925, %v4924
        %v4927 = vmul.f32 0.5, %v4926
        %v4928 = vsub.f32 1.5, %v4927
        %v4929 = vmul.f32 %v4924, %v4928
        %vm4930 = vweird.f32 %v4889
        %vm4931 = vweird.f32 %v4924
        %vm4932 = vmor %vm4930, %vm4931
        %v4933 = vsel %vm4932, %v4924, %v4929
        %v4934 = vrsqrt.pop %v4890
        %v4935 = vmul.f32 %v4934, %v4890
        %v4936 = vmul.f32 %v4935, %v4934
        %v4937 = vmul.f32 0.5, %v4936
        %v4938 = vsub.f32 1.5, %v4937
        %v4939 = vmul.f32 %v4934, %v4938
        %vm4940 = vweird.f32 %v4890
        %vm4941 = vweird.f32 %v4934
        %vm4942 = vmor %vm4940, %vm4941
        %v4943 = vsel %vm4942, %v4934, %v4939
        %v4944 = vrsqrt.pop %v4891
        %v4945 = vmul.f32 %v4944, %v4891
        %v4946 = vmul.f32 %v4945, %v4944
        %v4947 = vmul.f32 0.5, %v4946
        %v4948 = vsub.f32 1.5, %v4947
        %v4949 = vmul.f32 %v4944, %v4948
        %vm4950 = vweird.f32 %v4891
        %vm4951 = vweird.f32 %v4944
        %vm4952 = vmor %vm4950, %vm4951
        %v4953 = vsel %vm4952, %v4944, %v4949
        %v4954 = vrsqrt.pop %v4892
        %v4955 = vmul.f32 %v4954, %v4892
        %v4956 = vmul.f32 %v4955, %v4954
        %v4957 = vmul.f32 0.5, %v4956
        %v4958 = vsub.f32 1.5, %v4957
        %v4959 = vmul.f32 %v4954, %v4958
        %vm4960 = vweird.f32 %v4892
        %vm4961 = vweird.f32 %v4954
        %vm4962 = vmor %vm4960, %vm4961
        %v4963 = vsel %vm4962, %v4954, %v4959
        %v4964 = vrsqrt.pop %v4893
        %v4965 = vmul.f32 %v4964, %v4893
        %v4966 = vmul.f32 %v4965, %v4964
        %v4967 = vmul.f32 0.5, %v4966
        %v4968 = vsub.f32 1.5, %v4967
        %v4969 = vmul.f32 %v4964, %v4968
        %vm4970 = vweird.f32 %v4893
        %vm4971 = vweird.f32 %v4964
        %vm4972 = vmor %vm4970, %vm4971
        %v4973 = vsel %vm4972, %v4964, %v4969
        %v4974 = vmul.f32 %v4846, %v4903
        %v4975 = vmul.f32 %v4847, %v4913
        %v4976 = vmul.f32 %v4848, %v4923
        %v4977 = vmul.f32 %v4849, %v4933
        %v4978 = vmul.f32 %v4850, %v4943
        %v4979 = vmul.f32 %v4851, %v4953
        %v4980 = vmul.f32 %v4852, %v4963
        %v4981 = vmul.f32 %v4853, %v4973
        %s4982 = scalar_lea.vmem %s5, 3
        %v4983 = vld [vmem:[%s4982] sm:$0x1]
        %v4985 = vperm.slane %v4983, 0
        %v4987 = vmul.f32 %v4974, %v4985
        %v4988 = vmul.f32 %v4975, %v4985
        %v4989 = vmul.f32 %v4976, %v4985
        %v4990 = vmul.f32 %v4977, %v4985
        %v4991 = vmul.f32 %v4978, %v4985
        %v4992 = vmul.f32 %v4979, %v4985
        %v4993 = vmul.f32 %v4980, %v4985
        %v4994 = vmul.f32 %v4981, %v4985
        %s4995 = scalar_lea.vmem [#allocation11], 3
        %v4996 = vld [vmem:[%s4995] sm:$0x1]
        %v4998 = vperm.slane %v4996, 0
        %v5000 = vadd.f32 %v4987, %v4998
        %v5001 = vadd.f32 %v4988, %v4998
        %v5002 = vadd.f32 %v4989, %v4998
        %v5003 = vadd.f32 %v4990, %v4998
        %v5004 = vadd.f32 %v4991, %v4998
        %v5005 = vadd.f32 %v4992, %v4998
        %v5006 = vadd.f32 %v4993, %v4998
        %v5007 = vadd.f32 %v4994, %v4998
        %v5008 = vpack.c.bf16 %v5001, %v5000
        %v5009 = vpack.c.bf16 %v5003, %v5002
        %v5010 = vpack.c.bf16 %v5005, %v5004
        %v5011 = vpack.c.bf16 %v5007, %v5006
        %v5012 = vld [vmem:[#allocation13] sm:$0xf]
        %v5013 = vld [vmem:[#allocation13 + $0x4] sm:$0xf]
        %v5014 = vld [vmem:[#allocation13 + $0x8] sm:$0xf]
        %v5015 = vld [vmem:[#allocation13 + $0xc] sm:$0xf]
        %v5016 = vld [vmem:[#allocation13 + $0x10] sm:$0xf]
        %v5017 = vld [vmem:[#allocation13 + $0x14] sm:$0xf]
        %v5018 = vld [vmem:[#allocation13 + $0x18] sm:$0xf]
        %v5019 = vld [vmem:[#allocation13 + $0x1c] sm:$0xf]
        %v5020 = vld [vmem:[#allocation13 + $0x20] sm:$0xf]
        %v5021 = vld [vmem:[#allocation13 + $0x24] sm:$0xf]
        %v5022 = vld [vmem:[#allocation13 + $0x28] sm:$0xf]
        %v5023 = vld [vmem:[#allocation13 + $0x2c] sm:$0xf]
        %v5024 = vld [vmem:[#allocation13 + $0x30] sm:$0xf]
        %v5025 = vld [vmem:[#allocation13 + $0x34] sm:$0xf]
        %v5026 = vld [vmem:[#allocation13 + $0x38] sm:$0xf]
        %v5027 = vld [vmem:[#allocation13 + $0x3c] sm:$0xf]
        %v5028 = vld [vmem:[%s8] sm:$0x1]
        %v5030 = vperm.slane %v5028, 0
        %v5048 = vunpack.c.l.b16 %v5012
        %v5049 = vunpack.c.l.b16 %v5013
        %v5050 = vunpack.c.l.b16 %v5014
        %v5051 = vunpack.c.l.b16 %v5015
        %v5052 = vunpack.c.l.b16 %v5016
        %v5053 = vunpack.c.l.b16 %v5017
        %v5054 = vunpack.c.l.b16 %v5018
        %v5055 = vunpack.c.l.b16 %v5019
        %v5056 = vunpack.c.l.b16 %v5020
        %v5057 = vunpack.c.l.b16 %v5021
        %v5058 = vunpack.c.l.b16 %v5022
        %v5059 = vunpack.c.l.b16 %v5023
        %v5060 = vunpack.c.l.b16 %v5024
        %v5061 = vunpack.c.l.b16 %v5025
        %v5062 = vunpack.c.l.b16 %v5026
        %v5063 = vunpack.c.l.b16 %v5027
        %v5064 = vpack.c.b16 %v5049, %v5048
        %v5065 = vpack.c.b16 %v5051, %v5050
        %v5066 = vpack.c.b16 %v5053, %v5052
        %v5067 = vpack.c.b16 %v5055, %v5054
        %v5068 = vpack.c.b16 %v5057, %v5056
        %v5069 = vpack.c.b16 %v5059, %v5058
        %v5070 = vpack.c.b16 %v5061, %v5060
        %v5071 = vpack.c.b16 %v5063, %v5062
        %5080 = vmatpush.bf16.msra.mxu0 %v5071
        %5081 = vmatpush.bf16.msra.mxu0 %v5070
        %5082 = vmatpush.bf16.msra.mxu0 %v5069
        %5083 = vmatpush.bf16.msra.mxu0 %v5068
        %5084 = vmatpush.bf16.msra.mxu0 %v5067
        %5085 = vmatpush.bf16.msra.mxu0 %v5066
        %5086 = vmatpush.bf16.msra.mxu0 %v5065
        %5087 = vmatpush.bf16.msra.mxu0 %v5064
        %5088 = vmatmul.bf16.gmra.mxu0 %v5008
        %v5089 = vpop.f32.mrf.mxu0
        %v5090 = vadd.f32 %v5030, %v5089
        %v5091 = vpop.f32.mrf.mxu0
        %v5092 = vadd.f32 %v5030, %v5091
        %5093 = vmatmul.bf16.gmra.mxu0 %v5009
        %v5094 = vpop.f32.mrf.mxu0
        %v5095 = vadd.f32 %v5030, %v5094
        %v5096 = vpop.f32.mrf.mxu0
        %v5097 = vadd.f32 %v5030, %v5096
        %5098 = vmatmul.bf16.gmra.mxu0 %v5010
        %v5099 = vpop.f32.mrf.mxu0
        %v5100 = vadd.f32 %v5030, %v5099
        %v5101 = vpop.f32.mrf.mxu0
        %v5102 = vadd.f32 %v5030, %v5101
        %5103 = vmatmul.bf16.gmra.mxu0 %v5011
        %v5104 = vpop.f32.mrf.mxu0
        %v5105 = vadd.f32 %v5030, %v5104
        %v5106 = vpop.f32.mrf.mxu0
        %v5107 = vadd.f32 %v5030, %v5106
        %5108 = vdwg.mxu0
        %5109 = vst [vmem:[%s452] sm:$0xff] %v5090
        %5110 = vst [vmem:[%s452 + $0x8] sm:$0xff] %v5092
        %5111 = vst [vmem:[%s452 + $0x10] sm:$0xff] %v5095
        %5112 = vst [vmem:[%s452 + $0x18] sm:$0xff] %v5097
        %5113 = vst [vmem:[%s452 + $0x20] sm:$0xff] %v5100
        %5114 = vst [vmem:[%s452 + $0x28] sm:$0xff] %v5102
        %5115 = vst [vmem:[%s452 + $0x30] sm:$0xff] %v5105
        %5116 = vst [vmem:[%s452 + $0x38] sm:$0xff] %v5107
        %s5117 = sand.u32 %s231, 1
        %s5118 = scalar_lea.sflag [#allocation4], %s5117
        %s5119 = sand.u32 %s231, 1
        %s5120 = smul.addr %s5119, 64
        %s5121 = scalar_lea.vmem [#allocation14], %s5120
        // Predicated region
        $region85: #{tpu_custom_call.1} parent=55 // pred_check
          %p5122 = pneg %p241
        $region86: #{tpu_custom_call.1} parent=55 // pred_check_branch
          %5124 = sbr.rel (%p5122) target = $region88
        $region87: #{tpu_custom_call.1} parent=55 // pred_region
          %s5125 = smul.u32 4, %s29
          %5127 = vsyncadd %s5118, 0
          %s5128 = smul.addr %s5125, 2
          %s5129 = smul.addr %s5128, 8
          %s5130 = scalar_lea.hbm %s9, %s5129
          %s5131 = sshll.u32 %s5121, 4
          %s5132 = int_to_ptr.vmem [resolvable:$true] %s5131
          %s5133 = sshll.u32 %s5130, 4
          %s5134 = int_to_ptr.hbm [resolvable:$true] %s5133
          %5139 = dma.vmem_to_hbm [thread:$0]  %s5132, 1024, %s5134, %s5118, 128, 128, 8
        $region88: #{tpu_custom_call.1} parent=55 // pred_fallthru
          _
      $region56: #{tpu_custom_call.1} parent=5 // pred_fallthru
        _
      %p5140 = scmp.le.s32.totalorder 2, %s24
      // Predicated region
      $region89: #{tpu_custom_call.1} parent=5 // pred_check
        %p5141 = pneg %p5140
      $region90: #{tpu_custom_call.1} parent=5 // pred_check_branch
        %5143 = sbr.rel (%p5141) target = $region92
      $region91: #{tpu_custom_call.1} parent=5 // pred_region
        %s5144 = ssub.s32 %s24, 2
        // Predicated region
        $region93: #{tpu_custom_call.1} parent=91 // pred_check
          %p5145 = pneg %p247
        $region94: #{tpu_custom_call.1} parent=91 // pred_check_branch
          %5147 = sbr.rel (%p5145) target = $region96
        $region95: #{tpu_custom_call.1} parent=91 // pred_region
          %s5148 = sand.u32 %s232, 1
          %s5149 = scalar_lea.sflag [#allocation4], %s5148
          %s5150 = sand.u32 %s232, 1
          %s5151 = smul.addr %s5150, 64
          %s5152 = scalar_lea.vmem [#allocation14], %s5151
          %5154 = dma.done %s5149, 1024
        $region96: #{tpu_custom_call.1} parent=91 // pred_fallthru
          _
      $region92: #{tpu_custom_call.1} parent=5 // pred_fallthru
        _
    $region6: #{tpu_custom_call.1} parent=1 // loop_footer
      %s28 = sadd.s32 1, %s24
    $region7: #{tpu_custom_call.1} parent=1 // loop_footer_branch
      %23 = sbr.rel target = $region3
    $region8: #{tpu_custom_call.1} parent=1 // loop_exit
      _
    %5155 = vsyncpa [#allocation3], 1
    %s5156 = scalar_lea.sflag [#allocation3], 1
    %5157 = vsyncpa %s5156, 1
    %5158 = vsyncpa [#allocation6], 1
    %5159 = vsyncpa [#allocation9], 1
    %5160 = vsyncpa [#allocation12], 1
    %5161 = vsyncpa [#allocation4], 1
    %s5162 = scalar_lea.sflag [#allocation4], 1
    %5163 = vsyncpa %s5162, 1

</llo_original>
